<compile_context>
chip_gen: v7x
topology: tpu7x:2x2x1
jax: 0.10.0
libtpu: 0.0.40
codegen_flags: <defaults>
</compile_context>

<pallas_src>
import jax
import jax.numpy as jnp
from jax.experimental import pallas as pl
from jax.experimental.pallas import tpu as pltpu


_MAX_TILE = 1024   # rows; keeps VMEM use small on every generation (incl. v7x)


def _round_up(n, m):
    return ((n + m - 1) // m) * m


def _num_tensorcores():
    """Best-effort TensorCores-per-device count (megacore awareness).

    v7x (and v4-class megacore chips) expose 2 TensorCores per device; v5e/v6e
    expose 1. Detection failure only affects tiling choice, never correctness.
    """
    try:
        kind = str(getattr(jax.devices()[0], "device_kind", "")).lower()
        if "v7" in kind or "v4" in kind or "v5p" in kind:
            return 2
    except Exception:
        pass
    return 1


def _choose_tiling(batch, n_cores, max_tile=_MAX_TILE):
    """Pick (tile_rows, padded_batch, n_tiles).

    * single core: fewest grid steps (one tile up to `max_tile` rows),
    * megacore:   a multiple-of-n_cores tile count >= n_cores (load balanced).
    Tile rows are always a multiple of 8 (sublane alignment).
    """
    b8 = _round_up(max(batch, 1), 8)
    n_tiles = max(n_cores, pl.cdiv(b8, max_tile))
    if n_cores > 1:
        n_tiles = _round_up(n_tiles, n_cores)
    tb = _round_up(pl.cdiv(b8, n_tiles), 8)
    b_pad = n_tiles * tb
    return tb, b_pad, n_tiles


def ae_kernel(x_ref, w1_ref, w2_ref, w3_ref, w4_ref, b123_ref, b4_ref,
              nvalid_ref, part_ref):
    """One batch tile of the AE forward + masked partial sum-of-squared-errors.

    x_ref:      (TB, 784) bf16 input pixels (bf16 halves the dominant DMA)
    w*_ref:     bf16 weights, (in, out), constant-index (VMEM-resident)
    b123_ref:   (3, 128)  f32  packed biases of the three 128-wide layers
    b4_ref:     (1, 784)  f32
    nvalid_ref: (1,)      i32  true (unpadded) batch size, in SMEM
    part_ref:   (8, 784)  f32  lane-dense per-tile partial SSE (8-row slab sums)
    """
    x = x_ref[...]                                          # bf16 [TB, 784]
    tb = x.shape[0]

    # encoder_hidden_layer + relu (MXU bf16 inputs, f32 accumulation)
    h = jnp.dot(x, w1_ref[...], preferred_element_type=jnp.float32)
    h = jnp.maximum(h + b123_ref[0:1, :], 0.0)              # f32 [TB, 128]

    # encoder_output_layer + relu
    c = jnp.dot(h.astype(jnp.bfloat16), w2_ref[...],
                preferred_element_type=jnp.float32)
    c = jnp.maximum(c + b123_ref[1:2, :], 0.0)              # f32 [TB, 128]

    # decoder_hidden_layer + relu
    d = jnp.dot(c.astype(jnp.bfloat16), w3_ref[...],
                preferred_element_type=jnp.float32)
    d = jnp.maximum(d + b123_ref[2:3, :], 0.0)              # f32 [TB, 128]

    # decoder_output_layer + relu
    rec = jnp.dot(d.astype(jnp.bfloat16), w4_ref[...],
                  preferred_element_type=jnp.float32)
    rec = jnp.maximum(rec + b4_ref[...], 0.0)               # f32 [TB, 784]

    # Masked squared error: padded rows (global row >= n_valid) contribute 0.
    row = (jax.lax.broadcasted_iota(jnp.int32, (tb, 1), 0)
           + pl.program_id(0) * tb)
    valid = (row < nvalid_ref[0]).astype(jnp.float32)       # [TB, 1]
    diff = (x.astype(jnp.float32) - rec) * valid
    sq = diff * diff                                        # f32 [TB, 784]

    # 8-row slab partial sums: every output sublane carries real data, the
    # store is unmasked and lane-dense, and the reduction is pure per-vreg VPU
    # adds (static, 8-aligned slices -> no relayout, no XLU column reduce).
    part = sq[0:8, :]
    for r in range(1, tb // 8):
        part = part + sq[r * 8:(r + 1) * 8, :]
    part_ref[...] = part


def ae_forward(features, params):
    """AE forward pass; returns (reconst_error, {'reconstruction_error': err})."""
    w1, b1, w2, b2, w3, b3, w4, b4 = params
    batch, feat = features.shape

    tb, b_pad, n_tiles = _choose_tiling(batch, _num_tensorcores())

    # bf16 features: halves the dominant input DMA. The diff/SSE math and the
    # final mean stay f32 inside the kernel / wrapper.
    x = features.astype(jnp.bfloat16)
    if b_pad != batch:
        x = jnp.pad(x, ((0, b_pad - batch), (0, 0)))

    # bf16 weights: halves weight HBM traffic and doubles MXU issue rate.
    # Biases, accumulation (preferred_element_type) and the loss stay f32.
    w1b, w2b, w3b, w4b = (w.astype(jnp.bfloat16) for w in (w1, w2, w3, w4))
    b123 = jnp.concatenate([b1, b2, b3], axis=0)            # (3, 128): one DMA
    n_valid = jnp.asarray([batch], dtype=jnp.int32)

    const = lambda i: (0, 0)                                # weights stay resident
    partials = pl.pallas_call(
        ae_kernel,
        out_shape=jax.ShapeDtypeStruct((n_tiles * 8, feat), jnp.float32),
        grid=(n_tiles,),
        in_specs=[
            pl.BlockSpec((tb, feat), lambda i: (i, 0)),     # x batch tile (bf16)
            pl.BlockSpec((feat, 128), const),               # w1
            pl.BlockSpec((128, 128), const),                # w2
            pl.BlockSpec((128, 128), const),                # w3
            pl.BlockSpec((128, feat), const),               # w4
            pl.BlockSpec((3, 128), const),                  # packed b1..b3
            pl.BlockSpec((1, feat), const),                 # b4
            pl.BlockSpec(memory_space=pltpu.MemorySpace.SMEM),  # n_valid scalar
        ],
        out_specs=pl.BlockSpec((8, feat), lambda i: (i, 0)),
        compiler_params=pltpu.CompilerParams(
            dimension_semantics=("parallel",)),             # megacore sharding
    )(x, w1b, w2b, w3b, w4b, b123, b4, n_valid)

    err = jnp.sum(partials) / jnp.float32(batch * feat)     # MSE 'mean' reduction
    return err, {'reconstruction_error': err}


def ae_reference(features, params):
    """Pure-JAX reference mirroring the kernel numerics (bf16 in, f32 acc/loss)."""
    w1, b1, w2, b2, w3, b3, w4, b4 = params
    xb = features.astype(jnp.bfloat16)

    def lin_relu(a, w, b):
        y = jnp.dot(a.astype(jnp.bfloat16), w.astype(jnp.bfloat16),
                    preferred_element_type=jnp.float32) + b
        return jnp.maximum(y, 0.0)

    rec = lin_relu(lin_relu(lin_relu(lin_relu(xb, w1, b1), w2, b2), w3, b3),
                   w4, b4)
    diff = xb.astype(jnp.float32) - rec
    return jnp.mean(diff * diff)


def ae_reference_f32(features, params):
    """Full-precision reference (matches the PyTorch module's f32 numerics)."""
    w1, b1, w2, b2, w3, b3, w4, b4 = params

    def lin_relu(a, w, b):
        return jnp.maximum(jnp.dot(a, w) + b, 0.0)

    rec = lin_relu(lin_relu(lin_relu(lin_relu(features, w1, b1), w2, b2),
                            w3, b3), w4, b4)
    diff = features - rec
    return jnp.mean(diff * diff)


def init_params(key):
    """Deterministic init mirroring nn.Linear shapes.

    PyTorch Linear(in, out) stores weight (out, in); we keep the transpose
    (in, out) so the kernel computes x @ W + b."""
    dims = [(784, 128), (128, 128), (128, 128), (128, 784)]
    params = []
    for fan_in, fan_out in dims:
        kw, kb, key = jax.random.split(key, 3)
        bound = 1.0 / jnp.sqrt(jnp.float32(fan_in))
        w = jax.random.uniform(kw, (fan_in, fan_out), jnp.float32, -bound, bound)
        b = jax.random.uniform(kb, (1, fan_out), jnp.float32, -bound, bound)
        params += [w, b]
    return params


if __name__ == "__main__":
    key = jax.random.PRNGKey(0)
    k_x, k_p = jax.random.split(key)

    # Batch of 500 exercises the batch grid / padding / loss masking. On a
    # 2-TensorCore chip this becomes two 256-row tiles (both cores busy); on
    # v5e/v6e it becomes one 504-row tile (no per-step overhead to amortize).
    B = 500
    features = jax.random.uniform(k_x, (B, 784), jnp.float32)  # MNIST-like pixels
    params = init_params(k_p)

    fwd = jax.jit(ae_forward)
    err, aux = fwd(features, params)
    jax.block_until_ready(err)
    jax.block_until_ready(aux['reconstruction_error'])

    # sanity: finite scalar loss matching the bf16-mirrored JAX reference ...
    assert err.shape == ()
    assert bool(jnp.isfinite(err))
    ref = ae_reference(features, params)
    rel = abs(float(err) - float(ref)) / max(abs(float(ref)), 1e-6)
    assert rel < 2e-3, (float(err), float(ref), rel)
    # ... and staying close to the full-f32 (PyTorch-equivalent) MSE.
    ref32 = ae_reference_f32(features, params)
    rel32 = abs(float(err) - float(ref32)) / max(abs(float(ref32)), 1e-6)
    assert rel32 < 5e-2, (float(err), float(ref32), rel32)

    # small-batch sanity: heavy padding + masking path.
    B2 = 12
    feats2 = jax.random.uniform(jax.random.PRNGKey(1), (B2, 784), jnp.float32)
    err2, _ = fwd(feats2, params)
    jax.block_until_ready(err2)
    ref2 = ae_reference(feats2, params)
    rel2 = abs(float(err2) - float(ref2)) / max(abs(float(ref2)), 1e-6)
    assert rel2 < 2e-3, (float(err2), float(ref2), rel2)

    print("KERNEL_OK")
</pallas_src>

<mosaic_0001>
module attributes {stable_mosaic.version = 11 : i64} {
  func.func @ae_kernel(%arg0: i32, %arg1: memref<504x784xbf16, #tpu.memory_space<vmem>>, %arg2: memref<784x128xbf16, #tpu.memory_space<vmem>>, %arg3: memref<128x128xbf16, #tpu.memory_space<vmem>>, %arg4: memref<128x128xbf16, #tpu.memory_space<vmem>>, %arg5: memref<128x784xbf16, #tpu.memory_space<vmem>>, %arg6: memref<3x128xf32, #tpu.memory_space<vmem>>, %arg7: memref<1x784xf32, #tpu.memory_space<vmem>>, %arg8: memref<1xi32, #tpu.memory_space<smem>>, %arg9: memref<8x784xf32, #tpu.memory_space<vmem>>) attributes {dimension_semantics = [#tpu.dimension_semantics<parallel>], iteration_bounds = array<i64: 1>, scalar_prefetch = 0 : i64, scratch_operands = 0 : i64, tpu.core_type = #tpu.core_type<tc>, window_params = [{transform_indices = @transform_0, window_bounds = array<i64: 504, 784>}, {pipeline_mode = #tpu.pipeline_mode<synchronous>, transform_indices = @transform_1, window_bounds = array<i64: 784, 128>}, {pipeline_mode = #tpu.pipeline_mode<synchronous>, transform_indices = @transform_2, window_bounds = array<i64: 128, 128>}, {pipeline_mode = #tpu.pipeline_mode<synchronous>, transform_indices = @transform_3, window_bounds = array<i64: 128, 128>}, {pipeline_mode = #tpu.pipeline_mode<synchronous>, transform_indices = @transform_4, window_bounds = array<i64: 128, 784>}, {pipeline_mode = #tpu.pipeline_mode<synchronous>, transform_indices = @transform_5, window_bounds = array<i64: 3, 128>}, {pipeline_mode = #tpu.pipeline_mode<synchronous>, transform_indices = @transform_6, window_bounds = array<i64: 1, 784>}, {transform_indices = @transform_7, window_bounds = array<i64: 1>}, {transform_indices = @transform_8, window_bounds = array<i64: 8, 784>}]} {
    %c0 = arith.constant 0 : index
    %c0_0 = arith.constant 0 : index
    %0 = vector.load %arg1[%c0, %c0_0] : memref<504x784xbf16, #tpu.memory_space<vmem>>, vector<504x784xbf16>
    %c0_1 = arith.constant 0 : index
    %c0_2 = arith.constant 0 : index
    %1 = vector.load %arg2[%c0_1, %c0_2] : memref<784x128xbf16, #tpu.memory_space<vmem>>, vector<784x128xbf16>
    %cst = arith.constant dense<0.000000e+00> : vector<504x128xf32>
    %2 = tpu.matmul %0, %1, %cst {dimension_numbers = #tpu.dot_dimension_numbers<[1], [0], [0], [1], [0, 0, 1, 1], [], []>} : vector<504x784xbf16>, vector<784x128xbf16>, vector<504x128xf32> -> vector<504x128xf32>
    %c0_3 = arith.constant 0 : index
    %c0_4 = arith.constant 0 : index
    %3 = vector.load %arg6[%c0_3, %c0_4] : memref<3x128xf32, #tpu.memory_space<vmem>>, vector<1x128xf32>
    %4 = vector.broadcast %3 : vector<1x128xf32> to vector<504x128xf32>
    %5 = arith.addf %2, %4 : vector<504x128xf32>
    %cst_5 = arith.constant 0.000000e+00 : f32
    %6 = vector.broadcast %cst_5 : f32 to vector<504x128xf32>
    %7 = arith.maximumf %5, %6 : vector<504x128xf32>
    %8 = arith.truncf %7 : vector<504x128xf32> to vector<504x128xbf16>
    %c0_6 = arith.constant 0 : index
    %c0_7 = arith.constant 0 : index
    %9 = vector.load %arg3[%c0_6, %c0_7] : memref<128x128xbf16, #tpu.memory_space<vmem>>, vector<128x128xbf16>
    %cst_8 = arith.constant dense<0.000000e+00> : vector<504x128xf32>
    %10 = tpu.matmul %8, %9, %cst_8 {dimension_numbers = #tpu.dot_dimension_numbers<[1], [0], [0], [1], [0, 0, 1, 1], [], []>} : vector<504x128xbf16>, vector<128x128xbf16>, vector<504x128xf32> -> vector<504x128xf32>
    %c1 = arith.constant 1 : index
    %c0_9 = arith.constant 0 : index
    %11 = vector.load %arg6[%c1, %c0_9] : memref<3x128xf32, #tpu.memory_space<vmem>>, vector<1x128xf32>
    %12 = vector.broadcast %11 : vector<1x128xf32> to vector<504x128xf32>
    %13 = arith.addf %10, %12 : vector<504x128xf32>
    %cst_10 = arith.constant 0.000000e+00 : f32
    %14 = vector.broadcast %cst_10 : f32 to vector<504x128xf32>
    %15 = arith.maximumf %13, %14 : vector<504x128xf32>
    %16 = arith.truncf %15 : vector<504x128xf32> to vector<504x128xbf16>
    %c0_11 = arith.constant 0 : index
    %c0_12 = arith.constant 0 : index
    %17 = vector.load %arg4[%c0_11, %c0_12] : memref<128x128xbf16, #tpu.memory_space<vmem>>, vector<128x128xbf16>
    %cst_13 = arith.constant dense<0.000000e+00> : vector<504x128xf32>
    %18 = tpu.matmul %16, %17, %cst_13 {dimension_numbers = #tpu.dot_dimension_numbers<[1], [0], [0], [1], [0, 0, 1, 1], [], []>} : vector<504x128xbf16>, vector<128x128xbf16>, vector<504x128xf32> -> vector<504x128xf32>
    %c2 = arith.constant 2 : index
    %c0_14 = arith.constant 0 : index
    %19 = vector.load %arg6[%c2, %c0_14] : memref<3x128xf32, #tpu.memory_space<vmem>>, vector<1x128xf32>
    %20 = vector.broadcast %19 : vector<1x128xf32> to vector<504x128xf32>
    %21 = arith.addf %18, %20 : vector<504x128xf32>
    %cst_15 = arith.constant 0.000000e+00 : f32
    %22 = vector.broadcast %cst_15 : f32 to vector<504x128xf32>
    %23 = arith.maximumf %21, %22 : vector<504x128xf32>
    %24 = arith.truncf %23 : vector<504x128xf32> to vector<504x128xbf16>
    %c0_16 = arith.constant 0 : index
    %c0_17 = arith.constant 0 : index
    %25 = vector.load %arg5[%c0_16, %c0_17] : memref<128x784xbf16, #tpu.memory_space<vmem>>, vector<128x784xbf16>
    %cst_18 = arith.constant dense<0.000000e+00> : vector<504x784xf32>
    %26 = tpu.matmul %24, %25, %cst_18 {dimension_numbers = #tpu.dot_dimension_numbers<[1], [0], [0], [1], [0, 0, 1, 1], [], []>} : vector<504x128xbf16>, vector<128x784xbf16>, vector<504x784xf32> -> vector<504x784xf32>
    %c0_19 = arith.constant 0 : index
    %c0_20 = arith.constant 0 : index
    %27 = vector.load %arg7[%c0_19, %c0_20] : memref<1x784xf32, #tpu.memory_space<vmem>>, vector<1x784xf32>
    %28 = vector.broadcast %27 : vector<1x784xf32> to vector<504x784xf32>
    %29 = arith.addf %26, %28 : vector<504x784xf32>
    %cst_21 = arith.constant 0.000000e+00 : f32
    %30 = vector.broadcast %cst_21 : f32 to vector<504x784xf32>
    %31 = arith.maximumf %29, %30 : vector<504x784xf32>
    %32 = tpu.iota {dimensions = array<i32: 0>} : vector<504x1xi32>
    %c504_i32 = arith.constant 504 : i32
    %33 = arith.muli %arg0, %c504_i32 : i32
    %34 = vector.broadcast %33 : i32 to vector<504x1xi32>
    %35 = arith.addi %32, %34 : vector<504x1xi32>
    %c0_22 = arith.constant 0 : index
    %36 = memref.load %arg8[%c0_22] : memref<1xi32, #tpu.memory_space<smem>>
    %37 = vector.broadcast %36 : i32 to vector<504x1xi32>
    %38 = arith.cmpi slt, %35, %37 : vector<504x1xi32>
    %39 = arith.extui %38 : vector<504x1xi1> to vector<504x1xi32>
    %40 = arith.sitofp %39 : vector<504x1xi32> to vector<504x1xf32>
    %41 = arith.extf %0 : vector<504x784xbf16> to vector<504x784xf32>
    %42 = arith.subf %41, %31 : vector<504x784xf32>
    %43 = vector.broadcast %40 : vector<504x1xf32> to vector<504x784xf32>
    %44 = arith.mulf %42, %43 : vector<504x784xf32>
    %45 = arith.mulf %44, %44 : vector<504x784xf32>
    %46 = vector.extract_strided_slice %45 {offsets = [0, 0], sizes = [8, 784], strides = [1, 1]} : vector<504x784xf32> to vector<8x784xf32>
    %47 = vector.extract_strided_slice %45 {offsets = [8, 0], sizes = [8, 784], strides = [1, 1]} : vector<504x784xf32> to vector<8x784xf32>
    %48 = arith.addf %46, %47 : vector<8x784xf32>
    %49 = vector.extract_strided_slice %45 {offsets = [16, 0], sizes = [8, 784], strides = [1, 1]} : vector<504x784xf32> to vector<8x784xf32>
    %50 = arith.addf %48, %49 : vector<8x784xf32>
    %51 = vector.extract_strided_slice %45 {offsets = [24, 0], sizes = [8, 784], strides = [1, 1]} : vector<504x784xf32> to vector<8x784xf32>
    %52 = arith.addf %50, %51 : vector<8x784xf32>
    %53 = vector.extract_strided_slice %45 {offsets = [32, 0], sizes = [8, 784], strides = [1, 1]} : vector<504x784xf32> to vector<8x784xf32>
    %54 = arith.addf %52, %53 : vector<8x784xf32>
    %55 = vector.extract_strided_slice %45 {offsets = [40, 0], sizes = [8, 784], strides = [1, 1]} : vector<504x784xf32> to vector<8x784xf32>
    %56 = arith.addf %54, %55 : vector<8x784xf32>
    %57 = vector.extract_strided_slice %45 {offsets = [48, 0], sizes = [8, 784], strides = [1, 1]} : vector<504x784xf32> to vector<8x784xf32>
    %58 = arith.addf %56, %57 : vector<8x784xf32>
    %59 = vector.extract_strided_slice %45 {offsets = [56, 0], sizes = [8, 784], strides = [1, 1]} : vector<504x784xf32> to vector<8x784xf32>
    %60 = arith.addf %58, %59 : vector<8x784xf32>
    %61 = vector.extract_strided_slice %45 {offsets = [64, 0], sizes = [8, 784], strides = [1, 1]} : vector<504x784xf32> to vector<8x784xf32>
    %62 = arith.addf %60, %61 : vector<8x784xf32>
    %63 = vector.extract_strided_slice %45 {offsets = [72, 0], sizes = [8, 784], strides = [1, 1]} : vector<504x784xf32> to vector<8x784xf32>
    %64 = arith.addf %62, %63 : vector<8x784xf32>
    %65 = vector.extract_strided_slice %45 {offsets = [80, 0], sizes = [8, 784], strides = [1, 1]} : vector<504x784xf32> to vector<8x784xf32>
    %66 = arith.addf %64, %65 : vector<8x784xf32>
    %67 = vector.extract_strided_slice %45 {offsets = [88, 0], sizes = [8, 784], strides = [1, 1]} : vector<504x784xf32> to vector<8x784xf32>
    %68 = arith.addf %66, %67 : vector<8x784xf32>
    %69 = vector.extract_strided_slice %45 {offsets = [96, 0], sizes = [8, 784], strides = [1, 1]} : vector<504x784xf32> to vector<8x784xf32>
    %70 = arith.addf %68, %69 : vector<8x784xf32>
    %71 = vector.extract_strided_slice %45 {offsets = [104, 0], sizes = [8, 784], strides = [1, 1]} : vector<504x784xf32> to vector<8x784xf32>
    %72 = arith.addf %70, %71 : vector<8x784xf32>
    %73 = vector.extract_strided_slice %45 {offsets = [112, 0], sizes = [8, 784], strides = [1, 1]} : vector<504x784xf32> to vector<8x784xf32>
    %74 = arith.addf %72, %73 : vector<8x784xf32>
    %75 = vector.extract_strided_slice %45 {offsets = [120, 0], sizes = [8, 784], strides = [1, 1]} : vector<504x784xf32> to vector<8x784xf32>
    %76 = arith.addf %74, %75 : vector<8x784xf32>
    %77 = vector.extract_strided_slice %45 {offsets = [128, 0], sizes = [8, 784], strides = [1, 1]} : vector<504x784xf32> to vector<8x784xf32>
    %78 = arith.addf %76, %77 : vector<8x784xf32>
    %79 = vector.extract_strided_slice %45 {offsets = [136, 0], sizes = [8, 784], strides = [1, 1]} : vector<504x784xf32> to vector<8x784xf32>
    %80 = arith.addf %78, %79 : vector<8x784xf32>
    %81 = vector.extract_strided_slice %45 {offsets = [144, 0], sizes = [8, 784], strides = [1, 1]} : vector<504x784xf32> to vector<8x784xf32>
    %82 = arith.addf %80, %81 : vector<8x784xf32>
    %83 = vector.extract_strided_slice %45 {offsets = [152, 0], sizes = [8, 784], strides = [1, 1]} : vector<504x784xf32> to vector<8x784xf32>
    %84 = arith.addf %82, %83 : vector<8x784xf32>
    %85 = vector.extract_strided_slice %45 {offsets = [160, 0], sizes = [8, 784], strides = [1, 1]} : vector<504x784xf32> to vector<8x784xf32>
    %86 = arith.addf %84, %85 : vector<8x784xf32>
    %87 = vector.extract_strided_slice %45 {offsets = [168, 0], sizes = [8, 784], strides = [1, 1]} : vector<504x784xf32> to vector<8x784xf32>
    %88 = arith.addf %86, %87 : vector<8x784xf32>
    %89 = vector.extract_strided_slice %45 {offsets = [176, 0], sizes = [8, 784], strides = [1, 1]} : vector<504x784xf32> to vector<8x784xf32>
    %90 = arith.addf %88, %89 : vector<8x784xf32>
    %91 = vector.extract_strided_slice %45 {offsets = [184, 0], sizes = [8, 784], strides = [1, 1]} : vector<504x784xf32> to vector<8x784xf32>
    %92 = arith.addf %90, %91 : vector<8x784xf32>
    %93 = vector.extract_strided_slice %45 {offsets = [192, 0], sizes = [8, 784], strides = [1, 1]} : vector<504x784xf32> to vector<8x784xf32>
    %94 = arith.addf %92, %93 : vector<8x784xf32>
    %95 = vector.extract_strided_slice %45 {offsets = [200, 0], sizes = [8, 784], strides = [1, 1]} : vector<504x784xf32> to vector<8x784xf32>
    %96 = arith.addf %94, %95 : vector<8x784xf32>
    %97 = vector.extract_strided_slice %45 {offsets = [208, 0], sizes = [8, 784], strides = [1, 1]} : vector<504x784xf32> to vector<8x784xf32>
    %98 = arith.addf %96, %97 : vector<8x784xf32>
    %99 = vector.extract_strided_slice %45 {offsets = [216, 0], sizes = [8, 784], strides = [1, 1]} : vector<504x784xf32> to vector<8x784xf32>
    %100 = arith.addf %98, %99 : vector<8x784xf32>
    %101 = vector.extract_strided_slice %45 {offsets = [224, 0], sizes = [8, 784], strides = [1, 1]} : vector<504x784xf32> to vector<8x784xf32>
    %102 = arith.addf %100, %101 : vector<8x784xf32>
    %103 = vector.extract_strided_slice %45 {offsets = [232, 0], sizes = [8, 784], strides = [1, 1]} : vector<504x784xf32> to vector<8x784xf32>
    %104 = arith.addf %102, %103 : vector<8x784xf32>
    %105 = vector.extract_strided_slice %45 {offsets = [240, 0], sizes = [8, 784], strides = [1, 1]} : vector<504x784xf32> to vector<8x784xf32>
    %106 = arith.addf %104, %105 : vector<8x784xf32>
    %107 = vector.extract_strided_slice %45 {offsets = [248, 0], sizes = [8, 784], strides = [1, 1]} : vector<504x784xf32> to vector<8x784xf32>
    %108 = arith.addf %106, %107 : vector<8x784xf32>
    %109 = vector.extract_strided_slice %45 {offsets = [256, 0], sizes = [8, 784], strides = [1, 1]} : vector<504x784xf32> to vector<8x784xf32>
    %110 = arith.addf %108, %109 : vector<8x784xf32>
    %111 = vector.extract_strided_slice %45 {offsets = [264, 0], sizes = [8, 784], strides = [1, 1]} : vector<504x784xf32> to vector<8x784xf32>
    %112 = arith.addf %110, %111 : vector<8x784xf32>
    %113 = vector.extract_strided_slice %45 {offsets = [272, 0], sizes = [8, 784], strides = [1, 1]} : vector<504x784xf32> to vector<8x784xf32>
    %114 = arith.addf %112, %113 : vector<8x784xf32>
    %115 = vector.extract_strided_slice %45 {offsets = [280, 0], sizes = [8, 784], strides = [1, 1]} : vector<504x784xf32> to vector<8x784xf32>
    %116 = arith.addf %114, %115 : vector<8x784xf32>
    %117 = vector.extract_strided_slice %45 {offsets = [288, 0], sizes = [8, 784], strides = [1, 1]} : vector<504x784xf32> to vector<8x784xf32>
    %118 = arith.addf %116, %117 : vector<8x784xf32>
    %119 = vector.extract_strided_slice %45 {offsets = [296, 0], sizes = [8, 784], strides = [1, 1]} : vector<504x784xf32> to vector<8x784xf32>
    %120 = arith.addf %118, %119 : vector<8x784xf32>
    %121 = vector.extract_strided_slice %45 {offsets = [304, 0], sizes = [8, 784], strides = [1, 1]} : vector<504x784xf32> to vector<8x784xf32>
    %122 = arith.addf %120, %121 : vector<8x784xf32>
    %123 = vector.extract_strided_slice %45 {offsets = [312, 0], sizes = [8, 784], strides = [1, 1]} : vector<504x784xf32> to vector<8x784xf32>
    %124 = arith.addf %122, %123 : vector<8x784xf32>
    %125 = vector.extract_strided_slice %45 {offsets = [320, 0], sizes = [8, 784], strides = [1, 1]} : vector<504x784xf32> to vector<8x784xf32>
    %126 = arith.addf %124, %125 : vector<8x784xf32>
    %127 = vector.extract_strided_slice %45 {offsets = [328, 0], sizes = [8, 784], strides = [1, 1]} : vector<504x784xf32> to vector<8x784xf32>
    %128 = arith.addf %126, %127 : vector<8x784xf32>
    %129 = vector.extract_strided_slice %45 {offsets = [336, 0], sizes = [8, 784], strides = [1, 1]} : vector<504x784xf32> to vector<8x784xf32>
    %130 = arith.addf %128, %129 : vector<8x784xf32>
    %131 = vector.extract_strided_slice %45 {offsets = [344, 0], sizes = [8, 784], strides = [1, 1]} : vector<504x784xf32> to vector<8x784xf32>
    %132 = arith.addf %130, %131 : vector<8x784xf32>
    %133 = vector.extract_strided_slice %45 {offsets = [352, 0], sizes = [8, 784], strides = [1, 1]} : vector<504x784xf32> to vector<8x784xf32>
    %134 = arith.addf %132, %133 : vector<8x784xf32>
    %135 = vector.extract_strided_slice %45 {offsets = [360, 0], sizes = [8, 784], strides = [1, 1]} : vector<504x784xf32> to vector<8x784xf32>
    %136 = arith.addf %134, %135 : vector<8x784xf32>
    %137 = vector.extract_strided_slice %45 {offsets = [368, 0], sizes = [8, 784], strides = [1, 1]} : vector<504x784xf32> to vector<8x784xf32>
    %138 = arith.addf %136, %137 : vector<8x784xf32>
    %139 = vector.extract_strided_slice %45 {offsets = [376, 0], sizes = [8, 784], strides = [1, 1]} : vector<504x784xf32> to vector<8x784xf32>
    %140 = arith.addf %138, %139 : vector<8x784xf32>
    %141 = vector.extract_strided_slice %45 {offsets = [384, 0], sizes = [8, 784], strides = [1, 1]} : vector<504x784xf32> to vector<8x784xf32>
    %142 = arith.addf %140, %141 : vector<8x784xf32>
    %143 = vector.extract_strided_slice %45 {offsets = [392, 0], sizes = [8, 784], strides = [1, 1]} : vector<504x784xf32> to vector<8x784xf32>
    %144 = arith.addf %142, %143 : vector<8x784xf32>
    %145 = vector.extract_strided_slice %45 {offsets = [400, 0], sizes = [8, 784], strides = [1, 1]} : vector<504x784xf32> to vector<8x784xf32>
    %146 = arith.addf %144, %145 : vector<8x784xf32>
    %147 = vector.extract_strided_slice %45 {offsets = [408, 0], sizes = [8, 784], strides = [1, 1]} : vector<504x784xf32> to vector<8x784xf32>
    %148 = arith.addf %146, %147 : vector<8x784xf32>
    %149 = vector.extract_strided_slice %45 {offsets = [416, 0], sizes = [8, 784], strides = [1, 1]} : vector<504x784xf32> to vector<8x784xf32>
    %150 = arith.addf %148, %149 : vector<8x784xf32>
    %151 = vector.extract_strided_slice %45 {offsets = [424, 0], sizes = [8, 784], strides = [1, 1]} : vector<504x784xf32> to vector<8x784xf32>
    %152 = arith.addf %150, %151 : vector<8x784xf32>
    %153 = vector.extract_strided_slice %45 {offsets = [432, 0], sizes = [8, 784], strides = [1, 1]} : vector<504x784xf32> to vector<8x784xf32>
    %154 = arith.addf %152, %153 : vector<8x784xf32>
    %155 = vector.extract_strided_slice %45 {offsets = [440, 0], sizes = [8, 784], strides = [1, 1]} : vector<504x784xf32> to vector<8x784xf32>
    %156 = arith.addf %154, %155 : vector<8x784xf32>
    %157 = vector.extract_strided_slice %45 {offsets = [448, 0], sizes = [8, 784], strides = [1, 1]} : vector<504x784xf32> to vector<8x784xf32>
    %158 = arith.addf %156, %157 : vector<8x784xf32>
    %159 = vector.extract_strided_slice %45 {offsets = [456, 0], sizes = [8, 784], strides = [1, 1]} : vector<504x784xf32> to vector<8x784xf32>
    %160 = arith.addf %158, %159 : vector<8x784xf32>
    %161 = vector.extract_strided_slice %45 {offsets = [464, 0], sizes = [8, 784], strides = [1, 1]} : vector<504x784xf32> to vector<8x784xf32>
    %162 = arith.addf %160, %161 : vector<8x784xf32>
    %163 = vector.extract_strided_slice %45 {offsets = [472, 0], sizes = [8, 784], strides = [1, 1]} : vector<504x784xf32> to vector<8x784xf32>
    %164 = arith.addf %162, %163 : vector<8x784xf32>
    %165 = vector.extract_strided_slice %45 {offsets = [480, 0], sizes = [8, 784], strides = [1, 1]} : vector<504x784xf32> to vector<8x784xf32>
    %166 = arith.addf %164, %165 : vector<8x784xf32>
    %167 = vector.extract_strided_slice %45 {offsets = [488, 0], sizes = [8, 784], strides = [1, 1]} : vector<504x784xf32> to vector<8x784xf32>
    %168 = arith.addf %166, %167 : vector<8x784xf32>
    %169 = vector.extract_strided_slice %45 {offsets = [496, 0], sizes = [8, 784], strides = [1, 1]} : vector<504x784xf32> to vector<8x784xf32>
    %170 = arith.addf %168, %169 : vector<8x784xf32>
    %c0_23 = arith.constant 0 : index
    %c0_24 = arith.constant 0 : index
    %171 = vector.load %arg9[%c0_23, %c0_24] : memref<8x784xf32, #tpu.memory_space<vmem>>, vector<8x784xf32>
    tpu.vector_store %arg9[%c0_23, %c0_24], %170 {strides = array<i32>} : memref<8x784xf32, #tpu.memory_space<vmem>>, vector<8x784xf32>,
    return
  }
  func.func @transform_0(%arg0: i32) -> (i32, i32) {
    %c0_i32 = arith.constant 0 : i32
    %c0_i32_0 = arith.constant 0 : i32
    return %arg0, %c0_i32 : i32, i32
  }
  func.func @transform_1(%arg0: i32) -> (i32, i32) {
    %c0_i32 = arith.constant 0 : i32
    %c0_i32_0 = arith.constant 0 : i32
    %c0_i32_1 = arith.constant 0 : i32
    return %c0_i32, %c0_i32_0 : i32, i32
  }
  func.func @transform_2(%arg0: i32) -> (i32, i32) {
    %c0_i32 = arith.constant 0 : i32
    %c0_i32_0 = arith.constant 0 : i32
    %c0_i32_1 = arith.constant 0 : i32
    return %c0_i32, %c0_i32_0 : i32, i32
  }
  func.func @transform_3(%arg0: i32) -> (i32, i32) {
    %c0_i32 = arith.constant 0 : i32
    %c0_i32_0 = arith.constant 0 : i32
    %c0_i32_1 = arith.constant 0 : i32
    return %c0_i32, %c0_i32_0 : i32, i32
  }
  func.func @transform_4(%arg0: i32) -> (i32, i32) {
    %c0_i32 = arith.constant 0 : i32
    %c0_i32_0 = arith.constant 0 : i32
    %c0_i32_1 = arith.constant 0 : i32
    return %c0_i32, %c0_i32_0 : i32, i32
  }
  func.func @transform_5(%arg0: i32) -> (i32, i32) {
    %c0_i32 = arith.constant 0 : i32
    %c0_i32_0 = arith.constant 0 : i32
    %c0_i32_1 = arith.constant 0 : i32
    return %c0_i32, %c0_i32_0 : i32, i32
  }
  func.func @transform_6(%arg0: i32) -> (i32, i32) {
    %c0_i32 = arith.constant 0 : i32
    %c0_i32_0 = arith.constant 0 : i32
    %c0_i32_1 = arith.constant 0 : i32
    return %c0_i32, %c0_i32_0 : i32, i32
  }
  func.func @transform_7(%arg0: i32) -> i32 {
    %c0_i32 = arith.constant 0 : i32
    %c0_i32_0 = arith.constant 0 : i32
    return %c0_i32 : i32
  }
  func.func @transform_8(%arg0: i32) -> (i32, i32) {
    %c0_i32 = arith.constant 0 : i32
    %c0_i32_0 = arith.constant 0 : i32
    return %arg0, %c0_i32 : i32, i32
  }
}

</mosaic_0001>

<llo_original>
// kernel: ae_forward.1
$region0: #{ae_forward.1}
  #allocation0 [shape = 'u32[]', space=smem, size = 0x4, offset = 0x4, fixed_abs, tag = 'smem constant byte address 0x4 - core index']
  #allocation1 [shape = 'u32[144,128]{1,0:T(1,128)}', space=vmem, size = 0x12000, scoped, tag = 'internal scratch']
  #allocation2 [shape = 's32[1]{0:T(128)S(6)}', space=smem, size = 0x200, scoped, tag = 'scoped memory for ae_forward.1']
  %s0 = inlined_call_operand.vmem [shape: bf16[504,784], index: 0, kind: input, shape index: {}]
  %s1 = inlined_call_operand.vmem [shape: bf16[784,128], index: 1, kind: input, shape index: {}]
  %s2 = inlined_call_operand.vmem [shape: bf16[128,128], index: 2, kind: input, shape index: {}]
  %s3 = inlined_call_operand.vmem [shape: bf16[128,128], index: 3, kind: input, shape index: {}]
  %s4 = inlined_call_operand.vmem [shape: bf16[128,784], index: 4, kind: input, shape index: {}]
  %s5 = inlined_call_operand.vmem [shape: f32[3,128], index: 5, kind: input, shape index: {}]
  %s6 = inlined_call_operand.vmem [shape: f32[1,784], index: 6, kind: input, shape index: {}]
  %s7 = inlined_call_operand.<no memory space> [shape: s32[1], index: 7, kind: input, shape index: {}]
  %s8 = inlined_call_operand.vmem [shape: f32[8,784], index: 8, kind: output, shape index: {}]
  %s9 = sld [smem:[#allocation0]]
  $region42: #{ae_forward.1} parent=0
    _
  %s11 = ssub.s32 1, %s9
  %s12 = scalar_select 0, %s11, %s9
  %13 = sst [smem:[#allocation2]] %s7
  // Predicated region
  $region2: #{ae_forward.1} parent=0 // pred_check
    _
  $region3: #{ae_forward.1} parent=0 // pred_check_branch
    %15 = sbr.rel (0) target = $region5
  $region4: #{ae_forward.1} parent=0 // pred_region
    _
  $region5: #{ae_forward.1} parent=0 // pred_fallthru
    _
  // Predicated region
  $region6: #{ae_forward.1} parent=0 // pred_check
    _
  $region7: #{ae_forward.1} parent=0 // pred_check_branch
    %17 = sbr.rel (0) target = $region9
  $region8: #{ae_forward.1} parent=0 // pred_region
    _
  $region9: #{ae_forward.1} parent=0 // pred_fallthru
    _
  // Predicated region
  $region10: #{ae_forward.1} parent=0 // pred_check
    _
  $region11: #{ae_forward.1} parent=0 // pred_check_branch
    %19 = sbr.rel (0) target = $region13
  $region12: #{ae_forward.1} parent=0 // pred_region
    _
  $region13: #{ae_forward.1} parent=0 // pred_fallthru
    _
  // Predicated region
  $region14: #{ae_forward.1} parent=0 // pred_check
    _
  $region15: #{ae_forward.1} parent=0 // pred_check_branch
    %21 = sbr.rel (0) target = $region17
  $region16: #{ae_forward.1} parent=0 // pred_region
    _
  $region17: #{ae_forward.1} parent=0 // pred_fallthru
    _
  // Predicated region
  $region18: #{ae_forward.1} parent=0 // pred_check
    _
  $region19: #{ae_forward.1} parent=0 // pred_check_branch
    %23 = sbr.rel (0) target = $region21
  $region20: #{ae_forward.1} parent=0 // pred_region
    _
  $region21: #{ae_forward.1} parent=0 // pred_fallthru
    _
  // Predicated region
  $region22: #{ae_forward.1} parent=0 // pred_check
    _
  $region23: #{ae_forward.1} parent=0 // pred_check_branch
    %25 = sbr.rel (0) target = $region25
  $region24: #{ae_forward.1} parent=0 // pred_region
    _
  $region25: #{ae_forward.1} parent=0 // pred_fallthru
    _
  // Predicated region
  $region26: #{ae_forward.1} parent=0 // pred_check
    _
  $region27: #{ae_forward.1} parent=0 // pred_check_branch
    %27 = sbr.rel (0) target = $region29
  $region28: #{ae_forward.1} parent=0 // pred_region
    _
  $region29: #{ae_forward.1} parent=0 // pred_fallthru
    _
  // Predicated region
  $region30: #{ae_forward.1} parent=0 // pred_check
    _
  $region31: #{ae_forward.1} parent=0 // pred_check_branch
    %29 = sbr.rel (0) target = $region33
  $region32: #{ae_forward.1} parent=0 // pred_region
    _
  $region33: #{ae_forward.1} parent=0 // pred_fallthru
    _
  %v31 = vld [vmem:[%s0] sm:$0xff]
  %v32 = vld [vmem:[%s0 + $0x8] sm:$0xff]
  %v33 = vld [vmem:[%s0 + $0x10] sm:$0xff]
  %v34 = vld [vmem:[%s0 + $0x18] sm:$0xf]
  %v35 = vld [vmem:[%s0 + $0x1c] sm:$0xff]
  %v36 = vld [vmem:[%s0 + $0x24] sm:$0xff]
  %v37 = vld [vmem:[%s0 + $0x2c] sm:$0xff]
  %v38 = vld [vmem:[%s0 + $0x34] sm:$0xf]
  %v39 = vld [vmem:[%s0 + $0x38] sm:$0xff]
  %v40 = vld [vmem:[%s0 + $0x40] sm:$0xff]
  %v41 = vld [vmem:[%s0 + $0x48] sm:$0xff]
  %v42 = vld [vmem:[%s0 + $0x50] sm:$0xf]
  %v43 = vld [vmem:[%s0 + $0x54] sm:$0xff]
  %v44 = vld [vmem:[%s0 + $0x5c] sm:$0xff]
  %v45 = vld [vmem:[%s0 + $0x64] sm:$0xff]
  %v46 = vld [vmem:[%s0 + $0x6c] sm:$0xf]
  %v47 = vld [vmem:[%s0 + $0x70] sm:$0xff]
  %v48 = vld [vmem:[%s0 + $0x78] sm:$0xff]
  %v49 = vld [vmem:[%s0 + $0x80] sm:$0xff]
  %v50 = vld [vmem:[%s0 + $0x88] sm:$0xf]
  %v51 = vld [vmem:[%s0 + $0x8c] sm:$0xff]
  %v52 = vld [vmem:[%s0 + $0x94] sm:$0xff]
  %v53 = vld [vmem:[%s0 + $0x9c] sm:$0xff]
  %v54 = vld [vmem:[%s0 + $0xa4] sm:$0xf]
  %v55 = vld [vmem:[%s0 + $0xa8] sm:$0xff]
  %v56 = vld [vmem:[%s0 + $0xb0] sm:$0xff]
  %v57 = vld [vmem:[%s0 + $0xb8] sm:$0xff]
  %v58 = vld [vmem:[%s0 + $0xc0] sm:$0xf]
  %v59 = vld [vmem:[%s0 + $0xc4] sm:$0xff]
  %v60 = vld [vmem:[%s0 + $0xcc] sm:$0xff]
  %v61 = vld [vmem:[%s0 + $0xd4] sm:$0xff]
  %v62 = vld [vmem:[%s0 + $0xdc] sm:$0xf]
  %v63 = vld [vmem:[%s0 + $0xe0] sm:$0xff]
  %v64 = vld [vmem:[%s0 + $0xe8] sm:$0xff]
  %v65 = vld [vmem:[%s0 + $0xf0] sm:$0xff]
  %v66 = vld [vmem:[%s0 + $0xf8] sm:$0xf]
  %v67 = vld [vmem:[%s0 + $0xfc] sm:$0xff]
  %v68 = vld [vmem:[%s0 + $0x104] sm:$0xff]
  %v69 = vld [vmem:[%s0 + $0x10c] sm:$0xff]
  %v70 = vld [vmem:[%s0 + $0x114] sm:$0xf]
  %v71 = vld [vmem:[%s0 + $0x118] sm:$0xff]
  %v72 = vld [vmem:[%s0 + $0x120] sm:$0xff]
  %v73 = vld [vmem:[%s0 + $0x128] sm:$0xff]
  %v74 = vld [vmem:[%s0 + $0x130] sm:$0xf]
  %v75 = vld [vmem:[%s0 + $0x134] sm:$0xff]
  %v76 = vld [vmem:[%s0 + $0x13c] sm:$0xff]
  %v77 = vld [vmem:[%s0 + $0x144] sm:$0xff]
  %v78 = vld [vmem:[%s0 + $0x14c] sm:$0xf]
  %v79 = vld [vmem:[%s0 + $0x150] sm:$0xff]
  %v80 = vld [vmem:[%s0 + $0x158] sm:$0xff]
  %v81 = vld [vmem:[%s0 + $0x160] sm:$0xff]
  %v82 = vld [vmem:[%s0 + $0x168] sm:$0xf]
  %v83 = vld [vmem:[%s0 + $0x16c] sm:$0xff]
  %v84 = vld [vmem:[%s0 + $0x174] sm:$0xff]
  %v85 = vld [vmem:[%s0 + $0x17c] sm:$0xff]
  %v86 = vld [vmem:[%s0 + $0x184] sm:$0xf]
  %v87 = vld [vmem:[%s0 + $0x188] sm:$0xff]
  %v88 = vld [vmem:[%s0 + $0x190] sm:$0xff]
  %v89 = vld [vmem:[%s0 + $0x198] sm:$0xff]
  %v90 = vld [vmem:[%s0 + $0x1a0] sm:$0xf]
  %v91 = vld [vmem:[%s0 + $0x1a4] sm:$0xff]
  %v92 = vld [vmem:[%s0 + $0x1ac] sm:$0xff]
  %v93 = vld [vmem:[%s0 + $0x1b4] sm:$0xff]
  %v94 = vld [vmem:[%s0 + $0x1bc] sm:$0xf]
  %v95 = vld [vmem:[%s0 + $0x1c0] sm:$0xff]
  %v96 = vld [vmem:[%s0 + $0x1c8] sm:$0xff]
  %v97 = vld [vmem:[%s0 + $0x1d0] sm:$0xff]
  %v98 = vld [vmem:[%s0 + $0x1d8] sm:$0xf]
  %v99 = vld [vmem:[%s0 + $0x1dc] sm:$0xff]
  %v100 = vld [vmem:[%s0 + $0x1e4] sm:$0xff]
  %v101 = vld [vmem:[%s0 + $0x1ec] sm:$0xff]
  %v102 = vld [vmem:[%s0 + $0x1f4] sm:$0xf]
  %v103 = vld [vmem:[%s0 + $0x1f8] sm:$0xff]
  %v104 = vld [vmem:[%s0 + $0x200] sm:$0xff]
  %v105 = vld [vmem:[%s0 + $0x208] sm:$0xff]
  %v106 = vld [vmem:[%s0 + $0x210] sm:$0xf]
  %v107 = vld [vmem:[%s0 + $0x214] sm:$0xff]
  %v108 = vld [vmem:[%s0 + $0x21c] sm:$0xff]
  %v109 = vld [vmem:[%s0 + $0x224] sm:$0xff]
  %v110 = vld [vmem:[%s0 + $0x22c] sm:$0xf]
  %v111 = vld [vmem:[%s0 + $0x230] sm:$0xff]
  %v112 = vld [vmem:[%s0 + $0x238] sm:$0xff]
  %v113 = vld [vmem:[%s0 + $0x240] sm:$0xff]
  %v114 = vld [vmem:[%s0 + $0x248] sm:$0xf]
  %v115 = vld [vmem:[%s0 + $0x24c] sm:$0xff]
  %v116 = vld [vmem:[%s0 + $0x254] sm:$0xff]
  %v117 = vld [vmem:[%s0 + $0x25c] sm:$0xff]
  %v118 = vld [vmem:[%s0 + $0x264] sm:$0xf]
  %v119 = vld [vmem:[%s0 + $0x268] sm:$0xff]
  %v120 = vld [vmem:[%s0 + $0x270] sm:$0xff]
  %v121 = vld [vmem:[%s0 + $0x278] sm:$0xff]
  %v122 = vld [vmem:[%s0 + $0x280] sm:$0xf]
  %v123 = vld [vmem:[%s0 + $0x284] sm:$0xff]
  %v124 = vld [vmem:[%s0 + $0x28c] sm:$0xff]
  %v125 = vld [vmem:[%s0 + $0x294] sm:$0xff]
  %v126 = vld [vmem:[%s0 + $0x29c] sm:$0xf]
  %v127 = vld [vmem:[%s0 + $0x2a0] sm:$0xff]
  %v128 = vld [vmem:[%s0 + $0x2a8] sm:$0xff]
  %v129 = vld [vmem:[%s0 + $0x2b0] sm:$0xff]
  %v130 = vld [vmem:[%s0 + $0x2b8] sm:$0xf]
  %v131 = vld [vmem:[%s0 + $0x2bc] sm:$0xff]
  %v132 = vld [vmem:[%s0 + $0x2c4] sm:$0xff]
  %v133 = vld [vmem:[%s0 + $0x2cc] sm:$0xff]
  %v134 = vld [vmem:[%s0 + $0x2d4] sm:$0xf]
  %v135 = vld [vmem:[%s0 + $0x2d8] sm:$0xff]
  %v136 = vld [vmem:[%s0 + $0x2e0] sm:$0xff]
  %v137 = vld [vmem:[%s0 + $0x2e8] sm:$0xff]
  %v138 = vld [vmem:[%s0 + $0x2f0] sm:$0xf]
  %v139 = vld [vmem:[%s0 + $0x2f4] sm:$0xff]
  %v140 = vld [vmem:[%s0 + $0x2fc] sm:$0xff]
  %v141 = vld [vmem:[%s0 + $0x304] sm:$0xff]
  %v142 = vld [vmem:[%s0 + $0x30c] sm:$0xf]
  %v143 = vld [vmem:[%s0 + $0x310] sm:$0xff]
  %v144 = vld [vmem:[%s0 + $0x318] sm:$0xff]
  %v145 = vld [vmem:[%s0 + $0x320] sm:$0xff]
  %v146 = vld [vmem:[%s0 + $0x328] sm:$0xf]
  %v147 = vld [vmem:[%s0 + $0x32c] sm:$0xff]
  %v148 = vld [vmem:[%s0 + $0x334] sm:$0xff]
  %v149 = vld [vmem:[%s0 + $0x33c] sm:$0xff]
  %v150 = vld [vmem:[%s0 + $0x344] sm:$0xf]
  %v151 = vld [vmem:[%s0 + $0x348] sm:$0xff]
  %v152 = vld [vmem:[%s0 + $0x350] sm:$0xff]
  %v153 = vld [vmem:[%s0 + $0x358] sm:$0xff]
  %v154 = vld [vmem:[%s0 + $0x360] sm:$0xf]
  %v155 = vld [vmem:[%s0 + $0x364] sm:$0xff]
  %v156 = vld [vmem:[%s0 + $0x36c] sm:$0xff]
  %v157 = vld [vmem:[%s0 + $0x374] sm:$0xff]
  %v158 = vld [vmem:[%s0 + $0x37c] sm:$0xf]
  %v159 = vld [vmem:[%s0 + $0x380] sm:$0xff]
  %v160 = vld [vmem:[%s0 + $0x388] sm:$0xff]
  %v161 = vld [vmem:[%s0 + $0x390] sm:$0xff]
  %v162 = vld [vmem:[%s0 + $0x398] sm:$0xf]
  %v163 = vld [vmem:[%s0 + $0x39c] sm:$0xff]
  %v164 = vld [vmem:[%s0 + $0x3a4] sm:$0xff]
  %v165 = vld [vmem:[%s0 + $0x3ac] sm:$0xff]
  %v166 = vld [vmem:[%s0 + $0x3b4] sm:$0xf]
  %v167 = vld [vmem:[%s0 + $0x3b8] sm:$0xff]
  %v168 = vld [vmem:[%s0 + $0x3c0] sm:$0xff]
  %v169 = vld [vmem:[%s0 + $0x3c8] sm:$0xff]
  %v170 = vld [vmem:[%s0 + $0x3d0] sm:$0xf]
  %v171 = vld [vmem:[%s0 + $0x3d4] sm:$0xff]
  %v172 = vld [vmem:[%s0 + $0x3dc] sm:$0xff]
  %v173 = vld [vmem:[%s0 + $0x3e4] sm:$0xff]
  %v174 = vld [vmem:[%s0 + $0x3ec] sm:$0xf]
  %v175 = vld [vmem:[%s0 + $0x3f0] sm:$0xff]
  %v176 = vld [vmem:[%s0 + $0x3f8] sm:$0xff]
  %v177 = vld [vmem:[%s0 + $0x400] sm:$0xff]
  %v178 = vld [vmem:[%s0 + $0x408] sm:$0xf]
  %v179 = vld [vmem:[%s0 + $0x40c] sm:$0xff]
  %v180 = vld [vmem:[%s0 + $0x414] sm:$0xff]
  %v181 = vld [vmem:[%s0 + $0x41c] sm:$0xff]
  %v182 = vld [vmem:[%s0 + $0x424] sm:$0xf]
  %v183 = vld [vmem:[%s0 + $0x428] sm:$0xff]
  %v184 = vld [vmem:[%s0 + $0x430] sm:$0xff]
  %v185 = vld [vmem:[%s0 + $0x438] sm:$0xff]
  %v186 = vld [vmem:[%s0 + $0x440] sm:$0xf]
  %v187 = vld [vmem:[%s0 + $0x444] sm:$0xff]
  %v188 = vld [vmem:[%s0 + $0x44c] sm:$0xff]
  %v189 = vld [vmem:[%s0 + $0x454] sm:$0xff]
  %v190 = vld [vmem:[%s0 + $0x45c] sm:$0xf]
  %v191 = vld [vmem:[%s0 + $0x460] sm:$0xff]
  %v192 = vld [vmem:[%s0 + $0x468] sm:$0xff]
  %v193 = vld [vmem:[%s0 + $0x470] sm:$0xff]
  %v194 = vld [vmem:[%s0 + $0x478] sm:$0xf]
  %v195 = vld [vmem:[%s0 + $0x47c] sm:$0xff]
  %v196 = vld [vmem:[%s0 + $0x484] sm:$0xff]
  %v197 = vld [vmem:[%s0 + $0x48c] sm:$0xff]
  %v198 = vld [vmem:[%s0 + $0x494] sm:$0xf]
  %v199 = vld [vmem:[%s0 + $0x498] sm:$0xff]
  %v200 = vld [vmem:[%s0 + $0x4a0] sm:$0xff]
  %v201 = vld [vmem:[%s0 + $0x4a8] sm:$0xff]
  %v202 = vld [vmem:[%s0 + $0x4b0] sm:$0xf]
  %v203 = vld [vmem:[%s0 + $0x4b4] sm:$0xff]
  %v204 = vld [vmem:[%s0 + $0x4bc] sm:$0xff]
  %v205 = vld [vmem:[%s0 + $0x4c4] sm:$0xff]
  %v206 = vld [vmem:[%s0 + $0x4cc] sm:$0xf]
  %v207 = vld [vmem:[%s0 + $0x4d0] sm:$0xff]
  %v208 = vld [vmem:[%s0 + $0x4d8] sm:$0xff]
  %v209 = vld [vmem:[%s0 + $0x4e0] sm:$0xff]
  %v210 = vld [vmem:[%s0 + $0x4e8] sm:$0xf]
  %v211 = vld [vmem:[%s0 + $0x4ec] sm:$0xff]
  %v212 = vld [vmem:[%s0 + $0x4f4] sm:$0xff]
  %v213 = vld [vmem:[%s0 + $0x4fc] sm:$0xff]
  %v214 = vld [vmem:[%s0 + $0x504] sm:$0xf]
  %v215 = vld [vmem:[%s0 + $0x508] sm:$0xff]
  %v216 = vld [vmem:[%s0 + $0x510] sm:$0xff]
  %v217 = vld [vmem:[%s0 + $0x518] sm:$0xff]
  %v218 = vld [vmem:[%s0 + $0x520] sm:$0xf]
  %v219 = vld [vmem:[%s0 + $0x524] sm:$0xff]
  %v220 = vld [vmem:[%s0 + $0x52c] sm:$0xff]
  %v221 = vld [vmem:[%s0 + $0x534] sm:$0xff]
  %v222 = vld [vmem:[%s0 + $0x53c] sm:$0xf]
  %v223 = vld [vmem:[%s0 + $0x540] sm:$0xff]
  %v224 = vld [vmem:[%s0 + $0x548] sm:$0xff]
  %v225 = vld [vmem:[%s0 + $0x550] sm:$0xff]
  %v226 = vld [vmem:[%s0 + $0x558] sm:$0xf]
  %v227 = vld [vmem:[%s0 + $0x55c] sm:$0xff]
  %v228 = vld [vmem:[%s0 + $0x564] sm:$0xff]
  %v229 = vld [vmem:[%s0 + $0x56c] sm:$0xff]
  %v230 = vld [vmem:[%s0 + $0x574] sm:$0xf]
  %v231 = vld [vmem:[%s0 + $0x578] sm:$0xff]
  %v232 = vld [vmem:[%s0 + $0x580] sm:$0xff]
  %v233 = vld [vmem:[%s0 + $0x588] sm:$0xff]
  %v234 = vld [vmem:[%s0 + $0x590] sm:$0xf]
  %v235 = vld [vmem:[%s0 + $0x594] sm:$0xff]
  %v236 = vld [vmem:[%s0 + $0x59c] sm:$0xff]
  %v237 = vld [vmem:[%s0 + $0x5a4] sm:$0xff]
  %v238 = vld [vmem:[%s0 + $0x5ac] sm:$0xf]
  %v239 = vld [vmem:[%s0 + $0x5b0] sm:$0xff]
  %v240 = vld [vmem:[%s0 + $0x5b8] sm:$0xff]
  %v241 = vld [vmem:[%s0 + $0x5c0] sm:$0xff]
  %v242 = vld [vmem:[%s0 + $0x5c8] sm:$0xf]
  %v243 = vld [vmem:[%s0 + $0x5cc] sm:$0xff]
  %v244 = vld [vmem:[%s0 + $0x5d4] sm:$0xff]
  %v245 = vld [vmem:[%s0 + $0x5dc] sm:$0xff]
  %v246 = vld [vmem:[%s0 + $0x5e4] sm:$0xf]
  %v247 = vld [vmem:[%s0 + $0x5e8] sm:$0xff]
  %v248 = vld [vmem:[%s0 + $0x5f0] sm:$0xff]
  %v249 = vld [vmem:[%s0 + $0x5f8] sm:$0xff]
  %v250 = vld [vmem:[%s0 + $0x600] sm:$0xf]
  %v251 = vld [vmem:[%s0 + $0x604] sm:$0xff]
  %v252 = vld [vmem:[%s0 + $0x60c] sm:$0xff]
  %v253 = vld [vmem:[%s0 + $0x614] sm:$0xff]
  %v254 = vld [vmem:[%s0 + $0x61c] sm:$0xf]
  %v255 = vld [vmem:[%s0 + $0x620] sm:$0xff]
  %v256 = vld [vmem:[%s0 + $0x628] sm:$0xff]
  %v257 = vld [vmem:[%s0 + $0x630] sm:$0xff]
  %v258 = vld [vmem:[%s0 + $0x638] sm:$0xf]
  %v259 = vld [vmem:[%s0 + $0x63c] sm:$0xff]
  %v260 = vld [vmem:[%s0 + $0x644] sm:$0xff]
  %v261 = vld [vmem:[%s0 + $0x64c] sm:$0xff]
  %v262 = vld [vmem:[%s0 + $0x654] sm:$0xf]
  %v263 = vld [vmem:[%s0 + $0x658] sm:$0xff]
  %v264 = vld [vmem:[%s0 + $0x660] sm:$0xff]
  %v265 = vld [vmem:[%s0 + $0x668] sm:$0xff]
  %v266 = vld [vmem:[%s0 + $0x670] sm:$0xf]
  %v267 = vld [vmem:[%s0 + $0x674] sm:$0xff]
  %v268 = vld [vmem:[%s0 + $0x67c] sm:$0xff]
  %v269 = vld [vmem:[%s0 + $0x684] sm:$0xff]
  %v270 = vld [vmem:[%s0 + $0x68c] sm:$0xf]
  %v271 = vld [vmem:[%s0 + $0x690] sm:$0xff]
  %v272 = vld [vmem:[%s0 + $0x698] sm:$0xff]
  %v273 = vld [vmem:[%s0 + $0x6a0] sm:$0xff]
  %v274 = vld [vmem:[%s0 + $0x6a8] sm:$0xf]
  %v275 = vld [vmem:[%s0 + $0x6ac] sm:$0xff]
  %v276 = vld [vmem:[%s0 + $0x6b4] sm:$0xff]
  %v277 = vld [vmem:[%s0 + $0x6bc] sm:$0xff]
  %v278 = vld [vmem:[%s0 + $0x6c4] sm:$0xf]
  %v279 = vld [vmem:[%s0 + $0x6c8] sm:$0xff]
  %v280 = vld [vmem:[%s0 + $0x6d0] sm:$0xff]
  %v281 = vld [vmem:[%s0 + $0x6d8] sm:$0xff]
  %v282 = vld [vmem:[%s0 + $0x6e0] sm:$0xf]
  %v283 = vld [vmem:[%s1] sm:$0xf]
  %v284 = vld [vmem:[%s1 + $0x4] sm:$0xf]
  %v285 = vld [vmem:[%s1 + $0x8] sm:$0xf]
  %v286 = vld [vmem:[%s1 + $0xc] sm:$0xf]
  %v287 = vld [vmem:[%s1 + $0x10] sm:$0xf]
  %v288 = vld [vmem:[%s1 + $0x14] sm:$0xf]
  %v289 = vld [vmem:[%s1 + $0x18] sm:$0xf]
  %v290 = vld [vmem:[%s1 + $0x1c] sm:$0xf]
  %v291 = vld [vmem:[%s1 + $0x20] sm:$0xf]
  %v292 = vld [vmem:[%s1 + $0x24] sm:$0xf]
  %v293 = vld [vmem:[%s1 + $0x28] sm:$0xf]
  %v294 = vld [vmem:[%s1 + $0x2c] sm:$0xf]
  %v295 = vld [vmem:[%s1 + $0x30] sm:$0xf]
  %v296 = vld [vmem:[%s1 + $0x34] sm:$0xf]
  %v297 = vld [vmem:[%s1 + $0x38] sm:$0xf]
  %v298 = vld [vmem:[%s1 + $0x3c] sm:$0xf]
  %v299 = vld [vmem:[%s1 + $0x40] sm:$0xf]
  %v300 = vld [vmem:[%s1 + $0x44] sm:$0xf]
  %v301 = vld [vmem:[%s1 + $0x48] sm:$0xf]
  %v302 = vld [vmem:[%s1 + $0x4c] sm:$0xf]
  %v303 = vld [vmem:[%s1 + $0x50] sm:$0xf]
  %v304 = vld [vmem:[%s1 + $0x54] sm:$0xf]
  %v305 = vld [vmem:[%s1 + $0x58] sm:$0xf]
  %v306 = vld [vmem:[%s1 + $0x5c] sm:$0xf]
  %v307 = vld [vmem:[%s1 + $0x60] sm:$0xf]
  %v308 = vld [vmem:[%s1 + $0x64] sm:$0xf]
  %v309 = vld [vmem:[%s1 + $0x68] sm:$0xf]
  %v310 = vld [vmem:[%s1 + $0x6c] sm:$0xf]
  %v311 = vld [vmem:[%s1 + $0x70] sm:$0xf]
  %v312 = vld [vmem:[%s1 + $0x74] sm:$0xf]
  %v313 = vld [vmem:[%s1 + $0x78] sm:$0xf]
  %v314 = vld [vmem:[%s1 + $0x7c] sm:$0xf]
  %v315 = vld [vmem:[%s1 + $0x80] sm:$0xf]
  %v316 = vld [vmem:[%s1 + $0x84] sm:$0xf]
  %v317 = vld [vmem:[%s1 + $0x88] sm:$0xf]
  %v318 = vld [vmem:[%s1 + $0x8c] sm:$0xf]
  %v319 = vld [vmem:[%s1 + $0x90] sm:$0xf]
  %v320 = vld [vmem:[%s1 + $0x94] sm:$0xf]
  %v321 = vld [vmem:[%s1 + $0x98] sm:$0xf]
  %v322 = vld [vmem:[%s1 + $0x9c] sm:$0xf]
  %v323 = vld [vmem:[%s1 + $0xa0] sm:$0xf]
  %v324 = vld [vmem:[%s1 + $0xa4] sm:$0xf]
  %v325 = vld [vmem:[%s1 + $0xa8] sm:$0xf]
  %v326 = vld [vmem:[%s1 + $0xac] sm:$0xf]
  %v327 = vld [vmem:[%s1 + $0xb0] sm:$0xf]
  %v328 = vld [vmem:[%s1 + $0xb4] sm:$0xf]
  %v329 = vld [vmem:[%s1 + $0xb8] sm:$0xf]
  %v330 = vld [vmem:[%s1 + $0xbc] sm:$0xf]
  %v331 = vld [vmem:[%s1 + $0xc0] sm:$0xf]
  %v332 = vld [vmem:[%s1 + $0xc4] sm:$0xf]
  %v333 = vld [vmem:[%s1 + $0xc8] sm:$0xf]
  %v334 = vld [vmem:[%s1 + $0xcc] sm:$0xf]
  %v335 = vld [vmem:[%s1 + $0xd0] sm:$0xf]
  %v336 = vld [vmem:[%s1 + $0xd4] sm:$0xf]
  %v337 = vld [vmem:[%s1 + $0xd8] sm:$0xf]
  %v338 = vld [vmem:[%s1 + $0xdc] sm:$0xf]
  %v339 = vld [vmem:[%s1 + $0xe0] sm:$0xf]
  %v340 = vld [vmem:[%s1 + $0xe4] sm:$0xf]
  %v341 = vld [vmem:[%s1 + $0xe8] sm:$0xf]
  %v342 = vld [vmem:[%s1 + $0xec] sm:$0xf]
  %v343 = vld [vmem:[%s1 + $0xf0] sm:$0xf]
  %v344 = vld [vmem:[%s1 + $0xf4] sm:$0xf]
  %v345 = vld [vmem:[%s1 + $0xf8] sm:$0xf]
  %v346 = vld [vmem:[%s1 + $0xfc] sm:$0xf]
  %v347 = vld [vmem:[%s1 + $0x100] sm:$0xf]
  %v348 = vld [vmem:[%s1 + $0x104] sm:$0xf]
  %v349 = vld [vmem:[%s1 + $0x108] sm:$0xf]
  %v350 = vld [vmem:[%s1 + $0x10c] sm:$0xf]
  %v351 = vld [vmem:[%s1 + $0x110] sm:$0xf]
  %v352 = vld [vmem:[%s1 + $0x114] sm:$0xf]
  %v353 = vld [vmem:[%s1 + $0x118] sm:$0xf]
  %v354 = vld [vmem:[%s1 + $0x11c] sm:$0xf]
  %v355 = vld [vmem:[%s1 + $0x120] sm:$0xf]
  %v356 = vld [vmem:[%s1 + $0x124] sm:$0xf]
  %v357 = vld [vmem:[%s1 + $0x128] sm:$0xf]
  %v358 = vld [vmem:[%s1 + $0x12c] sm:$0xf]
  %v359 = vld [vmem:[%s1 + $0x130] sm:$0xf]
  %v360 = vld [vmem:[%s1 + $0x134] sm:$0xf]
  %v361 = vld [vmem:[%s1 + $0x138] sm:$0xf]
  %v362 = vld [vmem:[%s1 + $0x13c] sm:$0xf]
  %v363 = vld [vmem:[%s1 + $0x140] sm:$0xf]
  %v364 = vld [vmem:[%s1 + $0x144] sm:$0xf]
  %v365 = vld [vmem:[%s1 + $0x148] sm:$0xf]
  %v366 = vld [vmem:[%s1 + $0x14c] sm:$0xf]
  %v367 = vld [vmem:[%s1 + $0x150] sm:$0xf]
  %v368 = vld [vmem:[%s1 + $0x154] sm:$0xf]
  %v369 = vld [vmem:[%s1 + $0x158] sm:$0xf]
  %v370 = vld [vmem:[%s1 + $0x15c] sm:$0xf]
  %v371 = vld [vmem:[%s1 + $0x160] sm:$0xf]
  %v372 = vld [vmem:[%s1 + $0x164] sm:$0xf]
  %v373 = vld [vmem:[%s1 + $0x168] sm:$0xf]
  %v374 = vld [vmem:[%s1 + $0x16c] sm:$0xf]
  %v375 = vld [vmem:[%s1 + $0x170] sm:$0xf]
  %v376 = vld [vmem:[%s1 + $0x174] sm:$0xf]
  %v377 = vld [vmem:[%s1 + $0x178] sm:$0xf]
  %v378 = vld [vmem:[%s1 + $0x17c] sm:$0xf]
  %v379 = vld [vmem:[%s1 + $0x180] sm:$0xf]
  %v380 = vld [vmem:[%s1 + $0x184] sm:$0xf]
  %v381 = vld [vmem:[%s5] sm:$0x1]
  %v382 = vlaneseq
  %v383 = vshrl.u32 %v382, 7
  %v384 = vsub.s32 0, %v383
  %v385 = vrot.slane %v381, %v384
  %v638 = vunpack.c.l.b16 %v31
  %v639 = vunpack.c.h.b16 %v31
  %v640 = vunpack.c.l.b16 %v32
  %v641 = vunpack.c.h.b16 %v32
  %v642 = vunpack.c.l.b16 %v33
  %v643 = vunpack.c.h.b16 %v33
  %v644 = vunpack.c.l.b16 %v34
  %v645 = vunpack.c.l.b16 %v35
  %v646 = vunpack.c.h.b16 %v35
  %v647 = vunpack.c.l.b16 %v36
  %v648 = vunpack.c.h.b16 %v36
  %v649 = vunpack.c.l.b16 %v37
  %v650 = vunpack.c.h.b16 %v37
  %v651 = vunpack.c.l.b16 %v38
  %v652 = vunpack.c.l.b16 %v39
  %v653 = vunpack.c.h.b16 %v39
  %v654 = vunpack.c.l.b16 %v40
  %v655 = vunpack.c.h.b16 %v40
  %v656 = vunpack.c.l.b16 %v41
  %v657 = vunpack.c.h.b16 %v41
  %v658 = vunpack.c.l.b16 %v42
  %v659 = vunpack.c.l.b16 %v43
  %v660 = vunpack.c.h.b16 %v43
  %v661 = vunpack.c.l.b16 %v44
  %v662 = vunpack.c.h.b16 %v44
  %v663 = vunpack.c.l.b16 %v45
  %v664 = vunpack.c.h.b16 %v45
  %v665 = vunpack.c.l.b16 %v46
  %v666 = vunpack.c.l.b16 %v47
  %v667 = vunpack.c.h.b16 %v47
  %v668 = vunpack.c.l.b16 %v48
  %v669 = vunpack.c.h.b16 %v48
  %v670 = vunpack.c.l.b16 %v49
  %v671 = vunpack.c.h.b16 %v49
  %v672 = vunpack.c.l.b16 %v50
  %v673 = vunpack.c.l.b16 %v51
  %v674 = vunpack.c.h.b16 %v51
  %v675 = vunpack.c.l.b16 %v52
  %v676 = vunpack.c.h.b16 %v52
  %v677 = vunpack.c.l.b16 %v53
  %v678 = vunpack.c.h.b16 %v53
  %v679 = vunpack.c.l.b16 %v54
  %v680 = vunpack.c.l.b16 %v55
  %v681 = vunpack.c.h.b16 %v55
  %v682 = vunpack.c.l.b16 %v56
  %v683 = vunpack.c.h.b16 %v56
  %v684 = vunpack.c.l.b16 %v57
  %v685 = vunpack.c.h.b16 %v57
  %v686 = vunpack.c.l.b16 %v58
  %v687 = vunpack.c.l.b16 %v59
  %v688 = vunpack.c.h.b16 %v59
  %v689 = vunpack.c.l.b16 %v60
  %v690 = vunpack.c.h.b16 %v60
  %v691 = vunpack.c.l.b16 %v61
  %v692 = vunpack.c.h.b16 %v61
  %v693 = vunpack.c.l.b16 %v62
  %v694 = vunpack.c.l.b16 %v63
  %v695 = vunpack.c.h.b16 %v63
  %v696 = vunpack.c.l.b16 %v64
  %v697 = vunpack.c.h.b16 %v64
  %v698 = vunpack.c.l.b16 %v65
  %v699 = vunpack.c.h.b16 %v65
  %v700 = vunpack.c.l.b16 %v66
  %v701 = vunpack.c.l.b16 %v67
  %v702 = vunpack.c.h.b16 %v67
  %v703 = vunpack.c.l.b16 %v68
  %v704 = vunpack.c.h.b16 %v68
  %v705 = vunpack.c.l.b16 %v69
  %v706 = vunpack.c.h.b16 %v69
  %v707 = vunpack.c.l.b16 %v70
  %v708 = vunpack.c.l.b16 %v71
  %v709 = vunpack.c.h.b16 %v71
  %v710 = vunpack.c.l.b16 %v72
  %v711 = vunpack.c.h.b16 %v72
  %v712 = vunpack.c.l.b16 %v73
  %v713 = vunpack.c.h.b16 %v73
  %v714 = vunpack.c.l.b16 %v74
  %v715 = vunpack.c.l.b16 %v75
  %v716 = vunpack.c.h.b16 %v75
  %v717 = vunpack.c.l.b16 %v76
  %v718 = vunpack.c.h.b16 %v76
  %v719 = vunpack.c.l.b16 %v77
  %v720 = vunpack.c.h.b16 %v77
  %v721 = vunpack.c.l.b16 %v78
  %v722 = vunpack.c.l.b16 %v79
  %v723 = vunpack.c.h.b16 %v79
  %v724 = vunpack.c.l.b16 %v80
  %v725 = vunpack.c.h.b16 %v80
  %v726 = vunpack.c.l.b16 %v81
  %v727 = vunpack.c.h.b16 %v81
  %v728 = vunpack.c.l.b16 %v82
  %v729 = vunpack.c.l.b16 %v83
  %v730 = vunpack.c.h.b16 %v83
  %v731 = vunpack.c.l.b16 %v84
  %v732 = vunpack.c.h.b16 %v84
  %v733 = vunpack.c.l.b16 %v85
  %v734 = vunpack.c.h.b16 %v85
  %v735 = vunpack.c.l.b16 %v86
  %v736 = vunpack.c.l.b16 %v87
  %v737 = vunpack.c.h.b16 %v87
  %v738 = vunpack.c.l.b16 %v88
  %v739 = vunpack.c.h.b16 %v88
  %v740 = vunpack.c.l.b16 %v89
  %v741 = vunpack.c.h.b16 %v89
  %v742 = vunpack.c.l.b16 %v90
  %v743 = vunpack.c.l.b16 %v91
  %v744 = vunpack.c.h.b16 %v91
  %v745 = vunpack.c.l.b16 %v92
  %v746 = vunpack.c.h.b16 %v92
  %v747 = vunpack.c.l.b16 %v93
  %v748 = vunpack.c.h.b16 %v93
  %v749 = vunpack.c.l.b16 %v94
  %v750 = vunpack.c.l.b16 %v95
  %v751 = vunpack.c.h.b16 %v95
  %v752 = vunpack.c.l.b16 %v96
  %v753 = vunpack.c.h.b16 %v96
  %v754 = vunpack.c.l.b16 %v97
  %v755 = vunpack.c.h.b16 %v97
  %v756 = vunpack.c.l.b16 %v98
  %v757 = vunpack.c.l.b16 %v99
  %v758 = vunpack.c.h.b16 %v99
  %v759 = vunpack.c.l.b16 %v100
  %v760 = vunpack.c.h.b16 %v100
  %v761 = vunpack.c.l.b16 %v101
  %v762 = vunpack.c.h.b16 %v101
  %v763 = vunpack.c.l.b16 %v102
  %v764 = vunpack.c.l.b16 %v103
  %v765 = vunpack.c.h.b16 %v103
  %v766 = vunpack.c.l.b16 %v104
  %v767 = vunpack.c.h.b16 %v104
  %v768 = vunpack.c.l.b16 %v105
  %v769 = vunpack.c.h.b16 %v105
  %v770 = vunpack.c.l.b16 %v106
  %v771 = vunpack.c.l.b16 %v107
  %v772 = vunpack.c.h.b16 %v107
  %v773 = vunpack.c.l.b16 %v108
  %v774 = vunpack.c.h.b16 %v108
  %v775 = vunpack.c.l.b16 %v109
  %v776 = vunpack.c.h.b16 %v109
  %v777 = vunpack.c.l.b16 %v110
  %v778 = vunpack.c.l.b16 %v111
  %v779 = vunpack.c.h.b16 %v111
  %v780 = vunpack.c.l.b16 %v112
  %v781 = vunpack.c.h.b16 %v112
  %v782 = vunpack.c.l.b16 %v113
  %v783 = vunpack.c.h.b16 %v113
  %v784 = vunpack.c.l.b16 %v114
  %v785 = vunpack.c.l.b16 %v115
  %v786 = vunpack.c.h.b16 %v115
  %v787 = vunpack.c.l.b16 %v116
  %v788 = vunpack.c.h.b16 %v116
  %v789 = vunpack.c.l.b16 %v117
  %v790 = vunpack.c.h.b16 %v117
  %v791 = vunpack.c.l.b16 %v118
  %v792 = vunpack.c.l.b16 %v119
  %v793 = vunpack.c.h.b16 %v119
  %v794 = vunpack.c.l.b16 %v120
  %v795 = vunpack.c.h.b16 %v120
  %v796 = vunpack.c.l.b16 %v121
  %v797 = vunpack.c.h.b16 %v121
  %v798 = vunpack.c.l.b16 %v122
  %v799 = vunpack.c.l.b16 %v123
  %v800 = vunpack.c.h.b16 %v123
  %v801 = vunpack.c.l.b16 %v124
  %v802 = vunpack.c.h.b16 %v124
  %v803 = vunpack.c.l.b16 %v125
  %v804 = vunpack.c.h.b16 %v125
  %v805 = vunpack.c.l.b16 %v126
  %v806 = vunpack.c.l.b16 %v127
  %v807 = vunpack.c.h.b16 %v127
  %v808 = vunpack.c.l.b16 %v128
  %v809 = vunpack.c.h.b16 %v128
  %v810 = vunpack.c.l.b16 %v129
  %v811 = vunpack.c.h.b16 %v129
  %v812 = vunpack.c.l.b16 %v130
  %v813 = vunpack.c.l.b16 %v131
  %v814 = vunpack.c.h.b16 %v131
  %v815 = vunpack.c.l.b16 %v132
  %v816 = vunpack.c.h.b16 %v132
  %v817 = vunpack.c.l.b16 %v133
  %v818 = vunpack.c.h.b16 %v133
  %v819 = vunpack.c.l.b16 %v134
  %v820 = vunpack.c.l.b16 %v135
  %v821 = vunpack.c.h.b16 %v135
  %v822 = vunpack.c.l.b16 %v136
  %v823 = vunpack.c.h.b16 %v136
  %v824 = vunpack.c.l.b16 %v137
  %v825 = vunpack.c.h.b16 %v137
  %v826 = vunpack.c.l.b16 %v138
  %v827 = vunpack.c.l.b16 %v139
  %v828 = vunpack.c.h.b16 %v139
  %v829 = vunpack.c.l.b16 %v140
  %v830 = vunpack.c.h.b16 %v140
  %v831 = vunpack.c.l.b16 %v141
  %v832 = vunpack.c.h.b16 %v141
  %v833 = vunpack.c.l.b16 %v142
  %v834 = vunpack.c.l.b16 %v143
  %v835 = vunpack.c.h.b16 %v143
  %v836 = vunpack.c.l.b16 %v144
  %v837 = vunpack.c.h.b16 %v144
  %v838 = vunpack.c.l.b16 %v145
  %v839 = vunpack.c.h.b16 %v145
  %v840 = vunpack.c.l.b16 %v146
  %v841 = vunpack.c.l.b16 %v147
  %v842 = vunpack.c.h.b16 %v147
  %v843 = vunpack.c.l.b16 %v148
  %v844 = vunpack.c.h.b16 %v148
  %v845 = vunpack.c.l.b16 %v149
  %v846 = vunpack.c.h.b16 %v149
  %v847 = vunpack.c.l.b16 %v150
  %v848 = vunpack.c.l.b16 %v151
  %v849 = vunpack.c.h.b16 %v151
  %v850 = vunpack.c.l.b16 %v152
  %v851 = vunpack.c.h.b16 %v152
  %v852 = vunpack.c.l.b16 %v153
  %v853 = vunpack.c.h.b16 %v153
  %v854 = vunpack.c.l.b16 %v154
  %v855 = vunpack.c.l.b16 %v155
  %v856 = vunpack.c.h.b16 %v155
  %v857 = vunpack.c.l.b16 %v156
  %v858 = vunpack.c.h.b16 %v156
  %v859 = vunpack.c.l.b16 %v157
  %v860 = vunpack.c.h.b16 %v157
  %v861 = vunpack.c.l.b16 %v158
  %v862 = vunpack.c.l.b16 %v159
  %v863 = vunpack.c.h.b16 %v159
  %v864 = vunpack.c.l.b16 %v160
  %v865 = vunpack.c.h.b16 %v160
  %v866 = vunpack.c.l.b16 %v161
  %v867 = vunpack.c.h.b16 %v161
  %v868 = vunpack.c.l.b16 %v162
  %v869 = vunpack.c.l.b16 %v163
  %v870 = vunpack.c.h.b16 %v163
  %v871 = vunpack.c.l.b16 %v164
  %v872 = vunpack.c.h.b16 %v164
  %v873 = vunpack.c.l.b16 %v165
  %v874 = vunpack.c.h.b16 %v165
  %v875 = vunpack.c.l.b16 %v166
  %v876 = vunpack.c.l.b16 %v167
  %v877 = vunpack.c.h.b16 %v167
  %v878 = vunpack.c.l.b16 %v168
  %v879 = vunpack.c.h.b16 %v168
  %v880 = vunpack.c.l.b16 %v169
  %v881 = vunpack.c.h.b16 %v169
  %v882 = vunpack.c.l.b16 %v170
  %v883 = vunpack.c.l.b16 %v171
  %v884 = vunpack.c.h.b16 %v171
  %v885 = vunpack.c.l.b16 %v172
  %v886 = vunpack.c.h.b16 %v172
  %v887 = vunpack.c.l.b16 %v173
  %v888 = vunpack.c.h.b16 %v173
  %v889 = vunpack.c.l.b16 %v174
  %v890 = vunpack.c.l.b16 %v175
  %v891 = vunpack.c.h.b16 %v175
  %v892 = vunpack.c.l.b16 %v176
  %v893 = vunpack.c.h.b16 %v176
  %v894 = vunpack.c.l.b16 %v177
  %v895 = vunpack.c.h.b16 %v177
  %v896 = vunpack.c.l.b16 %v178
  %v897 = vunpack.c.l.b16 %v179
  %v898 = vunpack.c.h.b16 %v179
  %v899 = vunpack.c.l.b16 %v180
  %v900 = vunpack.c.h.b16 %v180
  %v901 = vunpack.c.l.b16 %v181
  %v902 = vunpack.c.h.b16 %v181
  %v903 = vunpack.c.l.b16 %v182
  %v904 = vunpack.c.l.b16 %v183
  %v905 = vunpack.c.h.b16 %v183
  %v906 = vunpack.c.l.b16 %v184
  %v907 = vunpack.c.h.b16 %v184
  %v908 = vunpack.c.l.b16 %v185
  %v909 = vunpack.c.h.b16 %v185
  %v910 = vunpack.c.l.b16 %v186
  %v911 = vunpack.c.l.b16 %v187
  %v912 = vunpack.c.h.b16 %v187
  %v913 = vunpack.c.l.b16 %v188
  %v914 = vunpack.c.h.b16 %v188
  %v915 = vunpack.c.l.b16 %v189
  %v916 = vunpack.c.h.b16 %v189
  %v917 = vunpack.c.l.b16 %v190
  %v918 = vunpack.c.l.b16 %v191
  %v919 = vunpack.c.h.b16 %v191
  %v920 = vunpack.c.l.b16 %v192
  %v921 = vunpack.c.h.b16 %v192
  %v922 = vunpack.c.l.b16 %v193
  %v923 = vunpack.c.h.b16 %v193
  %v924 = vunpack.c.l.b16 %v194
  %v925 = vunpack.c.l.b16 %v195
  %v926 = vunpack.c.h.b16 %v195
  %v927 = vunpack.c.l.b16 %v196
  %v928 = vunpack.c.h.b16 %v196
  %v929 = vunpack.c.l.b16 %v197
  %v930 = vunpack.c.h.b16 %v197
  %v931 = vunpack.c.l.b16 %v198
  %v932 = vunpack.c.l.b16 %v199
  %v933 = vunpack.c.h.b16 %v199
  %v934 = vunpack.c.l.b16 %v200
  %v935 = vunpack.c.h.b16 %v200
  %v936 = vunpack.c.l.b16 %v201
  %v937 = vunpack.c.h.b16 %v201
  %v938 = vunpack.c.l.b16 %v202
  %v939 = vunpack.c.l.b16 %v203
  %v940 = vunpack.c.h.b16 %v203
  %v941 = vunpack.c.l.b16 %v204
  %v942 = vunpack.c.h.b16 %v204
  %v943 = vunpack.c.l.b16 %v205
  %v944 = vunpack.c.h.b16 %v205
  %v945 = vunpack.c.l.b16 %v206
  %v946 = vunpack.c.l.b16 %v207
  %v947 = vunpack.c.h.b16 %v207
  %v948 = vunpack.c.l.b16 %v208
  %v949 = vunpack.c.h.b16 %v208
  %v950 = vunpack.c.l.b16 %v209
  %v951 = vunpack.c.h.b16 %v209
  %v952 = vunpack.c.l.b16 %v210
  %v953 = vunpack.c.l.b16 %v211
  %v954 = vunpack.c.h.b16 %v211
  %v955 = vunpack.c.l.b16 %v212
  %v956 = vunpack.c.h.b16 %v212
  %v957 = vunpack.c.l.b16 %v213
  %v958 = vunpack.c.h.b16 %v213
  %v959 = vunpack.c.l.b16 %v214
  %v960 = vunpack.c.l.b16 %v215
  %v961 = vunpack.c.h.b16 %v215
  %v962 = vunpack.c.l.b16 %v216
  %v963 = vunpack.c.h.b16 %v216
  %v964 = vunpack.c.l.b16 %v217
  %v965 = vunpack.c.h.b16 %v217
  %v966 = vunpack.c.l.b16 %v218
  %v967 = vunpack.c.l.b16 %v219
  %v968 = vunpack.c.h.b16 %v219
  %v969 = vunpack.c.l.b16 %v220
  %v970 = vunpack.c.h.b16 %v220
  %v971 = vunpack.c.l.b16 %v221
  %v972 = vunpack.c.h.b16 %v221
  %v973 = vunpack.c.l.b16 %v222
  %v974 = vunpack.c.l.b16 %v223
  %v975 = vunpack.c.h.b16 %v223
  %v976 = vunpack.c.l.b16 %v224
  %v977 = vunpack.c.h.b16 %v224
  %v978 = vunpack.c.l.b16 %v225
  %v979 = vunpack.c.h.b16 %v225
  %v980 = vunpack.c.l.b16 %v226
  %v981 = vunpack.c.l.b16 %v227
  %v982 = vunpack.c.h.b16 %v227
  %v983 = vunpack.c.l.b16 %v228
  %v984 = vunpack.c.h.b16 %v228
  %v985 = vunpack.c.l.b16 %v229
  %v986 = vunpack.c.h.b16 %v229
  %v987 = vunpack.c.l.b16 %v230
  %v988 = vunpack.c.l.b16 %v231
  %v989 = vunpack.c.h.b16 %v231
  %v990 = vunpack.c.l.b16 %v232
  %v991 = vunpack.c.h.b16 %v232
  %v992 = vunpack.c.l.b16 %v233
  %v993 = vunpack.c.h.b16 %v233
  %v994 = vunpack.c.l.b16 %v234
  %v995 = vunpack.c.l.b16 %v235
  %v996 = vunpack.c.h.b16 %v235
  %v997 = vunpack.c.l.b16 %v236
  %v998 = vunpack.c.h.b16 %v236
  %v999 = vunpack.c.l.b16 %v237
  %v1000 = vunpack.c.h.b16 %v237
  %v1001 = vunpack.c.l.b16 %v238
  %v1002 = vunpack.c.l.b16 %v239
  %v1003 = vunpack.c.h.b16 %v239
  %v1004 = vunpack.c.l.b16 %v240
  %v1005 = vunpack.c.h.b16 %v240
  %v1006 = vunpack.c.l.b16 %v241
  %v1007 = vunpack.c.h.b16 %v241
  %v1008 = vunpack.c.l.b16 %v242
  %v1009 = vunpack.c.l.b16 %v243
  %v1010 = vunpack.c.h.b16 %v243
  %v1011 = vunpack.c.l.b16 %v244
  %v1012 = vunpack.c.h.b16 %v244
  %v1013 = vunpack.c.l.b16 %v245
  %v1014 = vunpack.c.h.b16 %v245
  %v1015 = vunpack.c.l.b16 %v246
  %v1016 = vunpack.c.l.b16 %v247
  %v1017 = vunpack.c.h.b16 %v247
  %v1018 = vunpack.c.l.b16 %v248
  %v1019 = vunpack.c.h.b16 %v248
  %v1020 = vunpack.c.l.b16 %v249
  %v1021 = vunpack.c.h.b16 %v249
  %v1022 = vunpack.c.l.b16 %v250
  %v1023 = vunpack.c.l.b16 %v251
  %v1024 = vunpack.c.h.b16 %v251
  %v1025 = vunpack.c.l.b16 %v252
  %v1026 = vunpack.c.h.b16 %v252
  %v1027 = vunpack.c.l.b16 %v253
  %v1028 = vunpack.c.h.b16 %v253
  %v1029 = vunpack.c.l.b16 %v254
  %v1030 = vunpack.c.l.b16 %v255
  %v1031 = vunpack.c.h.b16 %v255
  %v1032 = vunpack.c.l.b16 %v256
  %v1033 = vunpack.c.h.b16 %v256
  %v1034 = vunpack.c.l.b16 %v257
  %v1035 = vunpack.c.h.b16 %v257
  %v1036 = vunpack.c.l.b16 %v258
  %v1037 = vunpack.c.l.b16 %v259
  %v1038 = vunpack.c.h.b16 %v259
  %v1039 = vunpack.c.l.b16 %v260
  %v1040 = vunpack.c.h.b16 %v260
  %v1041 = vunpack.c.l.b16 %v261
  %v1042 = vunpack.c.h.b16 %v261
  %v1043 = vunpack.c.l.b16 %v262
  %v1044 = vunpack.c.l.b16 %v263
  %v1045 = vunpack.c.h.b16 %v263
  %v1046 = vunpack.c.l.b16 %v264
  %v1047 = vunpack.c.h.b16 %v264
  %v1048 = vunpack.c.l.b16 %v265
  %v1049 = vunpack.c.h.b16 %v265
  %v1050 = vunpack.c.l.b16 %v266
  %v1051 = vunpack.c.l.b16 %v267
  %v1052 = vunpack.c.h.b16 %v267
  %v1053 = vunpack.c.l.b16 %v268
  %v1054 = vunpack.c.h.b16 %v268
  %v1055 = vunpack.c.l.b16 %v269
  %v1056 = vunpack.c.h.b16 %v269
  %v1057 = vunpack.c.l.b16 %v270
  %v1058 = vunpack.c.l.b16 %v271
  %v1059 = vunpack.c.h.b16 %v271
  %v1060 = vunpack.c.l.b16 %v272
  %v1061 = vunpack.c.h.b16 %v272
  %v1062 = vunpack.c.l.b16 %v273
  %v1063 = vunpack.c.h.b16 %v273
  %v1064 = vunpack.c.l.b16 %v274
  %v1065 = vunpack.c.l.b16 %v275
  %v1066 = vunpack.c.h.b16 %v275
  %v1067 = vunpack.c.l.b16 %v276
  %v1068 = vunpack.c.h.b16 %v276
  %v1069 = vunpack.c.l.b16 %v277
  %v1070 = vunpack.c.h.b16 %v277
  %v1071 = vunpack.c.l.b16 %v278
  %v1072 = vunpack.c.l.b16 %v279
  %v1073 = vunpack.c.h.b16 %v279
  %v1074 = vunpack.c.l.b16 %v280
  %v1075 = vunpack.c.h.b16 %v280
  %v1076 = vunpack.c.l.b16 %v281
  %v1077 = vunpack.c.h.b16 %v281
  %v1078 = vunpack.c.l.b16 %v282
  %v1079 = vpack.c.b16 %v645, %v638
  %v1080 = vpack.c.b16 %v646, %v639
  %v1081 = vpack.c.b16 %v647, %v640
  %v1082 = vpack.c.b16 %v648, %v641
  %v1083 = vpack.c.b16 %v649, %v642
  %v1084 = vpack.c.b16 %v650, %v643
  %v1085 = vpack.c.b16 %v651, %v644
  %v1086 = vpack.c.b16 %v659, %v652
  %v1087 = vpack.c.b16 %v660, %v653
  %v1088 = vpack.c.b16 %v661, %v654
  %v1089 = vpack.c.b16 %v662, %v655
  %v1090 = vpack.c.b16 %v663, %v656
  %v1091 = vpack.c.b16 %v664, %v657
  %v1092 = vpack.c.b16 %v665, %v658
  %v1093 = vpack.c.b16 %v673, %v666
  %v1094 = vpack.c.b16 %v674, %v667
  %v1095 = vpack.c.b16 %v675, %v668
  %v1096 = vpack.c.b16 %v676, %v669
  %v1097 = vpack.c.b16 %v677, %v670
  %v1098 = vpack.c.b16 %v678, %v671
  %v1099 = vpack.c.b16 %v679, %v672
  %v1100 = vpack.c.b16 %v687, %v680
  %v1101 = vpack.c.b16 %v688, %v681
  %v1102 = vpack.c.b16 %v689, %v682
  %v1103 = vpack.c.b16 %v690, %v683
  %v1104 = vpack.c.b16 %v691, %v684
  %v1105 = vpack.c.b16 %v692, %v685
  %v1106 = vpack.c.b16 %v693, %v686
  %v1107 = vpack.c.b16 %v701, %v694
  %v1108 = vpack.c.b16 %v702, %v695
  %v1109 = vpack.c.b16 %v703, %v696
  %v1110 = vpack.c.b16 %v704, %v697
  %v1111 = vpack.c.b16 %v705, %v698
  %v1112 = vpack.c.b16 %v706, %v699
  %v1113 = vpack.c.b16 %v707, %v700
  %v1114 = vpack.c.b16 %v715, %v708
  %v1115 = vpack.c.b16 %v716, %v709
  %v1116 = vpack.c.b16 %v717, %v710
  %v1117 = vpack.c.b16 %v718, %v711
  %v1118 = vpack.c.b16 %v719, %v712
  %v1119 = vpack.c.b16 %v720, %v713
  %v1120 = vpack.c.b16 %v721, %v714
  %v1121 = vpack.c.b16 %v729, %v722
  %v1122 = vpack.c.b16 %v730, %v723
  %v1123 = vpack.c.b16 %v731, %v724
  %v1124 = vpack.c.b16 %v732, %v725
  %v1125 = vpack.c.b16 %v733, %v726
  %v1126 = vpack.c.b16 %v734, %v727
  %v1127 = vpack.c.b16 %v735, %v728
  %v1128 = vpack.c.b16 %v743, %v736
  %v1129 = vpack.c.b16 %v744, %v737
  %v1130 = vpack.c.b16 %v745, %v738
  %v1131 = vpack.c.b16 %v746, %v739
  %v1132 = vpack.c.b16 %v747, %v740
  %v1133 = vpack.c.b16 %v748, %v741
  %v1134 = vpack.c.b16 %v749, %v742
  %v1135 = vpack.c.b16 %v757, %v750
  %v1136 = vpack.c.b16 %v758, %v751
  %v1137 = vpack.c.b16 %v759, %v752
  %v1138 = vpack.c.b16 %v760, %v753
  %v1139 = vpack.c.b16 %v761, %v754
  %v1140 = vpack.c.b16 %v762, %v755
  %v1141 = vpack.c.b16 %v763, %v756
  %v1142 = vpack.c.b16 %v771, %v764
  %v1143 = vpack.c.b16 %v772, %v765
  %v1144 = vpack.c.b16 %v773, %v766
  %v1145 = vpack.c.b16 %v774, %v767
  %v1146 = vpack.c.b16 %v775, %v768
  %v1147 = vpack.c.b16 %v776, %v769
  %v1148 = vpack.c.b16 %v777, %v770
  %v1149 = vpack.c.b16 %v785, %v778
  %v1150 = vpack.c.b16 %v786, %v779
  %v1151 = vpack.c.b16 %v787, %v780
  %v1152 = vpack.c.b16 %v788, %v781
  %v1153 = vpack.c.b16 %v789, %v782
  %v1154 = vpack.c.b16 %v790, %v783
  %v1155 = vpack.c.b16 %v791, %v784
  %v1156 = vpack.c.b16 %v799, %v792
  %v1157 = vpack.c.b16 %v800, %v793
  %v1158 = vpack.c.b16 %v801, %v794
  %v1159 = vpack.c.b16 %v802, %v795
  %v1160 = vpack.c.b16 %v803, %v796
  %v1161 = vpack.c.b16 %v804, %v797
  %v1162 = vpack.c.b16 %v805, %v798
  %v1163 = vpack.c.b16 %v813, %v806
  %v1164 = vpack.c.b16 %v814, %v807
  %v1165 = vpack.c.b16 %v815, %v808
  %v1166 = vpack.c.b16 %v816, %v809
  %v1167 = vpack.c.b16 %v817, %v810
  %v1168 = vpack.c.b16 %v818, %v811
  %v1169 = vpack.c.b16 %v819, %v812
  %v1170 = vpack.c.b16 %v827, %v820
  %v1171 = vpack.c.b16 %v828, %v821
  %v1172 = vpack.c.b16 %v829, %v822
  %v1173 = vpack.c.b16 %v830, %v823
  %v1174 = vpack.c.b16 %v831, %v824
  %v1175 = vpack.c.b16 %v832, %v825
  %v1176 = vpack.c.b16 %v833, %v826
  %v1177 = vpack.c.b16 %v841, %v834
  %v1178 = vpack.c.b16 %v842, %v835
  %v1179 = vpack.c.b16 %v843, %v836
  %v1180 = vpack.c.b16 %v844, %v837
  %v1181 = vpack.c.b16 %v845, %v838
  %v1182 = vpack.c.b16 %v846, %v839
  %v1183 = vpack.c.b16 %v847, %v840
  %v1184 = vpack.c.b16 %v855, %v848
  %v1185 = vpack.c.b16 %v856, %v849
  %v1186 = vpack.c.b16 %v857, %v850
  %v1187 = vpack.c.b16 %v858, %v851
  %v1188 = vpack.c.b16 %v859, %v852
  %v1189 = vpack.c.b16 %v860, %v853
  %v1190 = vpack.c.b16 %v861, %v854
  %v1191 = vpack.c.b16 %v869, %v862
  %v1192 = vpack.c.b16 %v870, %v863
  %v1193 = vpack.c.b16 %v871, %v864
  %v1194 = vpack.c.b16 %v872, %v865
  %v1195 = vpack.c.b16 %v873, %v866
  %v1196 = vpack.c.b16 %v874, %v867
  %v1197 = vpack.c.b16 %v875, %v868
  %v1198 = vpack.c.b16 %v883, %v876
  %v1199 = vpack.c.b16 %v884, %v877
  %v1200 = vpack.c.b16 %v885, %v878
  %v1201 = vpack.c.b16 %v886, %v879
  %v1202 = vpack.c.b16 %v887, %v880
  %v1203 = vpack.c.b16 %v888, %v881
  %v1204 = vpack.c.b16 %v889, %v882
  %v1205 = vpack.c.b16 %v897, %v890
  %v1206 = vpack.c.b16 %v898, %v891
  %v1207 = vpack.c.b16 %v899, %v892
  %v1208 = vpack.c.b16 %v900, %v893
  %v1209 = vpack.c.b16 %v901, %v894
  %v1210 = vpack.c.b16 %v902, %v895
  %v1211 = vpack.c.b16 %v903, %v896
  %v1212 = vpack.c.b16 %v911, %v904
  %v1213 = vpack.c.b16 %v912, %v905
  %v1214 = vpack.c.b16 %v913, %v906
  %v1215 = vpack.c.b16 %v914, %v907
  %v1216 = vpack.c.b16 %v915, %v908
  %v1217 = vpack.c.b16 %v916, %v909
  %v1218 = vpack.c.b16 %v917, %v910
  %v1219 = vpack.c.b16 %v925, %v918
  %v1220 = vpack.c.b16 %v926, %v919
  %v1221 = vpack.c.b16 %v927, %v920
  %v1222 = vpack.c.b16 %v928, %v921
  %v1223 = vpack.c.b16 %v929, %v922
  %v1224 = vpack.c.b16 %v930, %v923
  %v1225 = vpack.c.b16 %v931, %v924
  %v1226 = vpack.c.b16 %v939, %v932
  %v1227 = vpack.c.b16 %v940, %v933
  %v1228 = vpack.c.b16 %v941, %v934
  %v1229 = vpack.c.b16 %v942, %v935
  %v1230 = vpack.c.b16 %v943, %v936
  %v1231 = vpack.c.b16 %v944, %v937
  %v1232 = vpack.c.b16 %v945, %v938
  %v1233 = vpack.c.b16 %v953, %v946
  %v1234 = vpack.c.b16 %v954, %v947
  %v1235 = vpack.c.b16 %v955, %v948
  %v1236 = vpack.c.b16 %v956, %v949
  %v1237 = vpack.c.b16 %v957, %v950
  %v1238 = vpack.c.b16 %v958, %v951
  %v1239 = vpack.c.b16 %v959, %v952
  %v1240 = vpack.c.b16 %v967, %v960
  %v1241 = vpack.c.b16 %v968, %v961
  %v1242 = vpack.c.b16 %v969, %v962
  %v1243 = vpack.c.b16 %v970, %v963
  %v1244 = vpack.c.b16 %v971, %v964
  %v1245 = vpack.c.b16 %v972, %v965
  %v1246 = vpack.c.b16 %v973, %v966
  %v1247 = vpack.c.b16 %v981, %v974
  %v1248 = vpack.c.b16 %v982, %v975
  %v1249 = vpack.c.b16 %v983, %v976
  %v1250 = vpack.c.b16 %v984, %v977
  %v1251 = vpack.c.b16 %v985, %v978
  %v1252 = vpack.c.b16 %v986, %v979
  %v1253 = vpack.c.b16 %v987, %v980
  %v1254 = vpack.c.b16 %v995, %v988
  %v1255 = vpack.c.b16 %v996, %v989
  %v1256 = vpack.c.b16 %v997, %v990
  %v1257 = vpack.c.b16 %v998, %v991
  %v1258 = vpack.c.b16 %v999, %v992
  %v1259 = vpack.c.b16 %v1000, %v993
  %v1260 = vpack.c.b16 %v1001, %v994
  %v1261 = vpack.c.b16 %v1009, %v1002
  %v1262 = vpack.c.b16 %v1010, %v1003
  %v1263 = vpack.c.b16 %v1011, %v1004
  %v1264 = vpack.c.b16 %v1012, %v1005
  %v1265 = vpack.c.b16 %v1013, %v1006
  %v1266 = vpack.c.b16 %v1014, %v1007
  %v1267 = vpack.c.b16 %v1015, %v1008
  %v1268 = vpack.c.b16 %v1023, %v1016
  %v1269 = vpack.c.b16 %v1024, %v1017
  %v1270 = vpack.c.b16 %v1025, %v1018
  %v1271 = vpack.c.b16 %v1026, %v1019
  %v1272 = vpack.c.b16 %v1027, %v1020
  %v1273 = vpack.c.b16 %v1028, %v1021
  %v1274 = vpack.c.b16 %v1029, %v1022
  %v1275 = vpack.c.b16 %v1037, %v1030
  %v1276 = vpack.c.b16 %v1038, %v1031
  %v1277 = vpack.c.b16 %v1039, %v1032
  %v1278 = vpack.c.b16 %v1040, %v1033
  %v1279 = vpack.c.b16 %v1041, %v1034
  %v1280 = vpack.c.b16 %v1042, %v1035
  %v1281 = vpack.c.b16 %v1043, %v1036
  %v1282 = vpack.c.b16 %v1051, %v1044
  %v1283 = vpack.c.b16 %v1052, %v1045
  %v1284 = vpack.c.b16 %v1053, %v1046
  %v1285 = vpack.c.b16 %v1054, %v1047
  %v1286 = vpack.c.b16 %v1055, %v1048
  %v1287 = vpack.c.b16 %v1056, %v1049
  %v1288 = vpack.c.b16 %v1057, %v1050
  %v1289 = vpack.c.b16 %v1065, %v1058
  %v1290 = vpack.c.b16 %v1066, %v1059
  %v1291 = vpack.c.b16 %v1067, %v1060
  %v1292 = vpack.c.b16 %v1068, %v1061
  %v1293 = vpack.c.b16 %v1069, %v1062
  %v1294 = vpack.c.b16 %v1070, %v1063
  %v1295 = vpack.c.b16 %v1071, %v1064
  %v1296 = vpack.c.b16 %v1072, %v1072
  %v1297 = vpack.c.b16 %v1073, %v1073
  %v1298 = vpack.c.b16 %v1074, %v1074
  %v1299 = vpack.c.b16 %v1075, %v1075
  %v1300 = vpack.c.b16 %v1076, %v1076
  %v1301 = vpack.c.b16 %v1077, %v1077
  %v1302 = vpack.c.b16 %v1078, %v1078
  %v1593 = vunpack.c.l.b16 %v283
  %v1594 = vunpack.c.l.b16 %v284
  %v1595 = vunpack.c.l.b16 %v285
  %v1596 = vunpack.c.l.b16 %v286
  %v1597 = vunpack.c.l.b16 %v287
  %v1598 = vunpack.c.l.b16 %v288
  %v1599 = vunpack.c.l.b16 %v289
  %v1600 = vunpack.c.l.b16 %v290
  %v1601 = vunpack.c.l.b16 %v291
  %v1602 = vunpack.c.l.b16 %v292
  %v1603 = vunpack.c.l.b16 %v293
  %v1604 = vunpack.c.l.b16 %v294
  %v1605 = vunpack.c.l.b16 %v295
  %v1606 = vunpack.c.l.b16 %v296
  %v1607 = vunpack.c.l.b16 %v297
  %v1608 = vunpack.c.l.b16 %v298
  %v1609 = vunpack.c.l.b16 %v299
  %v1610 = vunpack.c.l.b16 %v300
  %v1611 = vunpack.c.l.b16 %v301
  %v1612 = vunpack.c.l.b16 %v302
  %v1613 = vunpack.c.l.b16 %v303
  %v1614 = vunpack.c.l.b16 %v304
  %v1615 = vunpack.c.l.b16 %v305
  %v1616 = vunpack.c.l.b16 %v306
  %v1617 = vunpack.c.l.b16 %v307
  %v1618 = vunpack.c.l.b16 %v308
  %v1619 = vunpack.c.l.b16 %v309
  %v1620 = vunpack.c.l.b16 %v310
  %v1621 = vunpack.c.l.b16 %v311
  %v1622 = vunpack.c.l.b16 %v312
  %v1623 = vunpack.c.l.b16 %v313
  %v1624 = vunpack.c.l.b16 %v314
  %v1625 = vunpack.c.l.b16 %v315
  %v1626 = vunpack.c.l.b16 %v316
  %v1627 = vunpack.c.l.b16 %v317
  %v1628 = vunpack.c.l.b16 %v318
  %v1629 = vunpack.c.l.b16 %v319
  %v1630 = vunpack.c.l.b16 %v320
  %v1631 = vunpack.c.l.b16 %v321
  %v1632 = vunpack.c.l.b16 %v322
  %v1633 = vunpack.c.l.b16 %v323
  %v1634 = vunpack.c.l.b16 %v324
  %v1635 = vunpack.c.l.b16 %v325
  %v1636 = vunpack.c.l.b16 %v326
  %v1637 = vunpack.c.l.b16 %v327
  %v1638 = vunpack.c.l.b16 %v328
  %v1639 = vunpack.c.l.b16 %v329
  %v1640 = vunpack.c.l.b16 %v330
  %v1641 = vunpack.c.l.b16 %v331
  %v1642 = vunpack.c.l.b16 %v332
  %v1643 = vunpack.c.l.b16 %v333
  %v1644 = vunpack.c.l.b16 %v334
  %v1645 = vunpack.c.l.b16 %v335
  %v1646 = vunpack.c.l.b16 %v336
  %v1647 = vunpack.c.l.b16 %v337
  %v1648 = vunpack.c.l.b16 %v338
  %v1649 = vunpack.c.l.b16 %v339
  %v1650 = vunpack.c.l.b16 %v340
  %v1651 = vunpack.c.l.b16 %v341
  %v1652 = vunpack.c.l.b16 %v342
  %v1653 = vunpack.c.l.b16 %v343
  %v1654 = vunpack.c.l.b16 %v344
  %v1655 = vunpack.c.l.b16 %v345
  %v1656 = vunpack.c.l.b16 %v346
  %v1657 = vunpack.c.l.b16 %v347
  %v1658 = vunpack.c.l.b16 %v348
  %v1659 = vunpack.c.l.b16 %v349
  %v1660 = vunpack.c.l.b16 %v350
  %v1661 = vunpack.c.l.b16 %v351
  %v1662 = vunpack.c.l.b16 %v352
  %v1663 = vunpack.c.l.b16 %v353
  %v1664 = vunpack.c.l.b16 %v354
  %v1665 = vunpack.c.l.b16 %v355
  %v1666 = vunpack.c.l.b16 %v356
  %v1667 = vunpack.c.l.b16 %v357
  %v1668 = vunpack.c.l.b16 %v358
  %v1669 = vunpack.c.l.b16 %v359
  %v1670 = vunpack.c.l.b16 %v360
  %v1671 = vunpack.c.l.b16 %v361
  %v1672 = vunpack.c.l.b16 %v362
  %v1673 = vunpack.c.l.b16 %v363
  %v1674 = vunpack.c.l.b16 %v364
  %v1675 = vunpack.c.l.b16 %v365
  %v1676 = vunpack.c.l.b16 %v366
  %v1677 = vunpack.c.l.b16 %v367
  %v1678 = vunpack.c.l.b16 %v368
  %v1679 = vunpack.c.l.b16 %v369
  %v1680 = vunpack.c.l.b16 %v370
  %v1681 = vunpack.c.l.b16 %v371
  %v1682 = vunpack.c.l.b16 %v372
  %v1683 = vunpack.c.l.b16 %v373
  %v1684 = vunpack.c.l.b16 %v374
  %v1685 = vunpack.c.l.b16 %v375
  %v1686 = vunpack.c.l.b16 %v376
  %v1687 = vunpack.c.l.b16 %v377
  %v1688 = vunpack.c.l.b16 %v378
  %v1689 = vunpack.c.l.b16 %v379
  %v1690 = vunpack.c.l.b16 %v380
  %v1691 = vpack.c.b16 %v1594, %v1593
  %v1692 = vpack.c.b16 %v1596, %v1595
  %v1693 = vpack.c.b16 %v1598, %v1597
  %v1694 = vpack.c.b16 %v1600, %v1599
  %v1695 = vpack.c.b16 %v1602, %v1601
  %v1696 = vpack.c.b16 %v1604, %v1603
  %v1697 = vpack.c.b16 %v1606, %v1605
  %v1698 = vpack.c.b16 %v1608, %v1607
  %v1699 = vpack.c.b16 %v1610, %v1609
  %v1700 = vpack.c.b16 %v1612, %v1611
  %v1701 = vpack.c.b16 %v1614, %v1613
  %v1702 = vpack.c.b16 %v1616, %v1615
  %v1703 = vpack.c.b16 %v1618, %v1617
  %v1704 = vpack.c.b16 %v1620, %v1619
  %v1705 = vpack.c.b16 %v1622, %v1621
  %v1706 = vpack.c.b16 %v1624, %v1623
  %v1707 = vpack.c.b16 %v1626, %v1625
  %v1708 = vpack.c.b16 %v1628, %v1627
  %v1709 = vpack.c.b16 %v1630, %v1629
  %v1710 = vpack.c.b16 %v1632, %v1631
  %v1711 = vpack.c.b16 %v1634, %v1633
  %v1712 = vpack.c.b16 %v1636, %v1635
  %v1713 = vpack.c.b16 %v1638, %v1637
  %v1714 = vpack.c.b16 %v1640, %v1639
  %v1715 = vpack.c.b16 %v1642, %v1641
  %v1716 = vpack.c.b16 %v1644, %v1643
  %v1717 = vpack.c.b16 %v1646, %v1645
  %v1718 = vpack.c.b16 %v1648, %v1647
  %v1719 = vpack.c.b16 %v1650, %v1649
  %v1720 = vpack.c.b16 %v1652, %v1651
  %v1721 = vpack.c.b16 %v1654, %v1653
  %v1722 = vpack.c.b16 %v1656, %v1655
  %v1723 = vpack.c.b16 %v1658, %v1657
  %v1724 = vpack.c.b16 %v1660, %v1659
  %v1725 = vpack.c.b16 %v1662, %v1661
  %v1726 = vpack.c.b16 %v1664, %v1663
  %v1727 = vpack.c.b16 %v1666, %v1665
  %v1728 = vpack.c.b16 %v1668, %v1667
  %v1729 = vpack.c.b16 %v1670, %v1669
  %v1730 = vpack.c.b16 %v1672, %v1671
  %v1731 = vpack.c.b16 %v1674, %v1673
  %v1732 = vpack.c.b16 %v1676, %v1675
  %v1733 = vpack.c.b16 %v1678, %v1677
  %v1734 = vpack.c.b16 %v1680, %v1679
  %v1735 = vpack.c.b16 %v1682, %v1681
  %v1736 = vpack.c.b16 %v1684, %v1683
  %v1737 = vpack.c.b16 %v1686, %v1685
  %v1738 = vpack.c.b16 %v1688, %v1687
  %v1739 = vpack.c.b16 %v1690, %v1689
  %vm1789 = vcmask 130048
  %v1791 = vsel %vm1789, %v1085, 0
  %v1794 = vsel %vm1789, %v1092, 0
  %v1797 = vsel %vm1789, %v1099, 0
  %v1800 = vsel %vm1789, %v1106, 0
  %v1803 = vsel %vm1789, %v1113, 0
  %v1806 = vsel %vm1789, %v1120, 0
  %v1809 = vsel %vm1789, %v1127, 0
  %v1812 = vsel %vm1789, %v1134, 0
  %v1815 = vsel %vm1789, %v1141, 0
  %v1818 = vsel %vm1789, %v1148, 0
  %v1821 = vsel %vm1789, %v1155, 0
  %v1824 = vsel %vm1789, %v1162, 0
  %v1827 = vsel %vm1789, %v1169, 0
  %v1830 = vsel %vm1789, %v1176, 0
  %v1833 = vsel %vm1789, %v1183, 0
  %v1836 = vsel %vm1789, %v1190, 0
  %v1839 = vsel %vm1789, %v1197, 0
  %v1842 = vsel %vm1789, %v1204, 0
  %v1845 = vsel %vm1789, %v1211, 0
  %v1848 = vsel %vm1789, %v1218, 0
  %v1851 = vsel %vm1789, %v1225, 0
  %v1854 = vsel %vm1789, %v1232, 0
  %v1857 = vsel %vm1789, %v1239, 0
  %v1860 = vsel %vm1789, %v1246, 0
  %v1863 = vsel %vm1789, %v1253, 0
  %v1866 = vsel %vm1789, %v1260, 0
  %v1869 = vsel %vm1789, %v1267, 0
  %v1872 = vsel %vm1789, %v1274, 0
  %v1875 = vsel %vm1789, %v1281, 0
  %v1878 = vsel %vm1789, %v1288, 0
  %v1881 = vsel %vm1789, %v1295, 0
  %v1884 = vsel %vm1789, %v1302, 0
  %1886 = vmatprep.subr.bf16.mxu0 0
  %1887 = vmatpush1.bf16.msra.mxu0 %v1691
  %1888 = vmatprep.subr.bf16.mxu0 0
  %1889 = vmatpush1.bf16.msra.mxu0 %v1692
  %1890 = vmatprep.subr.bf16.mxu0 0
  %1891 = vmatpush1.bf16.msra.mxu0 %v1693
  %1892 = vmatprep.subr.bf16.mxu0 0
  %1893 = vmatpush1.bf16.msra.mxu0 %v1694
  %1894 = vmatprep.subr.bf16.mxu0 0
  %1895 = vmatpush1.bf16.msra.mxu0 %v1695
  %1896 = vmatprep.subr.bf16.mxu0 0
  %1897 = vmatpush1.bf16.msra.mxu0 %v1696
  %1898 = vmatprep.subr.bf16.mxu0 0
  %1899 = vmatpush1.bf16.msra.mxu0 %v1697
  %1900 = vmatprep.subr.bf16.mxu0 0
  %1901 = vmatpush1.bf16.msra.mxu0 %v1698
  %1902 = vmatprep.subr.bf16.mxu0 0
  %1903 = vmatpush1.bf16.msra.mxu0 %v1699
  %1904 = vmatprep.subr.bf16.mxu0 0
  %1905 = vmatpush1.bf16.msra.mxu0 %v1700
  %1906 = vmatprep.subr.bf16.mxu0 0
  %1907 = vmatpush1.bf16.msra.mxu0 %v1701
  %1908 = vmatprep.subr.bf16.mxu0 0
  %1909 = vmatpush1.bf16.msra.mxu0 %v1702
  %1910 = vmatprep.subr.bf16.mxu0 0
  %1911 = vmatpush1.bf16.msra.mxu0 %v1703
  %1912 = vmatprep.subr.bf16.mxu0 0
  %1913 = vmatpush1.bf16.msra.mxu0 %v1704
  %1914 = vmatprep.subr.bf16.mxu0 0
  %1915 = vmatpush1.bf16.msra.mxu0 %v1705
  %1916 = vmatprep.subr.bf16.mxu0 0
  %1917 = vmatpush1.bf16.msra.mxu0 %v1706
  %1918 = vmatprep.mubr.bf16.mxu0 %v1080
  %1919 = vmatmul.mubr.bf16.gmra.mrb[0].mxu0 %v1079
  %v1920 = vpop.f32.mrb[0].mxu0
  %v1921 = vadd.f32 %v385, %v1920
  %v1922 = vpop.f32.mrb[0].mxu0
  %v1923 = vpop.f32.mrb[0].mxu0
  %v1924 = vadd.f32 %v385, %v1923
  %v1925 = vpop.f32.mrb[0].mxu0
  %1926 = vmatprep.mubr.bf16.mxu0 %v1087
  %1927 = vmatmul.mubr.bf16.gmra.mrb[0].mxu0 %v1086
  %v1928 = vpop.f32.mrb[0].mxu0
  %v1929 = vadd.f32 %v385, %v1928
  %v1930 = vpop.f32.mrb[0].mxu0
  %v1931 = vpop.f32.mrb[0].mxu0
  %v1932 = vadd.f32 %v385, %v1931
  %v1933 = vpop.f32.mrb[0].mxu0
  %1934 = vmatprep.mubr.bf16.mxu0 %v1094
  %1935 = vmatmul.mubr.bf16.gmra.mrb[0].mxu0 %v1093
  %v1936 = vpop.f32.mrb[0].mxu0
  %v1937 = vadd.f32 %v385, %v1936
  %v1938 = vpop.f32.mrb[0].mxu0
  %v1939 = vpop.f32.mrb[0].mxu0
  %v1940 = vadd.f32 %v385, %v1939
  %v1941 = vpop.f32.mrb[0].mxu0
  %1942 = vmatprep.mubr.bf16.mxu0 %v1101
  %1943 = vmatmul.mubr.bf16.gmra.mrb[0].mxu0 %v1100
  %v1944 = vpop.f32.mrb[0].mxu0
  %v1945 = vadd.f32 %v385, %v1944
  %v1946 = vpop.f32.mrb[0].mxu0
  %v1947 = vpop.f32.mrb[0].mxu0
  %v1948 = vadd.f32 %v385, %v1947
  %v1949 = vpop.f32.mrb[0].mxu0
  %1950 = vmatprep.mubr.bf16.mxu0 %v1108
  %1951 = vmatmul.mubr.bf16.gmra.mrb[0].mxu0 %v1107
  %v1952 = vpop.f32.mrb[0].mxu0
  %v1953 = vadd.f32 %v385, %v1952
  %v1954 = vpop.f32.mrb[0].mxu0
  %v1955 = vpop.f32.mrb[0].mxu0
  %v1956 = vadd.f32 %v385, %v1955
  %v1957 = vpop.f32.mrb[0].mxu0
  %1958 = vmatprep.mubr.bf16.mxu0 %v1115
  %1959 = vmatmul.mubr.bf16.gmra.mrb[0].mxu0 %v1114
  %v1960 = vpop.f32.mrb[0].mxu0
  %v1961 = vadd.f32 %v385, %v1960
  %v1962 = vpop.f32.mrb[0].mxu0
  %v1963 = vpop.f32.mrb[0].mxu0
  %v1964 = vadd.f32 %v385, %v1963
  %v1965 = vpop.f32.mrb[0].mxu0
  %1966 = vmatprep.mubr.bf16.mxu0 %v1122
  %1967 = vmatmul.mubr.bf16.gmra.mrb[0].mxu0 %v1121
  %v1968 = vpop.f32.mrb[0].mxu0
  %v1969 = vadd.f32 %v385, %v1968
  %v1970 = vpop.f32.mrb[0].mxu0
  %v1971 = vpop.f32.mrb[0].mxu0
  %v1972 = vadd.f32 %v385, %v1971
  %v1973 = vpop.f32.mrb[0].mxu0
  %1974 = vmatprep.mubr.bf16.mxu0 %v1129
  %1975 = vmatmul.mubr.bf16.gmra.mrb[0].mxu0 %v1128
  %v1976 = vpop.f32.mrb[0].mxu0
  %v1977 = vadd.f32 %v385, %v1976
  %v1978 = vpop.f32.mrb[0].mxu0
  %v1979 = vpop.f32.mrb[0].mxu0
  %v1980 = vadd.f32 %v385, %v1979
  %v1981 = vpop.f32.mrb[0].mxu0
  %1982 = vmatprep.mubr.bf16.mxu0 %v1136
  %1983 = vmatmul.mubr.bf16.gmra.mrb[0].mxu0 %v1135
  %v1984 = vpop.f32.mrb[0].mxu0
  %v1985 = vadd.f32 %v385, %v1984
  %v1986 = vpop.f32.mrb[0].mxu0
  %v1987 = vpop.f32.mrb[0].mxu0
  %v1988 = vadd.f32 %v385, %v1987
  %v1989 = vpop.f32.mrb[0].mxu0
  %1990 = vmatprep.mubr.bf16.mxu0 %v1143
  %1991 = vmatmul.mubr.bf16.gmra.mrb[0].mxu0 %v1142
  %v1992 = vpop.f32.mrb[0].mxu0
  %v1993 = vadd.f32 %v385, %v1992
  %v1994 = vpop.f32.mrb[0].mxu0
  %v1995 = vpop.f32.mrb[0].mxu0
  %v1996 = vadd.f32 %v385, %v1995
  %v1997 = vpop.f32.mrb[0].mxu0
  %1998 = vmatprep.mubr.bf16.mxu0 %v1150
  %1999 = vmatmul.mubr.bf16.gmra.mrb[0].mxu0 %v1149
  %v2000 = vpop.f32.mrb[0].mxu0
  %v2001 = vadd.f32 %v385, %v2000
  %v2002 = vpop.f32.mrb[0].mxu0
  %v2003 = vpop.f32.mrb[0].mxu0
  %v2004 = vadd.f32 %v385, %v2003
  %v2005 = vpop.f32.mrb[0].mxu0
  %2006 = vmatprep.mubr.bf16.mxu0 %v1157
  %2007 = vmatmul.mubr.bf16.gmra.mrb[0].mxu0 %v1156
  %v2008 = vpop.f32.mrb[0].mxu0
  %v2009 = vadd.f32 %v385, %v2008
  %v2010 = vpop.f32.mrb[0].mxu0
  %v2011 = vpop.f32.mrb[0].mxu0
  %v2012 = vadd.f32 %v385, %v2011
  %v2013 = vpop.f32.mrb[0].mxu0
  %2014 = vmatprep.mubr.bf16.mxu0 %v1164
  %2015 = vmatmul.mubr.bf16.gmra.mrb[0].mxu0 %v1163
  %v2016 = vpop.f32.mrb[0].mxu0
  %v2017 = vadd.f32 %v385, %v2016
  %v2018 = vpop.f32.mrb[0].mxu0
  %v2019 = vpop.f32.mrb[0].mxu0
  %v2020 = vadd.f32 %v385, %v2019
  %v2021 = vpop.f32.mrb[0].mxu0
  %2022 = vmatprep.mubr.bf16.mxu0 %v1171
  %2023 = vmatmul.mubr.bf16.gmra.mrb[0].mxu0 %v1170
  %v2024 = vpop.f32.mrb[0].mxu0
  %v2025 = vadd.f32 %v385, %v2024
  %v2026 = vpop.f32.mrb[0].mxu0
  %v2027 = vpop.f32.mrb[0].mxu0
  %v2028 = vadd.f32 %v385, %v2027
  %v2029 = vpop.f32.mrb[0].mxu0
  %2030 = vmatprep.mubr.bf16.mxu0 %v1178
  %2031 = vmatmul.mubr.bf16.gmra.mrb[0].mxu0 %v1177
  %v2032 = vpop.f32.mrb[0].mxu0
  %v2033 = vadd.f32 %v385, %v2032
  %v2034 = vpop.f32.mrb[0].mxu0
  %v2035 = vpop.f32.mrb[0].mxu0
  %v2036 = vadd.f32 %v385, %v2035
  %v2037 = vpop.f32.mrb[0].mxu0
  %2038 = vmatprep.mubr.bf16.mxu0 %v1185
  %2039 = vmatmul.mubr.bf16.gmra.mrb[0].mxu0 %v1184
  %v2040 = vpop.f32.mrb[0].mxu0
  %v2041 = vadd.f32 %v385, %v2040
  %v2042 = vpop.f32.mrb[0].mxu0
  %v2043 = vpop.f32.mrb[0].mxu0
  %v2044 = vadd.f32 %v385, %v2043
  %v2045 = vpop.f32.mrb[0].mxu0
  %2046 = vmatprep.mubr.bf16.mxu0 %v1192
  %2047 = vmatmul.mubr.bf16.gmra.mrb[0].mxu0 %v1191
  %v2048 = vpop.f32.mrb[0].mxu0
  %v2049 = vadd.f32 %v385, %v2048
  %v2050 = vpop.f32.mrb[0].mxu0
  %v2051 = vpop.f32.mrb[0].mxu0
  %v2052 = vadd.f32 %v385, %v2051
  %v2053 = vpop.f32.mrb[0].mxu0
  %2054 = vmatprep.mubr.bf16.mxu0 %v1199
  %2055 = vmatmul.mubr.bf16.gmra.mrb[0].mxu0 %v1198
  %v2056 = vpop.f32.mrb[0].mxu0
  %v2057 = vadd.f32 %v385, %v2056
  %v2058 = vpop.f32.mrb[0].mxu0
  %v2059 = vpop.f32.mrb[0].mxu0
  %v2060 = vadd.f32 %v385, %v2059
  %v2061 = vpop.f32.mrb[0].mxu0
  %2062 = vmatprep.mubr.bf16.mxu0 %v1206
  %2063 = vmatmul.mubr.bf16.gmra.mrb[0].mxu0 %v1205
  %v2064 = vpop.f32.mrb[0].mxu0
  %v2065 = vadd.f32 %v385, %v2064
  %v2066 = vpop.f32.mrb[0].mxu0
  %v2067 = vpop.f32.mrb[0].mxu0
  %v2068 = vadd.f32 %v385, %v2067
  %v2069 = vpop.f32.mrb[0].mxu0
  %2070 = vmatprep.mubr.bf16.mxu0 %v1213
  %2071 = vmatmul.mubr.bf16.gmra.mrb[0].mxu0 %v1212
  %v2072 = vpop.f32.mrb[0].mxu0
  %v2073 = vadd.f32 %v385, %v2072
  %v2074 = vpop.f32.mrb[0].mxu0
  %v2075 = vpop.f32.mrb[0].mxu0
  %v2076 = vadd.f32 %v385, %v2075
  %v2077 = vpop.f32.mrb[0].mxu0
  %2078 = vmatprep.mubr.bf16.mxu0 %v1220
  %2079 = vmatmul.mubr.bf16.gmra.mrb[0].mxu0 %v1219
  %v2080 = vpop.f32.mrb[0].mxu0
  %v2081 = vadd.f32 %v385, %v2080
  %v2082 = vpop.f32.mrb[0].mxu0
  %v2083 = vpop.f32.mrb[0].mxu0
  %v2084 = vadd.f32 %v385, %v2083
  %v2085 = vpop.f32.mrb[0].mxu0
  %2086 = vmatprep.mubr.bf16.mxu0 %v1227
  %2087 = vmatmul.mubr.bf16.gmra.mrb[0].mxu0 %v1226
  %v2088 = vpop.f32.mrb[0].mxu0
  %v2089 = vadd.f32 %v385, %v2088
  %v2090 = vpop.f32.mrb[0].mxu0
  %v2091 = vpop.f32.mrb[0].mxu0
  %v2092 = vadd.f32 %v385, %v2091
  %v2093 = vpop.f32.mrb[0].mxu0
  %2094 = vmatprep.mubr.bf16.mxu0 %v1234
  %2095 = vmatmul.mubr.bf16.gmra.mrb[0].mxu0 %v1233
  %v2096 = vpop.f32.mrb[0].mxu0
  %v2097 = vadd.f32 %v385, %v2096
  %v2098 = vpop.f32.mrb[0].mxu0
  %v2099 = vpop.f32.mrb[0].mxu0
  %v2100 = vadd.f32 %v385, %v2099
  %v2101 = vpop.f32.mrb[0].mxu0
  %2102 = vmatprep.mubr.bf16.mxu0 %v1241
  %2103 = vmatmul.mubr.bf16.gmra.mrb[0].mxu0 %v1240
  %v2104 = vpop.f32.mrb[0].mxu0
  %v2105 = vadd.f32 %v385, %v2104
  %v2106 = vpop.f32.mrb[0].mxu0
  %v2107 = vpop.f32.mrb[0].mxu0
  %v2108 = vadd.f32 %v385, %v2107
  %v2109 = vpop.f32.mrb[0].mxu0
  %2110 = vmatprep.mubr.bf16.mxu0 %v1248
  %2111 = vmatmul.mubr.bf16.gmra.mrb[0].mxu0 %v1247
  %v2112 = vpop.f32.mrb[0].mxu0
  %v2113 = vadd.f32 %v385, %v2112
  %v2114 = vpop.f32.mrb[0].mxu0
  %v2115 = vpop.f32.mrb[0].mxu0
  %v2116 = vadd.f32 %v385, %v2115
  %v2117 = vpop.f32.mrb[0].mxu0
  %2118 = vmatprep.mubr.bf16.mxu0 %v1255
  %2119 = vmatmul.mubr.bf16.gmra.mrb[0].mxu0 %v1254
  %v2120 = vpop.f32.mrb[0].mxu0
  %v2121 = vadd.f32 %v385, %v2120
  %v2122 = vpop.f32.mrb[0].mxu0
  %v2123 = vpop.f32.mrb[0].mxu0
  %v2124 = vadd.f32 %v385, %v2123
  %v2125 = vpop.f32.mrb[0].mxu0
  %2126 = vmatprep.mubr.bf16.mxu0 %v1262
  %2127 = vmatmul.mubr.bf16.gmra.mrb[0].mxu0 %v1261
  %v2128 = vpop.f32.mrb[0].mxu0
  %v2129 = vadd.f32 %v385, %v2128
  %v2130 = vpop.f32.mrb[0].mxu0
  %v2131 = vpop.f32.mrb[0].mxu0
  %v2132 = vadd.f32 %v385, %v2131
  %v2133 = vpop.f32.mrb[0].mxu0
  %2134 = vmatprep.mubr.bf16.mxu0 %v1269
  %2135 = vmatmul.mubr.bf16.gmra.mrb[0].mxu0 %v1268
  %v2136 = vpop.f32.mrb[0].mxu0
  %v2137 = vadd.f32 %v385, %v2136
  %v2138 = vpop.f32.mrb[0].mxu0
  %v2139 = vpop.f32.mrb[0].mxu0
  %v2140 = vadd.f32 %v385, %v2139
  %v2141 = vpop.f32.mrb[0].mxu0
  %2142 = vmatprep.mubr.bf16.mxu0 %v1276
  %2143 = vmatmul.mubr.bf16.gmra.mrb[0].mxu0 %v1275
  %v2144 = vpop.f32.mrb[0].mxu0
  %v2145 = vadd.f32 %v385, %v2144
  %v2146 = vpop.f32.mrb[0].mxu0
  %v2147 = vpop.f32.mrb[0].mxu0
  %v2148 = vadd.f32 %v385, %v2147
  %v2149 = vpop.f32.mrb[0].mxu0
  %2150 = vmatprep.mubr.bf16.mxu0 %v1283
  %2151 = vmatmul.mubr.bf16.gmra.mrb[0].mxu0 %v1282
  %v2152 = vpop.f32.mrb[0].mxu0
  %v2153 = vadd.f32 %v385, %v2152
  %v2154 = vpop.f32.mrb[0].mxu0
  %v2155 = vpop.f32.mrb[0].mxu0
  %v2156 = vadd.f32 %v385, %v2155
  %v2157 = vpop.f32.mrb[0].mxu0
  %2158 = vmatprep.mubr.bf16.mxu0 %v1290
  %2159 = vmatmul.mubr.bf16.gmra.mrb[0].mxu0 %v1289
  %v2160 = vpop.f32.mrb[0].mxu0
  %v2161 = vadd.f32 %v385, %v2160
  %v2162 = vpop.f32.mrb[0].mxu0
  %v2163 = vpop.f32.mrb[0].mxu0
  %v2164 = vadd.f32 %v385, %v2163
  %v2165 = vpop.f32.mrb[0].mxu0
  %2166 = vmatprep.mubr.bf16.mxu0 %v1297
  %2167 = vmatmul.mubr.bf16.gmra.mrb[0].mxu0 %v1296
  %v2168 = vpop.f32.mrb[0].mxu0
  %v2169 = vadd.f32 %v385, %v2168
  %v2170 = vpop.f32.mrb[0].mxu0
  %v2171 = vpop.f32.mrb[0].mxu0
  %v2172 = vpop.f32.mrb[0].mxu0
  %2173 = vdwg.mxu0
  %2174 = vmatprep.subr.bf16.mxu0 0
  %2175 = vmatpush1.bf16.msra.mxu0 %v1707
  %2176 = vmatprep.subr.bf16.mxu0 0
  %2177 = vmatpush1.bf16.msra.mxu0 %v1708
  %2178 = vmatprep.subr.bf16.mxu0 0
  %2179 = vmatpush1.bf16.msra.mxu0 %v1709
  %2180 = vmatprep.subr.bf16.mxu0 0
  %2181 = vmatpush1.bf16.msra.mxu0 %v1710
  %2182 = vmatprep.subr.bf16.mxu0 0
  %2183 = vmatpush1.bf16.msra.mxu0 %v1711
  %2184 = vmatprep.subr.bf16.mxu0 0
  %2185 = vmatpush1.bf16.msra.mxu0 %v1712
  %2186 = vmatprep.subr.bf16.mxu0 0
  %2187 = vmatpush1.bf16.msra.mxu0 %v1713
  %2188 = vmatprep.subr.bf16.mxu0 0
  %2189 = vmatpush1.bf16.msra.mxu0 %v1714
  %2190 = vmatprep.subr.bf16.mxu0 0
  %2191 = vmatpush1.bf16.msra.mxu0 %v1715
  %2192 = vmatprep.subr.bf16.mxu0 0
  %2193 = vmatpush1.bf16.msra.mxu0 %v1716
  %2194 = vmatprep.subr.bf16.mxu0 0
  %2195 = vmatpush1.bf16.msra.mxu0 %v1717
  %2196 = vmatprep.subr.bf16.mxu0 0
  %2197 = vmatpush1.bf16.msra.mxu0 %v1718
  %2198 = vmatprep.subr.bf16.mxu0 0
  %2199 = vmatpush1.bf16.msra.mxu0 %v1719
  %2200 = vmatprep.subr.bf16.mxu0 0
  %2201 = vmatpush1.bf16.msra.mxu0 %v1720
  %2202 = vmatprep.subr.bf16.mxu0 0
  %2203 = vmatpush1.bf16.msra.mxu0 %v1721
  %2204 = vmatprep.subr.bf16.mxu0 0
  %2205 = vmatpush1.bf16.msra.mxu0 %v1722
  %2206 = vmatprep.mubr.bf16.mxu0 %v1082
  %2207 = vmatmul.mubr.bf16.gmra.mrb[0].mxu0 %v1081
  %v2208 = vpop.f32.mrb[0].mxu0
  %v2209 = vadd.f32 %v1921, %v2208
  %v2210 = vpop.f32.mrb[0].mxu0
  %v2211 = vpop.f32.mrb[0].mxu0
  %v2212 = vadd.f32 %v1924, %v2211
  %v2213 = vpop.f32.mrb[0].mxu0
  %2214 = vmatprep.mubr.bf16.mxu0 %v1089
  %2215 = vmatmul.mubr.bf16.gmra.mrb[0].mxu0 %v1088
  %v2216 = vpop.f32.mrb[0].mxu0
  %v2217 = vadd.f32 %v1929, %v2216
  %v2218 = vpop.f32.mrb[0].mxu0
  %v2219 = vpop.f32.mrb[0].mxu0
  %v2220 = vadd.f32 %v1932, %v2219
  %v2221 = vpop.f32.mrb[0].mxu0
  %2222 = vmatprep.mubr.bf16.mxu0 %v1096
  %2223 = vmatmul.mubr.bf16.gmra.mrb[0].mxu0 %v1095
  %v2224 = vpop.f32.mrb[0].mxu0
  %v2225 = vadd.f32 %v1937, %v2224
  %v2226 = vpop.f32.mrb[0].mxu0
  %v2227 = vpop.f32.mrb[0].mxu0
  %v2228 = vadd.f32 %v1940, %v2227
  %v2229 = vpop.f32.mrb[0].mxu0
  %2230 = vmatprep.mubr.bf16.mxu0 %v1103
  %2231 = vmatmul.mubr.bf16.gmra.mrb[0].mxu0 %v1102
  %v2232 = vpop.f32.mrb[0].mxu0
  %v2233 = vadd.f32 %v1945, %v2232
  %v2234 = vpop.f32.mrb[0].mxu0
  %v2235 = vpop.f32.mrb[0].mxu0
  %v2236 = vadd.f32 %v1948, %v2235
  %v2237 = vpop.f32.mrb[0].mxu0
  %2238 = vmatprep.mubr.bf16.mxu0 %v1110
  %2239 = vmatmul.mubr.bf16.gmra.mrb[0].mxu0 %v1109
  %v2240 = vpop.f32.mrb[0].mxu0
  %v2241 = vadd.f32 %v1953, %v2240
  %v2242 = vpop.f32.mrb[0].mxu0
  %v2243 = vpop.f32.mrb[0].mxu0
  %v2244 = vadd.f32 %v1956, %v2243
  %v2245 = vpop.f32.mrb[0].mxu0
  %2246 = vmatprep.mubr.bf16.mxu0 %v1117
  %2247 = vmatmul.mubr.bf16.gmra.mrb[0].mxu0 %v1116
  %v2248 = vpop.f32.mrb[0].mxu0
  %v2249 = vadd.f32 %v1961, %v2248
  %v2250 = vpop.f32.mrb[0].mxu0
  %v2251 = vpop.f32.mrb[0].mxu0
  %v2252 = vadd.f32 %v1964, %v2251
  %v2253 = vpop.f32.mrb[0].mxu0
  %2254 = vmatprep.mubr.bf16.mxu0 %v1124
  %2255 = vmatmul.mubr.bf16.gmra.mrb[0].mxu0 %v1123
  %v2256 = vpop.f32.mrb[0].mxu0
  %v2257 = vadd.f32 %v1969, %v2256
  %v2258 = vpop.f32.mrb[0].mxu0
  %v2259 = vpop.f32.mrb[0].mxu0
  %v2260 = vadd.f32 %v1972, %v2259
  %v2261 = vpop.f32.mrb[0].mxu0
  %2262 = vmatprep.mubr.bf16.mxu0 %v1131
  %2263 = vmatmul.mubr.bf16.gmra.mrb[0].mxu0 %v1130
  %v2264 = vpop.f32.mrb[0].mxu0
  %v2265 = vadd.f32 %v1977, %v2264
  %v2266 = vpop.f32.mrb[0].mxu0
  %v2267 = vpop.f32.mrb[0].mxu0
  %v2268 = vadd.f32 %v1980, %v2267
  %v2269 = vpop.f32.mrb[0].mxu0
  %2270 = vmatprep.mubr.bf16.mxu0 %v1138
  %2271 = vmatmul.mubr.bf16.gmra.mrb[0].mxu0 %v1137
  %v2272 = vpop.f32.mrb[0].mxu0
  %v2273 = vadd.f32 %v1985, %v2272
  %v2274 = vpop.f32.mrb[0].mxu0
  %v2275 = vpop.f32.mrb[0].mxu0
  %v2276 = vadd.f32 %v1988, %v2275
  %v2277 = vpop.f32.mrb[0].mxu0
  %2278 = vmatprep.mubr.bf16.mxu0 %v1145
  %2279 = vmatmul.mubr.bf16.gmra.mrb[0].mxu0 %v1144
  %v2280 = vpop.f32.mrb[0].mxu0
  %v2281 = vadd.f32 %v1993, %v2280
  %v2282 = vpop.f32.mrb[0].mxu0
  %v2283 = vpop.f32.mrb[0].mxu0
  %v2284 = vadd.f32 %v1996, %v2283
  %v2285 = vpop.f32.mrb[0].mxu0
  %2286 = vmatprep.mubr.bf16.mxu0 %v1152
  %2287 = vmatmul.mubr.bf16.gmra.mrb[0].mxu0 %v1151
  %v2288 = vpop.f32.mrb[0].mxu0
  %v2289 = vadd.f32 %v2001, %v2288
  %v2290 = vpop.f32.mrb[0].mxu0
  %v2291 = vpop.f32.mrb[0].mxu0
  %v2292 = vadd.f32 %v2004, %v2291
  %v2293 = vpop.f32.mrb[0].mxu0
  %2294 = vmatprep.mubr.bf16.mxu0 %v1159
  %2295 = vmatmul.mubr.bf16.gmra.mrb[0].mxu0 %v1158
  %v2296 = vpop.f32.mrb[0].mxu0
  %v2297 = vadd.f32 %v2009, %v2296
  %v2298 = vpop.f32.mrb[0].mxu0
  %v2299 = vpop.f32.mrb[0].mxu0
  %v2300 = vadd.f32 %v2012, %v2299
  %v2301 = vpop.f32.mrb[0].mxu0
  %2302 = vmatprep.mubr.bf16.mxu0 %v1166
  %2303 = vmatmul.mubr.bf16.gmra.mrb[0].mxu0 %v1165
  %v2304 = vpop.f32.mrb[0].mxu0
  %v2305 = vadd.f32 %v2017, %v2304
  %v2306 = vpop.f32.mrb[0].mxu0
  %v2307 = vpop.f32.mrb[0].mxu0
  %v2308 = vadd.f32 %v2020, %v2307
  %v2309 = vpop.f32.mrb[0].mxu0
  %2310 = vmatprep.mubr.bf16.mxu0 %v1173
  %2311 = vmatmul.mubr.bf16.gmra.mrb[0].mxu0 %v1172
  %v2312 = vpop.f32.mrb[0].mxu0
  %v2313 = vadd.f32 %v2025, %v2312
  %v2314 = vpop.f32.mrb[0].mxu0
  %v2315 = vpop.f32.mrb[0].mxu0
  %v2316 = vadd.f32 %v2028, %v2315
  %v2317 = vpop.f32.mrb[0].mxu0
  %2318 = vmatprep.mubr.bf16.mxu0 %v1180
  %2319 = vmatmul.mubr.bf16.gmra.mrb[0].mxu0 %v1179
  %v2320 = vpop.f32.mrb[0].mxu0
  %v2321 = vadd.f32 %v2033, %v2320
  %v2322 = vpop.f32.mrb[0].mxu0
  %v2323 = vpop.f32.mrb[0].mxu0
  %v2324 = vadd.f32 %v2036, %v2323
  %v2325 = vpop.f32.mrb[0].mxu0
  %2326 = vmatprep.mubr.bf16.mxu0 %v1187
  %2327 = vmatmul.mubr.bf16.gmra.mrb[0].mxu0 %v1186
  %v2328 = vpop.f32.mrb[0].mxu0
  %v2329 = vadd.f32 %v2041, %v2328
  %v2330 = vpop.f32.mrb[0].mxu0
  %v2331 = vpop.f32.mrb[0].mxu0
  %v2332 = vadd.f32 %v2044, %v2331
  %v2333 = vpop.f32.mrb[0].mxu0
  %2334 = vmatprep.mubr.bf16.mxu0 %v1194
  %2335 = vmatmul.mubr.bf16.gmra.mrb[0].mxu0 %v1193
  %v2336 = vpop.f32.mrb[0].mxu0
  %v2337 = vadd.f32 %v2049, %v2336
  %v2338 = vpop.f32.mrb[0].mxu0
  %v2339 = vpop.f32.mrb[0].mxu0
  %v2340 = vadd.f32 %v2052, %v2339
  %v2341 = vpop.f32.mrb[0].mxu0
  %2342 = vmatprep.mubr.bf16.mxu0 %v1201
  %2343 = vmatmul.mubr.bf16.gmra.mrb[0].mxu0 %v1200
  %v2344 = vpop.f32.mrb[0].mxu0
  %v2345 = vadd.f32 %v2057, %v2344
  %v2346 = vpop.f32.mrb[0].mxu0
  %v2347 = vpop.f32.mrb[0].mxu0
  %v2348 = vadd.f32 %v2060, %v2347
  %v2349 = vpop.f32.mrb[0].mxu0
  %2350 = vmatprep.mubr.bf16.mxu0 %v1208
  %2351 = vmatmul.mubr.bf16.gmra.mrb[0].mxu0 %v1207
  %v2352 = vpop.f32.mrb[0].mxu0
  %v2353 = vadd.f32 %v2065, %v2352
  %v2354 = vpop.f32.mrb[0].mxu0
  %v2355 = vpop.f32.mrb[0].mxu0
  %v2356 = vadd.f32 %v2068, %v2355
  %v2357 = vpop.f32.mrb[0].mxu0
  %2358 = vmatprep.mubr.bf16.mxu0 %v1215
  %2359 = vmatmul.mubr.bf16.gmra.mrb[0].mxu0 %v1214
  %v2360 = vpop.f32.mrb[0].mxu0
  %v2361 = vadd.f32 %v2073, %v2360
  %v2362 = vpop.f32.mrb[0].mxu0
  %v2363 = vpop.f32.mrb[0].mxu0
  %v2364 = vadd.f32 %v2076, %v2363
  %v2365 = vpop.f32.mrb[0].mxu0
  %2366 = vmatprep.mubr.bf16.mxu0 %v1222
  %2367 = vmatmul.mubr.bf16.gmra.mrb[0].mxu0 %v1221
  %v2368 = vpop.f32.mrb[0].mxu0
  %v2369 = vadd.f32 %v2081, %v2368
  %v2370 = vpop.f32.mrb[0].mxu0
  %v2371 = vpop.f32.mrb[0].mxu0
  %v2372 = vadd.f32 %v2084, %v2371
  %v2373 = vpop.f32.mrb[0].mxu0
  %2374 = vmatprep.mubr.bf16.mxu0 %v1229
  %2375 = vmatmul.mubr.bf16.gmra.mrb[0].mxu0 %v1228
  %v2376 = vpop.f32.mrb[0].mxu0
  %v2377 = vadd.f32 %v2089, %v2376
  %v2378 = vpop.f32.mrb[0].mxu0
  %v2379 = vpop.f32.mrb[0].mxu0
  %v2380 = vadd.f32 %v2092, %v2379
  %v2381 = vpop.f32.mrb[0].mxu0
  %2382 = vmatprep.mubr.bf16.mxu0 %v1236
  %2383 = vmatmul.mubr.bf16.gmra.mrb[0].mxu0 %v1235
  %v2384 = vpop.f32.mrb[0].mxu0
  %v2385 = vadd.f32 %v2097, %v2384
  %v2386 = vpop.f32.mrb[0].mxu0
  %v2387 = vpop.f32.mrb[0].mxu0
  %v2388 = vadd.f32 %v2100, %v2387
  %v2389 = vpop.f32.mrb[0].mxu0
  %2390 = vmatprep.mubr.bf16.mxu0 %v1243
  %2391 = vmatmul.mubr.bf16.gmra.mrb[0].mxu0 %v1242
  %v2392 = vpop.f32.mrb[0].mxu0
  %v2393 = vadd.f32 %v2105, %v2392
  %v2394 = vpop.f32.mrb[0].mxu0
  %v2395 = vpop.f32.mrb[0].mxu0
  %v2396 = vadd.f32 %v2108, %v2395
  %v2397 = vpop.f32.mrb[0].mxu0
  %2398 = vmatprep.mubr.bf16.mxu0 %v1250
  %2399 = vmatmul.mubr.bf16.gmra.mrb[0].mxu0 %v1249
  %v2400 = vpop.f32.mrb[0].mxu0
  %v2401 = vadd.f32 %v2113, %v2400
  %v2402 = vpop.f32.mrb[0].mxu0
  %v2403 = vpop.f32.mrb[0].mxu0
  %v2404 = vadd.f32 %v2116, %v2403
  %v2405 = vpop.f32.mrb[0].mxu0
  %2406 = vmatprep.mubr.bf16.mxu0 %v1257
  %2407 = vmatmul.mubr.bf16.gmra.mrb[0].mxu0 %v1256
  %v2408 = vpop.f32.mrb[0].mxu0
  %v2409 = vadd.f32 %v2121, %v2408
  %v2410 = vpop.f32.mrb[0].mxu0
  %v2411 = vpop.f32.mrb[0].mxu0
  %v2412 = vadd.f32 %v2124, %v2411
  %v2413 = vpop.f32.mrb[0].mxu0
  %2414 = vmatprep.mubr.bf16.mxu0 %v1264
  %2415 = vmatmul.mubr.bf16.gmra.mrb[0].mxu0 %v1263
  %v2416 = vpop.f32.mrb[0].mxu0
  %v2417 = vadd.f32 %v2129, %v2416
  %v2418 = vpop.f32.mrb[0].mxu0
  %v2419 = vpop.f32.mrb[0].mxu0
  %v2420 = vadd.f32 %v2132, %v2419
  %v2421 = vpop.f32.mrb[0].mxu0
  %2422 = vmatprep.mubr.bf16.mxu0 %v1271
  %2423 = vmatmul.mubr.bf16.gmra.mrb[0].mxu0 %v1270
  %v2424 = vpop.f32.mrb[0].mxu0
  %v2425 = vadd.f32 %v2137, %v2424
  %v2426 = vpop.f32.mrb[0].mxu0
  %v2427 = vpop.f32.mrb[0].mxu0
  %v2428 = vadd.f32 %v2140, %v2427
  %v2429 = vpop.f32.mrb[0].mxu0
  %2430 = vmatprep.mubr.bf16.mxu0 %v1278
  %2431 = vmatmul.mubr.bf16.gmra.mrb[0].mxu0 %v1277
  %v2432 = vpop.f32.mrb[0].mxu0
  %v2433 = vadd.f32 %v2145, %v2432
  %v2434 = vpop.f32.mrb[0].mxu0
  %v2435 = vpop.f32.mrb[0].mxu0
  %v2436 = vadd.f32 %v2148, %v2435
  %v2437 = vpop.f32.mrb[0].mxu0
  %2438 = vmatprep.mubr.bf16.mxu0 %v1285
  %2439 = vmatmul.mubr.bf16.gmra.mrb[0].mxu0 %v1284
  %v2440 = vpop.f32.mrb[0].mxu0
  %v2441 = vadd.f32 %v2153, %v2440
  %v2442 = vpop.f32.mrb[0].mxu0
  %v2443 = vpop.f32.mrb[0].mxu0
  %v2444 = vadd.f32 %v2156, %v2443
  %v2445 = vpop.f32.mrb[0].mxu0
  %2446 = vmatprep.mubr.bf16.mxu0 %v1292
  %2447 = vmatmul.mubr.bf16.gmra.mrb[0].mxu0 %v1291
  %v2448 = vpop.f32.mrb[0].mxu0
  %v2449 = vadd.f32 %v2161, %v2448
  %v2450 = vpop.f32.mrb[0].mxu0
  %v2451 = vpop.f32.mrb[0].mxu0
  %v2452 = vadd.f32 %v2164, %v2451
  %v2453 = vpop.f32.mrb[0].mxu0
  %2454 = vmatprep.mubr.bf16.mxu0 %v1299
  %2455 = vmatmul.mubr.bf16.gmra.mrb[0].mxu0 %v1298
  %v2456 = vpop.f32.mrb[0].mxu0
  %v2457 = vadd.f32 %v2169, %v2456
  %v2458 = vpop.f32.mrb[0].mxu0
  %v2459 = vpop.f32.mrb[0].mxu0
  %v2460 = vpop.f32.mrb[0].mxu0
  %2461 = vdwg.mxu0
  %2462 = vmatprep.subr.bf16.mxu0 0
  %2463 = vmatpush1.bf16.msra.mxu0 %v1723
  %2464 = vmatprep.subr.bf16.mxu0 0
  %2465 = vmatpush1.bf16.msra.mxu0 %v1724
  %2466 = vmatprep.subr.bf16.mxu0 0
  %2467 = vmatpush1.bf16.msra.mxu0 %v1725
  %2468 = vmatprep.subr.bf16.mxu0 0
  %2469 = vmatpush1.bf16.msra.mxu0 %v1726
  %2470 = vmatprep.subr.bf16.mxu0 0
  %2471 = vmatpush1.bf16.msra.mxu0 %v1727
  %2472 = vmatprep.subr.bf16.mxu0 0
  %2473 = vmatpush1.bf16.msra.mxu0 %v1728
  %2474 = vmatprep.subr.bf16.mxu0 0
  %2475 = vmatpush1.bf16.msra.mxu0 %v1729
  %2476 = vmatprep.subr.bf16.mxu0 0
  %2477 = vmatpush1.bf16.msra.mxu0 %v1730
  %2478 = vmatprep.subr.bf16.mxu0 0
  %2479 = vmatpush1.bf16.msra.mxu0 %v1731
  %2480 = vmatprep.subr.bf16.mxu0 0
  %2481 = vmatpush1.bf16.msra.mxu0 %v1732
  %2482 = vmatprep.subr.bf16.mxu0 0
  %2483 = vmatpush1.bf16.msra.mxu0 %v1733
  %2484 = vmatprep.subr.bf16.mxu0 0
  %2485 = vmatpush1.bf16.msra.mxu0 %v1734
  %2486 = vmatprep.subr.bf16.mxu0 0
  %2487 = vmatpush1.bf16.msra.mxu0 %v1735
  %2488 = vmatprep.subr.bf16.mxu0 0
  %2489 = vmatpush1.bf16.msra.mxu0 %v1736
  %2490 = vmatprep.subr.bf16.mxu0 0
  %2491 = vmatpush1.bf16.msra.mxu0 %v1737
  %2492 = vmatprep.subr.bf16.mxu0 0
  %2493 = vmatpush1.bf16.msra.mxu0 %v1738
  %2494 = vmatprep.mubr.bf16.mxu0 %v1084
  %2495 = vmatmul.mubr.bf16.gmra.mrb[0].mxu0 %v1083
  %v2496 = vpop.f32.mrb[0].mxu0
  %v2497 = vadd.f32 %v2209, %v2496
  %v2498 = vpop.f32.mrb[0].mxu0
  %v2499 = vpop.f32.mrb[0].mxu0
  %v2500 = vadd.f32 %v2212, %v2499
  %v2501 = vpop.f32.mrb[0].mxu0
  %2502 = vmatprep.mubr.bf16.mxu0 %v1091
  %2503 = vmatmul.mubr.bf16.gmra.mrb[0].mxu0 %v1090
  %v2504 = vpop.f32.mrb[0].mxu0
  %v2505 = vadd.f32 %v2217, %v2504
  %v2506 = vpop.f32.mrb[0].mxu0
  %v2507 = vpop.f32.mrb[0].mxu0
  %v2508 = vadd.f32 %v2220, %v2507
  %v2509 = vpop.f32.mrb[0].mxu0
  %2510 = vmatprep.mubr.bf16.mxu0 %v1098
  %2511 = vmatmul.mubr.bf16.gmra.mrb[0].mxu0 %v1097
  %v2512 = vpop.f32.mrb[0].mxu0
  %v2513 = vadd.f32 %v2225, %v2512
  %v2514 = vpop.f32.mrb[0].mxu0
  %v2515 = vpop.f32.mrb[0].mxu0
  %v2516 = vadd.f32 %v2228, %v2515
  %v2517 = vpop.f32.mrb[0].mxu0
  %2518 = vmatprep.mubr.bf16.mxu0 %v1105
  %2519 = vmatmul.mubr.bf16.gmra.mrb[0].mxu0 %v1104
  %v2520 = vpop.f32.mrb[0].mxu0
  %v2521 = vadd.f32 %v2233, %v2520
  %v2522 = vpop.f32.mrb[0].mxu0
  %v2523 = vpop.f32.mrb[0].mxu0
  %v2524 = vadd.f32 %v2236, %v2523
  %v2525 = vpop.f32.mrb[0].mxu0
  %2526 = vmatprep.mubr.bf16.mxu0 %v1112
  %2527 = vmatmul.mubr.bf16.gmra.mrb[0].mxu0 %v1111
  %v2528 = vpop.f32.mrb[0].mxu0
  %v2529 = vadd.f32 %v2241, %v2528
  %v2530 = vpop.f32.mrb[0].mxu0
  %v2531 = vpop.f32.mrb[0].mxu0
  %v2532 = vadd.f32 %v2244, %v2531
  %v2533 = vpop.f32.mrb[0].mxu0
  %2534 = vmatprep.mubr.bf16.mxu0 %v1119
  %2535 = vmatmul.mubr.bf16.gmra.mrb[0].mxu0 %v1118
  %v2536 = vpop.f32.mrb[0].mxu0
  %v2537 = vadd.f32 %v2249, %v2536
  %v2538 = vpop.f32.mrb[0].mxu0
  %v2539 = vpop.f32.mrb[0].mxu0
  %v2540 = vadd.f32 %v2252, %v2539
  %v2541 = vpop.f32.mrb[0].mxu0
  %2542 = vmatprep.mubr.bf16.mxu0 %v1126
  %2543 = vmatmul.mubr.bf16.gmra.mrb[0].mxu0 %v1125
  %v2544 = vpop.f32.mrb[0].mxu0
  %v2545 = vadd.f32 %v2257, %v2544
  %v2546 = vpop.f32.mrb[0].mxu0
  %v2547 = vpop.f32.mrb[0].mxu0
  %v2548 = vadd.f32 %v2260, %v2547
  %v2549 = vpop.f32.mrb[0].mxu0
  %2550 = vmatprep.mubr.bf16.mxu0 %v1133
  %2551 = vmatmul.mubr.bf16.gmra.mrb[0].mxu0 %v1132
  %v2552 = vpop.f32.mrb[0].mxu0
  %v2553 = vadd.f32 %v2265, %v2552
  %v2554 = vpop.f32.mrb[0].mxu0
  %v2555 = vpop.f32.mrb[0].mxu0
  %v2556 = vadd.f32 %v2268, %v2555
  %v2557 = vpop.f32.mrb[0].mxu0
  %2558 = vmatprep.mubr.bf16.mxu0 %v1140
  %2559 = vmatmul.mubr.bf16.gmra.mrb[0].mxu0 %v1139
  %v2560 = vpop.f32.mrb[0].mxu0
  %v2561 = vadd.f32 %v2273, %v2560
  %v2562 = vpop.f32.mrb[0].mxu0
  %v2563 = vpop.f32.mrb[0].mxu0
  %v2564 = vadd.f32 %v2276, %v2563
  %v2565 = vpop.f32.mrb[0].mxu0
  %2566 = vmatprep.mubr.bf16.mxu0 %v1147
  %2567 = vmatmul.mubr.bf16.gmra.mrb[0].mxu0 %v1146
  %v2568 = vpop.f32.mrb[0].mxu0
  %v2569 = vadd.f32 %v2281, %v2568
  %v2570 = vpop.f32.mrb[0].mxu0
  %v2571 = vpop.f32.mrb[0].mxu0
  %v2572 = vadd.f32 %v2284, %v2571
  %v2573 = vpop.f32.mrb[0].mxu0
  %2574 = vmatprep.mubr.bf16.mxu0 %v1154
  %2575 = vmatmul.mubr.bf16.gmra.mrb[0].mxu0 %v1153
  %v2576 = vpop.f32.mrb[0].mxu0
  %v2577 = vadd.f32 %v2289, %v2576
  %v2578 = vpop.f32.mrb[0].mxu0
  %v2579 = vpop.f32.mrb[0].mxu0
  %v2580 = vadd.f32 %v2292, %v2579
  %v2581 = vpop.f32.mrb[0].mxu0
  %2582 = vmatprep.mubr.bf16.mxu0 %v1161
  %2583 = vmatmul.mubr.bf16.gmra.mrb[0].mxu0 %v1160
  %v2584 = vpop.f32.mrb[0].mxu0
  %v2585 = vadd.f32 %v2297, %v2584
  %v2586 = vpop.f32.mrb[0].mxu0
  %v2587 = vpop.f32.mrb[0].mxu0
  %v2588 = vadd.f32 %v2300, %v2587
  %v2589 = vpop.f32.mrb[0].mxu0
  %2590 = vmatprep.mubr.bf16.mxu0 %v1168
  %2591 = vmatmul.mubr.bf16.gmra.mrb[0].mxu0 %v1167
  %v2592 = vpop.f32.mrb[0].mxu0
  %v2593 = vadd.f32 %v2305, %v2592
  %v2594 = vpop.f32.mrb[0].mxu0
  %v2595 = vpop.f32.mrb[0].mxu0
  %v2596 = vadd.f32 %v2308, %v2595
  %v2597 = vpop.f32.mrb[0].mxu0
  %2598 = vmatprep.mubr.bf16.mxu0 %v1175
  %2599 = vmatmul.mubr.bf16.gmra.mrb[0].mxu0 %v1174
  %v2600 = vpop.f32.mrb[0].mxu0
  %v2601 = vadd.f32 %v2313, %v2600
  %v2602 = vpop.f32.mrb[0].mxu0
  %v2603 = vpop.f32.mrb[0].mxu0
  %v2604 = vadd.f32 %v2316, %v2603
  %v2605 = vpop.f32.mrb[0].mxu0
  %2606 = vmatprep.mubr.bf16.mxu0 %v1182
  %2607 = vmatmul.mubr.bf16.gmra.mrb[0].mxu0 %v1181
  %v2608 = vpop.f32.mrb[0].mxu0
  %v2609 = vadd.f32 %v2321, %v2608
  %v2610 = vpop.f32.mrb[0].mxu0
  %v2611 = vpop.f32.mrb[0].mxu0
  %v2612 = vadd.f32 %v2324, %v2611
  %v2613 = vpop.f32.mrb[0].mxu0
  %2614 = vmatprep.mubr.bf16.mxu0 %v1189
  %2615 = vmatmul.mubr.bf16.gmra.mrb[0].mxu0 %v1188
  %v2616 = vpop.f32.mrb[0].mxu0
  %v2617 = vadd.f32 %v2329, %v2616
  %v2618 = vpop.f32.mrb[0].mxu0
  %v2619 = vpop.f32.mrb[0].mxu0
  %v2620 = vadd.f32 %v2332, %v2619
  %v2621 = vpop.f32.mrb[0].mxu0
  %2622 = vmatprep.mubr.bf16.mxu0 %v1196
  %2623 = vmatmul.mubr.bf16.gmra.mrb[0].mxu0 %v1195
  %v2624 = vpop.f32.mrb[0].mxu0
  %v2625 = vadd.f32 %v2337, %v2624
  %v2626 = vpop.f32.mrb[0].mxu0
  %v2627 = vpop.f32.mrb[0].mxu0
  %v2628 = vadd.f32 %v2340, %v2627
  %v2629 = vpop.f32.mrb[0].mxu0
  %2630 = vmatprep.mubr.bf16.mxu0 %v1203
  %2631 = vmatmul.mubr.bf16.gmra.mrb[0].mxu0 %v1202
  %v2632 = vpop.f32.mrb[0].mxu0
  %v2633 = vadd.f32 %v2345, %v2632
  %v2634 = vpop.f32.mrb[0].mxu0
  %v2635 = vpop.f32.mrb[0].mxu0
  %v2636 = vadd.f32 %v2348, %v2635
  %v2637 = vpop.f32.mrb[0].mxu0
  %2638 = vmatprep.mubr.bf16.mxu0 %v1210
  %2639 = vmatmul.mubr.bf16.gmra.mrb[0].mxu0 %v1209
  %v2640 = vpop.f32.mrb[0].mxu0
  %v2641 = vadd.f32 %v2353, %v2640
  %v2642 = vpop.f32.mrb[0].mxu0
  %v2643 = vpop.f32.mrb[0].mxu0
  %v2644 = vadd.f32 %v2356, %v2643
  %v2645 = vpop.f32.mrb[0].mxu0
  %2646 = vmatprep.mubr.bf16.mxu0 %v1217
  %2647 = vmatmul.mubr.bf16.gmra.mrb[0].mxu0 %v1216
  %v2648 = vpop.f32.mrb[0].mxu0
  %v2649 = vadd.f32 %v2361, %v2648
  %v2650 = vpop.f32.mrb[0].mxu0
  %v2651 = vpop.f32.mrb[0].mxu0
  %v2652 = vadd.f32 %v2364, %v2651
  %v2653 = vpop.f32.mrb[0].mxu0
  %2654 = vmatprep.mubr.bf16.mxu0 %v1224
  %2655 = vmatmul.mubr.bf16.gmra.mrb[0].mxu0 %v1223
  %v2656 = vpop.f32.mrb[0].mxu0
  %v2657 = vadd.f32 %v2369, %v2656
  %v2658 = vpop.f32.mrb[0].mxu0
  %v2659 = vpop.f32.mrb[0].mxu0
  %v2660 = vadd.f32 %v2372, %v2659
  %v2661 = vpop.f32.mrb[0].mxu0
  %2662 = vmatprep.mubr.bf16.mxu0 %v1231
  %2663 = vmatmul.mubr.bf16.gmra.mrb[0].mxu0 %v1230
  %v2664 = vpop.f32.mrb[0].mxu0
  %v2665 = vadd.f32 %v2377, %v2664
  %v2666 = vpop.f32.mrb[0].mxu0
  %v2667 = vpop.f32.mrb[0].mxu0
  %v2668 = vadd.f32 %v2380, %v2667
  %v2669 = vpop.f32.mrb[0].mxu0
  %2670 = vmatprep.mubr.bf16.mxu0 %v1238
  %2671 = vmatmul.mubr.bf16.gmra.mrb[0].mxu0 %v1237
  %v2672 = vpop.f32.mrb[0].mxu0
  %v2673 = vadd.f32 %v2385, %v2672
  %v2674 = vpop.f32.mrb[0].mxu0
  %v2675 = vpop.f32.mrb[0].mxu0
  %v2676 = vadd.f32 %v2388, %v2675
  %v2677 = vpop.f32.mrb[0].mxu0
  %2678 = vmatprep.mubr.bf16.mxu0 %v1245
  %2679 = vmatmul.mubr.bf16.gmra.mrb[0].mxu0 %v1244
  %v2680 = vpop.f32.mrb[0].mxu0
  %v2681 = vadd.f32 %v2393, %v2680
  %v2682 = vpop.f32.mrb[0].mxu0
  %v2683 = vpop.f32.mrb[0].mxu0
  %v2684 = vadd.f32 %v2396, %v2683
  %v2685 = vpop.f32.mrb[0].mxu0
  %2686 = vmatprep.mubr.bf16.mxu0 %v1252
  %2687 = vmatmul.mubr.bf16.gmra.mrb[0].mxu0 %v1251
  %v2688 = vpop.f32.mrb[0].mxu0
  %v2689 = vadd.f32 %v2401, %v2688
  %v2690 = vpop.f32.mrb[0].mxu0
  %v2691 = vpop.f32.mrb[0].mxu0
  %v2692 = vadd.f32 %v2404, %v2691
  %v2693 = vpop.f32.mrb[0].mxu0
  %2694 = vmatprep.mubr.bf16.mxu0 %v1259
  %2695 = vmatmul.mubr.bf16.gmra.mrb[0].mxu0 %v1258
  %v2696 = vpop.f32.mrb[0].mxu0
  %v2697 = vadd.f32 %v2409, %v2696
  %v2698 = vpop.f32.mrb[0].mxu0
  %v2699 = vpop.f32.mrb[0].mxu0
  %v2700 = vadd.f32 %v2412, %v2699
  %v2701 = vpop.f32.mrb[0].mxu0
  %2702 = vmatprep.mubr.bf16.mxu0 %v1266
  %2703 = vmatmul.mubr.bf16.gmra.mrb[0].mxu0 %v1265
  %v2704 = vpop.f32.mrb[0].mxu0
  %v2705 = vadd.f32 %v2417, %v2704
  %v2706 = vpop.f32.mrb[0].mxu0
  %v2707 = vpop.f32.mrb[0].mxu0
  %v2708 = vadd.f32 %v2420, %v2707
  %v2709 = vpop.f32.mrb[0].mxu0
  %2710 = vmatprep.mubr.bf16.mxu0 %v1273
  %2711 = vmatmul.mubr.bf16.gmra.mrb[0].mxu0 %v1272
  %v2712 = vpop.f32.mrb[0].mxu0
  %v2713 = vadd.f32 %v2425, %v2712
  %v2714 = vpop.f32.mrb[0].mxu0
  %v2715 = vpop.f32.mrb[0].mxu0
  %v2716 = vadd.f32 %v2428, %v2715
  %v2717 = vpop.f32.mrb[0].mxu0
  %2718 = vmatprep.mubr.bf16.mxu0 %v1280
  %2719 = vmatmul.mubr.bf16.gmra.mrb[0].mxu0 %v1279
  %v2720 = vpop.f32.mrb[0].mxu0
  %v2721 = vadd.f32 %v2433, %v2720
  %v2722 = vpop.f32.mrb[0].mxu0
  %v2723 = vpop.f32.mrb[0].mxu0
  %v2724 = vadd.f32 %v2436, %v2723
  %v2725 = vpop.f32.mrb[0].mxu0
  %2726 = vmatprep.mubr.bf16.mxu0 %v1287
  %2727 = vmatmul.mubr.bf16.gmra.mrb[0].mxu0 %v1286
  %v2728 = vpop.f32.mrb[0].mxu0
  %v2729 = vadd.f32 %v2441, %v2728
  %v2730 = vpop.f32.mrb[0].mxu0
  %v2731 = vpop.f32.mrb[0].mxu0
  %v2732 = vadd.f32 %v2444, %v2731
  %v2733 = vpop.f32.mrb[0].mxu0
  %2734 = vmatprep.mubr.bf16.mxu0 %v1294
  %2735 = vmatmul.mubr.bf16.gmra.mrb[0].mxu0 %v1293
  %v2736 = vpop.f32.mrb[0].mxu0
  %v2737 = vadd.f32 %v2449, %v2736
  %v2738 = vpop.f32.mrb[0].mxu0
  %v2739 = vpop.f32.mrb[0].mxu0
  %v2740 = vadd.f32 %v2452, %v2739
  %v2741 = vpop.f32.mrb[0].mxu0
  %2742 = vmatprep.mubr.bf16.mxu0 %v1301
  %2743 = vmatmul.mubr.bf16.gmra.mrb[0].mxu0 %v1300
  %v2744 = vpop.f32.mrb[0].mxu0
  %v2745 = vadd.f32 %v2457, %v2744
  %v2746 = vpop.f32.mrb[0].mxu0
  %v2747 = vpop.f32.mrb[0].mxu0
  %v2748 = vpop.f32.mrb[0].mxu0
  %2749 = vdwg.mxu0
  %2750 = vmatprep.subr.bf16.mxu0 0
  %2751 = vmatpush1.bf16.msra.mxu0 %v1739
  %2752 = vmatprep.subr.bf16.mxu0 0
  %2753 = vmatpush1.bf16.msra.mxu0 0
  %2754 = vmatprep.subr.bf16.mxu0 0
  %2755 = vmatpush1.bf16.msra.mxu0 0
  %2756 = vmatprep.subr.bf16.mxu0 0
  %2757 = vmatpush1.bf16.msra.mxu0 0
  %2758 = vmatprep.subr.bf16.mxu0 0
  %2759 = vmatpush1.bf16.msra.mxu0 0
  %2760 = vmatprep.subr.bf16.mxu0 0
  %2761 = vmatpush1.bf16.msra.mxu0 0
  %2762 = vmatprep.subr.bf16.mxu0 0
  %2763 = vmatpush1.bf16.msra.mxu0 0
  %2764 = vmatprep.subr.bf16.mxu0 0
  %2765 = vmatpush1.bf16.msra.mxu0 0
  %2766 = vmatprep.subr.bf16.mxu0 0
  %2767 = vmatpush1.bf16.msra.mxu0 0
  %2768 = vmatprep.subr.bf16.mxu0 0
  %2769 = vmatpush1.bf16.msra.mxu0 0
  %2770 = vmatprep.subr.bf16.mxu0 0
  %2771 = vmatpush1.bf16.msra.mxu0 0
  %2772 = vmatprep.subr.bf16.mxu0 0
  %2773 = vmatpush1.bf16.msra.mxu0 0
  %2774 = vmatprep.subr.bf16.mxu0 0
  %2775 = vmatpush1.bf16.msra.mxu0 0
  %2776 = vmatprep.subr.bf16.mxu0 0
  %2777 = vmatpush1.bf16.msra.mxu0 0
  %2778 = vmatprep.subr.bf16.mxu0 0
  %2779 = vmatpush1.bf16.msra.mxu0 0
  %2780 = vmatprep.subr.bf16.mxu0 0
  %2781 = vmatpush1.bf16.msra.mxu0 0
  %2782 = vmatprep.mubr.bf16.mxu0 0
  %2783 = vmatmul.mubr.bf16.gmra.mrb[0].mxu0 %v1791
  %v2784 = vpop.f32.mrb[0].mxu0
  %v2785 = vadd.f32 %v2497, %v2784
  %v2786 = vpop.f32.mrb[0].mxu0
  %v2787 = vpop.f32.mrb[0].mxu0
  %v2788 = vadd.f32 %v2500, %v2787
  %v2789 = vpop.f32.mrb[0].mxu0
  %2790 = vmatprep.mubr.bf16.mxu0 0
  %2791 = vmatmul.mubr.bf16.gmra.mrb[0].mxu0 %v1794
  %v2792 = vpop.f32.mrb[0].mxu0
  %v2793 = vadd.f32 %v2505, %v2792
  %v2794 = vpop.f32.mrb[0].mxu0
  %v2795 = vpop.f32.mrb[0].mxu0
  %v2796 = vadd.f32 %v2508, %v2795
  %v2797 = vpop.f32.mrb[0].mxu0
  %2798 = vmatprep.mubr.bf16.mxu0 0
  %2799 = vmatmul.mubr.bf16.gmra.mrb[0].mxu0 %v1797
  %v2800 = vpop.f32.mrb[0].mxu0
  %v2801 = vadd.f32 %v2513, %v2800
  %v2802 = vpop.f32.mrb[0].mxu0
  %v2803 = vpop.f32.mrb[0].mxu0
  %v2804 = vadd.f32 %v2516, %v2803
  %v2805 = vpop.f32.mrb[0].mxu0
  %2806 = vmatprep.mubr.bf16.mxu0 0
  %2807 = vmatmul.mubr.bf16.gmra.mrb[0].mxu0 %v1800
  %v2808 = vpop.f32.mrb[0].mxu0
  %v2809 = vadd.f32 %v2521, %v2808
  %v2810 = vpop.f32.mrb[0].mxu0
  %v2811 = vpop.f32.mrb[0].mxu0
  %v2812 = vadd.f32 %v2524, %v2811
  %v2813 = vpop.f32.mrb[0].mxu0
  %2814 = vmatprep.mubr.bf16.mxu0 0
  %2815 = vmatmul.mubr.bf16.gmra.mrb[0].mxu0 %v1803
  %v2816 = vpop.f32.mrb[0].mxu0
  %v2817 = vadd.f32 %v2529, %v2816
  %v2818 = vpop.f32.mrb[0].mxu0
  %v2819 = vpop.f32.mrb[0].mxu0
  %v2820 = vadd.f32 %v2532, %v2819
  %v2821 = vpop.f32.mrb[0].mxu0
  %2822 = vmatprep.mubr.bf16.mxu0 0
  %2823 = vmatmul.mubr.bf16.gmra.mrb[0].mxu0 %v1806
  %v2824 = vpop.f32.mrb[0].mxu0
  %v2825 = vadd.f32 %v2537, %v2824
  %v2826 = vpop.f32.mrb[0].mxu0
  %v2827 = vpop.f32.mrb[0].mxu0
  %v2828 = vadd.f32 %v2540, %v2827
  %v2829 = vpop.f32.mrb[0].mxu0
  %2830 = vmatprep.mubr.bf16.mxu0 0
  %2831 = vmatmul.mubr.bf16.gmra.mrb[0].mxu0 %v1809
  %v2832 = vpop.f32.mrb[0].mxu0
  %v2833 = vadd.f32 %v2545, %v2832
  %v2834 = vpop.f32.mrb[0].mxu0
  %v2835 = vpop.f32.mrb[0].mxu0
  %v2836 = vadd.f32 %v2548, %v2835
  %v2837 = vpop.f32.mrb[0].mxu0
  %2838 = vmatprep.mubr.bf16.mxu0 0
  %2839 = vmatmul.mubr.bf16.gmra.mrb[0].mxu0 %v1812
  %v2840 = vpop.f32.mrb[0].mxu0
  %v2841 = vadd.f32 %v2553, %v2840
  %v2842 = vpop.f32.mrb[0].mxu0
  %v2843 = vpop.f32.mrb[0].mxu0
  %v2844 = vadd.f32 %v2556, %v2843
  %v2845 = vpop.f32.mrb[0].mxu0
  %2846 = vmatprep.mubr.bf16.mxu0 0
  %2847 = vmatmul.mubr.bf16.gmra.mrb[0].mxu0 %v1815
  %v2848 = vpop.f32.mrb[0].mxu0
  %v2849 = vadd.f32 %v2561, %v2848
  %v2850 = vpop.f32.mrb[0].mxu0
  %v2851 = vpop.f32.mrb[0].mxu0
  %v2852 = vadd.f32 %v2564, %v2851
  %v2853 = vpop.f32.mrb[0].mxu0
  %2854 = vmatprep.mubr.bf16.mxu0 0
  %2855 = vmatmul.mubr.bf16.gmra.mrb[0].mxu0 %v1818
  %v2856 = vpop.f32.mrb[0].mxu0
  %v2857 = vadd.f32 %v2569, %v2856
  %v2858 = vpop.f32.mrb[0].mxu0
  %v2859 = vpop.f32.mrb[0].mxu0
  %v2860 = vadd.f32 %v2572, %v2859
  %v2861 = vpop.f32.mrb[0].mxu0
  %2862 = vmatprep.mubr.bf16.mxu0 0
  %2863 = vmatmul.mubr.bf16.gmra.mrb[0].mxu0 %v1821
  %v2864 = vpop.f32.mrb[0].mxu0
  %v2865 = vadd.f32 %v2577, %v2864
  %v2866 = vpop.f32.mrb[0].mxu0
  %v2867 = vpop.f32.mrb[0].mxu0
  %v2868 = vadd.f32 %v2580, %v2867
  %v2869 = vpop.f32.mrb[0].mxu0
  %2870 = vmatprep.mubr.bf16.mxu0 0
  %2871 = vmatmul.mubr.bf16.gmra.mrb[0].mxu0 %v1824
  %v2872 = vpop.f32.mrb[0].mxu0
  %v2873 = vadd.f32 %v2585, %v2872
  %v2874 = vpop.f32.mrb[0].mxu0
  %v2875 = vpop.f32.mrb[0].mxu0
  %v2876 = vadd.f32 %v2588, %v2875
  %v2877 = vpop.f32.mrb[0].mxu0
  %2878 = vmatprep.mubr.bf16.mxu0 0
  %2879 = vmatmul.mubr.bf16.gmra.mrb[0].mxu0 %v1827
  %v2880 = vpop.f32.mrb[0].mxu0
  %v2881 = vadd.f32 %v2593, %v2880
  %v2882 = vpop.f32.mrb[0].mxu0
  %v2883 = vpop.f32.mrb[0].mxu0
  %v2884 = vadd.f32 %v2596, %v2883
  %v2885 = vpop.f32.mrb[0].mxu0
  %2886 = vmatprep.mubr.bf16.mxu0 0
  %2887 = vmatmul.mubr.bf16.gmra.mrb[0].mxu0 %v1830
  %v2888 = vpop.f32.mrb[0].mxu0
  %v2889 = vadd.f32 %v2601, %v2888
  %v2890 = vpop.f32.mrb[0].mxu0
  %v2891 = vpop.f32.mrb[0].mxu0
  %v2892 = vadd.f32 %v2604, %v2891
  %v2893 = vpop.f32.mrb[0].mxu0
  %2894 = vmatprep.mubr.bf16.mxu0 0
  %2895 = vmatmul.mubr.bf16.gmra.mrb[0].mxu0 %v1833
  %v2896 = vpop.f32.mrb[0].mxu0
  %v2897 = vadd.f32 %v2609, %v2896
  %v2898 = vpop.f32.mrb[0].mxu0
  %v2899 = vpop.f32.mrb[0].mxu0
  %v2900 = vadd.f32 %v2612, %v2899
  %v2901 = vpop.f32.mrb[0].mxu0
  %2902 = vmatprep.mubr.bf16.mxu0 0
  %2903 = vmatmul.mubr.bf16.gmra.mrb[0].mxu0 %v1836
  %v2904 = vpop.f32.mrb[0].mxu0
  %v2905 = vadd.f32 %v2617, %v2904
  %v2906 = vpop.f32.mrb[0].mxu0
  %v2907 = vpop.f32.mrb[0].mxu0
  %v2908 = vadd.f32 %v2620, %v2907
  %v2909 = vpop.f32.mrb[0].mxu0
  %2910 = vmatprep.mubr.bf16.mxu0 0
  %2911 = vmatmul.mubr.bf16.gmra.mrb[0].mxu0 %v1839
  %v2912 = vpop.f32.mrb[0].mxu0
  %v2913 = vadd.f32 %v2625, %v2912
  %v2914 = vpop.f32.mrb[0].mxu0
  %v2915 = vpop.f32.mrb[0].mxu0
  %v2916 = vadd.f32 %v2628, %v2915
  %v2917 = vpop.f32.mrb[0].mxu0
  %2918 = vmatprep.mubr.bf16.mxu0 0
  %2919 = vmatmul.mubr.bf16.gmra.mrb[0].mxu0 %v1842
  %v2920 = vpop.f32.mrb[0].mxu0
  %v2921 = vadd.f32 %v2633, %v2920
  %v2922 = vpop.f32.mrb[0].mxu0
  %v2923 = vpop.f32.mrb[0].mxu0
  %v2924 = vadd.f32 %v2636, %v2923
  %v2925 = vpop.f32.mrb[0].mxu0
  %2926 = vmatprep.mubr.bf16.mxu0 0
  %2927 = vmatmul.mubr.bf16.gmra.mrb[0].mxu0 %v1845
  %v2928 = vpop.f32.mrb[0].mxu0
  %v2929 = vadd.f32 %v2641, %v2928
  %v2930 = vpop.f32.mrb[0].mxu0
  %v2931 = vpop.f32.mrb[0].mxu0
  %v2932 = vadd.f32 %v2644, %v2931
  %v2933 = vpop.f32.mrb[0].mxu0
  %2934 = vmatprep.mubr.bf16.mxu0 0
  %2935 = vmatmul.mubr.bf16.gmra.mrb[0].mxu0 %v1848
  %v2936 = vpop.f32.mrb[0].mxu0
  %v2937 = vadd.f32 %v2649, %v2936
  %v2938 = vpop.f32.mrb[0].mxu0
  %v2939 = vpop.f32.mrb[0].mxu0
  %v2940 = vadd.f32 %v2652, %v2939
  %v2941 = vpop.f32.mrb[0].mxu0
  %2942 = vmatprep.mubr.bf16.mxu0 0
  %2943 = vmatmul.mubr.bf16.gmra.mrb[0].mxu0 %v1851
  %v2944 = vpop.f32.mrb[0].mxu0
  %v2945 = vadd.f32 %v2657, %v2944
  %v2946 = vpop.f32.mrb[0].mxu0
  %v2947 = vpop.f32.mrb[0].mxu0
  %v2948 = vadd.f32 %v2660, %v2947
  %v2949 = vpop.f32.mrb[0].mxu0
  %2950 = vmatprep.mubr.bf16.mxu0 0
  %2951 = vmatmul.mubr.bf16.gmra.mrb[0].mxu0 %v1854
  %v2952 = vpop.f32.mrb[0].mxu0
  %v2953 = vadd.f32 %v2665, %v2952
  %v2954 = vpop.f32.mrb[0].mxu0
  %v2955 = vpop.f32.mrb[0].mxu0
  %v2956 = vadd.f32 %v2668, %v2955
  %v2957 = vpop.f32.mrb[0].mxu0
  %2958 = vmatprep.mubr.bf16.mxu0 0
  %2959 = vmatmul.mubr.bf16.gmra.mrb[0].mxu0 %v1857
  %v2960 = vpop.f32.mrb[0].mxu0
  %v2961 = vadd.f32 %v2673, %v2960
  %v2962 = vpop.f32.mrb[0].mxu0
  %v2963 = vpop.f32.mrb[0].mxu0
  %v2964 = vadd.f32 %v2676, %v2963
  %v2965 = vpop.f32.mrb[0].mxu0
  %2966 = vmatprep.mubr.bf16.mxu0 0
  %2967 = vmatmul.mubr.bf16.gmra.mrb[0].mxu0 %v1860
  %v2968 = vpop.f32.mrb[0].mxu0
  %v2969 = vadd.f32 %v2681, %v2968
  %v2970 = vpop.f32.mrb[0].mxu0
  %v2971 = vpop.f32.mrb[0].mxu0
  %v2972 = vadd.f32 %v2684, %v2971
  %v2973 = vpop.f32.mrb[0].mxu0
  %2974 = vmatprep.mubr.bf16.mxu0 0
  %2975 = vmatmul.mubr.bf16.gmra.mrb[0].mxu0 %v1863
  %v2976 = vpop.f32.mrb[0].mxu0
  %v2977 = vadd.f32 %v2689, %v2976
  %v2978 = vpop.f32.mrb[0].mxu0
  %v2979 = vpop.f32.mrb[0].mxu0
  %v2980 = vadd.f32 %v2692, %v2979
  %v2981 = vpop.f32.mrb[0].mxu0
  %2982 = vmatprep.mubr.bf16.mxu0 0
  %2983 = vmatmul.mubr.bf16.gmra.mrb[0].mxu0 %v1866
  %v2984 = vpop.f32.mrb[0].mxu0
  %v2985 = vadd.f32 %v2697, %v2984
  %v2986 = vpop.f32.mrb[0].mxu0
  %v2987 = vpop.f32.mrb[0].mxu0
  %v2988 = vadd.f32 %v2700, %v2987
  %v2989 = vpop.f32.mrb[0].mxu0
  %2990 = vmatprep.mubr.bf16.mxu0 0
  %2991 = vmatmul.mubr.bf16.gmra.mrb[0].mxu0 %v1869
  %v2992 = vpop.f32.mrb[0].mxu0
  %v2993 = vadd.f32 %v2705, %v2992
  %v2994 = vpop.f32.mrb[0].mxu0
  %v2995 = vpop.f32.mrb[0].mxu0
  %v2996 = vadd.f32 %v2708, %v2995
  %v2997 = vpop.f32.mrb[0].mxu0
  %2998 = vmatprep.mubr.bf16.mxu0 0
  %2999 = vmatmul.mubr.bf16.gmra.mrb[0].mxu0 %v1872
  %v3000 = vpop.f32.mrb[0].mxu0
  %v3001 = vadd.f32 %v2713, %v3000
  %v3002 = vpop.f32.mrb[0].mxu0
  %v3003 = vpop.f32.mrb[0].mxu0
  %v3004 = vadd.f32 %v2716, %v3003
  %v3005 = vpop.f32.mrb[0].mxu0
  %3006 = vmatprep.mubr.bf16.mxu0 0
  %3007 = vmatmul.mubr.bf16.gmra.mrb[0].mxu0 %v1875
  %v3008 = vpop.f32.mrb[0].mxu0
  %v3009 = vadd.f32 %v2721, %v3008
  %v3010 = vpop.f32.mrb[0].mxu0
  %v3011 = vpop.f32.mrb[0].mxu0
  %v3012 = vadd.f32 %v2724, %v3011
  %v3013 = vpop.f32.mrb[0].mxu0
  %3014 = vmatprep.mubr.bf16.mxu0 0
  %3015 = vmatmul.mubr.bf16.gmra.mrb[0].mxu0 %v1878
  %v3016 = vpop.f32.mrb[0].mxu0
  %v3017 = vadd.f32 %v2729, %v3016
  %v3018 = vpop.f32.mrb[0].mxu0
  %v3019 = vpop.f32.mrb[0].mxu0
  %v3020 = vadd.f32 %v2732, %v3019
  %v3021 = vpop.f32.mrb[0].mxu0
  %3022 = vmatprep.mubr.bf16.mxu0 0
  %3023 = vmatmul.mubr.bf16.gmra.mrb[0].mxu0 %v1881
  %v3024 = vpop.f32.mrb[0].mxu0
  %v3025 = vadd.f32 %v2737, %v3024
  %v3026 = vpop.f32.mrb[0].mxu0
  %v3027 = vpop.f32.mrb[0].mxu0
  %v3028 = vadd.f32 %v2740, %v3027
  %v3029 = vpop.f32.mrb[0].mxu0
  %3030 = vmatprep.mubr.bf16.mxu0 0
  %3031 = vmatmul.mubr.bf16.gmra.mrb[0].mxu0 %v1884
  %v3032 = vpop.f32.mrb[0].mxu0
  %v3033 = vadd.f32 %v2745, %v3032
  %v3034 = vpop.f32.mrb[0].mxu0
  %v3035 = vpop.f32.mrb[0].mxu0
  %v3036 = vpop.f32.mrb[0].mxu0
  %3037 = vdwg.mxu0
  %v3038 = vmax.f32 %v2785, 0.0
  %v3039 = vmax.f32 %v2788, 0.0
  %v3040 = vmax.f32 %v2793, 0.0
  %v3041 = vmax.f32 %v2796, 0.0
  %v3042 = vmax.f32 %v2801, 0.0
  %v3043 = vmax.f32 %v2804, 0.0
  %v3044 = vmax.f32 %v2809, 0.0
  %v3045 = vmax.f32 %v2812, 0.0
  %v3046 = vmax.f32 %v2817, 0.0
  %v3047 = vmax.f32 %v2820, 0.0
  %v3048 = vmax.f32 %v2825, 0.0
  %v3049 = vmax.f32 %v2828, 0.0
  %v3050 = vmax.f32 %v2833, 0.0
  %v3051 = vmax.f32 %v2836, 0.0
  %v3052 = vmax.f32 %v2841, 0.0
  %v3053 = vmax.f32 %v2844, 0.0
  %v3054 = vmax.f32 %v2849, 0.0
  %v3055 = vmax.f32 %v2852, 0.0
  %v3056 = vmax.f32 %v2857, 0.0
  %v3057 = vmax.f32 %v2860, 0.0
  %v3058 = vmax.f32 %v2865, 0.0
  %v3059 = vmax.f32 %v2868, 0.0
  %v3060 = vmax.f32 %v2873, 0.0
  %v3061 = vmax.f32 %v2876, 0.0
  %v3062 = vmax.f32 %v2881, 0.0
  %v3063 = vmax.f32 %v2884, 0.0
  %v3064 = vmax.f32 %v2889, 0.0
  %v3065 = vmax.f32 %v2892, 0.0
  %v3066 = vmax.f32 %v2897, 0.0
  %v3067 = vmax.f32 %v2900, 0.0
  %v3068 = vmax.f32 %v2905, 0.0
  %v3069 = vmax.f32 %v2908, 0.0
  %v3070 = vmax.f32 %v2913, 0.0
  %v3071 = vmax.f32 %v2916, 0.0
  %v3072 = vmax.f32 %v2921, 0.0
  %v3073 = vmax.f32 %v2924, 0.0
  %v3074 = vmax.f32 %v2929, 0.0
  %v3075 = vmax.f32 %v2932, 0.0
  %v3076 = vmax.f32 %v2937, 0.0
  %v3077 = vmax.f32 %v2940, 0.0
  %v3078 = vmax.f32 %v2945, 0.0
  %v3079 = vmax.f32 %v2948, 0.0
  %v3080 = vmax.f32 %v2953, 0.0
  %v3081 = vmax.f32 %v2956, 0.0
  %v3082 = vmax.f32 %v2961, 0.0
  %v3083 = vmax.f32 %v2964, 0.0
  %v3084 = vmax.f32 %v2969, 0.0
  %v3085 = vmax.f32 %v2972, 0.0
  %v3086 = vmax.f32 %v2977, 0.0
  %v3087 = vmax.f32 %v2980, 0.0
  %v3088 = vmax.f32 %v2985, 0.0
  %v3089 = vmax.f32 %v2988, 0.0
  %v3090 = vmax.f32 %v2993, 0.0
  %v3091 = vmax.f32 %v2996, 0.0
  %v3092 = vmax.f32 %v3001, 0.0
  %v3093 = vmax.f32 %v3004, 0.0
  %v3094 = vmax.f32 %v3009, 0.0
  %v3095 = vmax.f32 %v3012, 0.0
  %v3096 = vmax.f32 %v3017, 0.0
  %v3097 = vmax.f32 %v3020, 0.0
  %v3098 = vmax.f32 %v3025, 0.0
  %v3099 = vmax.f32 %v3028, 0.0
  %v3100 = vmax.f32 %v3033, 0.0
  %v3101 = vpack.c.bf16 %v3039, %v3038
  %v3102 = vpack.c.bf16 %v3041, %v3040
  %v3103 = vpack.c.bf16 %v3043, %v3042
  %v3104 = vpack.c.bf16 %v3045, %v3044
  %v3105 = vpack.c.bf16 %v3047, %v3046
  %v3106 = vpack.c.bf16 %v3049, %v3048
  %v3107 = vpack.c.bf16 %v3051, %v3050
  %v3108 = vpack.c.bf16 %v3053, %v3052
  %v3109 = vpack.c.bf16 %v3055, %v3054
  %v3110 = vpack.c.bf16 %v3057, %v3056
  %v3111 = vpack.c.bf16 %v3059, %v3058
  %v3112 = vpack.c.bf16 %v3061, %v3060
  %v3113 = vpack.c.bf16 %v3063, %v3062
  %v3114 = vpack.c.bf16 %v3065, %v3064
  %v3115 = vpack.c.bf16 %v3067, %v3066
  %v3116 = vpack.c.bf16 %v3069, %v3068
  %v3117 = vpack.c.bf16 %v3071, %v3070
  %v3118 = vpack.c.bf16 %v3073, %v3072
  %v3119 = vpack.c.bf16 %v3075, %v3074
  %v3120 = vpack.c.bf16 %v3077, %v3076
  %v3121 = vpack.c.bf16 %v3079, %v3078
  %v3122 = vpack.c.bf16 %v3081, %v3080
  %v3123 = vpack.c.bf16 %v3083, %v3082
  %v3124 = vpack.c.bf16 %v3085, %v3084
  %v3125 = vpack.c.bf16 %v3087, %v3086
  %v3126 = vpack.c.bf16 %v3089, %v3088
  %v3127 = vpack.c.bf16 %v3091, %v3090
  %v3128 = vpack.c.bf16 %v3093, %v3092
  %v3129 = vpack.c.bf16 %v3095, %v3094
  %v3130 = vpack.c.bf16 %v3097, %v3096
  %v3131 = vpack.c.bf16 %v3099, %v3098
  %v3132 = vpack.c.bf16 %v3100, %v3100
  %v3133 = vld [vmem:[%s2] sm:$0xf]
  %v3134 = vld [vmem:[%s2 + $0x4] sm:$0xf]
  %v3135 = vld [vmem:[%s2 + $0x8] sm:$0xf]
  %v3136 = vld [vmem:[%s2 + $0xc] sm:$0xf]
  %v3137 = vld [vmem:[%s2 + $0x10] sm:$0xf]
  %v3138 = vld [vmem:[%s2 + $0x14] sm:$0xf]
  %v3139 = vld [vmem:[%s2 + $0x18] sm:$0xf]
  %v3140 = vld [vmem:[%s2 + $0x1c] sm:$0xf]
  %v3141 = vld [vmem:[%s2 + $0x20] sm:$0xf]
  %v3142 = vld [vmem:[%s2 + $0x24] sm:$0xf]
  %v3143 = vld [vmem:[%s2 + $0x28] sm:$0xf]
  %v3144 = vld [vmem:[%s2 + $0x2c] sm:$0xf]
  %v3145 = vld [vmem:[%s2 + $0x30] sm:$0xf]
  %v3146 = vld [vmem:[%s2 + $0x34] sm:$0xf]
  %v3147 = vld [vmem:[%s2 + $0x38] sm:$0xf]
  %v3148 = vld [vmem:[%s2 + $0x3c] sm:$0xf]
  %v3149 = vld [vmem:[%s5 + $0x1] sm:$0x1]
  %v3150 = vlaneseq
  %v3151 = vshrl.u32 %v3150, 7
  %v3152 = vsub.s32 0, %v3151
  %v3153 = vrot.slane %v3149, %v3152
  %v3170 = vunpack.c.l.b16 %v3133
  %v3171 = vunpack.c.l.b16 %v3134
  %v3172 = vunpack.c.l.b16 %v3135
  %v3173 = vunpack.c.l.b16 %v3136
  %v3174 = vunpack.c.l.b16 %v3137
  %v3175 = vunpack.c.l.b16 %v3138
  %v3176 = vunpack.c.l.b16 %v3139
  %v3177 = vunpack.c.l.b16 %v3140
  %v3178 = vunpack.c.l.b16 %v3141
  %v3179 = vunpack.c.l.b16 %v3142
  %v3180 = vunpack.c.l.b16 %v3143
  %v3181 = vunpack.c.l.b16 %v3144
  %v3182 = vunpack.c.l.b16 %v3145
  %v3183 = vunpack.c.l.b16 %v3146
  %v3184 = vunpack.c.l.b16 %v3147
  %v3185 = vunpack.c.l.b16 %v3148
  %v3186 = vpack.c.b16 %v3171, %v3170
  %v3187 = vpack.c.b16 %v3173, %v3172
  %v3188 = vpack.c.b16 %v3175, %v3174
  %v3189 = vpack.c.b16 %v3177, %v3176
  %v3190 = vpack.c.b16 %v3179, %v3178
  %v3191 = vpack.c.b16 %v3181, %v3180
  %v3192 = vpack.c.b16 %v3183, %v3182
  %v3193 = vpack.c.b16 %v3185, %v3184
  %3202 = vmatprep.subr.bf16.mxu0 0
  %3203 = vmatpush1.bf16.msra.mxu0 %v3186
  %3204 = vmatprep.subr.bf16.mxu0 0
  %3205 = vmatpush1.bf16.msra.mxu0 %v3187
  %3206 = vmatprep.subr.bf16.mxu0 0
  %3207 = vmatpush1.bf16.msra.mxu0 %v3188
  %3208 = vmatprep.subr.bf16.mxu0 0
  %3209 = vmatpush1.bf16.msra.mxu0 %v3189
  %3210 = vmatprep.subr.bf16.mxu0 0
  %3211 = vmatpush1.bf16.msra.mxu0 %v3190
  %3212 = vmatprep.subr.bf16.mxu0 0
  %3213 = vmatpush1.bf16.msra.mxu0 %v3191
  %3214 = vmatprep.subr.bf16.mxu0 0
  %3215 = vmatpush1.bf16.msra.mxu0 %v3192
  %3216 = vmatprep.subr.bf16.mxu0 0
  %3217 = vmatpush1.bf16.msra.mxu0 %v3193
  %3218 = vmatprep.subr.bf16.mxu0 0
  %3219 = vmatpush1.bf16.msra.mxu0 0
  %3220 = vmatprep.subr.bf16.mxu0 0
  %3221 = vmatpush1.bf16.msra.mxu0 0
  %3222 = vmatprep.subr.bf16.mxu0 0
  %3223 = vmatpush1.bf16.msra.mxu0 0
  %3224 = vmatprep.subr.bf16.mxu0 0
  %3225 = vmatpush1.bf16.msra.mxu0 0
  %3226 = vmatprep.subr.bf16.mxu0 0
  %3227 = vmatpush1.bf16.msra.mxu0 0
  %3228 = vmatprep.subr.bf16.mxu0 0
  %3229 = vmatpush1.bf16.msra.mxu0 0
  %3230 = vmatprep.subr.bf16.mxu0 0
  %3231 = vmatpush1.bf16.msra.mxu0 0
  %3232 = vmatprep.subr.bf16.mxu0 0
  %3233 = vmatpush1.bf16.msra.mxu0 0
  %3234 = vmatprep.mubr.bf16.mxu0 0
  %3235 = vmatmul.mubr.bf16.gmra.mrb[0].mxu0 %v3101
  %v3236 = vpop.f32.mrb[0].mxu0
  %v3237 = vadd.f32 %v3153, %v3236
  %v3238 = vpop.f32.mrb[0].mxu0
  %v3239 = vpop.f32.mrb[0].mxu0
  %v3240 = vadd.f32 %v3153, %v3239
  %v3241 = vpop.f32.mrb[0].mxu0
  %3242 = vmatprep.mubr.bf16.mxu0 0
  %3243 = vmatmul.mubr.bf16.gmra.mrb[0].mxu0 %v3102
  %v3244 = vpop.f32.mrb[0].mxu0
  %v3245 = vadd.f32 %v3153, %v3244
  %v3246 = vpop.f32.mrb[0].mxu0
  %v3247 = vpop.f32.mrb[0].mxu0
  %v3248 = vadd.f32 %v3153, %v3247
  %v3249 = vpop.f32.mrb[0].mxu0
  %3250 = vmatprep.mubr.bf16.mxu0 0
  %3251 = vmatmul.mubr.bf16.gmra.mrb[0].mxu0 %v3103
  %v3252 = vpop.f32.mrb[0].mxu0
  %v3253 = vadd.f32 %v3153, %v3252
  %v3254 = vpop.f32.mrb[0].mxu0
  %v3255 = vpop.f32.mrb[0].mxu0
  %v3256 = vadd.f32 %v3153, %v3255
  %v3257 = vpop.f32.mrb[0].mxu0
  %3258 = vmatprep.mubr.bf16.mxu0 0
  %3259 = vmatmul.mubr.bf16.gmra.mrb[0].mxu0 %v3104
  %v3260 = vpop.f32.mrb[0].mxu0
  %v3261 = vadd.f32 %v3153, %v3260
  %v3262 = vpop.f32.mrb[0].mxu0
  %v3263 = vpop.f32.mrb[0].mxu0
  %v3264 = vadd.f32 %v3153, %v3263
  %v3265 = vpop.f32.mrb[0].mxu0
  %3266 = vmatprep.mubr.bf16.mxu0 0
  %3267 = vmatmul.mubr.bf16.gmra.mrb[0].mxu0 %v3105
  %v3268 = vpop.f32.mrb[0].mxu0
  %v3269 = vadd.f32 %v3153, %v3268
  %v3270 = vpop.f32.mrb[0].mxu0
  %v3271 = vpop.f32.mrb[0].mxu0
  %v3272 = vadd.f32 %v3153, %v3271
  %v3273 = vpop.f32.mrb[0].mxu0
  %3274 = vmatprep.mubr.bf16.mxu0 0
  %3275 = vmatmul.mubr.bf16.gmra.mrb[0].mxu0 %v3106
  %v3276 = vpop.f32.mrb[0].mxu0
  %v3277 = vadd.f32 %v3153, %v3276
  %v3278 = vpop.f32.mrb[0].mxu0
  %v3279 = vpop.f32.mrb[0].mxu0
  %v3280 = vadd.f32 %v3153, %v3279
  %v3281 = vpop.f32.mrb[0].mxu0
  %3282 = vmatprep.mubr.bf16.mxu0 0
  %3283 = vmatmul.mubr.bf16.gmra.mrb[0].mxu0 %v3107
  %v3284 = vpop.f32.mrb[0].mxu0
  %v3285 = vadd.f32 %v3153, %v3284
  %v3286 = vpop.f32.mrb[0].mxu0
  %v3287 = vpop.f32.mrb[0].mxu0
  %v3288 = vadd.f32 %v3153, %v3287
  %v3289 = vpop.f32.mrb[0].mxu0
  %3290 = vmatprep.mubr.bf16.mxu0 0
  %3291 = vmatmul.mubr.bf16.gmra.mrb[0].mxu0 %v3108
  %v3292 = vpop.f32.mrb[0].mxu0
  %v3293 = vadd.f32 %v3153, %v3292
  %v3294 = vpop.f32.mrb[0].mxu0
  %v3295 = vpop.f32.mrb[0].mxu0
  %v3296 = vadd.f32 %v3153, %v3295
  %v3297 = vpop.f32.mrb[0].mxu0
  %3298 = vmatprep.mubr.bf16.mxu0 0
  %3299 = vmatmul.mubr.bf16.gmra.mrb[0].mxu0 %v3109
  %v3300 = vpop.f32.mrb[0].mxu0
  %v3301 = vadd.f32 %v3153, %v3300
  %v3302 = vpop.f32.mrb[0].mxu0
  %v3303 = vpop.f32.mrb[0].mxu0
  %v3304 = vadd.f32 %v3153, %v3303
  %v3305 = vpop.f32.mrb[0].mxu0
  %3306 = vmatprep.mubr.bf16.mxu0 0
  %3307 = vmatmul.mubr.bf16.gmra.mrb[0].mxu0 %v3110
  %v3308 = vpop.f32.mrb[0].mxu0
  %v3309 = vadd.f32 %v3153, %v3308
  %v3310 = vpop.f32.mrb[0].mxu0
  %v3311 = vpop.f32.mrb[0].mxu0
  %v3312 = vadd.f32 %v3153, %v3311
  %v3313 = vpop.f32.mrb[0].mxu0
  %3314 = vmatprep.mubr.bf16.mxu0 0
  %3315 = vmatmul.mubr.bf16.gmra.mrb[0].mxu0 %v3111
  %v3316 = vpop.f32.mrb[0].mxu0
  %v3317 = vadd.f32 %v3153, %v3316
  %v3318 = vpop.f32.mrb[0].mxu0
  %v3319 = vpop.f32.mrb[0].mxu0
  %v3320 = vadd.f32 %v3153, %v3319
  %v3321 = vpop.f32.mrb[0].mxu0
  %3322 = vmatprep.mubr.bf16.mxu0 0
  %3323 = vmatmul.mubr.bf16.gmra.mrb[0].mxu0 %v3112
  %v3324 = vpop.f32.mrb[0].mxu0
  %v3325 = vadd.f32 %v3153, %v3324
  %v3326 = vpop.f32.mrb[0].mxu0
  %v3327 = vpop.f32.mrb[0].mxu0
  %v3328 = vadd.f32 %v3153, %v3327
  %v3329 = vpop.f32.mrb[0].mxu0
  %3330 = vmatprep.mubr.bf16.mxu0 0
  %3331 = vmatmul.mubr.bf16.gmra.mrb[0].mxu0 %v3113
  %v3332 = vpop.f32.mrb[0].mxu0
  %v3333 = vadd.f32 %v3153, %v3332
  %v3334 = vpop.f32.mrb[0].mxu0
  %v3335 = vpop.f32.mrb[0].mxu0
  %v3336 = vadd.f32 %v3153, %v3335
  %v3337 = vpop.f32.mrb[0].mxu0
  %3338 = vmatprep.mubr.bf16.mxu0 0
  %3339 = vmatmul.mubr.bf16.gmra.mrb[0].mxu0 %v3114
  %v3340 = vpop.f32.mrb[0].mxu0
  %v3341 = vadd.f32 %v3153, %v3340
  %v3342 = vpop.f32.mrb[0].mxu0
  %v3343 = vpop.f32.mrb[0].mxu0
  %v3344 = vadd.f32 %v3153, %v3343
  %v3345 = vpop.f32.mrb[0].mxu0
  %3346 = vmatprep.mubr.bf16.mxu0 0
  %3347 = vmatmul.mubr.bf16.gmra.mrb[0].mxu0 %v3115
  %v3348 = vpop.f32.mrb[0].mxu0
  %v3349 = vadd.f32 %v3153, %v3348
  %v3350 = vpop.f32.mrb[0].mxu0
  %v3351 = vpop.f32.mrb[0].mxu0
  %v3352 = vadd.f32 %v3153, %v3351
  %v3353 = vpop.f32.mrb[0].mxu0
  %3354 = vmatprep.mubr.bf16.mxu0 0
  %3355 = vmatmul.mubr.bf16.gmra.mrb[0].mxu0 %v3116
  %v3356 = vpop.f32.mrb[0].mxu0
  %v3357 = vadd.f32 %v3153, %v3356
  %v3358 = vpop.f32.mrb[0].mxu0
  %v3359 = vpop.f32.mrb[0].mxu0
  %v3360 = vadd.f32 %v3153, %v3359
  %v3361 = vpop.f32.mrb[0].mxu0
  %3362 = vmatprep.mubr.bf16.mxu0 0
  %3363 = vmatmul.mubr.bf16.gmra.mrb[0].mxu0 %v3117
  %v3364 = vpop.f32.mrb[0].mxu0
  %v3365 = vadd.f32 %v3153, %v3364
  %v3366 = vpop.f32.mrb[0].mxu0
  %v3367 = vpop.f32.mrb[0].mxu0
  %v3368 = vadd.f32 %v3153, %v3367
  %v3369 = vpop.f32.mrb[0].mxu0
  %3370 = vmatprep.mubr.bf16.mxu0 0
  %3371 = vmatmul.mubr.bf16.gmra.mrb[0].mxu0 %v3118
  %v3372 = vpop.f32.mrb[0].mxu0
  %v3373 = vadd.f32 %v3153, %v3372
  %v3374 = vpop.f32.mrb[0].mxu0
  %v3375 = vpop.f32.mrb[0].mxu0
  %v3376 = vadd.f32 %v3153, %v3375
  %v3377 = vpop.f32.mrb[0].mxu0
  %3378 = vmatprep.mubr.bf16.mxu0 0
  %3379 = vmatmul.mubr.bf16.gmra.mrb[0].mxu0 %v3119
  %v3380 = vpop.f32.mrb[0].mxu0
  %v3381 = vadd.f32 %v3153, %v3380
  %v3382 = vpop.f32.mrb[0].mxu0
  %v3383 = vpop.f32.mrb[0].mxu0
  %v3384 = vadd.f32 %v3153, %v3383
  %v3385 = vpop.f32.mrb[0].mxu0
  %3386 = vmatprep.mubr.bf16.mxu0 0
  %3387 = vmatmul.mubr.bf16.gmra.mrb[0].mxu0 %v3120
  %v3388 = vpop.f32.mrb[0].mxu0
  %v3389 = vadd.f32 %v3153, %v3388
  %v3390 = vpop.f32.mrb[0].mxu0
  %v3391 = vpop.f32.mrb[0].mxu0
  %v3392 = vadd.f32 %v3153, %v3391
  %v3393 = vpop.f32.mrb[0].mxu0
  %3394 = vmatprep.mubr.bf16.mxu0 0
  %3395 = vmatmul.mubr.bf16.gmra.mrb[0].mxu0 %v3121
  %v3396 = vpop.f32.mrb[0].mxu0
  %v3397 = vadd.f32 %v3153, %v3396
  %v3398 = vpop.f32.mrb[0].mxu0
  %v3399 = vpop.f32.mrb[0].mxu0
  %v3400 = vadd.f32 %v3153, %v3399
  %v3401 = vpop.f32.mrb[0].mxu0
  %3402 = vmatprep.mubr.bf16.mxu0 0
  %3403 = vmatmul.mubr.bf16.gmra.mrb[0].mxu0 %v3122
  %v3404 = vpop.f32.mrb[0].mxu0
  %v3405 = vadd.f32 %v3153, %v3404
  %v3406 = vpop.f32.mrb[0].mxu0
  %v3407 = vpop.f32.mrb[0].mxu0
  %v3408 = vadd.f32 %v3153, %v3407
  %v3409 = vpop.f32.mrb[0].mxu0
  %3410 = vmatprep.mubr.bf16.mxu0 0
  %3411 = vmatmul.mubr.bf16.gmra.mrb[0].mxu0 %v3123
  %v3412 = vpop.f32.mrb[0].mxu0
  %v3413 = vadd.f32 %v3153, %v3412
  %v3414 = vpop.f32.mrb[0].mxu0
  %v3415 = vpop.f32.mrb[0].mxu0
  %v3416 = vadd.f32 %v3153, %v3415
  %v3417 = vpop.f32.mrb[0].mxu0
  %3418 = vmatprep.mubr.bf16.mxu0 0
  %3419 = vmatmul.mubr.bf16.gmra.mrb[0].mxu0 %v3124
  %v3420 = vpop.f32.mrb[0].mxu0
  %v3421 = vadd.f32 %v3153, %v3420
  %v3422 = vpop.f32.mrb[0].mxu0
  %v3423 = vpop.f32.mrb[0].mxu0
  %v3424 = vadd.f32 %v3153, %v3423
  %v3425 = vpop.f32.mrb[0].mxu0
  %3426 = vmatprep.mubr.bf16.mxu0 0
  %3427 = vmatmul.mubr.bf16.gmra.mrb[0].mxu0 %v3125
  %v3428 = vpop.f32.mrb[0].mxu0
  %v3429 = vadd.f32 %v3153, %v3428
  %v3430 = vpop.f32.mrb[0].mxu0
  %v3431 = vpop.f32.mrb[0].mxu0
  %v3432 = vadd.f32 %v3153, %v3431
  %v3433 = vpop.f32.mrb[0].mxu0
  %3434 = vmatprep.mubr.bf16.mxu0 0
  %3435 = vmatmul.mubr.bf16.gmra.mrb[0].mxu0 %v3126
  %v3436 = vpop.f32.mrb[0].mxu0
  %v3437 = vadd.f32 %v3153, %v3436
  %v3438 = vpop.f32.mrb[0].mxu0
  %v3439 = vpop.f32.mrb[0].mxu0
  %v3440 = vadd.f32 %v3153, %v3439
  %v3441 = vpop.f32.mrb[0].mxu0
  %3442 = vmatprep.mubr.bf16.mxu0 0
  %3443 = vmatmul.mubr.bf16.gmra.mrb[0].mxu0 %v3127
  %v3444 = vpop.f32.mrb[0].mxu0
  %v3445 = vadd.f32 %v3153, %v3444
  %v3446 = vpop.f32.mrb[0].mxu0
  %v3447 = vpop.f32.mrb[0].mxu0
  %v3448 = vadd.f32 %v3153, %v3447
  %v3449 = vpop.f32.mrb[0].mxu0
  %3450 = vmatprep.mubr.bf16.mxu0 0
  %3451 = vmatmul.mubr.bf16.gmra.mrb[0].mxu0 %v3128
  %v3452 = vpop.f32.mrb[0].mxu0
  %v3453 = vadd.f32 %v3153, %v3452
  %v3454 = vpop.f32.mrb[0].mxu0
  %v3455 = vpop.f32.mrb[0].mxu0
  %v3456 = vadd.f32 %v3153, %v3455
  %v3457 = vpop.f32.mrb[0].mxu0
  %3458 = vmatprep.mubr.bf16.mxu0 0
  %3459 = vmatmul.mubr.bf16.gmra.mrb[0].mxu0 %v3129
  %v3460 = vpop.f32.mrb[0].mxu0
  %v3461 = vadd.f32 %v3153, %v3460
  %v3462 = vpop.f32.mrb[0].mxu0
  %v3463 = vpop.f32.mrb[0].mxu0
  %v3464 = vadd.f32 %v3153, %v3463
  %v3465 = vpop.f32.mrb[0].mxu0
  %3466 = vmatprep.mubr.bf16.mxu0 0
  %3467 = vmatmul.mubr.bf16.gmra.mrb[0].mxu0 %v3130
  %v3468 = vpop.f32.mrb[0].mxu0
  %v3469 = vadd.f32 %v3153, %v3468
  %v3470 = vpop.f32.mrb[0].mxu0
  %v3471 = vpop.f32.mrb[0].mxu0
  %v3472 = vadd.f32 %v3153, %v3471
  %v3473 = vpop.f32.mrb[0].mxu0
  %3474 = vmatprep.mubr.bf16.mxu0 0
  %3475 = vmatmul.mubr.bf16.gmra.mrb[0].mxu0 %v3131
  %v3476 = vpop.f32.mrb[0].mxu0
  %v3477 = vadd.f32 %v3153, %v3476
  %v3478 = vpop.f32.mrb[0].mxu0
  %v3479 = vpop.f32.mrb[0].mxu0
  %v3480 = vadd.f32 %v3153, %v3479
  %v3481 = vpop.f32.mrb[0].mxu0
  %3482 = vmatprep.mubr.bf16.mxu0 0
  %3483 = vmatmul.mubr.bf16.gmra.mrb[0].mxu0 %v3132
  %v3484 = vpop.f32.mrb[0].mxu0
  %v3485 = vadd.f32 %v3153, %v3484
  %v3486 = vpop.f32.mrb[0].mxu0
  %v3487 = vpop.f32.mrb[0].mxu0
  %v3488 = vpop.f32.mrb[0].mxu0
  %3489 = vdwg.mxu0
  %v3490 = vmax.f32 %v3237, 0.0
  %v3491 = vmax.f32 %v3240, 0.0
  %v3492 = vmax.f32 %v3245, 0.0
  %v3493 = vmax.f32 %v3248, 0.0
  %v3494 = vmax.f32 %v3253, 0.0
  %v3495 = vmax.f32 %v3256, 0.0
  %v3496 = vmax.f32 %v3261, 0.0
  %v3497 = vmax.f32 %v3264, 0.0
  %v3498 = vmax.f32 %v3269, 0.0
  %v3499 = vmax.f32 %v3272, 0.0
  %v3500 = vmax.f32 %v3277, 0.0
  %v3501 = vmax.f32 %v3280, 0.0
  %v3502 = vmax.f32 %v3285, 0.0
  %v3503 = vmax.f32 %v3288, 0.0
  %v3504 = vmax.f32 %v3293, 0.0
  %v3505 = vmax.f32 %v3296, 0.0
  %v3506 = vmax.f32 %v3301, 0.0
  %v3507 = vmax.f32 %v3304, 0.0
  %v3508 = vmax.f32 %v3309, 0.0
  %v3509 = vmax.f32 %v3312, 0.0
  %v3510 = vmax.f32 %v3317, 0.0
  %v3511 = vmax.f32 %v3320, 0.0
  %v3512 = vmax.f32 %v3325, 0.0
  %v3513 = vmax.f32 %v3328, 0.0
  %v3514 = vmax.f32 %v3333, 0.0
  %v3515 = vmax.f32 %v3336, 0.0
  %v3516 = vmax.f32 %v3341, 0.0
  %v3517 = vmax.f32 %v3344, 0.0
  %v3518 = vmax.f32 %v3349, 0.0
  %v3519 = vmax.f32 %v3352, 0.0
  %v3520 = vmax.f32 %v3357, 0.0
  %v3521 = vmax.f32 %v3360, 0.0
  %v3522 = vmax.f32 %v3365, 0.0
  %v3523 = vmax.f32 %v3368, 0.0
  %v3524 = vmax.f32 %v3373, 0.0
  %v3525 = vmax.f32 %v3376, 0.0
  %v3526 = vmax.f32 %v3381, 0.0
  %v3527 = vmax.f32 %v3384, 0.0
  %v3528 = vmax.f32 %v3389, 0.0
  %v3529 = vmax.f32 %v3392, 0.0
  %v3530 = vmax.f32 %v3397, 0.0
  %v3531 = vmax.f32 %v3400, 0.0
  %v3532 = vmax.f32 %v3405, 0.0
  %v3533 = vmax.f32 %v3408, 0.0
  %v3534 = vmax.f32 %v3413, 0.0
  %v3535 = vmax.f32 %v3416, 0.0
  %v3536 = vmax.f32 %v3421, 0.0
  %v3537 = vmax.f32 %v3424, 0.0
  %v3538 = vmax.f32 %v3429, 0.0
  %v3539 = vmax.f32 %v3432, 0.0
  %v3540 = vmax.f32 %v3437, 0.0
  %v3541 = vmax.f32 %v3440, 0.0
  %v3542 = vmax.f32 %v3445, 0.0
  %v3543 = vmax.f32 %v3448, 0.0
  %v3544 = vmax.f32 %v3453, 0.0
  %v3545 = vmax.f32 %v3456, 0.0
  %v3546 = vmax.f32 %v3461, 0.0
  %v3547 = vmax.f32 %v3464, 0.0
  %v3548 = vmax.f32 %v3469, 0.0
  %v3549 = vmax.f32 %v3472, 0.0
  %v3550 = vmax.f32 %v3477, 0.0
  %v3551 = vmax.f32 %v3480, 0.0
  %v3552 = vmax.f32 %v3485, 0.0
  %v3553 = vpack.c.bf16 %v3491, %v3490
  %v3554 = vpack.c.bf16 %v3493, %v3492
  %v3555 = vpack.c.bf16 %v3495, %v3494
  %v3556 = vpack.c.bf16 %v3497, %v3496
  %v3557 = vpack.c.bf16 %v3499, %v3498
  %v3558 = vpack.c.bf16 %v3501, %v3500
  %v3559 = vpack.c.bf16 %v3503, %v3502
  %v3560 = vpack.c.bf16 %v3505, %v3504
  %v3561 = vpack.c.bf16 %v3507, %v3506
  %v3562 = vpack.c.bf16 %v3509, %v3508
  %v3563 = vpack.c.bf16 %v3511, %v3510
  %v3564 = vpack.c.bf16 %v3513, %v3512
  %v3565 = vpack.c.bf16 %v3515, %v3514
  %v3566 = vpack.c.bf16 %v3517, %v3516
  %v3567 = vpack.c.bf16 %v3519, %v3518
  %v3568 = vpack.c.bf16 %v3521, %v3520
  %v3569 = vpack.c.bf16 %v3523, %v3522
  %v3570 = vpack.c.bf16 %v3525, %v3524
  %v3571 = vpack.c.bf16 %v3527, %v3526
  %v3572 = vpack.c.bf16 %v3529, %v3528
  %v3573 = vpack.c.bf16 %v3531, %v3530
  %v3574 = vpack.c.bf16 %v3533, %v3532
  %v3575 = vpack.c.bf16 %v3535, %v3534
  %v3576 = vpack.c.bf16 %v3537, %v3536
  %v3577 = vpack.c.bf16 %v3539, %v3538
  %v3578 = vpack.c.bf16 %v3541, %v3540
  %v3579 = vpack.c.bf16 %v3543, %v3542
  %v3580 = vpack.c.bf16 %v3545, %v3544
  %v3581 = vpack.c.bf16 %v3547, %v3546
  %v3582 = vpack.c.bf16 %v3549, %v3548
  %v3583 = vpack.c.bf16 %v3551, %v3550
  %v3584 = vpack.c.bf16 %v3552, %v3552
  %v3585 = vld [vmem:[%s3] sm:$0xf]
  %v3586 = vld [vmem:[%s3 + $0x4] sm:$0xf]
  %v3587 = vld [vmem:[%s3 + $0x8] sm:$0xf]
  %v3588 = vld [vmem:[%s3 + $0xc] sm:$0xf]
  %v3589 = vld [vmem:[%s3 + $0x10] sm:$0xf]
  %v3590 = vld [vmem:[%s3 + $0x14] sm:$0xf]
  %v3591 = vld [vmem:[%s3 + $0x18] sm:$0xf]
  %v3592 = vld [vmem:[%s3 + $0x1c] sm:$0xf]
  %v3593 = vld [vmem:[%s3 + $0x20] sm:$0xf]
  %v3594 = vld [vmem:[%s3 + $0x24] sm:$0xf]
  %v3595 = vld [vmem:[%s3 + $0x28] sm:$0xf]
  %v3596 = vld [vmem:[%s3 + $0x2c] sm:$0xf]
  %v3597 = vld [vmem:[%s3 + $0x30] sm:$0xf]
  %v3598 = vld [vmem:[%s3 + $0x34] sm:$0xf]
  %v3599 = vld [vmem:[%s3 + $0x38] sm:$0xf]
  %v3600 = vld [vmem:[%s3 + $0x3c] sm:$0xf]
  %v3601 = vld [vmem:[%s5 + $0x2] sm:$0x1]
  %v3602 = vlaneseq
  %v3603 = vshrl.u32 %v3602, 7
  %v3604 = vsub.s32 0, %v3603
  %v3605 = vrot.slane %v3601, %v3604
  %v3622 = vunpack.c.l.b16 %v3585
  %v3623 = vunpack.c.l.b16 %v3586
  %v3624 = vunpack.c.l.b16 %v3587
  %v3625 = vunpack.c.l.b16 %v3588
  %v3626 = vunpack.c.l.b16 %v3589
  %v3627 = vunpack.c.l.b16 %v3590
  %v3628 = vunpack.c.l.b16 %v3591
  %v3629 = vunpack.c.l.b16 %v3592
  %v3630 = vunpack.c.l.b16 %v3593
  %v3631 = vunpack.c.l.b16 %v3594
  %v3632 = vunpack.c.l.b16 %v3595
  %v3633 = vunpack.c.l.b16 %v3596
  %v3634 = vunpack.c.l.b16 %v3597
  %v3635 = vunpack.c.l.b16 %v3598
  %v3636 = vunpack.c.l.b16 %v3599
  %v3637 = vunpack.c.l.b16 %v3600
  %v3638 = vpack.c.b16 %v3623, %v3622
  %v3639 = vpack.c.b16 %v3625, %v3624
  %v3640 = vpack.c.b16 %v3627, %v3626
  %v3641 = vpack.c.b16 %v3629, %v3628
  %v3642 = vpack.c.b16 %v3631, %v3630
  %v3643 = vpack.c.b16 %v3633, %v3632
  %v3644 = vpack.c.b16 %v3635, %v3634
  %v3645 = vpack.c.b16 %v3637, %v3636
  %3654 = vmatprep.subr.bf16.mxu0 0
  %3655 = vmatpush1.bf16.msra.mxu0 %v3638
  %3656 = vmatprep.subr.bf16.mxu0 0
  %3657 = vmatpush1.bf16.msra.mxu0 %v3639
  %3658 = vmatprep.subr.bf16.mxu0 0
  %3659 = vmatpush1.bf16.msra.mxu0 %v3640
  %3660 = vmatprep.subr.bf16.mxu0 0
  %3661 = vmatpush1.bf16.msra.mxu0 %v3641
  %3662 = vmatprep.subr.bf16.mxu0 0
  %3663 = vmatpush1.bf16.msra.mxu0 %v3642
  %3664 = vmatprep.subr.bf16.mxu0 0
  %3665 = vmatpush1.bf16.msra.mxu0 %v3643
  %3666 = vmatprep.subr.bf16.mxu0 0
  %3667 = vmatpush1.bf16.msra.mxu0 %v3644
  %3668 = vmatprep.subr.bf16.mxu0 0
  %3669 = vmatpush1.bf16.msra.mxu0 %v3645
  %3670 = vmatprep.subr.bf16.mxu0 0
  %3671 = vmatpush1.bf16.msra.mxu0 0
  %3672 = vmatprep.subr.bf16.mxu0 0
  %3673 = vmatpush1.bf16.msra.mxu0 0
  %3674 = vmatprep.subr.bf16.mxu0 0
  %3675 = vmatpush1.bf16.msra.mxu0 0
  %3676 = vmatprep.subr.bf16.mxu0 0
  %3677 = vmatpush1.bf16.msra.mxu0 0
  %3678 = vmatprep.subr.bf16.mxu0 0
  %3679 = vmatpush1.bf16.msra.mxu0 0
  %3680 = vmatprep.subr.bf16.mxu0 0
  %3681 = vmatpush1.bf16.msra.mxu0 0
  %3682 = vmatprep.subr.bf16.mxu0 0
  %3683 = vmatpush1.bf16.msra.mxu0 0
  %3684 = vmatprep.subr.bf16.mxu0 0
  %3685 = vmatpush1.bf16.msra.mxu0 0
  %3686 = vmatprep.mubr.bf16.mxu0 0
  %3687 = vmatmul.mubr.bf16.gmra.mrb[0].mxu0 %v3553
  %v3688 = vpop.f32.mrb[0].mxu0
  %v3689 = vadd.f32 %v3605, %v3688
  %v3690 = vpop.f32.mrb[0].mxu0
  %v3691 = vpop.f32.mrb[0].mxu0
  %v3692 = vadd.f32 %v3605, %v3691
  %v3693 = vpop.f32.mrb[0].mxu0
  %3694 = vmatprep.mubr.bf16.mxu0 0
  %3695 = vmatmul.mubr.bf16.gmra.mrb[0].mxu0 %v3554
  %v3696 = vpop.f32.mrb[0].mxu0
  %v3697 = vadd.f32 %v3605, %v3696
  %v3698 = vpop.f32.mrb[0].mxu0
  %v3699 = vpop.f32.mrb[0].mxu0
  %v3700 = vadd.f32 %v3605, %v3699
  %v3701 = vpop.f32.mrb[0].mxu0
  %3702 = vmatprep.mubr.bf16.mxu0 0
  %3703 = vmatmul.mubr.bf16.gmra.mrb[0].mxu0 %v3555
  %v3704 = vpop.f32.mrb[0].mxu0
  %v3705 = vadd.f32 %v3605, %v3704
  %v3706 = vpop.f32.mrb[0].mxu0
  %v3707 = vpop.f32.mrb[0].mxu0
  %v3708 = vadd.f32 %v3605, %v3707
  %v3709 = vpop.f32.mrb[0].mxu0
  %3710 = vmatprep.mubr.bf16.mxu0 0
  %3711 = vmatmul.mubr.bf16.gmra.mrb[0].mxu0 %v3556
  %v3712 = vpop.f32.mrb[0].mxu0
  %v3713 = vadd.f32 %v3605, %v3712
  %v3714 = vpop.f32.mrb[0].mxu0
  %v3715 = vpop.f32.mrb[0].mxu0
  %v3716 = vadd.f32 %v3605, %v3715
  %v3717 = vpop.f32.mrb[0].mxu0
  %3718 = vmatprep.mubr.bf16.mxu0 0
  %3719 = vmatmul.mubr.bf16.gmra.mrb[0].mxu0 %v3557
  %v3720 = vpop.f32.mrb[0].mxu0
  %v3721 = vadd.f32 %v3605, %v3720
  %v3722 = vpop.f32.mrb[0].mxu0
  %v3723 = vpop.f32.mrb[0].mxu0
  %v3724 = vadd.f32 %v3605, %v3723
  %v3725 = vpop.f32.mrb[0].mxu0
  %3726 = vmatprep.mubr.bf16.mxu0 0
  %3727 = vmatmul.mubr.bf16.gmra.mrb[0].mxu0 %v3558
  %v3728 = vpop.f32.mrb[0].mxu0
  %v3729 = vadd.f32 %v3605, %v3728
  %v3730 = vpop.f32.mrb[0].mxu0
  %v3731 = vpop.f32.mrb[0].mxu0
  %v3732 = vadd.f32 %v3605, %v3731
  %v3733 = vpop.f32.mrb[0].mxu0
  %3734 = vmatprep.mubr.bf16.mxu0 0
  %3735 = vmatmul.mubr.bf16.gmra.mrb[0].mxu0 %v3559
  %v3736 = vpop.f32.mrb[0].mxu0
  %v3737 = vadd.f32 %v3605, %v3736
  %v3738 = vpop.f32.mrb[0].mxu0
  %v3739 = vpop.f32.mrb[0].mxu0
  %v3740 = vadd.f32 %v3605, %v3739
  %v3741 = vpop.f32.mrb[0].mxu0
  %3742 = vmatprep.mubr.bf16.mxu0 0
  %3743 = vmatmul.mubr.bf16.gmra.mrb[0].mxu0 %v3560
  %v3744 = vpop.f32.mrb[0].mxu0
  %v3745 = vadd.f32 %v3605, %v3744
  %v3746 = vpop.f32.mrb[0].mxu0
  %v3747 = vpop.f32.mrb[0].mxu0
  %v3748 = vadd.f32 %v3605, %v3747
  %v3749 = vpop.f32.mrb[0].mxu0
  %3750 = vmatprep.mubr.bf16.mxu0 0
  %3751 = vmatmul.mubr.bf16.gmra.mrb[0].mxu0 %v3561
  %v3752 = vpop.f32.mrb[0].mxu0
  %v3753 = vadd.f32 %v3605, %v3752
  %v3754 = vpop.f32.mrb[0].mxu0
  %v3755 = vpop.f32.mrb[0].mxu0
  %v3756 = vadd.f32 %v3605, %v3755
  %v3757 = vpop.f32.mrb[0].mxu0
  %3758 = vmatprep.mubr.bf16.mxu0 0
  %3759 = vmatmul.mubr.bf16.gmra.mrb[0].mxu0 %v3562
  %v3760 = vpop.f32.mrb[0].mxu0
  %v3761 = vadd.f32 %v3605, %v3760
  %v3762 = vpop.f32.mrb[0].mxu0
  %v3763 = vpop.f32.mrb[0].mxu0
  %v3764 = vadd.f32 %v3605, %v3763
  %v3765 = vpop.f32.mrb[0].mxu0
  %3766 = vmatprep.mubr.bf16.mxu0 0
  %3767 = vmatmul.mubr.bf16.gmra.mrb[0].mxu0 %v3563
  %v3768 = vpop.f32.mrb[0].mxu0
  %v3769 = vadd.f32 %v3605, %v3768
  %v3770 = vpop.f32.mrb[0].mxu0
  %v3771 = vpop.f32.mrb[0].mxu0
  %v3772 = vadd.f32 %v3605, %v3771
  %v3773 = vpop.f32.mrb[0].mxu0
  %3774 = vmatprep.mubr.bf16.mxu0 0
  %3775 = vmatmul.mubr.bf16.gmra.mrb[0].mxu0 %v3564
  %v3776 = vpop.f32.mrb[0].mxu0
  %v3777 = vadd.f32 %v3605, %v3776
  %v3778 = vpop.f32.mrb[0].mxu0
  %v3779 = vpop.f32.mrb[0].mxu0
  %v3780 = vadd.f32 %v3605, %v3779
  %v3781 = vpop.f32.mrb[0].mxu0
  %3782 = vmatprep.mubr.bf16.mxu0 0
  %3783 = vmatmul.mubr.bf16.gmra.mrb[0].mxu0 %v3565
  %v3784 = vpop.f32.mrb[0].mxu0
  %v3785 = vadd.f32 %v3605, %v3784
  %v3786 = vpop.f32.mrb[0].mxu0
  %v3787 = vpop.f32.mrb[0].mxu0
  %v3788 = vadd.f32 %v3605, %v3787
  %v3789 = vpop.f32.mrb[0].mxu0
  %3790 = vmatprep.mubr.bf16.mxu0 0
  %3791 = vmatmul.mubr.bf16.gmra.mrb[0].mxu0 %v3566
  %v3792 = vpop.f32.mrb[0].mxu0
  %v3793 = vadd.f32 %v3605, %v3792
  %v3794 = vpop.f32.mrb[0].mxu0
  %v3795 = vpop.f32.mrb[0].mxu0
  %v3796 = vadd.f32 %v3605, %v3795
  %v3797 = vpop.f32.mrb[0].mxu0
  %3798 = vmatprep.mubr.bf16.mxu0 0
  %3799 = vmatmul.mubr.bf16.gmra.mrb[0].mxu0 %v3567
  %v3800 = vpop.f32.mrb[0].mxu0
  %v3801 = vadd.f32 %v3605, %v3800
  %v3802 = vpop.f32.mrb[0].mxu0
  %v3803 = vpop.f32.mrb[0].mxu0
  %v3804 = vadd.f32 %v3605, %v3803
  %v3805 = vpop.f32.mrb[0].mxu0
  %3806 = vmatprep.mubr.bf16.mxu0 0
  %3807 = vmatmul.mubr.bf16.gmra.mrb[0].mxu0 %v3568
  %v3808 = vpop.f32.mrb[0].mxu0
  %v3809 = vadd.f32 %v3605, %v3808
  %v3810 = vpop.f32.mrb[0].mxu0
  %v3811 = vpop.f32.mrb[0].mxu0
  %v3812 = vadd.f32 %v3605, %v3811
  %v3813 = vpop.f32.mrb[0].mxu0
  %3814 = vmatprep.mubr.bf16.mxu0 0
  %3815 = vmatmul.mubr.bf16.gmra.mrb[0].mxu0 %v3569
  %v3816 = vpop.f32.mrb[0].mxu0
  %v3817 = vadd.f32 %v3605, %v3816
  %v3818 = vpop.f32.mrb[0].mxu0
  %v3819 = vpop.f32.mrb[0].mxu0
  %v3820 = vadd.f32 %v3605, %v3819
  %v3821 = vpop.f32.mrb[0].mxu0
  %3822 = vmatprep.mubr.bf16.mxu0 0
  %3823 = vmatmul.mubr.bf16.gmra.mrb[0].mxu0 %v3570
  %v3824 = vpop.f32.mrb[0].mxu0
  %v3825 = vadd.f32 %v3605, %v3824
  %v3826 = vpop.f32.mrb[0].mxu0
  %v3827 = vpop.f32.mrb[0].mxu0
  %v3828 = vadd.f32 %v3605, %v3827
  %v3829 = vpop.f32.mrb[0].mxu0
  %3830 = vmatprep.mubr.bf16.mxu0 0
  %3831 = vmatmul.mubr.bf16.gmra.mrb[0].mxu0 %v3571
  %v3832 = vpop.f32.mrb[0].mxu0
  %v3833 = vadd.f32 %v3605, %v3832
  %v3834 = vpop.f32.mrb[0].mxu0
  %v3835 = vpop.f32.mrb[0].mxu0
  %v3836 = vadd.f32 %v3605, %v3835
  %v3837 = vpop.f32.mrb[0].mxu0
  %3838 = vmatprep.mubr.bf16.mxu0 0
  %3839 = vmatmul.mubr.bf16.gmra.mrb[0].mxu0 %v3572
  %v3840 = vpop.f32.mrb[0].mxu0
  %v3841 = vadd.f32 %v3605, %v3840
  %v3842 = vpop.f32.mrb[0].mxu0
  %v3843 = vpop.f32.mrb[0].mxu0
  %v3844 = vadd.f32 %v3605, %v3843
  %v3845 = vpop.f32.mrb[0].mxu0
  %3846 = vmatprep.mubr.bf16.mxu0 0
  %3847 = vmatmul.mubr.bf16.gmra.mrb[0].mxu0 %v3573
  %v3848 = vpop.f32.mrb[0].mxu0
  %v3849 = vadd.f32 %v3605, %v3848
  %v3850 = vpop.f32.mrb[0].mxu0
  %v3851 = vpop.f32.mrb[0].mxu0
  %v3852 = vadd.f32 %v3605, %v3851
  %v3853 = vpop.f32.mrb[0].mxu0
  %3854 = vmatprep.mubr.bf16.mxu0 0
  %3855 = vmatmul.mubr.bf16.gmra.mrb[0].mxu0 %v3574
  %v3856 = vpop.f32.mrb[0].mxu0
  %v3857 = vadd.f32 %v3605, %v3856
  %v3858 = vpop.f32.mrb[0].mxu0
  %v3859 = vpop.f32.mrb[0].mxu0
  %v3860 = vadd.f32 %v3605, %v3859
  %v3861 = vpop.f32.mrb[0].mxu0
  %3862 = vmatprep.mubr.bf16.mxu0 0
  %3863 = vmatmul.mubr.bf16.gmra.mrb[0].mxu0 %v3575
  %v3864 = vpop.f32.mrb[0].mxu0
  %v3865 = vadd.f32 %v3605, %v3864
  %v3866 = vpop.f32.mrb[0].mxu0
  %v3867 = vpop.f32.mrb[0].mxu0
  %v3868 = vadd.f32 %v3605, %v3867
  %v3869 = vpop.f32.mrb[0].mxu0
  %3870 = vmatprep.mubr.bf16.mxu0 0
  %3871 = vmatmul.mubr.bf16.gmra.mrb[0].mxu0 %v3576
  %v3872 = vpop.f32.mrb[0].mxu0
  %v3873 = vadd.f32 %v3605, %v3872
  %v3874 = vpop.f32.mrb[0].mxu0
  %v3875 = vpop.f32.mrb[0].mxu0
  %v3876 = vadd.f32 %v3605, %v3875
  %v3877 = vpop.f32.mrb[0].mxu0
  %3878 = vmatprep.mubr.bf16.mxu0 0
  %3879 = vmatmul.mubr.bf16.gmra.mrb[0].mxu0 %v3577
  %v3880 = vpop.f32.mrb[0].mxu0
  %v3881 = vadd.f32 %v3605, %v3880
  %v3882 = vpop.f32.mrb[0].mxu0
  %v3883 = vpop.f32.mrb[0].mxu0
  %v3884 = vadd.f32 %v3605, %v3883
  %v3885 = vpop.f32.mrb[0].mxu0
  %3886 = vmatprep.mubr.bf16.mxu0 0
  %3887 = vmatmul.mubr.bf16.gmra.mrb[0].mxu0 %v3578
  %v3888 = vpop.f32.mrb[0].mxu0
  %v3889 = vadd.f32 %v3605, %v3888
  %v3890 = vpop.f32.mrb[0].mxu0
  %v3891 = vpop.f32.mrb[0].mxu0
  %v3892 = vadd.f32 %v3605, %v3891
  %v3893 = vpop.f32.mrb[0].mxu0
  %3894 = vmatprep.mubr.bf16.mxu0 0
  %3895 = vmatmul.mubr.bf16.gmra.mrb[0].mxu0 %v3579
  %v3896 = vpop.f32.mrb[0].mxu0
  %v3897 = vadd.f32 %v3605, %v3896
  %v3898 = vpop.f32.mrb[0].mxu0
  %v3899 = vpop.f32.mrb[0].mxu0
  %v3900 = vadd.f32 %v3605, %v3899
  %v3901 = vpop.f32.mrb[0].mxu0
  %3902 = vmatprep.mubr.bf16.mxu0 0
  %3903 = vmatmul.mubr.bf16.gmra.mrb[0].mxu0 %v3580
  %v3904 = vpop.f32.mrb[0].mxu0
  %v3905 = vadd.f32 %v3605, %v3904
  %v3906 = vpop.f32.mrb[0].mxu0
  %v3907 = vpop.f32.mrb[0].mxu0
  %v3908 = vadd.f32 %v3605, %v3907
  %v3909 = vpop.f32.mrb[0].mxu0
  %3910 = vmatprep.mubr.bf16.mxu0 0
  %3911 = vmatmul.mubr.bf16.gmra.mrb[0].mxu0 %v3581
  %v3912 = vpop.f32.mrb[0].mxu0
  %v3913 = vadd.f32 %v3605, %v3912
  %v3914 = vpop.f32.mrb[0].mxu0
  %v3915 = vpop.f32.mrb[0].mxu0
  %v3916 = vadd.f32 %v3605, %v3915
  %v3917 = vpop.f32.mrb[0].mxu0
  %3918 = vmatprep.mubr.bf16.mxu0 0
  %3919 = vmatmul.mubr.bf16.gmra.mrb[0].mxu0 %v3582
  %v3920 = vpop.f32.mrb[0].mxu0
  %v3921 = vadd.f32 %v3605, %v3920
  %v3922 = vpop.f32.mrb[0].mxu0
  %v3923 = vpop.f32.mrb[0].mxu0
  %v3924 = vadd.f32 %v3605, %v3923
  %v3925 = vpop.f32.mrb[0].mxu0
  %3926 = vmatprep.mubr.bf16.mxu0 0
  %3927 = vmatmul.mubr.bf16.gmra.mrb[0].mxu0 %v3583
  %v3928 = vpop.f32.mrb[0].mxu0
  %v3929 = vadd.f32 %v3605, %v3928
  %v3930 = vpop.f32.mrb[0].mxu0
  %v3931 = vpop.f32.mrb[0].mxu0
  %v3932 = vadd.f32 %v3605, %v3931
  %v3933 = vpop.f32.mrb[0].mxu0
  %3934 = vmatprep.mubr.bf16.mxu0 0
  %3935 = vmatmul.mubr.bf16.gmra.mrb[0].mxu0 %v3584
  %v3936 = vpop.f32.mrb[0].mxu0
  %v3937 = vadd.f32 %v3605, %v3936
  %v3938 = vpop.f32.mrb[0].mxu0
  %v3939 = vpop.f32.mrb[0].mxu0
  %v3940 = vpop.f32.mrb[0].mxu0
  %3941 = vdwg.mxu0
  %v3942 = vmax.f32 %v3689, 0.0
  %v3943 = vmax.f32 %v3692, 0.0
  %v3944 = vmax.f32 %v3697, 0.0
  %v3945 = vmax.f32 %v3700, 0.0
  %v3946 = vmax.f32 %v3705, 0.0
  %v3947 = vmax.f32 %v3708, 0.0
  %v3948 = vmax.f32 %v3713, 0.0
  %v3949 = vmax.f32 %v3716, 0.0
  %v3950 = vmax.f32 %v3721, 0.0
  %v3951 = vmax.f32 %v3724, 0.0
  %v3952 = vmax.f32 %v3729, 0.0
  %v3953 = vmax.f32 %v3732, 0.0
  %v3954 = vmax.f32 %v3737, 0.0
  %v3955 = vmax.f32 %v3740, 0.0
  %v3956 = vmax.f32 %v3745, 0.0
  %v3957 = vmax.f32 %v3748, 0.0
  %v3958 = vmax.f32 %v3753, 0.0
  %v3959 = vmax.f32 %v3756, 0.0
  %v3960 = vmax.f32 %v3761, 0.0
  %v3961 = vmax.f32 %v3764, 0.0
  %v3962 = vmax.f32 %v3769, 0.0
  %v3963 = vmax.f32 %v3772, 0.0
  %v3964 = vmax.f32 %v3777, 0.0
  %v3965 = vmax.f32 %v3780, 0.0
  %v3966 = vmax.f32 %v3785, 0.0
  %v3967 = vmax.f32 %v3788, 0.0
  %v3968 = vmax.f32 %v3793, 0.0
  %v3969 = vmax.f32 %v3796, 0.0
  %v3970 = vmax.f32 %v3801, 0.0
  %v3971 = vmax.f32 %v3804, 0.0
  %v3972 = vmax.f32 %v3809, 0.0
  %v3973 = vmax.f32 %v3812, 0.0
  %v3974 = vmax.f32 %v3817, 0.0
  %v3975 = vmax.f32 %v3820, 0.0
  %v3976 = vmax.f32 %v3825, 0.0
  %v3977 = vmax.f32 %v3828, 0.0
  %v3978 = vmax.f32 %v3833, 0.0
  %v3979 = vmax.f32 %v3836, 0.0
  %v3980 = vmax.f32 %v3841, 0.0
  %v3981 = vmax.f32 %v3844, 0.0
  %v3982 = vmax.f32 %v3849, 0.0
  %v3983 = vmax.f32 %v3852, 0.0
  %v3984 = vmax.f32 %v3857, 0.0
  %v3985 = vmax.f32 %v3860, 0.0
  %v3986 = vmax.f32 %v3865, 0.0
  %v3987 = vmax.f32 %v3868, 0.0
  %v3988 = vmax.f32 %v3873, 0.0
  %v3989 = vmax.f32 %v3876, 0.0
  %v3990 = vmax.f32 %v3881, 0.0
  %v3991 = vmax.f32 %v3884, 0.0
  %v3992 = vmax.f32 %v3889, 0.0
  %v3993 = vmax.f32 %v3892, 0.0
  %v3994 = vmax.f32 %v3897, 0.0
  %v3995 = vmax.f32 %v3900, 0.0
  %v3996 = vmax.f32 %v3905, 0.0
  %v3997 = vmax.f32 %v3908, 0.0
  %v3998 = vmax.f32 %v3913, 0.0
  %v3999 = vmax.f32 %v3916, 0.0
  %v4000 = vmax.f32 %v3921, 0.0
  %v4001 = vmax.f32 %v3924, 0.0
  %v4002 = vmax.f32 %v3929, 0.0
  %v4003 = vmax.f32 %v3932, 0.0
  %v4004 = vmax.f32 %v3937, 0.0
  %v4005 = vpack.c.bf16 %v3943, %v3942
  %v4006 = vpack.c.bf16 %v3945, %v3944
  %v4007 = vpack.c.bf16 %v3947, %v3946
  %v4008 = vpack.c.bf16 %v3949, %v3948
  %v4009 = vpack.c.bf16 %v3951, %v3950
  %v4010 = vpack.c.bf16 %v3953, %v3952
  %v4011 = vpack.c.bf16 %v3955, %v3954
  %v4012 = vpack.c.bf16 %v3957, %v3956
  %v4013 = vpack.c.bf16 %v3959, %v3958
  %v4014 = vpack.c.bf16 %v3961, %v3960
  %v4015 = vpack.c.bf16 %v3963, %v3962
  %v4016 = vpack.c.bf16 %v3965, %v3964
  %v4017 = vpack.c.bf16 %v3967, %v3966
  %v4018 = vpack.c.bf16 %v3969, %v3968
  %v4019 = vpack.c.bf16 %v3971, %v3970
  %v4020 = vpack.c.bf16 %v3973, %v3972
  %v4021 = vpack.c.bf16 %v3975, %v3974
  %v4022 = vpack.c.bf16 %v3977, %v3976
  %v4023 = vpack.c.bf16 %v3979, %v3978
  %v4024 = vpack.c.bf16 %v3981, %v3980
  %v4025 = vpack.c.bf16 %v3983, %v3982
  %v4026 = vpack.c.bf16 %v3985, %v3984
  %v4027 = vpack.c.bf16 %v3987, %v3986
  %v4028 = vpack.c.bf16 %v3989, %v3988
  %v4029 = vpack.c.bf16 %v3991, %v3990
  %v4030 = vpack.c.bf16 %v3993, %v3992
  %v4031 = vpack.c.bf16 %v3995, %v3994
  %v4032 = vpack.c.bf16 %v3997, %v3996
  %v4033 = vpack.c.bf16 %v3999, %v3998
  %v4034 = vpack.c.bf16 %v4001, %v4000
  %v4035 = vpack.c.bf16 %v4003, %v4002
  %v4036 = vpack.c.bf16 %v4004, %v4004
  %v4037 = vld [vmem:[%s4] sm:$0xff]
  %v4038 = vld [vmem:[%s4 + $0x8] sm:$0xff]
  %v4039 = vld [vmem:[%s4 + $0x10] sm:$0xff]
  %v4040 = vld [vmem:[%s4 + $0x18] sm:$0xf]
  %v4041 = vld [vmem:[%s4 + $0x1c] sm:$0xff]
  %v4042 = vld [vmem:[%s4 + $0x24] sm:$0xff]
  %v4043 = vld [vmem:[%s4 + $0x2c] sm:$0xff]
  %v4044 = vld [vmem:[%s4 + $0x34] sm:$0xf]
  %v4045 = vld [vmem:[%s4 + $0x38] sm:$0xff]
  %v4046 = vld [vmem:[%s4 + $0x40] sm:$0xff]
  %v4047 = vld [vmem:[%s4 + $0x48] sm:$0xff]
  %v4048 = vld [vmem:[%s4 + $0x50] sm:$0xf]
  %v4049 = vld [vmem:[%s4 + $0x54] sm:$0xff]
  %v4050 = vld [vmem:[%s4 + $0x5c] sm:$0xff]
  %v4051 = vld [vmem:[%s4 + $0x64] sm:$0xff]
  %v4052 = vld [vmem:[%s4 + $0x6c] sm:$0xf]
  %v4053 = vld [vmem:[%s4 + $0x70] sm:$0xff]
  %v4054 = vld [vmem:[%s4 + $0x78] sm:$0xff]
  %v4055 = vld [vmem:[%s4 + $0x80] sm:$0xff]
  %v4056 = vld [vmem:[%s4 + $0x88] sm:$0xf]
  %v4057 = vld [vmem:[%s4 + $0x8c] sm:$0xff]
  %v4058 = vld [vmem:[%s4 + $0x94] sm:$0xff]
  %v4059 = vld [vmem:[%s4 + $0x9c] sm:$0xff]
  %v4060 = vld [vmem:[%s4 + $0xa4] sm:$0xf]
  %v4061 = vld [vmem:[%s4 + $0xa8] sm:$0xff]
  %v4062 = vld [vmem:[%s4 + $0xb0] sm:$0xff]
  %v4063 = vld [vmem:[%s4 + $0xb8] sm:$0xff]
  %v4064 = vld [vmem:[%s4 + $0xc0] sm:$0xf]
  %v4065 = vld [vmem:[%s4 + $0xc4] sm:$0xff]
  %v4066 = vld [vmem:[%s4 + $0xcc] sm:$0xff]
  %v4067 = vld [vmem:[%s4 + $0xd4] sm:$0xff]
  %v4068 = vld [vmem:[%s4 + $0xdc] sm:$0xf]
  %v4069 = vld [vmem:[%s4 + $0xe0] sm:$0xff]
  %v4070 = vld [vmem:[%s4 + $0xe8] sm:$0xff]
  %v4071 = vld [vmem:[%s4 + $0xf0] sm:$0xff]
  %v4072 = vld [vmem:[%s4 + $0xf8] sm:$0xf]
  %v4073 = vld [vmem:[%s4 + $0xfc] sm:$0xff]
  %v4074 = vld [vmem:[%s4 + $0x104] sm:$0xff]
  %v4075 = vld [vmem:[%s4 + $0x10c] sm:$0xff]
  %v4076 = vld [vmem:[%s4 + $0x114] sm:$0xf]
  %v4077 = vld [vmem:[%s4 + $0x118] sm:$0xff]
  %v4078 = vld [vmem:[%s4 + $0x120] sm:$0xff]
  %v4079 = vld [vmem:[%s4 + $0x128] sm:$0xff]
  %v4080 = vld [vmem:[%s4 + $0x130] sm:$0xf]
  %v4081 = vld [vmem:[%s4 + $0x134] sm:$0xff]
  %v4082 = vld [vmem:[%s4 + $0x13c] sm:$0xff]
  %v4083 = vld [vmem:[%s4 + $0x144] sm:$0xff]
  %v4084 = vld [vmem:[%s4 + $0x14c] sm:$0xf]
  %v4085 = vld [vmem:[%s4 + $0x150] sm:$0xff]
  %v4086 = vld [vmem:[%s4 + $0x158] sm:$0xff]
  %v4087 = vld [vmem:[%s4 + $0x160] sm:$0xff]
  %v4088 = vld [vmem:[%s4 + $0x168] sm:$0xf]
  %v4089 = vld [vmem:[%s4 + $0x16c] sm:$0xff]
  %v4090 = vld [vmem:[%s4 + $0x174] sm:$0xff]
  %v4091 = vld [vmem:[%s4 + $0x17c] sm:$0xff]
  %v4092 = vld [vmem:[%s4 + $0x184] sm:$0xf]
  %v4093 = vld [vmem:[%s4 + $0x188] sm:$0xff]
  %v4094 = vld [vmem:[%s4 + $0x190] sm:$0xff]
  %v4095 = vld [vmem:[%s4 + $0x198] sm:$0xff]
  %v4096 = vld [vmem:[%s4 + $0x1a0] sm:$0xf]
  %v4097 = vld [vmem:[%s4 + $0x1a4] sm:$0xff]
  %v4098 = vld [vmem:[%s4 + $0x1ac] sm:$0xff]
  %v4099 = vld [vmem:[%s4 + $0x1b4] sm:$0xff]
  %v4100 = vld [vmem:[%s4 + $0x1bc] sm:$0xf]
  %v4101 = vld [vmem:[%s6] sm:$0x7f]
  %v4103 = vlaneseq
  %v4104 = vshrl.u32 %v4103, 7
  %v4105 = vsub.s32 0, %v4104
  %v4106 = vrot.slane %v4101, %v4105
  %v4107 = vlaneseq
  %v4108 = vshrl.u32 %v4107, 7
  %v4109 = vsub.s32 1, %v4108
  %v4110 = vrot.slane %v4101, %v4109
  %v4111 = vlaneseq
  %v4112 = vshrl.u32 %v4111, 7
  %v4113 = vsub.s32 2, %v4112
  %v4114 = vrot.slane %v4101, %v4113
  %v4115 = vlaneseq
  %v4116 = vshrl.u32 %v4115, 7
  %v4117 = vsub.s32 3, %v4116
  %v4118 = vrot.slane %v4101, %v4117
  %v4119 = vlaneseq
  %v4120 = vshrl.u32 %v4119, 7
  %v4121 = vsub.s32 4, %v4120
  %v4122 = vrot.slane %v4101, %v4121
  %v4123 = vlaneseq
  %v4124 = vshrl.u32 %v4123, 7
  %v4125 = vsub.s32 5, %v4124
  %v4126 = vrot.slane %v4101, %v4125
  %v4127 = vlaneseq
  %v4128 = vshrl.u32 %v4127, 7
  %v4129 = vsub.s32 6, %v4128
  %v4130 = vrot.slane %v4101, %v4129
  %v4202 = vunpack.c.l.b16 %v4037
  %v4203 = vunpack.c.h.b16 %v4037
  %v4204 = vunpack.c.l.b16 %v4038
  %v4205 = vunpack.c.h.b16 %v4038
  %v4206 = vunpack.c.l.b16 %v4039
  %v4207 = vunpack.c.h.b16 %v4039
  %v4208 = vunpack.c.l.b16 %v4040
  %v4209 = vunpack.c.l.b16 %v4041
  %v4210 = vunpack.c.h.b16 %v4041
  %v4211 = vunpack.c.l.b16 %v4042
  %v4212 = vunpack.c.h.b16 %v4042
  %v4213 = vunpack.c.l.b16 %v4043
  %v4214 = vunpack.c.h.b16 %v4043
  %v4215 = vunpack.c.l.b16 %v4044
  %v4216 = vunpack.c.l.b16 %v4045
  %v4217 = vunpack.c.h.b16 %v4045
  %v4218 = vunpack.c.l.b16 %v4046
  %v4219 = vunpack.c.h.b16 %v4046
  %v4220 = vunpack.c.l.b16 %v4047
  %v4221 = vunpack.c.h.b16 %v4047
  %v4222 = vunpack.c.l.b16 %v4048
  %v4223 = vunpack.c.l.b16 %v4049
  %v4224 = vunpack.c.h.b16 %v4049
  %v4225 = vunpack.c.l.b16 %v4050
  %v4226 = vunpack.c.h.b16 %v4050
  %v4227 = vunpack.c.l.b16 %v4051
  %v4228 = vunpack.c.h.b16 %v4051
  %v4229 = vunpack.c.l.b16 %v4052
  %v4230 = vunpack.c.l.b16 %v4053
  %v4231 = vunpack.c.h.b16 %v4053
  %v4232 = vunpack.c.l.b16 %v4054
  %v4233 = vunpack.c.h.b16 %v4054
  %v4234 = vunpack.c.l.b16 %v4055
  %v4235 = vunpack.c.h.b16 %v4055
  %v4236 = vunpack.c.l.b16 %v4056
  %v4237 = vunpack.c.l.b16 %v4057
  %v4238 = vunpack.c.h.b16 %v4057
  %v4239 = vunpack.c.l.b16 %v4058
  %v4240 = vunpack.c.h.b16 %v4058
  %v4241 = vunpack.c.l.b16 %v4059
  %v4242 = vunpack.c.h.b16 %v4059
  %v4243 = vunpack.c.l.b16 %v4060
  %v4244 = vunpack.c.l.b16 %v4061
  %v4245 = vunpack.c.h.b16 %v4061
  %v4246 = vunpack.c.l.b16 %v4062
  %v4247 = vunpack.c.h.b16 %v4062
  %v4248 = vunpack.c.l.b16 %v4063
  %v4249 = vunpack.c.h.b16 %v4063
  %v4250 = vunpack.c.l.b16 %v4064
  %v4251 = vunpack.c.l.b16 %v4065
  %v4252 = vunpack.c.h.b16 %v4065
  %v4253 = vunpack.c.l.b16 %v4066
  %v4254 = vunpack.c.h.b16 %v4066
  %v4255 = vunpack.c.l.b16 %v4067
  %v4256 = vunpack.c.h.b16 %v4067
  %v4257 = vunpack.c.l.b16 %v4068
  %v4258 = vunpack.c.l.b16 %v4069
  %v4259 = vunpack.c.h.b16 %v4069
  %v4260 = vunpack.c.l.b16 %v4070
  %v4261 = vunpack.c.h.b16 %v4070
  %v4262 = vunpack.c.l.b16 %v4071
  %v4263 = vunpack.c.h.b16 %v4071
  %v4264 = vunpack.c.l.b16 %v4072
  %v4265 = vunpack.c.l.b16 %v4073
  %v4266 = vunpack.c.h.b16 %v4073
  %v4267 = vunpack.c.l.b16 %v4074
  %v4268 = vunpack.c.h.b16 %v4074
  %v4269 = vunpack.c.l.b16 %v4075
  %v4270 = vunpack.c.h.b16 %v4075
  %v4271 = vunpack.c.l.b16 %v4076
  %v4272 = vunpack.c.l.b16 %v4077
  %v4273 = vunpack.c.h.b16 %v4077
  %v4274 = vunpack.c.l.b16 %v4078
  %v4275 = vunpack.c.h.b16 %v4078
  %v4276 = vunpack.c.l.b16 %v4079
  %v4277 = vunpack.c.h.b16 %v4079
  %v4278 = vunpack.c.l.b16 %v4080
  %v4279 = vunpack.c.l.b16 %v4081
  %v4280 = vunpack.c.h.b16 %v4081
  %v4281 = vunpack.c.l.b16 %v4082
  %v4282 = vunpack.c.h.b16 %v4082
  %v4283 = vunpack.c.l.b16 %v4083
  %v4284 = vunpack.c.h.b16 %v4083
  %v4285 = vunpack.c.l.b16 %v4084
  %v4286 = vunpack.c.l.b16 %v4085
  %v4287 = vunpack.c.h.b16 %v4085
  %v4288 = vunpack.c.l.b16 %v4086
  %v4289 = vunpack.c.h.b16 %v4086
  %v4290 = vunpack.c.l.b16 %v4087
  %v4291 = vunpack.c.h.b16 %v4087
  %v4292 = vunpack.c.l.b16 %v4088
  %v4293 = vunpack.c.l.b16 %v4089
  %v4294 = vunpack.c.h.b16 %v4089
  %v4295 = vunpack.c.l.b16 %v4090
  %v4296 = vunpack.c.h.b16 %v4090
  %v4297 = vunpack.c.l.b16 %v4091
  %v4298 = vunpack.c.h.b16 %v4091
  %v4299 = vunpack.c.l.b16 %v4092
  %v4300 = vunpack.c.l.b16 %v4093
  %v4301 = vunpack.c.h.b16 %v4093
  %v4302 = vunpack.c.l.b16 %v4094
  %v4303 = vunpack.c.h.b16 %v4094
  %v4304 = vunpack.c.l.b16 %v4095
  %v4305 = vunpack.c.h.b16 %v4095
  %v4306 = vunpack.c.l.b16 %v4096
  %v4307 = vunpack.c.l.b16 %v4097
  %v4308 = vunpack.c.h.b16 %v4097
  %v4309 = vunpack.c.l.b16 %v4098
  %v4310 = vunpack.c.h.b16 %v4098
  %v4311 = vunpack.c.l.b16 %v4099
  %v4312 = vunpack.c.h.b16 %v4099
  %v4313 = vunpack.c.l.b16 %v4100
  %v4314 = vpack.c.b16 %v4209, %v4202
  %v4315 = vpack.c.b16 %v4210, %v4203
  %v4316 = vpack.c.b16 %v4211, %v4204
  %v4317 = vpack.c.b16 %v4212, %v4205
  %v4318 = vpack.c.b16 %v4213, %v4206
  %v4319 = vpack.c.b16 %v4214, %v4207
  %v4320 = vpack.c.b16 %v4215, %v4208
  %v4321 = vpack.c.b16 %v4223, %v4216
  %v4322 = vpack.c.b16 %v4224, %v4217
  %v4323 = vpack.c.b16 %v4225, %v4218
  %v4324 = vpack.c.b16 %v4226, %v4219
  %v4325 = vpack.c.b16 %v4227, %v4220
  %v4326 = vpack.c.b16 %v4228, %v4221
  %v4327 = vpack.c.b16 %v4229, %v4222
  %v4328 = vpack.c.b16 %v4237, %v4230
  %v4329 = vpack.c.b16 %v4238, %v4231
  %v4330 = vpack.c.b16 %v4239, %v4232
  %v4331 = vpack.c.b16 %v4240, %v4233
  %v4332 = vpack.c.b16 %v4241, %v4234
  %v4333 = vpack.c.b16 %v4242, %v4235
  %v4334 = vpack.c.b16 %v4243, %v4236
  %v4335 = vpack.c.b16 %v4251, %v4244
  %v4336 = vpack.c.b16 %v4252, %v4245
  %v4337 = vpack.c.b16 %v4253, %v4246
  %v4338 = vpack.c.b16 %v4254, %v4247
  %v4339 = vpack.c.b16 %v4255, %v4248
  %v4340 = vpack.c.b16 %v4256, %v4249
  %v4341 = vpack.c.b16 %v4257, %v4250
  %v4342 = vpack.c.b16 %v4265, %v4258
  %v4343 = vpack.c.b16 %v4266, %v4259
  %v4344 = vpack.c.b16 %v4267, %v4260
  %v4345 = vpack.c.b16 %v4268, %v4261
  %v4346 = vpack.c.b16 %v4269, %v4262
  %v4347 = vpack.c.b16 %v4270, %v4263
  %v4348 = vpack.c.b16 %v4271, %v4264
  %v4349 = vpack.c.b16 %v4279, %v4272
  %v4350 = vpack.c.b16 %v4280, %v4273
  %v4351 = vpack.c.b16 %v4281, %v4274
  %v4352 = vpack.c.b16 %v4282, %v4275
  %v4353 = vpack.c.b16 %v4283, %v4276
  %v4354 = vpack.c.b16 %v4284, %v4277
  %v4355 = vpack.c.b16 %v4285, %v4278
  %v4356 = vpack.c.b16 %v4293, %v4286
  %v4357 = vpack.c.b16 %v4294, %v4287
  %v4358 = vpack.c.b16 %v4295, %v4288
  %v4359 = vpack.c.b16 %v4296, %v4289
  %v4360 = vpack.c.b16 %v4297, %v4290
  %v4361 = vpack.c.b16 %v4298, %v4291
  %v4362 = vpack.c.b16 %v4299, %v4292
  %v4363 = vpack.c.b16 %v4307, %v4300
  %v4364 = vpack.c.b16 %v4308, %v4301
  %v4365 = vpack.c.b16 %v4309, %v4302
  %v4366 = vpack.c.b16 %v4310, %v4303
  %v4367 = vpack.c.b16 %v4311, %v4304
  %v4368 = vpack.c.b16 %v4312, %v4305
  %v4369 = vpack.c.b16 %v4313, %v4306
  %4426 = vmatprep.subr.bf16.mxu0 %v4315
  %4427 = vmatpush1.bf16.msra.mxu0 %v4314
  %4428 = vmatprep.subr.bf16.mxu0 %v4322
  %4429 = vmatpush1.bf16.msra.mxu0 %v4321
  %4430 = vmatprep.subr.bf16.mxu0 %v4329
  %4431 = vmatpush1.bf16.msra.mxu0 %v4328
  %4432 = vmatprep.subr.bf16.mxu0 %v4336
  %4433 = vmatpush1.bf16.msra.mxu0 %v4335
  %4434 = vmatprep.subr.bf16.mxu0 %v4343
  %4435 = vmatpush1.bf16.msra.mxu0 %v4342
  %4436 = vmatprep.subr.bf16.mxu0 %v4350
  %4437 = vmatpush1.bf16.msra.mxu0 %v4349
  %4438 = vmatprep.subr.bf16.mxu0 %v4357
  %4439 = vmatpush1.bf16.msra.mxu0 %v4356
  %4440 = vmatprep.subr.bf16.mxu0 %v4364
  %4441 = vmatpush1.bf16.msra.mxu0 %v4363
  %4442 = vmatprep.subr.bf16.mxu0 0
  %4443 = vmatpush1.bf16.msra.mxu0 0
  %4444 = vmatprep.subr.bf16.mxu0 0
  %4445 = vmatpush1.bf16.msra.mxu0 0
  %4446 = vmatprep.subr.bf16.mxu0 0
  %4447 = vmatpush1.bf16.msra.mxu0 0
  %4448 = vmatprep.subr.bf16.mxu0 0
  %4449 = vmatpush1.bf16.msra.mxu0 0
  %4450 = vmatprep.subr.bf16.mxu0 0
  %4451 = vmatpush1.bf16.msra.mxu0 0
  %4452 = vmatprep.subr.bf16.mxu0 0
  %4453 = vmatpush1.bf16.msra.mxu0 0
  %4454 = vmatprep.subr.bf16.mxu0 0
  %4455 = vmatpush1.bf16.msra.mxu0 0
  %4456 = vmatprep.subr.bf16.mxu0 0
  %4457 = vmatpush1.bf16.msra.mxu0 0
  %4458 = vmatprep.mubr.bf16.mxu0 0
  %4459 = vmatmul.mubr.bf16.gmra.mrb[0].mxu0 %v4005
  %v4460 = vpop.f32.mrb[0].mxu0
  %v4461 = vadd.f32 %v4106, %v4460
  %v4462 = vpop.f32.mrb[0].mxu0
  %v4463 = vadd.f32 %v4110, %v4462
  %v4464 = vpop.f32.mrb[0].mxu0
  %v4465 = vadd.f32 %v4106, %v4464
  %v4466 = vpop.f32.mrb[0].mxu0
  %v4467 = vadd.f32 %v4110, %v4466
  %4468 = vmatprep.mubr.bf16.mxu0 0
  %4469 = vmatmul.mubr.bf16.gmra.mrb[0].mxu0 %v4006
  %v4470 = vpop.f32.mrb[0].mxu0
  %v4471 = vadd.f32 %v4106, %v4470
  %v4472 = vpop.f32.mrb[0].mxu0
  %v4473 = vadd.f32 %v4110, %v4472
  %v4474 = vpop.f32.mrb[0].mxu0
  %v4475 = vadd.f32 %v4106, %v4474
  %v4476 = vpop.f32.mrb[0].mxu0
  %v4477 = vadd.f32 %v4110, %v4476
  %4478 = vmatprep.mubr.bf16.mxu0 0
  %4479 = vmatmul.mubr.bf16.gmra.mrb[0].mxu0 %v4007
  %v4480 = vpop.f32.mrb[0].mxu0
  %v4481 = vadd.f32 %v4106, %v4480
  %v4482 = vpop.f32.mrb[0].mxu0
  %v4483 = vadd.f32 %v4110, %v4482
  %v4484 = vpop.f32.mrb[0].mxu0
  %v4485 = vadd.f32 %v4106, %v4484
  %v4486 = vpop.f32.mrb[0].mxu0
  %v4487 = vadd.f32 %v4110, %v4486
  %4488 = vmatprep.mubr.bf16.mxu0 0
  %4489 = vmatmul.mubr.bf16.gmra.mrb[0].mxu0 %v4008
  %v4490 = vpop.f32.mrb[0].mxu0
  %v4491 = vadd.f32 %v4106, %v4490
  %v4492 = vpop.f32.mrb[0].mxu0
  %v4493 = vadd.f32 %v4110, %v4492
  %v4494 = vpop.f32.mrb[0].mxu0
  %v4495 = vadd.f32 %v4106, %v4494
  %v4496 = vpop.f32.mrb[0].mxu0
  %v4497 = vadd.f32 %v4110, %v4496
  %4498 = vmatprep.mubr.bf16.mxu0 0
  %4499 = vmatmul.mubr.bf16.gmra.mrb[0].mxu0 %v4009
  %v4500 = vpop.f32.mrb[0].mxu0
  %v4501 = vadd.f32 %v4106, %v4500
  %v4502 = vpop.f32.mrb[0].mxu0
  %v4503 = vadd.f32 %v4110, %v4502
  %v4504 = vpop.f32.mrb[0].mxu0
  %v4505 = vadd.f32 %v4106, %v4504
  %v4506 = vpop.f32.mrb[0].mxu0
  %v4507 = vadd.f32 %v4110, %v4506
  %4508 = vmatprep.mubr.bf16.mxu0 0
  %4509 = vmatmul.mubr.bf16.gmra.mrb[0].mxu0 %v4010
  %v4510 = vpop.f32.mrb[0].mxu0
  %v4511 = vadd.f32 %v4106, %v4510
  %v4512 = vpop.f32.mrb[0].mxu0
  %v4513 = vadd.f32 %v4110, %v4512
  %v4514 = vpop.f32.mrb[0].mxu0
  %v4515 = vadd.f32 %v4106, %v4514
  %v4516 = vpop.f32.mrb[0].mxu0
  %v4517 = vadd.f32 %v4110, %v4516
  %4518 = vmatprep.mubr.bf16.mxu0 0
  %4519 = vmatmul.mubr.bf16.gmra.mrb[0].mxu0 %v4011
  %v4520 = vpop.f32.mrb[0].mxu0
  %v4521 = vadd.f32 %v4106, %v4520
  %v4522 = vpop.f32.mrb[0].mxu0
  %v4523 = vadd.f32 %v4110, %v4522
  %v4524 = vpop.f32.mrb[0].mxu0
  %v4525 = vadd.f32 %v4106, %v4524
  %v4526 = vpop.f32.mrb[0].mxu0
  %v4527 = vadd.f32 %v4110, %v4526
  %4528 = vmatprep.mubr.bf16.mxu0 0
  %4529 = vmatmul.mubr.bf16.gmra.mrb[0].mxu0 %v4012
  %v4530 = vpop.f32.mrb[0].mxu0
  %v4531 = vadd.f32 %v4106, %v4530
  %v4532 = vpop.f32.mrb[0].mxu0
  %v4533 = vadd.f32 %v4110, %v4532
  %v4534 = vpop.f32.mrb[0].mxu0
  %v4535 = vadd.f32 %v4106, %v4534
  %v4536 = vpop.f32.mrb[0].mxu0
  %v4537 = vadd.f32 %v4110, %v4536
  %4538 = vmatprep.mubr.bf16.mxu0 0
  %4539 = vmatmul.mubr.bf16.gmra.mrb[0].mxu0 %v4013
  %v4540 = vpop.f32.mrb[0].mxu0
  %v4541 = vadd.f32 %v4106, %v4540
  %v4542 = vpop.f32.mrb[0].mxu0
  %v4543 = vadd.f32 %v4110, %v4542
  %v4544 = vpop.f32.mrb[0].mxu0
  %v4545 = vadd.f32 %v4106, %v4544
  %v4546 = vpop.f32.mrb[0].mxu0
  %v4547 = vadd.f32 %v4110, %v4546
  %4548 = vmatprep.mubr.bf16.mxu0 0
  %4549 = vmatmul.mubr.bf16.gmra.mrb[0].mxu0 %v4014
  %v4550 = vpop.f32.mrb[0].mxu0
  %v4551 = vadd.f32 %v4106, %v4550
  %v4552 = vpop.f32.mrb[0].mxu0
  %v4553 = vadd.f32 %v4110, %v4552
  %v4554 = vpop.f32.mrb[0].mxu0
  %v4555 = vadd.f32 %v4106, %v4554
  %v4556 = vpop.f32.mrb[0].mxu0
  %v4557 = vadd.f32 %v4110, %v4556
  %4558 = vmatprep.mubr.bf16.mxu0 0
  %4559 = vmatmul.mubr.bf16.gmra.mrb[0].mxu0 %v4015
  %v4560 = vpop.f32.mrb[0].mxu0
  %v4561 = vadd.f32 %v4106, %v4560
  %v4562 = vpop.f32.mrb[0].mxu0
  %v4563 = vadd.f32 %v4110, %v4562
  %v4564 = vpop.f32.mrb[0].mxu0
  %v4565 = vadd.f32 %v4106, %v4564
  %v4566 = vpop.f32.mrb[0].mxu0
  %v4567 = vadd.f32 %v4110, %v4566
  %4568 = vmatprep.mubr.bf16.mxu0 0
  %4569 = vmatmul.mubr.bf16.gmra.mrb[0].mxu0 %v4016
  %v4570 = vpop.f32.mrb[0].mxu0
  %v4571 = vadd.f32 %v4106, %v4570
  %v4572 = vpop.f32.mrb[0].mxu0
  %v4573 = vadd.f32 %v4110, %v4572
  %v4574 = vpop.f32.mrb[0].mxu0
  %v4575 = vadd.f32 %v4106, %v4574
  %v4576 = vpop.f32.mrb[0].mxu0
  %v4577 = vadd.f32 %v4110, %v4576
  %4578 = vmatprep.mubr.bf16.mxu0 0
  %4579 = vmatmul.mubr.bf16.gmra.mrb[0].mxu0 %v4017
  %v4580 = vpop.f32.mrb[0].mxu0
  %v4581 = vadd.f32 %v4106, %v4580
  %v4582 = vpop.f32.mrb[0].mxu0
  %v4583 = vadd.f32 %v4110, %v4582
  %v4584 = vpop.f32.mrb[0].mxu0
  %v4585 = vadd.f32 %v4106, %v4584
  %v4586 = vpop.f32.mrb[0].mxu0
  %v4587 = vadd.f32 %v4110, %v4586
  %4588 = vmatprep.mubr.bf16.mxu0 0
  %4589 = vmatmul.mubr.bf16.gmra.mrb[0].mxu0 %v4018
  %v4590 = vpop.f32.mrb[0].mxu0
  %v4591 = vadd.f32 %v4106, %v4590
  %v4592 = vpop.f32.mrb[0].mxu0
  %v4593 = vadd.f32 %v4110, %v4592
  %v4594 = vpop.f32.mrb[0].mxu0
  %v4595 = vadd.f32 %v4106, %v4594
  %v4596 = vpop.f32.mrb[0].mxu0
  %v4597 = vadd.f32 %v4110, %v4596
  %4598 = vmatprep.mubr.bf16.mxu0 0
  %4599 = vmatmul.mubr.bf16.gmra.mrb[0].mxu0 %v4019
  %v4600 = vpop.f32.mrb[0].mxu0
  %v4601 = vadd.f32 %v4106, %v4600
  %v4602 = vpop.f32.mrb[0].mxu0
  %v4603 = vadd.f32 %v4110, %v4602
  %v4604 = vpop.f32.mrb[0].mxu0
  %v4605 = vadd.f32 %v4106, %v4604
  %v4606 = vpop.f32.mrb[0].mxu0
  %v4607 = vadd.f32 %v4110, %v4606
  %4608 = vmatprep.mubr.bf16.mxu0 0
  %4609 = vmatmul.mubr.bf16.gmra.mrb[0].mxu0 %v4020
  %v4610 = vpop.f32.mrb[0].mxu0
  %v4611 = vadd.f32 %v4106, %v4610
  %v4612 = vpop.f32.mrb[0].mxu0
  %v4613 = vadd.f32 %v4110, %v4612
  %v4614 = vpop.f32.mrb[0].mxu0
  %v4615 = vadd.f32 %v4106, %v4614
  %v4616 = vpop.f32.mrb[0].mxu0
  %v4617 = vadd.f32 %v4110, %v4616
  %4618 = vmatprep.mubr.bf16.mxu0 0
  %4619 = vmatmul.mubr.bf16.gmra.mrb[0].mxu0 %v4021
  %v4620 = vpop.f32.mrb[0].mxu0
  %v4621 = vadd.f32 %v4106, %v4620
  %v4622 = vpop.f32.mrb[0].mxu0
  %v4623 = vadd.f32 %v4110, %v4622
  %v4624 = vpop.f32.mrb[0].mxu0
  %v4625 = vadd.f32 %v4106, %v4624
  %v4626 = vpop.f32.mrb[0].mxu0
  %v4627 = vadd.f32 %v4110, %v4626
  %4628 = vmatprep.mubr.bf16.mxu0 0
  %4629 = vmatmul.mubr.bf16.gmra.mrb[0].mxu0 %v4022
  %v4630 = vpop.f32.mrb[0].mxu0
  %v4631 = vadd.f32 %v4106, %v4630
  %v4632 = vpop.f32.mrb[0].mxu0
  %v4633 = vadd.f32 %v4110, %v4632
  %v4634 = vpop.f32.mrb[0].mxu0
  %v4635 = vadd.f32 %v4106, %v4634
  %v4636 = vpop.f32.mrb[0].mxu0
  %v4637 = vadd.f32 %v4110, %v4636
  %4638 = vmatprep.mubr.bf16.mxu0 0
  %4639 = vmatmul.mubr.bf16.gmra.mrb[0].mxu0 %v4023
  %v4640 = vpop.f32.mrb[0].mxu0
  %v4641 = vadd.f32 %v4106, %v4640
  %v4642 = vpop.f32.mrb[0].mxu0
  %v4643 = vadd.f32 %v4110, %v4642
  %v4644 = vpop.f32.mrb[0].mxu0
  %v4645 = vadd.f32 %v4106, %v4644
  %v4646 = vpop.f32.mrb[0].mxu0
  %v4647 = vadd.f32 %v4110, %v4646
  %4648 = vmatprep.mubr.bf16.mxu0 0
  %4649 = vmatmul.mubr.bf16.gmra.mrb[0].mxu0 %v4024
  %v4650 = vpop.f32.mrb[0].mxu0
  %v4651 = vadd.f32 %v4106, %v4650
  %v4652 = vpop.f32.mrb[0].mxu0
  %v4653 = vadd.f32 %v4110, %v4652
  %v4654 = vpop.f32.mrb[0].mxu0
  %v4655 = vadd.f32 %v4106, %v4654
  %v4656 = vpop.f32.mrb[0].mxu0
  %v4657 = vadd.f32 %v4110, %v4656
  %4658 = vmatprep.mubr.bf16.mxu0 0
  %4659 = vmatmul.mubr.bf16.gmra.mrb[0].mxu0 %v4025
  %v4660 = vpop.f32.mrb[0].mxu0
  %v4661 = vadd.f32 %v4106, %v4660
  %v4662 = vpop.f32.mrb[0].mxu0
  %v4663 = vadd.f32 %v4110, %v4662
  %v4664 = vpop.f32.mrb[0].mxu0
  %v4665 = vadd.f32 %v4106, %v4664
  %v4666 = vpop.f32.mrb[0].mxu0
  %v4667 = vadd.f32 %v4110, %v4666
  %4668 = vmatprep.mubr.bf16.mxu0 0
  %4669 = vmatmul.mubr.bf16.gmra.mrb[0].mxu0 %v4026
  %v4670 = vpop.f32.mrb[0].mxu0
  %v4671 = vadd.f32 %v4106, %v4670
  %v4672 = vpop.f32.mrb[0].mxu0
  %v4673 = vadd.f32 %v4110, %v4672
  %v4674 = vpop.f32.mrb[0].mxu0
  %v4675 = vadd.f32 %v4106, %v4674
  %v4676 = vpop.f32.mrb[0].mxu0
  %v4677 = vadd.f32 %v4110, %v4676
  %4678 = vmatprep.mubr.bf16.mxu0 0
  %4679 = vmatmul.mubr.bf16.gmra.mrb[0].mxu0 %v4027
  %v4680 = vpop.f32.mrb[0].mxu0
  %v4681 = vadd.f32 %v4106, %v4680
  %v4682 = vpop.f32.mrb[0].mxu0
  %v4683 = vadd.f32 %v4110, %v4682
  %v4684 = vpop.f32.mrb[0].mxu0
  %v4685 = vadd.f32 %v4106, %v4684
  %v4686 = vpop.f32.mrb[0].mxu0
  %v4687 = vadd.f32 %v4110, %v4686
  %4688 = vmatprep.mubr.bf16.mxu0 0
  %4689 = vmatmul.mubr.bf16.gmra.mrb[0].mxu0 %v4028
  %v4690 = vpop.f32.mrb[0].mxu0
  %v4691 = vadd.f32 %v4106, %v4690
  %v4692 = vpop.f32.mrb[0].mxu0
  %v4693 = vadd.f32 %v4110, %v4692
  %v4694 = vpop.f32.mrb[0].mxu0
  %v4695 = vadd.f32 %v4106, %v4694
  %v4696 = vpop.f32.mrb[0].mxu0
  %v4697 = vadd.f32 %v4110, %v4696
  %4698 = vmatprep.mubr.bf16.mxu0 0
  %4699 = vmatmul.mubr.bf16.gmra.mrb[0].mxu0 %v4029
  %v4700 = vpop.f32.mrb[0].mxu0
  %v4701 = vadd.f32 %v4106, %v4700
  %v4702 = vpop.f32.mrb[0].mxu0
  %v4703 = vadd.f32 %v4110, %v4702
  %v4704 = vpop.f32.mrb[0].mxu0
  %v4705 = vadd.f32 %v4106, %v4704
  %v4706 = vpop.f32.mrb[0].mxu0
  %v4707 = vadd.f32 %v4110, %v4706
  %4708 = vmatprep.mubr.bf16.mxu0 0
  %4709 = vmatmul.mubr.bf16.gmra.mrb[0].mxu0 %v4030
  %v4710 = vpop.f32.mrb[0].mxu0
  %v4711 = vadd.f32 %v4106, %v4710
  %v4712 = vpop.f32.mrb[0].mxu0
  %v4713 = vadd.f32 %v4110, %v4712
  %v4714 = vpop.f32.mrb[0].mxu0
  %v4715 = vadd.f32 %v4106, %v4714
  %v4716 = vpop.f32.mrb[0].mxu0
  %v4717 = vadd.f32 %v4110, %v4716
  %4718 = vmatprep.mubr.bf16.mxu0 0
  %4719 = vmatmul.mubr.bf16.gmra.mrb[0].mxu0 %v4031
  %v4720 = vpop.f32.mrb[0].mxu0
  %v4721 = vadd.f32 %v4106, %v4720
  %v4722 = vpop.f32.mrb[0].mxu0
  %v4723 = vadd.f32 %v4110, %v4722
  %v4724 = vpop.f32.mrb[0].mxu0
  %v4725 = vadd.f32 %v4106, %v4724
  %v4726 = vpop.f32.mrb[0].mxu0
  %v4727 = vadd.f32 %v4110, %v4726
  %4728 = vmatprep.mubr.bf16.mxu0 0
  %4729 = vmatmul.mubr.bf16.gmra.mrb[0].mxu0 %v4032
  %v4730 = vpop.f32.mrb[0].mxu0
  %v4731 = vadd.f32 %v4106, %v4730
  %v4732 = vpop.f32.mrb[0].mxu0
  %v4733 = vadd.f32 %v4110, %v4732
  %v4734 = vpop.f32.mrb[0].mxu0
  %v4735 = vadd.f32 %v4106, %v4734
  %v4736 = vpop.f32.mrb[0].mxu0
  %v4737 = vadd.f32 %v4110, %v4736
  %4738 = vmatprep.mubr.bf16.mxu0 0
  %4739 = vmatmul.mubr.bf16.gmra.mrb[0].mxu0 %v4033
  %v4740 = vpop.f32.mrb[0].mxu0
  %v4741 = vadd.f32 %v4106, %v4740
  %v4742 = vpop.f32.mrb[0].mxu0
  %v4743 = vadd.f32 %v4110, %v4742
  %v4744 = vpop.f32.mrb[0].mxu0
  %v4745 = vadd.f32 %v4106, %v4744
  %v4746 = vpop.f32.mrb[0].mxu0
  %v4747 = vadd.f32 %v4110, %v4746
  %4748 = vmatprep.mubr.bf16.mxu0 0
  %4749 = vmatmul.mubr.bf16.gmra.mrb[0].mxu0 %v4034
  %v4750 = vpop.f32.mrb[0].mxu0
  %v4751 = vadd.f32 %v4106, %v4750
  %v4752 = vpop.f32.mrb[0].mxu0
  %v4753 = vadd.f32 %v4110, %v4752
  %v4754 = vpop.f32.mrb[0].mxu0
  %v4755 = vadd.f32 %v4106, %v4754
  %v4756 = vpop.f32.mrb[0].mxu0
  %v4757 = vadd.f32 %v4110, %v4756
  %4758 = vmatprep.mubr.bf16.mxu0 0
  %4759 = vmatmul.mubr.bf16.gmra.mrb[0].mxu0 %v4035
  %v4760 = vpop.f32.mrb[0].mxu0
  %v4761 = vadd.f32 %v4106, %v4760
  %v4762 = vpop.f32.mrb[0].mxu0
  %v4763 = vadd.f32 %v4110, %v4762
  %v4764 = vpop.f32.mrb[0].mxu0
  %v4765 = vadd.f32 %v4106, %v4764
  %v4766 = vpop.f32.mrb[0].mxu0
  %v4767 = vadd.f32 %v4110, %v4766
  %4768 = vmatprep.mubr.bf16.mxu0 0
  %4769 = vmatmul.mubr.bf16.gmra.mrb[0].mxu0 %v4036
  %v4770 = vpop.f32.mrb[0].mxu0
  %v4771 = vadd.f32 %v4106, %v4770
  %v4772 = vpop.f32.mrb[0].mxu0
  %v4773 = vadd.f32 %v4110, %v4772
  %v4774 = vpop.f32.mrb[0].mxu0
  %v4775 = vpop.f32.mrb[0].mxu0
  %4776 = vdwg.mxu0
  %4777 = vmatprep.subr.bf16.mxu0 %v4317
  %4778 = vmatpush1.bf16.msra.mxu0 %v4316
  %4779 = vmatprep.subr.bf16.mxu0 %v4324
  %4780 = vmatpush1.bf16.msra.mxu0 %v4323
  %4781 = vmatprep.subr.bf16.mxu0 %v4331
  %4782 = vmatpush1.bf16.msra.mxu0 %v4330
  %4783 = vmatprep.subr.bf16.mxu0 %v4338
  %4784 = vmatpush1.bf16.msra.mxu0 %v4337
  %4785 = vmatprep.subr.bf16.mxu0 %v4345
  %4786 = vmatpush1.bf16.msra.mxu0 %v4344
  %4787 = vmatprep.subr.bf16.mxu0 %v4352
  %4788 = vmatpush1.bf16.msra.mxu0 %v4351
  %4789 = vmatprep.subr.bf16.mxu0 %v4359
  %4790 = vmatpush1.bf16.msra.mxu0 %v4358
  %4791 = vmatprep.subr.bf16.mxu0 %v4366
  %4792 = vmatpush1.bf16.msra.mxu0 %v4365
  %4793 = vmatprep.subr.bf16.mxu0 0
  %4794 = vmatpush1.bf16.msra.mxu0 0
  %4795 = vmatprep.subr.bf16.mxu0 0
  %4796 = vmatpush1.bf16.msra.mxu0 0
  %4797 = vmatprep.subr.bf16.mxu0 0
  %4798 = vmatpush1.bf16.msra.mxu0 0
  %4799 = vmatprep.subr.bf16.mxu0 0
  %4800 = vmatpush1.bf16.msra.mxu0 0
  %4801 = vmatprep.subr.bf16.mxu0 0
  %4802 = vmatpush1.bf16.msra.mxu0 0
  %4803 = vmatprep.subr.bf16.mxu0 0
  %4804 = vmatpush1.bf16.msra.mxu0 0
  %4805 = vmatprep.subr.bf16.mxu0 0
  %4806 = vmatpush1.bf16.msra.mxu0 0
  %4807 = vmatprep.subr.bf16.mxu0 0
  %4808 = vmatpush1.bf16.msra.mxu0 0
  %4809 = vmatprep.mubr.bf16.mxu0 0
  %4810 = vmatmul.mubr.bf16.gmra.mrb[0].mxu0 %v4005
  %v4811 = vpop.f32.mrb[0].mxu0
  %v4812 = vadd.f32 %v4114, %v4811
  %v4813 = vpop.f32.mrb[0].mxu0
  %v4814 = vadd.f32 %v4118, %v4813
  %v4815 = vpop.f32.mrb[0].mxu0
  %v4816 = vadd.f32 %v4114, %v4815
  %v4817 = vpop.f32.mrb[0].mxu0
  %v4818 = vadd.f32 %v4118, %v4817
  %4819 = vmatprep.mubr.bf16.mxu0 0
  %4820 = vmatmul.mubr.bf16.gmra.mrb[0].mxu0 %v4006
  %v4821 = vpop.f32.mrb[0].mxu0
  %v4822 = vadd.f32 %v4114, %v4821
  %v4823 = vpop.f32.mrb[0].mxu0
  %v4824 = vadd.f32 %v4118, %v4823
  %v4825 = vpop.f32.mrb[0].mxu0
  %v4826 = vadd.f32 %v4114, %v4825
  %v4827 = vpop.f32.mrb[0].mxu0
  %v4828 = vadd.f32 %v4118, %v4827
  %4829 = vmatprep.mubr.bf16.mxu0 0
  %4830 = vmatmul.mubr.bf16.gmra.mrb[0].mxu0 %v4007
  %v4831 = vpop.f32.mrb[0].mxu0
  %v4832 = vadd.f32 %v4114, %v4831
  %v4833 = vpop.f32.mrb[0].mxu0
  %v4834 = vadd.f32 %v4118, %v4833
  %v4835 = vpop.f32.mrb[0].mxu0
  %v4836 = vadd.f32 %v4114, %v4835
  %v4837 = vpop.f32.mrb[0].mxu0
  %v4838 = vadd.f32 %v4118, %v4837
  %4839 = vmatprep.mubr.bf16.mxu0 0
  %4840 = vmatmul.mubr.bf16.gmra.mrb[0].mxu0 %v4008
  %v4841 = vpop.f32.mrb[0].mxu0
  %v4842 = vadd.f32 %v4114, %v4841
  %v4843 = vpop.f32.mrb[0].mxu0
  %v4844 = vadd.f32 %v4118, %v4843
  %v4845 = vpop.f32.mrb[0].mxu0
  %v4846 = vadd.f32 %v4114, %v4845
  %v4847 = vpop.f32.mrb[0].mxu0
  %v4848 = vadd.f32 %v4118, %v4847
  %4849 = vmatprep.mubr.bf16.mxu0 0
  %4850 = vmatmul.mubr.bf16.gmra.mrb[0].mxu0 %v4009
  %v4851 = vpop.f32.mrb[0].mxu0
  %v4852 = vadd.f32 %v4114, %v4851
  %v4853 = vpop.f32.mrb[0].mxu0
  %v4854 = vadd.f32 %v4118, %v4853
  %v4855 = vpop.f32.mrb[0].mxu0
  %v4856 = vadd.f32 %v4114, %v4855
  %v4857 = vpop.f32.mrb[0].mxu0
  %v4858 = vadd.f32 %v4118, %v4857
  %4859 = vmatprep.mubr.bf16.mxu0 0
  %4860 = vmatmul.mubr.bf16.gmra.mrb[0].mxu0 %v4010
  %v4861 = vpop.f32.mrb[0].mxu0
  %v4862 = vadd.f32 %v4114, %v4861
  %v4863 = vpop.f32.mrb[0].mxu0
  %v4864 = vadd.f32 %v4118, %v4863
  %v4865 = vpop.f32.mrb[0].mxu0
  %v4866 = vadd.f32 %v4114, %v4865
  %v4867 = vpop.f32.mrb[0].mxu0
  %v4868 = vadd.f32 %v4118, %v4867
  %4869 = vmatprep.mubr.bf16.mxu0 0
  %4870 = vmatmul.mubr.bf16.gmra.mrb[0].mxu0 %v4011
  %v4871 = vpop.f32.mrb[0].mxu0
  %v4872 = vadd.f32 %v4114, %v4871
  %v4873 = vpop.f32.mrb[0].mxu0
  %v4874 = vadd.f32 %v4118, %v4873
  %v4875 = vpop.f32.mrb[0].mxu0
  %v4876 = vadd.f32 %v4114, %v4875
  %v4877 = vpop.f32.mrb[0].mxu0
  %v4878 = vadd.f32 %v4118, %v4877
  %4879 = vmatprep.mubr.bf16.mxu0 0
  %4880 = vmatmul.mubr.bf16.gmra.mrb[0].mxu0 %v4012
  %v4881 = vpop.f32.mrb[0].mxu0
  %v4882 = vadd.f32 %v4114, %v4881
  %v4883 = vpop.f32.mrb[0].mxu0
  %v4884 = vadd.f32 %v4118, %v4883
  %v4885 = vpop.f32.mrb[0].mxu0
  %v4886 = vadd.f32 %v4114, %v4885
  %v4887 = vpop.f32.mrb[0].mxu0
  %v4888 = vadd.f32 %v4118, %v4887
  %4889 = vmatprep.mubr.bf16.mxu0 0
  %4890 = vmatmul.mubr.bf16.gmra.mrb[0].mxu0 %v4013
  %v4891 = vpop.f32.mrb[0].mxu0
  %v4892 = vadd.f32 %v4114, %v4891
  %v4893 = vpop.f32.mrb[0].mxu0
  %v4894 = vadd.f32 %v4118, %v4893
  %v4895 = vpop.f32.mrb[0].mxu0
  %v4896 = vadd.f32 %v4114, %v4895
  %v4897 = vpop.f32.mrb[0].mxu0
  %v4898 = vadd.f32 %v4118, %v4897
  %4899 = vmatprep.mubr.bf16.mxu0 0
  %4900 = vmatmul.mubr.bf16.gmra.mrb[0].mxu0 %v4014
  %v4901 = vpop.f32.mrb[0].mxu0
  %v4902 = vadd.f32 %v4114, %v4901
  %v4903 = vpop.f32.mrb[0].mxu0
  %v4904 = vadd.f32 %v4118, %v4903
  %v4905 = vpop.f32.mrb[0].mxu0
  %v4906 = vadd.f32 %v4114, %v4905
  %v4907 = vpop.f32.mrb[0].mxu0
  %v4908 = vadd.f32 %v4118, %v4907
  %4909 = vmatprep.mubr.bf16.mxu0 0
  %4910 = vmatmul.mubr.bf16.gmra.mrb[0].mxu0 %v4015
  %v4911 = vpop.f32.mrb[0].mxu0
  %v4912 = vadd.f32 %v4114, %v4911
  %v4913 = vpop.f32.mrb[0].mxu0
  %v4914 = vadd.f32 %v4118, %v4913
  %v4915 = vpop.f32.mrb[0].mxu0
  %v4916 = vadd.f32 %v4114, %v4915
  %v4917 = vpop.f32.mrb[0].mxu0
  %v4918 = vadd.f32 %v4118, %v4917
  %4919 = vmatprep.mubr.bf16.mxu0 0
  %4920 = vmatmul.mubr.bf16.gmra.mrb[0].mxu0 %v4016
  %v4921 = vpop.f32.mrb[0].mxu0
  %v4922 = vadd.f32 %v4114, %v4921
  %v4923 = vpop.f32.mrb[0].mxu0
  %v4924 = vadd.f32 %v4118, %v4923
  %v4925 = vpop.f32.mrb[0].mxu0
  %v4926 = vadd.f32 %v4114, %v4925
  %v4927 = vpop.f32.mrb[0].mxu0
  %v4928 = vadd.f32 %v4118, %v4927
  %4929 = vmatprep.mubr.bf16.mxu0 0
  %4930 = vmatmul.mubr.bf16.gmra.mrb[0].mxu0 %v4017
  %v4931 = vpop.f32.mrb[0].mxu0
  %v4932 = vadd.f32 %v4114, %v4931
  %v4933 = vpop.f32.mrb[0].mxu0
  %v4934 = vadd.f32 %v4118, %v4933
  %v4935 = vpop.f32.mrb[0].mxu0
  %v4936 = vadd.f32 %v4114, %v4935
  %v4937 = vpop.f32.mrb[0].mxu0
  %v4938 = vadd.f32 %v4118, %v4937
  %4939 = vmatprep.mubr.bf16.mxu0 0
  %4940 = vmatmul.mubr.bf16.gmra.mrb[0].mxu0 %v4018
  %v4941 = vpop.f32.mrb[0].mxu0
  %v4942 = vadd.f32 %v4114, %v4941
  %v4943 = vpop.f32.mrb[0].mxu0
  %v4944 = vadd.f32 %v4118, %v4943
  %v4945 = vpop.f32.mrb[0].mxu0
  %v4946 = vadd.f32 %v4114, %v4945
  %v4947 = vpop.f32.mrb[0].mxu0
  %v4948 = vadd.f32 %v4118, %v4947
  %4949 = vmatprep.mubr.bf16.mxu0 0
  %4950 = vmatmul.mubr.bf16.gmra.mrb[0].mxu0 %v4019
  %v4951 = vpop.f32.mrb[0].mxu0
  %v4952 = vadd.f32 %v4114, %v4951
  %v4953 = vpop.f32.mrb[0].mxu0
  %v4954 = vadd.f32 %v4118, %v4953
  %v4955 = vpop.f32.mrb[0].mxu0
  %v4956 = vadd.f32 %v4114, %v4955
  %v4957 = vpop.f32.mrb[0].mxu0
  %v4958 = vadd.f32 %v4118, %v4957
  %4959 = vmatprep.mubr.bf16.mxu0 0
  %4960 = vmatmul.mubr.bf16.gmra.mrb[0].mxu0 %v4020
  %v4961 = vpop.f32.mrb[0].mxu0
  %v4962 = vadd.f32 %v4114, %v4961
  %v4963 = vpop.f32.mrb[0].mxu0
  %v4964 = vadd.f32 %v4118, %v4963
  %v4965 = vpop.f32.mrb[0].mxu0
  %v4966 = vadd.f32 %v4114, %v4965
  %v4967 = vpop.f32.mrb[0].mxu0
  %v4968 = vadd.f32 %v4118, %v4967
  %4969 = vmatprep.mubr.bf16.mxu0 0
  %4970 = vmatmul.mubr.bf16.gmra.mrb[0].mxu0 %v4021
  %v4971 = vpop.f32.mrb[0].mxu0
  %v4972 = vadd.f32 %v4114, %v4971
  %v4973 = vpop.f32.mrb[0].mxu0
  %v4974 = vadd.f32 %v4118, %v4973
  %v4975 = vpop.f32.mrb[0].mxu0
  %v4976 = vadd.f32 %v4114, %v4975
  %v4977 = vpop.f32.mrb[0].mxu0
  %v4978 = vadd.f32 %v4118, %v4977
  %4979 = vmatprep.mubr.bf16.mxu0 0
  %4980 = vmatmul.mubr.bf16.gmra.mrb[0].mxu0 %v4022
  %v4981 = vpop.f32.mrb[0].mxu0
  %v4982 = vadd.f32 %v4114, %v4981
  %v4983 = vpop.f32.mrb[0].mxu0
  %v4984 = vadd.f32 %v4118, %v4983
  %v4985 = vpop.f32.mrb[0].mxu0
  %v4986 = vadd.f32 %v4114, %v4985
  %v4987 = vpop.f32.mrb[0].mxu0
  %v4988 = vadd.f32 %v4118, %v4987
  %4989 = vmatprep.mubr.bf16.mxu0 0
  %4990 = vmatmul.mubr.bf16.gmra.mrb[0].mxu0 %v4023
  %v4991 = vpop.f32.mrb[0].mxu0
  %v4992 = vadd.f32 %v4114, %v4991
  %v4993 = vpop.f32.mrb[0].mxu0
  %v4994 = vadd.f32 %v4118, %v4993
  %v4995 = vpop.f32.mrb[0].mxu0
  %v4996 = vadd.f32 %v4114, %v4995
  %v4997 = vpop.f32.mrb[0].mxu0
  %v4998 = vadd.f32 %v4118, %v4997
  %4999 = vmatprep.mubr.bf16.mxu0 0
  %5000 = vmatmul.mubr.bf16.gmra.mrb[0].mxu0 %v4024
  %v5001 = vpop.f32.mrb[0].mxu0
  %v5002 = vadd.f32 %v4114, %v5001
  %v5003 = vpop.f32.mrb[0].mxu0
  %v5004 = vadd.f32 %v4118, %v5003
  %v5005 = vpop.f32.mrb[0].mxu0
  %v5006 = vadd.f32 %v4114, %v5005
  %v5007 = vpop.f32.mrb[0].mxu0
  %v5008 = vadd.f32 %v4118, %v5007
  %5009 = vmatprep.mubr.bf16.mxu0 0
  %5010 = vmatmul.mubr.bf16.gmra.mrb[0].mxu0 %v4025
  %v5011 = vpop.f32.mrb[0].mxu0
  %v5012 = vadd.f32 %v4114, %v5011
  %v5013 = vpop.f32.mrb[0].mxu0
  %v5014 = vadd.f32 %v4118, %v5013
  %v5015 = vpop.f32.mrb[0].mxu0
  %v5016 = vadd.f32 %v4114, %v5015
  %v5017 = vpop.f32.mrb[0].mxu0
  %v5018 = vadd.f32 %v4118, %v5017
  %5019 = vmatprep.mubr.bf16.mxu0 0
  %5020 = vmatmul.mubr.bf16.gmra.mrb[0].mxu0 %v4026
  %v5021 = vpop.f32.mrb[0].mxu0
  %v5022 = vadd.f32 %v4114, %v5021
  %v5023 = vpop.f32.mrb[0].mxu0
  %v5024 = vadd.f32 %v4118, %v5023
  %v5025 = vpop.f32.mrb[0].mxu0
  %v5026 = vadd.f32 %v4114, %v5025
  %v5027 = vpop.f32.mrb[0].mxu0
  %v5028 = vadd.f32 %v4118, %v5027
  %5029 = vmatprep.mubr.bf16.mxu0 0
  %5030 = vmatmul.mubr.bf16.gmra.mrb[0].mxu0 %v4027
  %v5031 = vpop.f32.mrb[0].mxu0
  %v5032 = vadd.f32 %v4114, %v5031
  %v5033 = vpop.f32.mrb[0].mxu0
  %v5034 = vadd.f32 %v4118, %v5033
  %v5035 = vpop.f32.mrb[0].mxu0
  %v5036 = vadd.f32 %v4114, %v5035
  %v5037 = vpop.f32.mrb[0].mxu0
  %v5038 = vadd.f32 %v4118, %v5037
  %5039 = vmatprep.mubr.bf16.mxu0 0
  %5040 = vmatmul.mubr.bf16.gmra.mrb[0].mxu0 %v4028
  %v5041 = vpop.f32.mrb[0].mxu0
  %v5042 = vadd.f32 %v4114, %v5041
  %v5043 = vpop.f32.mrb[0].mxu0
  %v5044 = vadd.f32 %v4118, %v5043
  %v5045 = vpop.f32.mrb[0].mxu0
  %v5046 = vadd.f32 %v4114, %v5045
  %v5047 = vpop.f32.mrb[0].mxu0
  %v5048 = vadd.f32 %v4118, %v5047
  %5049 = vmatprep.mubr.bf16.mxu0 0
  %5050 = vmatmul.mubr.bf16.gmra.mrb[0].mxu0 %v4029
  %v5051 = vpop.f32.mrb[0].mxu0
  %v5052 = vadd.f32 %v4114, %v5051
  %v5053 = vpop.f32.mrb[0].mxu0
  %v5054 = vadd.f32 %v4118, %v5053
  %v5055 = vpop.f32.mrb[0].mxu0
  %v5056 = vadd.f32 %v4114, %v5055
  %v5057 = vpop.f32.mrb[0].mxu0
  %v5058 = vadd.f32 %v4118, %v5057
  %5059 = vmatprep.mubr.bf16.mxu0 0
  %5060 = vmatmul.mubr.bf16.gmra.mrb[0].mxu0 %v4030
  %v5061 = vpop.f32.mrb[0].mxu0
  %v5062 = vadd.f32 %v4114, %v5061
  %v5063 = vpop.f32.mrb[0].mxu0
  %v5064 = vadd.f32 %v4118, %v5063
  %v5065 = vpop.f32.mrb[0].mxu0
  %v5066 = vadd.f32 %v4114, %v5065
  %v5067 = vpop.f32.mrb[0].mxu0
  %v5068 = vadd.f32 %v4118, %v5067
  %5069 = vmatprep.mubr.bf16.mxu0 0
  %5070 = vmatmul.mubr.bf16.gmra.mrb[0].mxu0 %v4031
  %v5071 = vpop.f32.mrb[0].mxu0
  %v5072 = vadd.f32 %v4114, %v5071
  %v5073 = vpop.f32.mrb[0].mxu0
  %v5074 = vadd.f32 %v4118, %v5073
  %v5075 = vpop.f32.mrb[0].mxu0
  %v5076 = vadd.f32 %v4114, %v5075
  %v5077 = vpop.f32.mrb[0].mxu0
  %v5078 = vadd.f32 %v4118, %v5077
  %5079 = vmatprep.mubr.bf16.mxu0 0
  %5080 = vmatmul.mubr.bf16.gmra.mrb[0].mxu0 %v4032
  %v5081 = vpop.f32.mrb[0].mxu0
  %v5082 = vadd.f32 %v4114, %v5081
  %v5083 = vpop.f32.mrb[0].mxu0
  %v5084 = vadd.f32 %v4118, %v5083
  %v5085 = vpop.f32.mrb[0].mxu0
  %v5086 = vadd.f32 %v4114, %v5085
  %v5087 = vpop.f32.mrb[0].mxu0
  %v5088 = vadd.f32 %v4118, %v5087
  %5089 = vmatprep.mubr.bf16.mxu0 0
  %5090 = vmatmul.mubr.bf16.gmra.mrb[0].mxu0 %v4033
  %v5091 = vpop.f32.mrb[0].mxu0
  %v5092 = vadd.f32 %v4114, %v5091
  %v5093 = vpop.f32.mrb[0].mxu0
  %v5094 = vadd.f32 %v4118, %v5093
  %v5095 = vpop.f32.mrb[0].mxu0
  %v5096 = vadd.f32 %v4114, %v5095
  %v5097 = vpop.f32.mrb[0].mxu0
  %v5098 = vadd.f32 %v4118, %v5097
  %5099 = vmatprep.mubr.bf16.mxu0 0
  %5100 = vmatmul.mubr.bf16.gmra.mrb[0].mxu0 %v4034
  %v5101 = vpop.f32.mrb[0].mxu0
  %v5102 = vadd.f32 %v4114, %v5101
  %v5103 = vpop.f32.mrb[0].mxu0
  %v5104 = vadd.f32 %v4118, %v5103
  %v5105 = vpop.f32.mrb[0].mxu0
  %v5106 = vadd.f32 %v4114, %v5105
  %v5107 = vpop.f32.mrb[0].mxu0
  %v5108 = vadd.f32 %v4118, %v5107
  %5109 = vmatprep.mubr.bf16.mxu0 0
  %5110 = vmatmul.mubr.bf16.gmra.mrb[0].mxu0 %v4035
  %v5111 = vpop.f32.mrb[0].mxu0
  %v5112 = vadd.f32 %v4114, %v5111
  %v5113 = vpop.f32.mrb[0].mxu0
  %v5114 = vadd.f32 %v4118, %v5113
  %v5115 = vpop.f32.mrb[0].mxu0
  %v5116 = vadd.f32 %v4114, %v5115
  %v5117 = vpop.f32.mrb[0].mxu0
  %v5118 = vadd.f32 %v4118, %v5117
  %5119 = vmatprep.mubr.bf16.mxu0 0
  %5120 = vmatmul.mubr.bf16.gmra.mrb[0].mxu0 %v4036
  %v5121 = vpop.f32.mrb[0].mxu0
  %v5122 = vadd.f32 %v4114, %v5121
  %v5123 = vpop.f32.mrb[0].mxu0
  %v5124 = vadd.f32 %v4118, %v5123
  %v5125 = vpop.f32.mrb[0].mxu0
  %v5126 = vpop.f32.mrb[0].mxu0
  %5127 = vdwg.mxu0
  %5128 = vmatprep.subr.bf16.mxu0 %v4319
  %5129 = vmatpush1.bf16.msra.mxu0 %v4318
  %5130 = vmatprep.subr.bf16.mxu0 %v4326
  %5131 = vmatpush1.bf16.msra.mxu0 %v4325
  %5132 = vmatprep.subr.bf16.mxu0 %v4333
  %5133 = vmatpush1.bf16.msra.mxu0 %v4332
  %5134 = vmatprep.subr.bf16.mxu0 %v4340
  %5135 = vmatpush1.bf16.msra.mxu0 %v4339
  %5136 = vmatprep.subr.bf16.mxu0 %v4347
  %5137 = vmatpush1.bf16.msra.mxu0 %v4346
  %5138 = vmatprep.subr.bf16.mxu0 %v4354
  %5139 = vmatpush1.bf16.msra.mxu0 %v4353
  %5140 = vmatprep.subr.bf16.mxu0 %v4361
  %5141 = vmatpush1.bf16.msra.mxu0 %v4360
  %5142 = vmatprep.subr.bf16.mxu0 %v4368
  %5143 = vmatpush1.bf16.msra.mxu0 %v4367
  %5144 = vmatprep.subr.bf16.mxu0 0
  %5145 = vmatpush1.bf16.msra.mxu0 0
  %5146 = vmatprep.subr.bf16.mxu0 0
  %5147 = vmatpush1.bf16.msra.mxu0 0
  %5148 = vmatprep.subr.bf16.mxu0 0
  %5149 = vmatpush1.bf16.msra.mxu0 0
  %5150 = vmatprep.subr.bf16.mxu0 0
  %5151 = vmatpush1.bf16.msra.mxu0 0
  %5152 = vmatprep.subr.bf16.mxu0 0
  %5153 = vmatpush1.bf16.msra.mxu0 0
  %5154 = vmatprep.subr.bf16.mxu0 0
  %5155 = vmatpush1.bf16.msra.mxu0 0
  %5156 = vmatprep.subr.bf16.mxu0 0
  %5157 = vmatpush1.bf16.msra.mxu0 0
  %5158 = vmatprep.subr.bf16.mxu0 0
  %5159 = vmatpush1.bf16.msra.mxu0 0
  %5160 = vmatprep.mubr.bf16.mxu0 0
  %5161 = vmatmul.mubr.bf16.gmra.mrb[0].mxu0 %v4005
  %v5162 = vpop.f32.mrb[0].mxu0
  %v5163 = vadd.f32 %v4122, %v5162
  %v5164 = vpop.f32.mrb[0].mxu0
  %v5165 = vadd.f32 %v4126, %v5164
  %v5166 = vpop.f32.mrb[0].mxu0
  %v5167 = vadd.f32 %v4122, %v5166
  %v5168 = vpop.f32.mrb[0].mxu0
  %v5169 = vadd.f32 %v4126, %v5168
  %5170 = vmatprep.mubr.bf16.mxu0 0
  %5171 = vmatmul.mubr.bf16.gmra.mrb[0].mxu0 %v4006
  %v5172 = vpop.f32.mrb[0].mxu0
  %v5173 = vadd.f32 %v4122, %v5172
  %v5174 = vpop.f32.mrb[0].mxu0
  %v5175 = vadd.f32 %v4126, %v5174
  %v5176 = vpop.f32.mrb[0].mxu0
  %v5177 = vadd.f32 %v4122, %v5176
  %v5178 = vpop.f32.mrb[0].mxu0
  %v5179 = vadd.f32 %v4126, %v5178
  %5180 = vmatprep.mubr.bf16.mxu0 0
  %5181 = vmatmul.mubr.bf16.gmra.mrb[0].mxu0 %v4007
  %v5182 = vpop.f32.mrb[0].mxu0
  %v5183 = vadd.f32 %v4122, %v5182
  %v5184 = vpop.f32.mrb[0].mxu0
  %v5185 = vadd.f32 %v4126, %v5184
  %v5186 = vpop.f32.mrb[0].mxu0
  %v5187 = vadd.f32 %v4122, %v5186
  %v5188 = vpop.f32.mrb[0].mxu0
  %v5189 = vadd.f32 %v4126, %v5188
  %5190 = vmatprep.mubr.bf16.mxu0 0
  %5191 = vmatmul.mubr.bf16.gmra.mrb[0].mxu0 %v4008
  %v5192 = vpop.f32.mrb[0].mxu0
  %v5193 = vadd.f32 %v4122, %v5192
  %v5194 = vpop.f32.mrb[0].mxu0
  %v5195 = vadd.f32 %v4126, %v5194
  %v5196 = vpop.f32.mrb[0].mxu0
  %v5197 = vadd.f32 %v4122, %v5196
  %v5198 = vpop.f32.mrb[0].mxu0
  %v5199 = vadd.f32 %v4126, %v5198
  %5200 = vmatprep.mubr.bf16.mxu0 0
  %5201 = vmatmul.mubr.bf16.gmra.mrb[0].mxu0 %v4009
  %v5202 = vpop.f32.mrb[0].mxu0
  %v5203 = vadd.f32 %v4122, %v5202
  %v5204 = vpop.f32.mrb[0].mxu0
  %v5205 = vadd.f32 %v4126, %v5204
  %v5206 = vpop.f32.mrb[0].mxu0
  %v5207 = vadd.f32 %v4122, %v5206
  %v5208 = vpop.f32.mrb[0].mxu0
  %v5209 = vadd.f32 %v4126, %v5208
  %5210 = vmatprep.mubr.bf16.mxu0 0
  %5211 = vmatmul.mubr.bf16.gmra.mrb[0].mxu0 %v4010
  %v5212 = vpop.f32.mrb[0].mxu0
  %v5213 = vadd.f32 %v4122, %v5212
  %v5214 = vpop.f32.mrb[0].mxu0
  %v5215 = vadd.f32 %v4126, %v5214
  %v5216 = vpop.f32.mrb[0].mxu0
  %v5217 = vadd.f32 %v4122, %v5216
  %v5218 = vpop.f32.mrb[0].mxu0
  %v5219 = vadd.f32 %v4126, %v5218
  %5220 = vmatprep.mubr.bf16.mxu0 0
  %5221 = vmatmul.mubr.bf16.gmra.mrb[0].mxu0 %v4011
  %v5222 = vpop.f32.mrb[0].mxu0
  %v5223 = vadd.f32 %v4122, %v5222
  %v5224 = vpop.f32.mrb[0].mxu0
  %v5225 = vadd.f32 %v4126, %v5224
  %v5226 = vpop.f32.mrb[0].mxu0
  %v5227 = vadd.f32 %v4122, %v5226
  %v5228 = vpop.f32.mrb[0].mxu0
  %v5229 = vadd.f32 %v4126, %v5228
  %5230 = vmatprep.mubr.bf16.mxu0 0
  %5231 = vmatmul.mubr.bf16.gmra.mrb[0].mxu0 %v4012
  %v5232 = vpop.f32.mrb[0].mxu0
  %v5233 = vadd.f32 %v4122, %v5232
  %v5234 = vpop.f32.mrb[0].mxu0
  %v5235 = vadd.f32 %v4126, %v5234
  %v5236 = vpop.f32.mrb[0].mxu0
  %v5237 = vadd.f32 %v4122, %v5236
  %v5238 = vpop.f32.mrb[0].mxu0
  %v5239 = vadd.f32 %v4126, %v5238
  %5240 = vmatprep.mubr.bf16.mxu0 0
  %5241 = vmatmul.mubr.bf16.gmra.mrb[0].mxu0 %v4013
  %v5242 = vpop.f32.mrb[0].mxu0
  %v5243 = vadd.f32 %v4122, %v5242
  %v5244 = vpop.f32.mrb[0].mxu0
  %v5245 = vadd.f32 %v4126, %v5244
  %v5246 = vpop.f32.mrb[0].mxu0
  %v5247 = vadd.f32 %v4122, %v5246
  %v5248 = vpop.f32.mrb[0].mxu0
  %v5249 = vadd.f32 %v4126, %v5248
  %5250 = vmatprep.mubr.bf16.mxu0 0
  %5251 = vmatmul.mubr.bf16.gmra.mrb[0].mxu0 %v4014
  %v5252 = vpop.f32.mrb[0].mxu0
  %v5253 = vadd.f32 %v4122, %v5252
  %v5254 = vpop.f32.mrb[0].mxu0
  %v5255 = vadd.f32 %v4126, %v5254
  %v5256 = vpop.f32.mrb[0].mxu0
  %v5257 = vadd.f32 %v4122, %v5256
  %v5258 = vpop.f32.mrb[0].mxu0
  %v5259 = vadd.f32 %v4126, %v5258
  %5260 = vmatprep.mubr.bf16.mxu0 0
  %5261 = vmatmul.mubr.bf16.gmra.mrb[0].mxu0 %v4015
  %v5262 = vpop.f32.mrb[0].mxu0
  %v5263 = vadd.f32 %v4122, %v5262
  %v5264 = vpop.f32.mrb[0].mxu0
  %v5265 = vadd.f32 %v4126, %v5264
  %v5266 = vpop.f32.mrb[0].mxu0
  %v5267 = vadd.f32 %v4122, %v5266
  %v5268 = vpop.f32.mrb[0].mxu0
  %v5269 = vadd.f32 %v4126, %v5268
  %5270 = vmatprep.mubr.bf16.mxu0 0
  %5271 = vmatmul.mubr.bf16.gmra.mrb[0].mxu0 %v4016
  %v5272 = vpop.f32.mrb[0].mxu0
  %v5273 = vadd.f32 %v4122, %v5272
  %v5274 = vpop.f32.mrb[0].mxu0
  %v5275 = vadd.f32 %v4126, %v5274
  %v5276 = vpop.f32.mrb[0].mxu0
  %v5277 = vadd.f32 %v4122, %v5276
  %v5278 = vpop.f32.mrb[0].mxu0
  %v5279 = vadd.f32 %v4126, %v5278
  %5280 = vmatprep.mubr.bf16.mxu0 0
  %5281 = vmatmul.mubr.bf16.gmra.mrb[0].mxu0 %v4017
  %v5282 = vpop.f32.mrb[0].mxu0
  %v5283 = vadd.f32 %v4122, %v5282
  %v5284 = vpop.f32.mrb[0].mxu0
  %v5285 = vadd.f32 %v4126, %v5284
  %v5286 = vpop.f32.mrb[0].mxu0
  %v5287 = vadd.f32 %v4122, %v5286
  %v5288 = vpop.f32.mrb[0].mxu0
  %v5289 = vadd.f32 %v4126, %v5288
  %5290 = vmatprep.mubr.bf16.mxu0 0
  %5291 = vmatmul.mubr.bf16.gmra.mrb[0].mxu0 %v4018
  %v5292 = vpop.f32.mrb[0].mxu0
  %v5293 = vadd.f32 %v4122, %v5292
  %v5294 = vpop.f32.mrb[0].mxu0
  %v5295 = vadd.f32 %v4126, %v5294
  %v5296 = vpop.f32.mrb[0].mxu0
  %v5297 = vadd.f32 %v4122, %v5296
  %v5298 = vpop.f32.mrb[0].mxu0
  %v5299 = vadd.f32 %v4126, %v5298
  %5300 = vmatprep.mubr.bf16.mxu0 0
  %5301 = vmatmul.mubr.bf16.gmra.mrb[0].mxu0 %v4019
  %v5302 = vpop.f32.mrb[0].mxu0
  %v5303 = vadd.f32 %v4122, %v5302
  %v5304 = vpop.f32.mrb[0].mxu0
  %v5305 = vadd.f32 %v4126, %v5304
  %v5306 = vpop.f32.mrb[0].mxu0
  %v5307 = vadd.f32 %v4122, %v5306
  %v5308 = vpop.f32.mrb[0].mxu0
  %v5309 = vadd.f32 %v4126, %v5308
  %5310 = vmatprep.mubr.bf16.mxu0 0
  %5311 = vmatmul.mubr.bf16.gmra.mrb[0].mxu0 %v4020
  %v5312 = vpop.f32.mrb[0].mxu0
  %v5313 = vadd.f32 %v4122, %v5312
  %v5314 = vpop.f32.mrb[0].mxu0
  %v5315 = vadd.f32 %v4126, %v5314
  %v5316 = vpop.f32.mrb[0].mxu0
  %v5317 = vadd.f32 %v4122, %v5316
  %v5318 = vpop.f32.mrb[0].mxu0
  %v5319 = vadd.f32 %v4126, %v5318
  %5320 = vmatprep.mubr.bf16.mxu0 0
  %5321 = vmatmul.mubr.bf16.gmra.mrb[0].mxu0 %v4021
  %v5322 = vpop.f32.mrb[0].mxu0
  %v5323 = vadd.f32 %v4122, %v5322
  %v5324 = vpop.f32.mrb[0].mxu0
  %v5325 = vadd.f32 %v4126, %v5324
  %v5326 = vpop.f32.mrb[0].mxu0
  %v5327 = vadd.f32 %v4122, %v5326
  %v5328 = vpop.f32.mrb[0].mxu0
  %v5329 = vadd.f32 %v4126, %v5328
  %5330 = vmatprep.mubr.bf16.mxu0 0
  %5331 = vmatmul.mubr.bf16.gmra.mrb[0].mxu0 %v4022
  %v5332 = vpop.f32.mrb[0].mxu0
  %v5333 = vadd.f32 %v4122, %v5332
  %v5334 = vpop.f32.mrb[0].mxu0
  %v5335 = vadd.f32 %v4126, %v5334
  %v5336 = vpop.f32.mrb[0].mxu0
  %v5337 = vadd.f32 %v4122, %v5336
  %v5338 = vpop.f32.mrb[0].mxu0
  %v5339 = vadd.f32 %v4126, %v5338
  %5340 = vmatprep.mubr.bf16.mxu0 0
  %5341 = vmatmul.mubr.bf16.gmra.mrb[0].mxu0 %v4023
  %v5342 = vpop.f32.mrb[0].mxu0
  %v5343 = vadd.f32 %v4122, %v5342
  %v5344 = vpop.f32.mrb[0].mxu0
  %v5345 = vadd.f32 %v4126, %v5344
  %v5346 = vpop.f32.mrb[0].mxu0
  %v5347 = vadd.f32 %v4122, %v5346
  %v5348 = vpop.f32.mrb[0].mxu0
  %v5349 = vadd.f32 %v4126, %v5348
  %5350 = vmatprep.mubr.bf16.mxu0 0
  %5351 = vmatmul.mubr.bf16.gmra.mrb[0].mxu0 %v4024
  %v5352 = vpop.f32.mrb[0].mxu0
  %v5353 = vadd.f32 %v4122, %v5352
  %v5354 = vpop.f32.mrb[0].mxu0
  %v5355 = vadd.f32 %v4126, %v5354
  %v5356 = vpop.f32.mrb[0].mxu0
  %v5357 = vadd.f32 %v4122, %v5356
  %v5358 = vpop.f32.mrb[0].mxu0
  %v5359 = vadd.f32 %v4126, %v5358
  %5360 = vmatprep.mubr.bf16.mxu0 0
  %5361 = vmatmul.mubr.bf16.gmra.mrb[0].mxu0 %v4025
  %v5362 = vpop.f32.mrb[0].mxu0
  %v5363 = vadd.f32 %v4122, %v5362
  %v5364 = vpop.f32.mrb[0].mxu0
  %v5365 = vadd.f32 %v4126, %v5364
  %v5366 = vpop.f32.mrb[0].mxu0
  %v5367 = vadd.f32 %v4122, %v5366
  %v5368 = vpop.f32.mrb[0].mxu0
  %v5369 = vadd.f32 %v4126, %v5368
  %5370 = vmatprep.mubr.bf16.mxu0 0
  %5371 = vmatmul.mubr.bf16.gmra.mrb[0].mxu0 %v4026
  %v5372 = vpop.f32.mrb[0].mxu0
  %v5373 = vadd.f32 %v4122, %v5372
  %v5374 = vpop.f32.mrb[0].mxu0
  %v5375 = vadd.f32 %v4126, %v5374
  %v5376 = vpop.f32.mrb[0].mxu0
  %v5377 = vadd.f32 %v4122, %v5376
  %v5378 = vpop.f32.mrb[0].mxu0
  %v5379 = vadd.f32 %v4126, %v5378
  %5380 = vmatprep.mubr.bf16.mxu0 0
  %5381 = vmatmul.mubr.bf16.gmra.mrb[0].mxu0 %v4027
  %v5382 = vpop.f32.mrb[0].mxu0
  %v5383 = vadd.f32 %v4122, %v5382
  %v5384 = vpop.f32.mrb[0].mxu0
  %v5385 = vadd.f32 %v4126, %v5384
  %v5386 = vpop.f32.mrb[0].mxu0
  %v5387 = vadd.f32 %v4122, %v5386
  %v5388 = vpop.f32.mrb[0].mxu0
  %v5389 = vadd.f32 %v4126, %v5388
  %5390 = vmatprep.mubr.bf16.mxu0 0
  %5391 = vmatmul.mubr.bf16.gmra.mrb[0].mxu0 %v4028
  %v5392 = vpop.f32.mrb[0].mxu0
  %v5393 = vadd.f32 %v4122, %v5392
  %v5394 = vpop.f32.mrb[0].mxu0
  %v5395 = vadd.f32 %v4126, %v5394
  %v5396 = vpop.f32.mrb[0].mxu0
  %v5397 = vadd.f32 %v4122, %v5396
  %v5398 = vpop.f32.mrb[0].mxu0
  %v5399 = vadd.f32 %v4126, %v5398
  %5400 = vmatprep.mubr.bf16.mxu0 0
  %5401 = vmatmul.mubr.bf16.gmra.mrb[0].mxu0 %v4029
  %v5402 = vpop.f32.mrb[0].mxu0
  %v5403 = vadd.f32 %v4122, %v5402
  %v5404 = vpop.f32.mrb[0].mxu0
  %v5405 = vadd.f32 %v4126, %v5404
  %v5406 = vpop.f32.mrb[0].mxu0
  %v5407 = vadd.f32 %v4122, %v5406
  %v5408 = vpop.f32.mrb[0].mxu0
  %v5409 = vadd.f32 %v4126, %v5408
  %5410 = vmatprep.mubr.bf16.mxu0 0
  %5411 = vmatmul.mubr.bf16.gmra.mrb[0].mxu0 %v4030
  %v5412 = vpop.f32.mrb[0].mxu0
  %v5413 = vadd.f32 %v4122, %v5412
  %v5414 = vpop.f32.mrb[0].mxu0
  %v5415 = vadd.f32 %v4126, %v5414
  %v5416 = vpop.f32.mrb[0].mxu0
  %v5417 = vadd.f32 %v4122, %v5416
  %v5418 = vpop.f32.mrb[0].mxu0
  %v5419 = vadd.f32 %v4126, %v5418
  %5420 = vmatprep.mubr.bf16.mxu0 0
  %5421 = vmatmul.mubr.bf16.gmra.mrb[0].mxu0 %v4031
  %v5422 = vpop.f32.mrb[0].mxu0
  %v5423 = vadd.f32 %v4122, %v5422
  %v5424 = vpop.f32.mrb[0].mxu0
  %v5425 = vadd.f32 %v4126, %v5424
  %v5426 = vpop.f32.mrb[0].mxu0
  %v5427 = vadd.f32 %v4122, %v5426
  %v5428 = vpop.f32.mrb[0].mxu0
  %v5429 = vadd.f32 %v4126, %v5428
  %5430 = vmatprep.mubr.bf16.mxu0 0
  %5431 = vmatmul.mubr.bf16.gmra.mrb[0].mxu0 %v4032
  %v5432 = vpop.f32.mrb[0].mxu0
  %v5433 = vadd.f32 %v4122, %v5432
  %v5434 = vpop.f32.mrb[0].mxu0
  %v5435 = vadd.f32 %v4126, %v5434
  %v5436 = vpop.f32.mrb[0].mxu0
  %v5437 = vadd.f32 %v4122, %v5436
  %v5438 = vpop.f32.mrb[0].mxu0
  %v5439 = vadd.f32 %v4126, %v5438
  %5440 = vmatprep.mubr.bf16.mxu0 0
  %5441 = vmatmul.mubr.bf16.gmra.mrb[0].mxu0 %v4033
  %v5442 = vpop.f32.mrb[0].mxu0
  %v5443 = vadd.f32 %v4122, %v5442
  %v5444 = vpop.f32.mrb[0].mxu0
  %v5445 = vadd.f32 %v4126, %v5444
  %v5446 = vpop.f32.mrb[0].mxu0
  %v5447 = vadd.f32 %v4122, %v5446
  %v5448 = vpop.f32.mrb[0].mxu0
  %v5449 = vadd.f32 %v4126, %v5448
  %5450 = vmatprep.mubr.bf16.mxu0 0
  %5451 = vmatmul.mubr.bf16.gmra.mrb[0].mxu0 %v4034
  %v5452 = vpop.f32.mrb[0].mxu0
  %v5453 = vadd.f32 %v4122, %v5452
  %v5454 = vpop.f32.mrb[0].mxu0
  %v5455 = vadd.f32 %v4126, %v5454
  %v5456 = vpop.f32.mrb[0].mxu0
  %v5457 = vadd.f32 %v4122, %v5456
  %v5458 = vpop.f32.mrb[0].mxu0
  %v5459 = vadd.f32 %v4126, %v5458
  %5460 = vmatprep.mubr.bf16.mxu0 0
  %5461 = vmatmul.mubr.bf16.gmra.mrb[0].mxu0 %v4035
  %v5462 = vpop.f32.mrb[0].mxu0
  %v5463 = vadd.f32 %v4122, %v5462
  %v5464 = vpop.f32.mrb[0].mxu0
  %v5465 = vadd.f32 %v4126, %v5464
  %v5466 = vpop.f32.mrb[0].mxu0
  %v5467 = vadd.f32 %v4122, %v5466
  %v5468 = vpop.f32.mrb[0].mxu0
  %v5469 = vadd.f32 %v4126, %v5468
  %5470 = vmatprep.mubr.bf16.mxu0 0
  %5471 = vmatmul.mubr.bf16.gmra.mrb[0].mxu0 %v4036
  %v5472 = vpop.f32.mrb[0].mxu0
  %v5473 = vadd.f32 %v4122, %v5472
  %v5474 = vpop.f32.mrb[0].mxu0
  %v5475 = vadd.f32 %v4126, %v5474
  %v5476 = vpop.f32.mrb[0].mxu0
  %v5477 = vpop.f32.mrb[0].mxu0
  %5478 = vdwg.mxu0
  %5479 = vmatprep.subr.bf16.mxu0 0
  %5480 = vmatpush1.bf16.msra.mxu0 %v4320
  %5481 = vmatprep.subr.bf16.mxu0 0
  %5482 = vmatpush1.bf16.msra.mxu0 %v4327
  %5483 = vmatprep.subr.bf16.mxu0 0
  %5484 = vmatpush1.bf16.msra.mxu0 %v4334
  %5485 = vmatprep.subr.bf16.mxu0 0
  %5486 = vmatpush1.bf16.msra.mxu0 %v4341
  %5487 = vmatprep.subr.bf16.mxu0 0
  %5488 = vmatpush1.bf16.msra.mxu0 %v4348
  %5489 = vmatprep.subr.bf16.mxu0 0
  %5490 = vmatpush1.bf16.msra.mxu0 %v4355
  %5491 = vmatprep.subr.bf16.mxu0 0
  %5492 = vmatpush1.bf16.msra.mxu0 %v4362
  %5493 = vmatprep.subr.bf16.mxu0 0
  %5494 = vmatpush1.bf16.msra.mxu0 %v4369
  %5495 = vmatprep.subr.bf16.mxu0 0
  %5496 = vmatpush1.bf16.msra.mxu0 0
  %5497 = vmatprep.subr.bf16.mxu0 0
  %5498 = vmatpush1.bf16.msra.mxu0 0
  %5499 = vmatprep.subr.bf16.mxu0 0
  %5500 = vmatpush1.bf16.msra.mxu0 0
  %5501 = vmatprep.subr.bf16.mxu0 0
  %5502 = vmatpush1.bf16.msra.mxu0 0
  %5503 = vmatprep.subr.bf16.mxu0 0
  %5504 = vmatpush1.bf16.msra.mxu0 0
  %5505 = vmatprep.subr.bf16.mxu0 0
  %5506 = vmatpush1.bf16.msra.mxu0 0
  %5507 = vmatprep.subr.bf16.mxu0 0
  %5508 = vmatpush1.bf16.msra.mxu0 0
  %5509 = vmatprep.subr.bf16.mxu0 0
  %5510 = vmatpush1.bf16.msra.mxu0 0
  %5511 = vmatprep.mubr.bf16.mxu0 0
  %5512 = vmatmul.mubr.bf16.gmra.mrb[0].mxu0 %v4005
  %v5513 = vpop.f32.mrb[0].mxu0
  %v5514 = vadd.f32 %v4130, %v5513
  %v5515 = vpop.f32.mrb[0].mxu0
  %v5516 = vpop.f32.mrb[0].mxu0
  %v5517 = vadd.f32 %v4130, %v5516
  %v5518 = vpop.f32.mrb[0].mxu0
  %5519 = vmatprep.mubr.bf16.mxu0 0
  %5520 = vmatmul.mubr.bf16.gmra.mrb[0].mxu0 %v4006
  %v5521 = vpop.f32.mrb[0].mxu0
  %v5522 = vadd.f32 %v4130, %v5521
  %v5523 = vpop.f32.mrb[0].mxu0
  %v5524 = vpop.f32.mrb[0].mxu0
  %v5525 = vadd.f32 %v4130, %v5524
  %v5526 = vpop.f32.mrb[0].mxu0
  %5527 = vmatprep.mubr.bf16.mxu0 0
  %5528 = vmatmul.mubr.bf16.gmra.mrb[0].mxu0 %v4007
  %v5529 = vpop.f32.mrb[0].mxu0
  %v5530 = vadd.f32 %v4130, %v5529
  %v5531 = vpop.f32.mrb[0].mxu0
  %v5532 = vpop.f32.mrb[0].mxu0
  %v5533 = vadd.f32 %v4130, %v5532
  %v5534 = vpop.f32.mrb[0].mxu0
  %5535 = vmatprep.mubr.bf16.mxu0 0
  %5536 = vmatmul.mubr.bf16.gmra.mrb[0].mxu0 %v4008
  %v5537 = vpop.f32.mrb[0].mxu0
  %v5538 = vadd.f32 %v4130, %v5537
  %v5539 = vpop.f32.mrb[0].mxu0
  %v5540 = vpop.f32.mrb[0].mxu0
  %v5541 = vadd.f32 %v4130, %v5540
  %v5542 = vpop.f32.mrb[0].mxu0
  %5543 = vmatprep.mubr.bf16.mxu0 0
  %5544 = vmatmul.mubr.bf16.gmra.mrb[0].mxu0 %v4009
  %v5545 = vpop.f32.mrb[0].mxu0
  %v5546 = vadd.f32 %v4130, %v5545
  %v5547 = vpop.f32.mrb[0].mxu0
  %v5548 = vpop.f32.mrb[0].mxu0
  %v5549 = vadd.f32 %v4130, %v5548
  %v5550 = vpop.f32.mrb[0].mxu0
  %5551 = vmatprep.mubr.bf16.mxu0 0
  %5552 = vmatmul.mubr.bf16.gmra.mrb[0].mxu0 %v4010
  %v5553 = vpop.f32.mrb[0].mxu0
  %v5554 = vadd.f32 %v4130, %v5553
  %v5555 = vpop.f32.mrb[0].mxu0
  %v5556 = vpop.f32.mrb[0].mxu0
  %v5557 = vadd.f32 %v4130, %v5556
  %v5558 = vpop.f32.mrb[0].mxu0
  %5559 = vmatprep.mubr.bf16.mxu0 0
  %5560 = vmatmul.mubr.bf16.gmra.mrb[0].mxu0 %v4011
  %v5561 = vpop.f32.mrb[0].mxu0
  %v5562 = vadd.f32 %v4130, %v5561
  %v5563 = vpop.f32.mrb[0].mxu0
  %v5564 = vpop.f32.mrb[0].mxu0
  %v5565 = vadd.f32 %v4130, %v5564
  %v5566 = vpop.f32.mrb[0].mxu0
  %5567 = vmatprep.mubr.bf16.mxu0 0
  %5568 = vmatmul.mubr.bf16.gmra.mrb[0].mxu0 %v4012
  %v5569 = vpop.f32.mrb[0].mxu0
  %v5570 = vadd.f32 %v4130, %v5569
  %v5571 = vpop.f32.mrb[0].mxu0
  %v5572 = vpop.f32.mrb[0].mxu0
  %v5573 = vadd.f32 %v4130, %v5572
  %v5574 = vpop.f32.mrb[0].mxu0
  %5575 = vmatprep.mubr.bf16.mxu0 0
  %5576 = vmatmul.mubr.bf16.gmra.mrb[0].mxu0 %v4013
  %v5577 = vpop.f32.mrb[0].mxu0
  %v5578 = vadd.f32 %v4130, %v5577
  %v5579 = vpop.f32.mrb[0].mxu0
  %v5580 = vpop.f32.mrb[0].mxu0
  %v5581 = vadd.f32 %v4130, %v5580
  %v5582 = vpop.f32.mrb[0].mxu0
  %5583 = vmatprep.mubr.bf16.mxu0 0
  %5584 = vmatmul.mubr.bf16.gmra.mrb[0].mxu0 %v4014
  %v5585 = vpop.f32.mrb[0].mxu0
  %v5586 = vadd.f32 %v4130, %v5585
  %v5587 = vpop.f32.mrb[0].mxu0
  %v5588 = vpop.f32.mrb[0].mxu0
  %v5589 = vadd.f32 %v4130, %v5588
  %v5590 = vpop.f32.mrb[0].mxu0
  %5591 = vmatprep.mubr.bf16.mxu0 0
  %5592 = vmatmul.mubr.bf16.gmra.mrb[0].mxu0 %v4015
  %v5593 = vpop.f32.mrb[0].mxu0
  %v5594 = vadd.f32 %v4130, %v5593
  %v5595 = vpop.f32.mrb[0].mxu0
  %v5596 = vpop.f32.mrb[0].mxu0
  %v5597 = vadd.f32 %v4130, %v5596
  %v5598 = vpop.f32.mrb[0].mxu0
  %5599 = vmatprep.mubr.bf16.mxu0 0
  %5600 = vmatmul.mubr.bf16.gmra.mrb[0].mxu0 %v4016
  %v5601 = vpop.f32.mrb[0].mxu0
  %v5602 = vadd.f32 %v4130, %v5601
  %v5603 = vpop.f32.mrb[0].mxu0
  %v5604 = vpop.f32.mrb[0].mxu0
  %v5605 = vadd.f32 %v4130, %v5604
  %v5606 = vpop.f32.mrb[0].mxu0
  %5607 = vmatprep.mubr.bf16.mxu0 0
  %5608 = vmatmul.mubr.bf16.gmra.mrb[0].mxu0 %v4017
  %v5609 = vpop.f32.mrb[0].mxu0
  %v5610 = vadd.f32 %v4130, %v5609
  %v5611 = vpop.f32.mrb[0].mxu0
  %v5612 = vpop.f32.mrb[0].mxu0
  %v5613 = vadd.f32 %v4130, %v5612
  %v5614 = vpop.f32.mrb[0].mxu0
  %5615 = vmatprep.mubr.bf16.mxu0 0
  %5616 = vmatmul.mubr.bf16.gmra.mrb[0].mxu0 %v4018
  %v5617 = vpop.f32.mrb[0].mxu0
  %v5618 = vadd.f32 %v4130, %v5617
  %v5619 = vpop.f32.mrb[0].mxu0
  %v5620 = vpop.f32.mrb[0].mxu0
  %v5621 = vadd.f32 %v4130, %v5620
  %v5622 = vpop.f32.mrb[0].mxu0
  %5623 = vmatprep.mubr.bf16.mxu0 0
  %5624 = vmatmul.mubr.bf16.gmra.mrb[0].mxu0 %v4019
  %v5625 = vpop.f32.mrb[0].mxu0
  %v5626 = vadd.f32 %v4130, %v5625
  %v5627 = vpop.f32.mrb[0].mxu0
  %v5628 = vpop.f32.mrb[0].mxu0
  %v5629 = vadd.f32 %v4130, %v5628
  %v5630 = vpop.f32.mrb[0].mxu0
  %5631 = vmatprep.mubr.bf16.mxu0 0
  %5632 = vmatmul.mubr.bf16.gmra.mrb[0].mxu0 %v4020
  %v5633 = vpop.f32.mrb[0].mxu0
  %v5634 = vadd.f32 %v4130, %v5633
  %v5635 = vpop.f32.mrb[0].mxu0
  %v5636 = vpop.f32.mrb[0].mxu0
  %v5637 = vadd.f32 %v4130, %v5636
  %v5638 = vpop.f32.mrb[0].mxu0
  %5639 = vmatprep.mubr.bf16.mxu0 0
  %5640 = vmatmul.mubr.bf16.gmra.mrb[0].mxu0 %v4021
  %v5641 = vpop.f32.mrb[0].mxu0
  %v5642 = vadd.f32 %v4130, %v5641
  %v5643 = vpop.f32.mrb[0].mxu0
  %v5644 = vpop.f32.mrb[0].mxu0
  %v5645 = vadd.f32 %v4130, %v5644
  %v5646 = vpop.f32.mrb[0].mxu0
  %5647 = vmatprep.mubr.bf16.mxu0 0
  %5648 = vmatmul.mubr.bf16.gmra.mrb[0].mxu0 %v4022
  %v5649 = vpop.f32.mrb[0].mxu0
  %v5650 = vadd.f32 %v4130, %v5649
  %v5651 = vpop.f32.mrb[0].mxu0
  %v5652 = vpop.f32.mrb[0].mxu0
  %v5653 = vadd.f32 %v4130, %v5652
  %v5654 = vpop.f32.mrb[0].mxu0
  %5655 = vmatprep.mubr.bf16.mxu0 0
  %5656 = vmatmul.mubr.bf16.gmra.mrb[0].mxu0 %v4023
  %v5657 = vpop.f32.mrb[0].mxu0
  %v5658 = vadd.f32 %v4130, %v5657
  %v5659 = vpop.f32.mrb[0].mxu0
  %v5660 = vpop.f32.mrb[0].mxu0
  %v5661 = vadd.f32 %v4130, %v5660
  %v5662 = vpop.f32.mrb[0].mxu0
  %5663 = vmatprep.mubr.bf16.mxu0 0
  %5664 = vmatmul.mubr.bf16.gmra.mrb[0].mxu0 %v4024
  %v5665 = vpop.f32.mrb[0].mxu0
  %v5666 = vadd.f32 %v4130, %v5665
  %v5667 = vpop.f32.mrb[0].mxu0
  %v5668 = vpop.f32.mrb[0].mxu0
  %v5669 = vadd.f32 %v4130, %v5668
  %v5670 = vpop.f32.mrb[0].mxu0
  %5671 = vmatprep.mubr.bf16.mxu0 0
  %5672 = vmatmul.mubr.bf16.gmra.mrb[0].mxu0 %v4025
  %v5673 = vpop.f32.mrb[0].mxu0
  %v5674 = vadd.f32 %v4130, %v5673
  %v5675 = vpop.f32.mrb[0].mxu0
  %v5676 = vpop.f32.mrb[0].mxu0
  %v5677 = vadd.f32 %v4130, %v5676
  %v5678 = vpop.f32.mrb[0].mxu0
  %5679 = vmatprep.mubr.bf16.mxu0 0
  %5680 = vmatmul.mubr.bf16.gmra.mrb[0].mxu0 %v4026
  %v5681 = vpop.f32.mrb[0].mxu0
  %v5682 = vadd.f32 %v4130, %v5681
  %v5683 = vpop.f32.mrb[0].mxu0
  %v5684 = vpop.f32.mrb[0].mxu0
  %v5685 = vadd.f32 %v4130, %v5684
  %v5686 = vpop.f32.mrb[0].mxu0
  %5687 = vmatprep.mubr.bf16.mxu0 0
  %5688 = vmatmul.mubr.bf16.gmra.mrb[0].mxu0 %v4027
  %v5689 = vpop.f32.mrb[0].mxu0
  %v5690 = vadd.f32 %v4130, %v5689
  %v5691 = vpop.f32.mrb[0].mxu0
  %v5692 = vpop.f32.mrb[0].mxu0
  %v5693 = vadd.f32 %v4130, %v5692
  %v5694 = vpop.f32.mrb[0].mxu0
  %5695 = vmatprep.mubr.bf16.mxu0 0
  %5696 = vmatmul.mubr.bf16.gmra.mrb[0].mxu0 %v4028
  %v5697 = vpop.f32.mrb[0].mxu0
  %v5698 = vadd.f32 %v4130, %v5697
  %v5699 = vpop.f32.mrb[0].mxu0
  %v5700 = vpop.f32.mrb[0].mxu0
  %v5701 = vadd.f32 %v4130, %v5700
  %v5702 = vpop.f32.mrb[0].mxu0
  %5703 = vmatprep.mubr.bf16.mxu0 0
  %5704 = vmatmul.mubr.bf16.gmra.mrb[0].mxu0 %v4029
  %v5705 = vpop.f32.mrb[0].mxu0
  %v5706 = vadd.f32 %v4130, %v5705
  %v5707 = vpop.f32.mrb[0].mxu0
  %v5708 = vpop.f32.mrb[0].mxu0
  %v5709 = vadd.f32 %v4130, %v5708
  %v5710 = vpop.f32.mrb[0].mxu0
  %5711 = vmatprep.mubr.bf16.mxu0 0
  %5712 = vmatmul.mubr.bf16.gmra.mrb[0].mxu0 %v4030
  %v5713 = vpop.f32.mrb[0].mxu0
  %v5714 = vadd.f32 %v4130, %v5713
  %v5715 = vpop.f32.mrb[0].mxu0
  %v5716 = vpop.f32.mrb[0].mxu0
  %v5717 = vadd.f32 %v4130, %v5716
  %v5718 = vpop.f32.mrb[0].mxu0
  %5719 = vmatprep.mubr.bf16.mxu0 0
  %5720 = vmatmul.mubr.bf16.gmra.mrb[0].mxu0 %v4031
  %v5721 = vpop.f32.mrb[0].mxu0
  %v5722 = vadd.f32 %v4130, %v5721
  %v5723 = vpop.f32.mrb[0].mxu0
  %v5724 = vpop.f32.mrb[0].mxu0
  %v5725 = vadd.f32 %v4130, %v5724
  %v5726 = vpop.f32.mrb[0].mxu0
  %5727 = vmatprep.mubr.bf16.mxu0 0
  %5728 = vmatmul.mubr.bf16.gmra.mrb[0].mxu0 %v4032
  %v5729 = vpop.f32.mrb[0].mxu0
  %v5730 = vadd.f32 %v4130, %v5729
  %v5731 = vpop.f32.mrb[0].mxu0
  %v5732 = vpop.f32.mrb[0].mxu0
  %v5733 = vadd.f32 %v4130, %v5732
  %v5734 = vpop.f32.mrb[0].mxu0
  %5735 = vmatprep.mubr.bf16.mxu0 0
  %5736 = vmatmul.mubr.bf16.gmra.mrb[0].mxu0 %v4033
  %v5737 = vpop.f32.mrb[0].mxu0
  %v5738 = vadd.f32 %v4130, %v5737
  %v5739 = vpop.f32.mrb[0].mxu0
  %v5740 = vpop.f32.mrb[0].mxu0
  %v5741 = vadd.f32 %v4130, %v5740
  %v5742 = vpop.f32.mrb[0].mxu0
  %5743 = vmatprep.mubr.bf16.mxu0 0
  %5744 = vmatmul.mubr.bf16.gmra.mrb[0].mxu0 %v4034
  %v5745 = vpop.f32.mrb[0].mxu0
  %v5746 = vadd.f32 %v4130, %v5745
  %v5747 = vpop.f32.mrb[0].mxu0
  %v5748 = vpop.f32.mrb[0].mxu0
  %v5749 = vadd.f32 %v4130, %v5748
  %v5750 = vpop.f32.mrb[0].mxu0
  %5751 = vmatprep.mubr.bf16.mxu0 0
  %5752 = vmatmul.mubr.bf16.gmra.mrb[0].mxu0 %v4035
  %v5753 = vpop.f32.mrb[0].mxu0
  %v5754 = vadd.f32 %v4130, %v5753
  %v5755 = vpop.f32.mrb[0].mxu0
  %v5756 = vpop.f32.mrb[0].mxu0
  %v5757 = vadd.f32 %v4130, %v5756
  %v5758 = vpop.f32.mrb[0].mxu0
  %5759 = vmatprep.mubr.bf16.mxu0 0
  %5760 = vmatmul.mubr.bf16.gmra.mrb[0].mxu0 %v4036
  %v5761 = vpop.f32.mrb[0].mxu0
  %v5762 = vadd.f32 %v4130, %v5761
  %v5763 = vpop.f32.mrb[0].mxu0
  %v5764 = vpop.f32.mrb[0].mxu0
  %v5765 = vpop.f32.mrb[0].mxu0
  %5766 = vdwg.mxu0
  %v5767 = vmax.f32 %v4461, 0.0
  %v5768 = vmax.f32 %v4463, 0.0
  %v5769 = vmax.f32 %v4812, 0.0
  %v5770 = vmax.f32 %v4814, 0.0
  %v5771 = vmax.f32 %v5163, 0.0
  %v5772 = vmax.f32 %v5165, 0.0
  %v5773 = vmax.f32 %v5514, 0.0
  %v5774 = vmax.f32 %v4465, 0.0
  %v5775 = vmax.f32 %v4467, 0.0
  %v5776 = vmax.f32 %v4816, 0.0
  %v5777 = vmax.f32 %v4818, 0.0
  %v5778 = vmax.f32 %v5167, 0.0
  %v5779 = vmax.f32 %v5169, 0.0
  %v5780 = vmax.f32 %v5517, 0.0
  %v5781 = vmax.f32 %v4471, 0.0
  %v5782 = vmax.f32 %v4473, 0.0
  %v5783 = vmax.f32 %v4822, 0.0
  %v5784 = vmax.f32 %v4824, 0.0
  %v5785 = vmax.f32 %v5173, 0.0
  %v5786 = vmax.f32 %v5175, 0.0
  %v5787 = vmax.f32 %v5522, 0.0
  %v5788 = vmax.f32 %v4475, 0.0
  %v5789 = vmax.f32 %v4477, 0.0
  %v5790 = vmax.f32 %v4826, 0.0
  %v5791 = vmax.f32 %v4828, 0.0
  %v5792 = vmax.f32 %v5177, 0.0
  %v5793 = vmax.f32 %v5179, 0.0
  %v5794 = vmax.f32 %v5525, 0.0
  %v5795 = vmax.f32 %v4481, 0.0
  %v5796 = vmax.f32 %v4483, 0.0
  %v5797 = vmax.f32 %v4832, 0.0
  %v5798 = vmax.f32 %v4834, 0.0
  %v5799 = vmax.f32 %v5183, 0.0
  %v5800 = vmax.f32 %v5185, 0.0
  %v5801 = vmax.f32 %v5530, 0.0
  %v5802 = vmax.f32 %v4485, 0.0
  %v5803 = vmax.f32 %v4487, 0.0
  %v5804 = vmax.f32 %v4836, 0.0
  %v5805 = vmax.f32 %v4838, 0.0
  %v5806 = vmax.f32 %v5187, 0.0
  %v5807 = vmax.f32 %v5189, 0.0
  %v5808 = vmax.f32 %v5533, 0.0
  %v5809 = vmax.f32 %v4491, 0.0
  %v5810 = vmax.f32 %v4493, 0.0
  %v5811 = vmax.f32 %v4842, 0.0
  %v5812 = vmax.f32 %v4844, 0.0
  %v5813 = vmax.f32 %v5193, 0.0
  %v5814 = vmax.f32 %v5195, 0.0
  %v5815 = vmax.f32 %v5538, 0.0
  %v5816 = vmax.f32 %v4495, 0.0
  %v5817 = vmax.f32 %v4497, 0.0
  %v5818 = vmax.f32 %v4846, 0.0
  %v5819 = vmax.f32 %v4848, 0.0
  %v5820 = vmax.f32 %v5197, 0.0
  %v5821 = vmax.f32 %v5199, 0.0
  %v5822 = vmax.f32 %v5541, 0.0
  %v5823 = vmax.f32 %v4501, 0.0
  %v5824 = vmax.f32 %v4503, 0.0
  %v5825 = vmax.f32 %v4852, 0.0
  %v5826 = vmax.f32 %v4854, 0.0
  %v5827 = vmax.f32 %v5203, 0.0
  %v5828 = vmax.f32 %v5205, 0.0
  %v5829 = vmax.f32 %v5546, 0.0
  %v5830 = vmax.f32 %v4505, 0.0
  %v5831 = vmax.f32 %v4507, 0.0
  %v5832 = vmax.f32 %v4856, 0.0
  %v5833 = vmax.f32 %v4858, 0.0
  %v5834 = vmax.f32 %v5207, 0.0
  %v5835 = vmax.f32 %v5209, 0.0
  %v5836 = vmax.f32 %v5549, 0.0
  %v5837 = vmax.f32 %v4511, 0.0
  %v5838 = vmax.f32 %v4513, 0.0
  %v5839 = vmax.f32 %v4862, 0.0
  %v5840 = vmax.f32 %v4864, 0.0
  %v5841 = vmax.f32 %v5213, 0.0
  %v5842 = vmax.f32 %v5215, 0.0
  %v5843 = vmax.f32 %v5554, 0.0
  %v5844 = vmax.f32 %v4515, 0.0
  %v5845 = vmax.f32 %v4517, 0.0
  %v5846 = vmax.f32 %v4866, 0.0
  %v5847 = vmax.f32 %v4868, 0.0
  %v5848 = vmax.f32 %v5217, 0.0
  %v5849 = vmax.f32 %v5219, 0.0
  %v5850 = vmax.f32 %v5557, 0.0
  %v5851 = vmax.f32 %v4521, 0.0
  %v5852 = vmax.f32 %v4523, 0.0
  %v5853 = vmax.f32 %v4872, 0.0
  %v5854 = vmax.f32 %v4874, 0.0
  %v5855 = vmax.f32 %v5223, 0.0
  %v5856 = vmax.f32 %v5225, 0.0
  %v5857 = vmax.f32 %v5562, 0.0
  %v5858 = vmax.f32 %v4525, 0.0
  %v5859 = vmax.f32 %v4527, 0.0
  %v5860 = vmax.f32 %v4876, 0.0
  %v5861 = vmax.f32 %v4878, 0.0
  %v5862 = vmax.f32 %v5227, 0.0
  %v5863 = vmax.f32 %v5229, 0.0
  %v5864 = vmax.f32 %v5565, 0.0
  %v5865 = vmax.f32 %v4531, 0.0
  %v5866 = vmax.f32 %v4533, 0.0
  %v5867 = vmax.f32 %v4882, 0.0
  %v5868 = vmax.f32 %v4884, 0.0
  %v5869 = vmax.f32 %v5233, 0.0
  %v5870 = vmax.f32 %v5235, 0.0
  %v5871 = vmax.f32 %v5570, 0.0
  %v5872 = vmax.f32 %v4535, 0.0
  %v5873 = vmax.f32 %v4537, 0.0
  %v5874 = vmax.f32 %v4886, 0.0
  %v5875 = vmax.f32 %v4888, 0.0
  %v5876 = vmax.f32 %v5237, 0.0
  %v5877 = vmax.f32 %v5239, 0.0
  %v5878 = vmax.f32 %v5573, 0.0
  %v5879 = vmax.f32 %v4541, 0.0
  %v5880 = vmax.f32 %v4543, 0.0
  %v5881 = vmax.f32 %v4892, 0.0
  %v5882 = vmax.f32 %v4894, 0.0
  %v5883 = vmax.f32 %v5243, 0.0
  %v5884 = vmax.f32 %v5245, 0.0
  %v5885 = vmax.f32 %v5578, 0.0
  %v5886 = vmax.f32 %v4545, 0.0
  %v5887 = vmax.f32 %v4547, 0.0
  %v5888 = vmax.f32 %v4896, 0.0
  %v5889 = vmax.f32 %v4898, 0.0
  %v5890 = vmax.f32 %v5247, 0.0
  %v5891 = vmax.f32 %v5249, 0.0
  %v5892 = vmax.f32 %v5581, 0.0
  %v5893 = vmax.f32 %v4551, 0.0
  %v5894 = vmax.f32 %v4553, 0.0
  %v5895 = vmax.f32 %v4902, 0.0
  %v5896 = vmax.f32 %v4904, 0.0
  %v5897 = vmax.f32 %v5253, 0.0
  %v5898 = vmax.f32 %v5255, 0.0
  %v5899 = vmax.f32 %v5586, 0.0
  %v5900 = vmax.f32 %v4555, 0.0
  %v5901 = vmax.f32 %v4557, 0.0
  %v5902 = vmax.f32 %v4906, 0.0
  %v5903 = vmax.f32 %v4908, 0.0
  %v5904 = vmax.f32 %v5257, 0.0
  %v5905 = vmax.f32 %v5259, 0.0
  %v5906 = vmax.f32 %v5589, 0.0
  %v5907 = vmax.f32 %v4561, 0.0
  %v5908 = vmax.f32 %v4563, 0.0
  %v5909 = vmax.f32 %v4912, 0.0
  %v5910 = vmax.f32 %v4914, 0.0
  %v5911 = vmax.f32 %v5263, 0.0
  %v5912 = vmax.f32 %v5265, 0.0
  %v5913 = vmax.f32 %v5594, 0.0
  %v5914 = vmax.f32 %v4565, 0.0
  %v5915 = vmax.f32 %v4567, 0.0
  %v5916 = vmax.f32 %v4916, 0.0
  %v5917 = vmax.f32 %v4918, 0.0
  %v5918 = vmax.f32 %v5267, 0.0
  %v5919 = vmax.f32 %v5269, 0.0
  %v5920 = vmax.f32 %v5597, 0.0
  %v5921 = vmax.f32 %v4571, 0.0
  %v5922 = vmax.f32 %v4573, 0.0
  %v5923 = vmax.f32 %v4922, 0.0
  %v5924 = vmax.f32 %v4924, 0.0
  %v5925 = vmax.f32 %v5273, 0.0
  %v5926 = vmax.f32 %v5275, 0.0
  %v5927 = vmax.f32 %v5602, 0.0
  %v5928 = vmax.f32 %v4575, 0.0
  %v5929 = vmax.f32 %v4577, 0.0
  %v5930 = vmax.f32 %v4926, 0.0
  %v5931 = vmax.f32 %v4928, 0.0
  %v5932 = vmax.f32 %v5277, 0.0
  %v5933 = vmax.f32 %v5279, 0.0
  %v5934 = vmax.f32 %v5605, 0.0
  %v5935 = vmax.f32 %v4581, 0.0
  %v5936 = vmax.f32 %v4583, 0.0
  %v5937 = vmax.f32 %v4932, 0.0
  %v5938 = vmax.f32 %v4934, 0.0
  %v5939 = vmax.f32 %v5283, 0.0
  %v5940 = vmax.f32 %v5285, 0.0
  %v5941 = vmax.f32 %v5610, 0.0
  %v5942 = vmax.f32 %v4585, 0.0
  %v5943 = vmax.f32 %v4587, 0.0
  %v5944 = vmax.f32 %v4936, 0.0
  %v5945 = vmax.f32 %v4938, 0.0
  %v5946 = vmax.f32 %v5287, 0.0
  %v5947 = vmax.f32 %v5289, 0.0
  %v5948 = vmax.f32 %v5613, 0.0
  %v5949 = vmax.f32 %v4591, 0.0
  %v5950 = vmax.f32 %v4593, 0.0
  %v5951 = vmax.f32 %v4942, 0.0
  %v5952 = vmax.f32 %v4944, 0.0
  %v5953 = vmax.f32 %v5293, 0.0
  %v5954 = vmax.f32 %v5295, 0.0
  %v5955 = vmax.f32 %v5618, 0.0
  %v5956 = vmax.f32 %v4595, 0.0
  %v5957 = vmax.f32 %v4597, 0.0
  %v5958 = vmax.f32 %v4946, 0.0
  %v5959 = vmax.f32 %v4948, 0.0
  %v5960 = vmax.f32 %v5297, 0.0
  %v5961 = vmax.f32 %v5299, 0.0
  %v5962 = vmax.f32 %v5621, 0.0
  %v5963 = vmax.f32 %v4601, 0.0
  %v5964 = vmax.f32 %v4603, 0.0
  %v5965 = vmax.f32 %v4952, 0.0
  %v5966 = vmax.f32 %v4954, 0.0
  %v5967 = vmax.f32 %v5303, 0.0
  %v5968 = vmax.f32 %v5305, 0.0
  %v5969 = vmax.f32 %v5626, 0.0
  %v5970 = vmax.f32 %v4605, 0.0
  %v5971 = vmax.f32 %v4607, 0.0
  %v5972 = vmax.f32 %v4956, 0.0
  %v5973 = vmax.f32 %v4958, 0.0
  %v5974 = vmax.f32 %v5307, 0.0
  %v5975 = vmax.f32 %v5309, 0.0
  %v5976 = vmax.f32 %v5629, 0.0
  %v5977 = vmax.f32 %v4611, 0.0
  %v5978 = vmax.f32 %v4613, 0.0
  %v5979 = vmax.f32 %v4962, 0.0
  %v5980 = vmax.f32 %v4964, 0.0
  %v5981 = vmax.f32 %v5313, 0.0
  %v5982 = vmax.f32 %v5315, 0.0
  %v5983 = vmax.f32 %v5634, 0.0
  %v5984 = vmax.f32 %v4615, 0.0
  %v5985 = vmax.f32 %v4617, 0.0
  %v5986 = vmax.f32 %v4966, 0.0
  %v5987 = vmax.f32 %v4968, 0.0
  %v5988 = vmax.f32 %v5317, 0.0
  %v5989 = vmax.f32 %v5319, 0.0
  %v5990 = vmax.f32 %v5637, 0.0
  %v5991 = vmax.f32 %v4621, 0.0
  %v5992 = vmax.f32 %v4623, 0.0
  %v5993 = vmax.f32 %v4972, 0.0
  %v5994 = vmax.f32 %v4974, 0.0
  %v5995 = vmax.f32 %v5323, 0.0
  %v5996 = vmax.f32 %v5325, 0.0
  %v5997 = vmax.f32 %v5642, 0.0
  %v5998 = vmax.f32 %v4625, 0.0
  %v5999 = vmax.f32 %v4627, 0.0
  %v6000 = vmax.f32 %v4976, 0.0
  %v6001 = vmax.f32 %v4978, 0.0
  %v6002 = vmax.f32 %v5327, 0.0
  %v6003 = vmax.f32 %v5329, 0.0
  %v6004 = vmax.f32 %v5645, 0.0
  %v6005 = vmax.f32 %v4631, 0.0
  %v6006 = vmax.f32 %v4633, 0.0
  %v6007 = vmax.f32 %v4982, 0.0
  %v6008 = vmax.f32 %v4984, 0.0
  %v6009 = vmax.f32 %v5333, 0.0
  %v6010 = vmax.f32 %v5335, 0.0
  %v6011 = vmax.f32 %v5650, 0.0
  %v6012 = vmax.f32 %v4635, 0.0
  %v6013 = vmax.f32 %v4637, 0.0
  %v6014 = vmax.f32 %v4986, 0.0
  %v6015 = vmax.f32 %v4988, 0.0
  %v6016 = vmax.f32 %v5337, 0.0
  %v6017 = vmax.f32 %v5339, 0.0
  %v6018 = vmax.f32 %v5653, 0.0
  %v6019 = vmax.f32 %v4641, 0.0
  %v6020 = vmax.f32 %v4643, 0.0
  %v6021 = vmax.f32 %v4992, 0.0
  %v6022 = vmax.f32 %v4994, 0.0
  %v6023 = vmax.f32 %v5343, 0.0
  %v6024 = vmax.f32 %v5345, 0.0
  %v6025 = vmax.f32 %v5658, 0.0
  %v6026 = vmax.f32 %v4645, 0.0
  %v6027 = vmax.f32 %v4647, 0.0
  %v6028 = vmax.f32 %v4996, 0.0
  %v6029 = vmax.f32 %v4998, 0.0
  %v6030 = vmax.f32 %v5347, 0.0
  %v6031 = vmax.f32 %v5349, 0.0
  %v6032 = vmax.f32 %v5661, 0.0
  %v6033 = vmax.f32 %v4651, 0.0
  %v6034 = vmax.f32 %v4653, 0.0
  %v6035 = vmax.f32 %v5002, 0.0
  %v6036 = vmax.f32 %v5004, 0.0
  %v6037 = vmax.f32 %v5353, 0.0
  %v6038 = vmax.f32 %v5355, 0.0
  %v6039 = vmax.f32 %v5666, 0.0
  %v6040 = vmax.f32 %v4655, 0.0
  %v6041 = vmax.f32 %v4657, 0.0
  %v6042 = vmax.f32 %v5006, 0.0
  %v6043 = vmax.f32 %v5008, 0.0
  %v6044 = vmax.f32 %v5357, 0.0
  %v6045 = vmax.f32 %v5359, 0.0
  %v6046 = vmax.f32 %v5669, 0.0
  %v6047 = vmax.f32 %v4661, 0.0
  %v6048 = vmax.f32 %v4663, 0.0
  %v6049 = vmax.f32 %v5012, 0.0
  %v6050 = vmax.f32 %v5014, 0.0
  %v6051 = vmax.f32 %v5363, 0.0
  %v6052 = vmax.f32 %v5365, 0.0
  %v6053 = vmax.f32 %v5674, 0.0
  %v6054 = vmax.f32 %v4665, 0.0
  %v6055 = vmax.f32 %v4667, 0.0
  %v6056 = vmax.f32 %v5016, 0.0
  %v6057 = vmax.f32 %v5018, 0.0
  %v6058 = vmax.f32 %v5367, 0.0
  %v6059 = vmax.f32 %v5369, 0.0
  %v6060 = vmax.f32 %v5677, 0.0
  %v6061 = vmax.f32 %v4671, 0.0
  %v6062 = vmax.f32 %v4673, 0.0
  %v6063 = vmax.f32 %v5022, 0.0
  %v6064 = vmax.f32 %v5024, 0.0
  %v6065 = vmax.f32 %v5373, 0.0
  %v6066 = vmax.f32 %v5375, 0.0
  %v6067 = vmax.f32 %v5682, 0.0
  %v6068 = vmax.f32 %v4675, 0.0
  %v6069 = vmax.f32 %v4677, 0.0
  %v6070 = vmax.f32 %v5026, 0.0
  %v6071 = vmax.f32 %v5028, 0.0
  %v6072 = vmax.f32 %v5377, 0.0
  %v6073 = vmax.f32 %v5379, 0.0
  %v6074 = vmax.f32 %v5685, 0.0
  %v6075 = vmax.f32 %v4681, 0.0
  %v6076 = vmax.f32 %v4683, 0.0
  %v6077 = vmax.f32 %v5032, 0.0
  %v6078 = vmax.f32 %v5034, 0.0
  %v6079 = vmax.f32 %v5383, 0.0
  %v6080 = vmax.f32 %v5385, 0.0
  %v6081 = vmax.f32 %v5690, 0.0
  %v6082 = vmax.f32 %v4685, 0.0
  %v6083 = vmax.f32 %v4687, 0.0
  %v6084 = vmax.f32 %v5036, 0.0
  %v6085 = vmax.f32 %v5038, 0.0
  %v6086 = vmax.f32 %v5387, 0.0
  %v6087 = vmax.f32 %v5389, 0.0
  %v6088 = vmax.f32 %v5693, 0.0
  %v6089 = vmax.f32 %v4691, 0.0
  %v6090 = vmax.f32 %v4693, 0.0
  %v6091 = vmax.f32 %v5042, 0.0
  %v6092 = vmax.f32 %v5044, 0.0
  %v6093 = vmax.f32 %v5393, 0.0
  %v6094 = vmax.f32 %v5395, 0.0
  %v6095 = vmax.f32 %v5698, 0.0
  %v6096 = vmax.f32 %v4695, 0.0
  %v6097 = vmax.f32 %v4697, 0.0
  %v6098 = vmax.f32 %v5046, 0.0
  %v6099 = vmax.f32 %v5048, 0.0
  %v6100 = vmax.f32 %v5397, 0.0
  %v6101 = vmax.f32 %v5399, 0.0
  %v6102 = vmax.f32 %v5701, 0.0
  %v6103 = vmax.f32 %v4701, 0.0
  %v6104 = vmax.f32 %v4703, 0.0
  %v6105 = vmax.f32 %v5052, 0.0
  %v6106 = vmax.f32 %v5054, 0.0
  %v6107 = vmax.f32 %v5403, 0.0
  %v6108 = vmax.f32 %v5405, 0.0
  %v6109 = vmax.f32 %v5706, 0.0
  %v6110 = vmax.f32 %v4705, 0.0
  %v6111 = vmax.f32 %v4707, 0.0
  %v6112 = vmax.f32 %v5056, 0.0
  %v6113 = vmax.f32 %v5058, 0.0
  %v6114 = vmax.f32 %v5407, 0.0
  %v6115 = vmax.f32 %v5409, 0.0
  %v6116 = vmax.f32 %v5709, 0.0
  %v6117 = vmax.f32 %v4711, 0.0
  %v6118 = vmax.f32 %v4713, 0.0
  %v6119 = vmax.f32 %v5062, 0.0
  %v6120 = vmax.f32 %v5064, 0.0
  %v6121 = vmax.f32 %v5413, 0.0
  %v6122 = vmax.f32 %v5415, 0.0
  %v6123 = vmax.f32 %v5714, 0.0
  %v6124 = vmax.f32 %v4715, 0.0
  %v6125 = vmax.f32 %v4717, 0.0
  %v6126 = vmax.f32 %v5066, 0.0
  %v6127 = vmax.f32 %v5068, 0.0
  %v6128 = vmax.f32 %v5417, 0.0
  %v6129 = vmax.f32 %v5419, 0.0
  %v6130 = vmax.f32 %v5717, 0.0
  %v6131 = vmax.f32 %v4721, 0.0
  %v6132 = vmax.f32 %v4723, 0.0
  %v6133 = vmax.f32 %v5072, 0.0
  %v6134 = vmax.f32 %v5074, 0.0
  %v6135 = vmax.f32 %v5423, 0.0
  %v6136 = vmax.f32 %v5425, 0.0
  %v6137 = vmax.f32 %v5722, 0.0
  %v6138 = vmax.f32 %v4725, 0.0
  %v6139 = vmax.f32 %v4727, 0.0
  %v6140 = vmax.f32 %v5076, 0.0
  %v6141 = vmax.f32 %v5078, 0.0
  %v6142 = vmax.f32 %v5427, 0.0
  %v6143 = vmax.f32 %v5429, 0.0
  %v6144 = vmax.f32 %v5725, 0.0
  %v6145 = vmax.f32 %v4731, 0.0
  %v6146 = vmax.f32 %v4733, 0.0
  %v6147 = vmax.f32 %v5082, 0.0
  %v6148 = vmax.f32 %v5084, 0.0
  %v6149 = vmax.f32 %v5433, 0.0
  %v6150 = vmax.f32 %v5435, 0.0
  %v6151 = vmax.f32 %v5730, 0.0
  %v6152 = vmax.f32 %v4735, 0.0
  %v6153 = vmax.f32 %v4737, 0.0
  %v6154 = vmax.f32 %v5086, 0.0
  %v6155 = vmax.f32 %v5088, 0.0
  %v6156 = vmax.f32 %v5437, 0.0
  %v6157 = vmax.f32 %v5439, 0.0
  %v6158 = vmax.f32 %v5733, 0.0
  %v6159 = vmax.f32 %v4741, 0.0
  %v6160 = vmax.f32 %v4743, 0.0
  %v6161 = vmax.f32 %v5092, 0.0
  %v6162 = vmax.f32 %v5094, 0.0
  %v6163 = vmax.f32 %v5443, 0.0
  %v6164 = vmax.f32 %v5445, 0.0
  %v6165 = vmax.f32 %v5738, 0.0
  %v6166 = vmax.f32 %v4745, 0.0
  %v6167 = vmax.f32 %v4747, 0.0
  %v6168 = vmax.f32 %v5096, 0.0
  %v6169 = vmax.f32 %v5098, 0.0
  %v6170 = vmax.f32 %v5447, 0.0
  %v6171 = vmax.f32 %v5449, 0.0
  %v6172 = vmax.f32 %v5741, 0.0
  %v6173 = vmax.f32 %v4751, 0.0
  %v6174 = vmax.f32 %v4753, 0.0
  %v6175 = vmax.f32 %v5102, 0.0
  %v6176 = vmax.f32 %v5104, 0.0
  %v6177 = vmax.f32 %v5453, 0.0
  %v6178 = vmax.f32 %v5455, 0.0
  %v6179 = vmax.f32 %v5746, 0.0
  %v6180 = vmax.f32 %v4755, 0.0
  %v6181 = vmax.f32 %v4757, 0.0
  %v6182 = vmax.f32 %v5106, 0.0
  %v6183 = vmax.f32 %v5108, 0.0
  %v6184 = vmax.f32 %v5457, 0.0
  %v6185 = vmax.f32 %v5459, 0.0
  %v6186 = vmax.f32 %v5749, 0.0
  %v6187 = vmax.f32 %v4761, 0.0
  %v6188 = vmax.f32 %v4763, 0.0
  %v6189 = vmax.f32 %v5112, 0.0
  %v6190 = vmax.f32 %v5114, 0.0
  %v6191 = vmax.f32 %v5463, 0.0
  %v6192 = vmax.f32 %v5465, 0.0
  %v6193 = vmax.f32 %v5754, 0.0
  %v6194 = vmax.f32 %v4765, 0.0
  %v6195 = vmax.f32 %v4767, 0.0
  %v6196 = vmax.f32 %v5116, 0.0
  %v6197 = vmax.f32 %v5118, 0.0
  %v6198 = vmax.f32 %v5467, 0.0
  %v6199 = vmax.f32 %v5469, 0.0
  %v6200 = vmax.f32 %v5757, 0.0
  %v6201 = vmax.f32 %v4771, 0.0
  %v6202 = vmax.f32 %v4773, 0.0
  %v6203 = vmax.f32 %v5122, 0.0
  %v6204 = vmax.f32 %v5124, 0.0
  %v6205 = vmax.f32 %v5473, 0.0
  %v6206 = vmax.f32 %v5475, 0.0
  %v6207 = vmax.f32 %v5762, 0.0
  %v6208 = vlaneseq
  %v6209 = vshrl.u32 %v6208, 7
  %v6210 = vadd.s32 %v6209, 8
  %v6211 = vadd.s32 %v6209, 16
  %v6212 = vadd.s32 %v6209, 24
  %v6213 = vadd.s32 %v6209, 32
  %v6214 = vadd.s32 %v6209, 40
  %v6215 = vadd.s32 %v6209, 48
  %v6216 = vadd.s32 %v6209, 56
  %v6217 = vadd.s32 %v6209, 64
  %v6218 = vadd.s32 %v6209, 72
  %v6219 = vadd.s32 %v6209, 80
  %v6220 = vadd.s32 %v6209, 88
  %v6221 = vadd.s32 %v6209, 96
  %v6222 = vadd.s32 %v6209, 104
  %v6223 = vadd.s32 %v6209, 112
  %v6224 = vadd.s32 %v6209, 120
  %v6225 = vadd.s32 %v6209, 128
  %v6226 = vadd.s32 %v6209, 136
  %v6227 = vadd.s32 %v6209, 144
  %v6228 = vadd.s32 %v6209, 152
  %v6229 = vadd.s32 %v6209, 160
  %v6230 = vadd.s32 %v6209, 168
  %v6231 = vadd.s32 %v6209, 176
  %v6232 = vadd.s32 %v6209, 184
  %v6233 = vadd.s32 %v6209, 192
  %v6234 = vadd.s32 %v6209, 200
  %v6235 = vadd.s32 %v6209, 208
  %v6236 = vadd.s32 %v6209, 216
  %v6237 = vadd.s32 %v6209, 224
  %v6238 = vadd.s32 %v6209, 232
  %v6239 = vadd.s32 %v6209, 240
  %v6240 = vadd.s32 %v6209, 248
  %v6241 = vadd.s32 %v6209, 256
  %v6242 = vadd.s32 %v6209, 264
  %v6243 = vadd.s32 %v6209, 272
  %v6244 = vadd.s32 %v6209, 280
  %v6245 = vadd.s32 %v6209, 288
  %v6246 = vadd.s32 %v6209, 296
  %v6247 = vadd.s32 %v6209, 304
  %v6248 = vadd.s32 %v6209, 312
  %v6249 = vadd.s32 %v6209, 320
  %v6250 = vadd.s32 %v6209, 328
  %v6251 = vadd.s32 %v6209, 336
  %v6252 = vadd.s32 %v6209, 344
  %v6253 = vadd.s32 %v6209, 352
  %v6254 = vadd.s32 %v6209, 360
  %v6255 = vadd.s32 %v6209, 368
  %v6256 = vadd.s32 %v6209, 376
  %v6257 = vadd.s32 %v6209, 384
  %v6258 = vadd.s32 %v6209, 392
  %v6259 = vadd.s32 %v6209, 400
  %v6260 = vadd.s32 %v6209, 408
  %v6261 = vadd.s32 %v6209, 416
  %v6262 = vadd.s32 %v6209, 424
  %v6263 = vadd.s32 %v6209, 432
  %v6264 = vadd.s32 %v6209, 440
  %v6265 = vadd.s32 %v6209, 448
  %v6266 = vadd.s32 %v6209, 456
  %v6267 = vadd.s32 %v6209, 464
  %v6268 = vadd.s32 %v6209, 472
  %v6269 = vadd.s32 %v6209, 480
  %v6270 = vadd.s32 %v6209, 488
  %v6271 = vadd.s32 %v6209, 496
  %s6272 = smul.u32 0, 504
  %v6273 = vstv %s6272
  %v6274 = vadd.s32 %v6209, %v6273
  %v6275 = vadd.s32 %v6210, %v6273
  %v6276 = vadd.s32 %v6211, %v6273
  %v6277 = vadd.s32 %v6212, %v6273
  %v6278 = vadd.s32 %v6213, %v6273
  %v6279 = vadd.s32 %v6214, %v6273
  %v6280 = vadd.s32 %v6215, %v6273
  %v6281 = vadd.s32 %v6216, %v6273
  %v6282 = vadd.s32 %v6217, %v6273
  %v6283 = vadd.s32 %v6218, %v6273
  %v6284 = vadd.s32 %v6219, %v6273
  %v6285 = vadd.s32 %v6220, %v6273
  %v6286 = vadd.s32 %v6221, %v6273
  %v6287 = vadd.s32 %v6222, %v6273
  %v6288 = vadd.s32 %v6223, %v6273
  %v6289 = vadd.s32 %v6224, %v6273
  %v6290 = vadd.s32 %v6225, %v6273
  %v6291 = vadd.s32 %v6226, %v6273
  %v6292 = vadd.s32 %v6227, %v6273
  %v6293 = vadd.s32 %v6228, %v6273
  %v6294 = vadd.s32 %v6229, %v6273
  %v6295 = vadd.s32 %v6230, %v6273
  %v6296 = vadd.s32 %v6231, %v6273
  %v6297 = vadd.s32 %v6232, %v6273
  %v6298 = vadd.s32 %v6233, %v6273
  %v6299 = vadd.s32 %v6234, %v6273
  %v6300 = vadd.s32 %v6235, %v6273
  %v6301 = vadd.s32 %v6236, %v6273
  %v6302 = vadd.s32 %v6237, %v6273
  %v6303 = vadd.s32 %v6238, %v6273
  %v6304 = vadd.s32 %v6239, %v6273
  %v6305 = vadd.s32 %v6240, %v6273
  %v6306 = vadd.s32 %v6241, %v6273
  %v6307 = vadd.s32 %v6242, %v6273
  %v6308 = vadd.s32 %v6243, %v6273
  %v6309 = vadd.s32 %v6244, %v6273
  %v6310 = vadd.s32 %v6245, %v6273
  %v6311 = vadd.s32 %v6246, %v6273
  %v6312 = vadd.s32 %v6247, %v6273
  %v6313 = vadd.s32 %v6248, %v6273
  %v6314 = vadd.s32 %v6249, %v6273
  %v6315 = vadd.s32 %v6250, %v6273
  %v6316 = vadd.s32 %v6251, %v6273
  %v6317 = vadd.s32 %v6252, %v6273
  %v6318 = vadd.s32 %v6253, %v6273
  %v6319 = vadd.s32 %v6254, %v6273
  %v6320 = vadd.s32 %v6255, %v6273
  %v6321 = vadd.s32 %v6256, %v6273
  %v6322 = vadd.s32 %v6257, %v6273
  %v6323 = vadd.s32 %v6258, %v6273
  %v6324 = vadd.s32 %v6259, %v6273
  %v6325 = vadd.s32 %v6260, %v6273
  %v6326 = vadd.s32 %v6261, %v6273
  %v6327 = vadd.s32 %v6262, %v6273
  %v6328 = vadd.s32 %v6263, %v6273
  %v6329 = vadd.s32 %v6264, %v6273
  %v6330 = vadd.s32 %v6265, %v6273
  %v6331 = vadd.s32 %v6266, %v6273
  %v6332 = vadd.s32 %v6267, %v6273
  %v6333 = vadd.s32 %v6268, %v6273
  %v6334 = vadd.s32 %v6269, %v6273
  %v6335 = vadd.s32 %v6270, %v6273
  %v6336 = vadd.s32 %v6271, %v6273
  %s6337 = sld [smem:[#allocation2]]
  %v6338 = vstv %s6337
  %vm6339 = vcmp.lt.s32.totalorder %v6274, %v6338
  %vm6340 = vcmp.lt.s32.totalorder %v6275, %v6338
  %vm6341 = vcmp.lt.s32.totalorder %v6276, %v6338
  %vm6342 = vcmp.lt.s32.totalorder %v6277, %v6338
  %vm6343 = vcmp.lt.s32.totalorder %v6278, %v6338
  %vm6344 = vcmp.lt.s32.totalorder %v6279, %v6338
  %vm6345 = vcmp.lt.s32.totalorder %v6280, %v6338
  %vm6346 = vcmp.lt.s32.totalorder %v6281, %v6338
  %vm6347 = vcmp.lt.s32.totalorder %v6282, %v6338
  %vm6348 = vcmp.lt.s32.totalorder %v6283, %v6338
  %vm6349 = vcmp.lt.s32.totalorder %v6284, %v6338
  %vm6350 = vcmp.lt.s32.totalorder %v6285, %v6338
  %vm6351 = vcmp.lt.s32.totalorder %v6286, %v6338
  %vm6352 = vcmp.lt.s32.totalorder %v6287, %v6338
  %vm6353 = vcmp.lt.s32.totalorder %v6288, %v6338
  %vm6354 = vcmp.lt.s32.totalorder %v6289, %v6338
  %vm6355 = vcmp.lt.s32.totalorder %v6290, %v6338
  %vm6356 = vcmp.lt.s32.totalorder %v6291, %v6338
  %vm6357 = vcmp.lt.s32.totalorder %v6292, %v6338
  %vm6358 = vcmp.lt.s32.totalorder %v6293, %v6338
  %vm6359 = vcmp.lt.s32.totalorder %v6294, %v6338
  %vm6360 = vcmp.lt.s32.totalorder %v6295, %v6338
  %vm6361 = vcmp.lt.s32.totalorder %v6296, %v6338
  %vm6362 = vcmp.lt.s32.totalorder %v6297, %v6338
  %vm6363 = vcmp.lt.s32.totalorder %v6298, %v6338
  %vm6364 = vcmp.lt.s32.totalorder %v6299, %v6338
  %vm6365 = vcmp.lt.s32.totalorder %v6300, %v6338
  %vm6366 = vcmp.lt.s32.totalorder %v6301, %v6338
  %vm6367 = vcmp.lt.s32.totalorder %v6302, %v6338
  %vm6368 = vcmp.lt.s32.totalorder %v6303, %v6338
  %vm6369 = vcmp.lt.s32.totalorder %v6304, %v6338
  %vm6370 = vcmp.lt.s32.totalorder %v6305, %v6338
  %vm6371 = vcmp.lt.s32.totalorder %v6306, %v6338
  %vm6372 = vcmp.lt.s32.totalorder %v6307, %v6338
  %vm6373 = vcmp.lt.s32.totalorder %v6308, %v6338
  %vm6374 = vcmp.lt.s32.totalorder %v6309, %v6338
  %vm6375 = vcmp.lt.s32.totalorder %v6310, %v6338
  %vm6376 = vcmp.lt.s32.totalorder %v6311, %v6338
  %vm6377 = vcmp.lt.s32.totalorder %v6312, %v6338
  %vm6378 = vcmp.lt.s32.totalorder %v6313, %v6338
  %vm6379 = vcmp.lt.s32.totalorder %v6314, %v6338
  %vm6380 = vcmp.lt.s32.totalorder %v6315, %v6338
  %vm6381 = vcmp.lt.s32.totalorder %v6316, %v6338
  %vm6382 = vcmp.lt.s32.totalorder %v6317, %v6338
  %vm6383 = vcmp.lt.s32.totalorder %v6318, %v6338
  %vm6384 = vcmp.lt.s32.totalorder %v6319, %v6338
  %vm6385 = vcmp.lt.s32.totalorder %v6320, %v6338
  %vm6386 = vcmp.lt.s32.totalorder %v6321, %v6338
  %vm6387 = vcmp.lt.s32.totalorder %v6322, %v6338
  %vm6388 = vcmp.lt.s32.totalorder %v6323, %v6338
  %vm6389 = vcmp.lt.s32.totalorder %v6324, %v6338
  %vm6390 = vcmp.lt.s32.totalorder %v6325, %v6338
  %vm6391 = vcmp.lt.s32.totalorder %v6326, %v6338
  %vm6392 = vcmp.lt.s32.totalorder %v6327, %v6338
  %vm6393 = vcmp.lt.s32.totalorder %v6328, %v6338
  %vm6394 = vcmp.lt.s32.totalorder %v6329, %v6338
  %vm6395 = vcmp.lt.s32.totalorder %v6330, %v6338
  %vm6396 = vcmp.lt.s32.totalorder %v6331, %v6338
  %vm6397 = vcmp.lt.s32.totalorder %v6332, %v6338
  %vm6398 = vcmp.lt.s32.totalorder %v6333, %v6338
  %vm6399 = vcmp.lt.s32.totalorder %v6334, %v6338
  %vm6400 = vcmp.lt.s32.totalorder %v6335, %v6338
  %vm6401 = vcmp.lt.s32.totalorder %v6336, %v6338
  %v6402 = vsel %vm6339, 1, 0
  %v6403 = vsel %vm6340, 1, 0
  %v6404 = vsel %vm6341, 1, 0
  %v6405 = vsel %vm6342, 1, 0
  %v6406 = vsel %vm6343, 1, 0
  %v6407 = vsel %vm6344, 1, 0
  %v6408 = vsel %vm6345, 1, 0
  %v6409 = vsel %vm6346, 1, 0
  %v6410 = vsel %vm6347, 1, 0
  %v6411 = vsel %vm6348, 1, 0
  %v6412 = vsel %vm6349, 1, 0
  %v6413 = vsel %vm6350, 1, 0
  %v6414 = vsel %vm6351, 1, 0
  %v6415 = vsel %vm6352, 1, 0
  %v6416 = vsel %vm6353, 1, 0
  %v6417 = vsel %vm6354, 1, 0
  %v6418 = vsel %vm6355, 1, 0
  %v6419 = vsel %vm6356, 1, 0
  %v6420 = vsel %vm6357, 1, 0
  %v6421 = vsel %vm6358, 1, 0
  %v6422 = vsel %vm6359, 1, 0
  %v6423 = vsel %vm6360, 1, 0
  %v6424 = vsel %vm6361, 1, 0
  %v6425 = vsel %vm6362, 1, 0
  %v6426 = vsel %vm6363, 1, 0
  %v6427 = vsel %vm6364, 1, 0
  %v6428 = vsel %vm6365, 1, 0
  %v6429 = vsel %vm6366, 1, 0
  %v6430 = vsel %vm6367, 1, 0
  %v6431 = vsel %vm6368, 1, 0
  %v6432 = vsel %vm6369, 1, 0
  %v6433 = vsel %vm6370, 1, 0
  %v6434 = vsel %vm6371, 1, 0
  %v6435 = vsel %vm6372, 1, 0
  %v6436 = vsel %vm6373, 1, 0
  %v6437 = vsel %vm6374, 1, 0
  %v6438 = vsel %vm6375, 1, 0
  %v6439 = vsel %vm6376, 1, 0
  %v6440 = vsel %vm6377, 1, 0
  %v6441 = vsel %vm6378, 1, 0
  %v6442 = vsel %vm6379, 1, 0
  %v6443 = vsel %vm6380, 1, 0
  %v6444 = vsel %vm6381, 1, 0
  %v6445 = vsel %vm6382, 1, 0
  %v6446 = vsel %vm6383, 1, 0
  %v6447 = vsel %vm6384, 1, 0
  %v6448 = vsel %vm6385, 1, 0
  %v6449 = vsel %vm6386, 1, 0
  %v6450 = vsel %vm6387, 1, 0
  %v6451 = vsel %vm6388, 1, 0
  %v6452 = vsel %vm6389, 1, 0
  %v6453 = vsel %vm6390, 1, 0
  %v6454 = vsel %vm6391, 1, 0
  %v6455 = vsel %vm6392, 1, 0
  %v6456 = vsel %vm6393, 1, 0
  %v6457 = vsel %vm6394, 1, 0
  %v6458 = vsel %vm6395, 1, 0
  %v6459 = vsel %vm6396, 1, 0
  %v6460 = vsel %vm6397, 1, 0
  %v6461 = vsel %vm6398, 1, 0
  %v6462 = vsel %vm6399, 1, 0
  %v6463 = vsel %vm6400, 1, 0
  %v6464 = vsel %vm6401, 1, 0
  %v6465 = vcvt.s32.f32 %v6402
  %v6466 = vcvt.s32.f32 %v6403
  %v6467 = vcvt.s32.f32 %v6404
  %v6468 = vcvt.s32.f32 %v6405
  %v6469 = vcvt.s32.f32 %v6406
  %v6470 = vcvt.s32.f32 %v6407
  %v6471 = vcvt.s32.f32 %v6408
  %v6472 = vcvt.s32.f32 %v6409
  %v6473 = vcvt.s32.f32 %v6410
  %v6474 = vcvt.s32.f32 %v6411
  %v6475 = vcvt.s32.f32 %v6412
  %v6476 = vcvt.s32.f32 %v6413
  %v6477 = vcvt.s32.f32 %v6414
  %v6478 = vcvt.s32.f32 %v6415
  %v6479 = vcvt.s32.f32 %v6416
  %v6480 = vcvt.s32.f32 %v6417
  %v6481 = vcvt.s32.f32 %v6418
  %v6482 = vcvt.s32.f32 %v6419
  %v6483 = vcvt.s32.f32 %v6420
  %v6484 = vcvt.s32.f32 %v6421
  %v6485 = vcvt.s32.f32 %v6422
  %v6486 = vcvt.s32.f32 %v6423
  %v6487 = vcvt.s32.f32 %v6424
  %v6488 = vcvt.s32.f32 %v6425
  %v6489 = vcvt.s32.f32 %v6426
  %v6490 = vcvt.s32.f32 %v6427
  %v6491 = vcvt.s32.f32 %v6428
  %v6492 = vcvt.s32.f32 %v6429
  %v6493 = vcvt.s32.f32 %v6430
  %v6494 = vcvt.s32.f32 %v6431
  %v6495 = vcvt.s32.f32 %v6432
  %v6496 = vcvt.s32.f32 %v6433
  %v6497 = vcvt.s32.f32 %v6434
  %v6498 = vcvt.s32.f32 %v6435
  %v6499 = vcvt.s32.f32 %v6436
  %v6500 = vcvt.s32.f32 %v6437
  %v6501 = vcvt.s32.f32 %v6438
  %v6502 = vcvt.s32.f32 %v6439
  %v6503 = vcvt.s32.f32 %v6440
  %v6504 = vcvt.s32.f32 %v6441
  %v6505 = vcvt.s32.f32 %v6442
  %v6506 = vcvt.s32.f32 %v6443
  %v6507 = vcvt.s32.f32 %v6444
  %v6508 = vcvt.s32.f32 %v6445
  %v6509 = vcvt.s32.f32 %v6446
  %v6510 = vcvt.s32.f32 %v6447
  %v6511 = vcvt.s32.f32 %v6448
  %v6512 = vcvt.s32.f32 %v6449
  %v6513 = vcvt.s32.f32 %v6450
  %v6514 = vcvt.s32.f32 %v6451
  %v6515 = vcvt.s32.f32 %v6452
  %v6516 = vcvt.s32.f32 %v6453
  %v6517 = vcvt.s32.f32 %v6454
  %v6518 = vcvt.s32.f32 %v6455
  %v6519 = vcvt.s32.f32 %v6456
  %v6520 = vcvt.s32.f32 %v6457
  %v6521 = vcvt.s32.f32 %v6458
  %v6522 = vcvt.s32.f32 %v6459
  %v6523 = vcvt.s32.f32 %v6460
  %v6524 = vcvt.s32.f32 %v6461
  %v6525 = vcvt.s32.f32 %v6462
  %v6526 = vcvt.s32.f32 %v6463
  %v6527 = vcvt.s32.f32 %v6464
  %v6528 = vunpack.c.l.bf16 %v31
  %v6529 = vunpack.c.h.bf16 %v31
  %v6530 = vunpack.c.l.bf16 %v32
  %v6531 = vunpack.c.h.bf16 %v32
  %v6532 = vunpack.c.l.bf16 %v33
  %v6533 = vunpack.c.h.bf16 %v33
  %v6534 = vunpack.c.l.bf16 %v34
  %v6535 = vunpack.c.l.bf16 %v35
  %v6536 = vunpack.c.h.bf16 %v35
  %v6537 = vunpack.c.l.bf16 %v36
  %v6538 = vunpack.c.h.bf16 %v36
  %v6539 = vunpack.c.l.bf16 %v37
  %v6540 = vunpack.c.h.bf16 %v37
  %v6541 = vunpack.c.l.bf16 %v38
  %v6542 = vunpack.c.l.bf16 %v39
  %v6543 = vunpack.c.h.bf16 %v39
  %v6544 = vunpack.c.l.bf16 %v40
  %v6545 = vunpack.c.h.bf16 %v40
  %v6546 = vunpack.c.l.bf16 %v41
  %v6547 = vunpack.c.h.bf16 %v41
  %v6548 = vunpack.c.l.bf16 %v42
  %v6549 = vunpack.c.l.bf16 %v43
  %v6550 = vunpack.c.h.bf16 %v43
  %v6551 = vunpack.c.l.bf16 %v44
  %v6552 = vunpack.c.h.bf16 %v44
  %v6553 = vunpack.c.l.bf16 %v45
  %v6554 = vunpack.c.h.bf16 %v45
  %v6555 = vunpack.c.l.bf16 %v46
  %v6556 = vunpack.c.l.bf16 %v47
  %v6557 = vunpack.c.h.bf16 %v47
  %v6558 = vunpack.c.l.bf16 %v48
  %v6559 = vunpack.c.h.bf16 %v48
  %v6560 = vunpack.c.l.bf16 %v49
  %v6561 = vunpack.c.h.bf16 %v49
  %v6562 = vunpack.c.l.bf16 %v50
  %v6563 = vunpack.c.l.bf16 %v51
  %v6564 = vunpack.c.h.bf16 %v51
  %v6565 = vunpack.c.l.bf16 %v52
  %v6566 = vunpack.c.h.bf16 %v52
  %v6567 = vunpack.c.l.bf16 %v53
  %v6568 = vunpack.c.h.bf16 %v53
  %v6569 = vunpack.c.l.bf16 %v54
  %v6570 = vunpack.c.l.bf16 %v55
  %v6571 = vunpack.c.h.bf16 %v55
  %v6572 = vunpack.c.l.bf16 %v56
  %v6573 = vunpack.c.h.bf16 %v56
  %v6574 = vunpack.c.l.bf16 %v57
  %v6575 = vunpack.c.h.bf16 %v57
  %v6576 = vunpack.c.l.bf16 %v58
  %v6577 = vunpack.c.l.bf16 %v59
  %v6578 = vunpack.c.h.bf16 %v59
  %v6579 = vunpack.c.l.bf16 %v60
  %v6580 = vunpack.c.h.bf16 %v60
  %v6581 = vunpack.c.l.bf16 %v61
  %v6582 = vunpack.c.h.bf16 %v61
  %v6583 = vunpack.c.l.bf16 %v62
  %v6584 = vunpack.c.l.bf16 %v63
  %v6585 = vunpack.c.h.bf16 %v63
  %v6586 = vunpack.c.l.bf16 %v64
  %v6587 = vunpack.c.h.bf16 %v64
  %v6588 = vunpack.c.l.bf16 %v65
  %v6589 = vunpack.c.h.bf16 %v65
  %v6590 = vunpack.c.l.bf16 %v66
  %v6591 = vunpack.c.l.bf16 %v67
  %v6592 = vunpack.c.h.bf16 %v67
  %v6593 = vunpack.c.l.bf16 %v68
  %v6594 = vunpack.c.h.bf16 %v68
  %v6595 = vunpack.c.l.bf16 %v69
  %v6596 = vunpack.c.h.bf16 %v69
  %v6597 = vunpack.c.l.bf16 %v70
  %v6598 = vunpack.c.l.bf16 %v71
  %v6599 = vunpack.c.h.bf16 %v71
  %v6600 = vunpack.c.l.bf16 %v72
  %v6601 = vunpack.c.h.bf16 %v72
  %v6602 = vunpack.c.l.bf16 %v73
  %v6603 = vunpack.c.h.bf16 %v73
  %v6604 = vunpack.c.l.bf16 %v74
  %v6605 = vunpack.c.l.bf16 %v75
  %v6606 = vunpack.c.h.bf16 %v75
  %v6607 = vunpack.c.l.bf16 %v76
  %v6608 = vunpack.c.h.bf16 %v76
  %v6609 = vunpack.c.l.bf16 %v77
  %v6610 = vunpack.c.h.bf16 %v77
  %v6611 = vunpack.c.l.bf16 %v78
  %v6612 = vunpack.c.l.bf16 %v79
  %v6613 = vunpack.c.h.bf16 %v79
  %v6614 = vunpack.c.l.bf16 %v80
  %v6615 = vunpack.c.h.bf16 %v80
  %v6616 = vunpack.c.l.bf16 %v81
  %v6617 = vunpack.c.h.bf16 %v81
  %v6618 = vunpack.c.l.bf16 %v82
  %v6619 = vunpack.c.l.bf16 %v83
  %v6620 = vunpack.c.h.bf16 %v83
  %v6621 = vunpack.c.l.bf16 %v84
  %v6622 = vunpack.c.h.bf16 %v84
  %v6623 = vunpack.c.l.bf16 %v85
  %v6624 = vunpack.c.h.bf16 %v85
  %v6625 = vunpack.c.l.bf16 %v86
  %v6626 = vunpack.c.l.bf16 %v87
  %v6627 = vunpack.c.h.bf16 %v87
  %v6628 = vunpack.c.l.bf16 %v88
  %v6629 = vunpack.c.h.bf16 %v88
  %v6630 = vunpack.c.l.bf16 %v89
  %v6631 = vunpack.c.h.bf16 %v89
  %v6632 = vunpack.c.l.bf16 %v90
  %v6633 = vunpack.c.l.bf16 %v91
  %v6634 = vunpack.c.h.bf16 %v91
  %v6635 = vunpack.c.l.bf16 %v92
  %v6636 = vunpack.c.h.bf16 %v92
  %v6637 = vunpack.c.l.bf16 %v93
  %v6638 = vunpack.c.h.bf16 %v93
  %v6639 = vunpack.c.l.bf16 %v94
  %v6640 = vunpack.c.l.bf16 %v95
  %v6641 = vunpack.c.h.bf16 %v95
  %v6642 = vunpack.c.l.bf16 %v96
  %v6643 = vunpack.c.h.bf16 %v96
  %v6644 = vunpack.c.l.bf16 %v97
  %v6645 = vunpack.c.h.bf16 %v97
  %v6646 = vunpack.c.l.bf16 %v98
  %v6647 = vunpack.c.l.bf16 %v99
  %v6648 = vunpack.c.h.bf16 %v99
  %v6649 = vunpack.c.l.bf16 %v100
  %v6650 = vunpack.c.h.bf16 %v100
  %v6651 = vunpack.c.l.bf16 %v101
  %v6652 = vunpack.c.h.bf16 %v101
  %v6653 = vunpack.c.l.bf16 %v102
  %v6654 = vunpack.c.l.bf16 %v103
  %v6655 = vunpack.c.h.bf16 %v103
  %v6656 = vunpack.c.l.bf16 %v104
  %v6657 = vunpack.c.h.bf16 %v104
  %v6658 = vunpack.c.l.bf16 %v105
  %v6659 = vunpack.c.h.bf16 %v105
  %v6660 = vunpack.c.l.bf16 %v106
  %v6661 = vunpack.c.l.bf16 %v107
  %v6662 = vunpack.c.h.bf16 %v107
  %v6663 = vunpack.c.l.bf16 %v108
  %v6664 = vunpack.c.h.bf16 %v108
  %v6665 = vunpack.c.l.bf16 %v109
  %v6666 = vunpack.c.h.bf16 %v109
  %v6667 = vunpack.c.l.bf16 %v110
  %v6668 = vunpack.c.l.bf16 %v111
  %v6669 = vunpack.c.h.bf16 %v111
  %v6670 = vunpack.c.l.bf16 %v112
  %v6671 = vunpack.c.h.bf16 %v112
  %v6672 = vunpack.c.l.bf16 %v113
  %v6673 = vunpack.c.h.bf16 %v113
  %v6674 = vunpack.c.l.bf16 %v114
  %v6675 = vunpack.c.l.bf16 %v115
  %v6676 = vunpack.c.h.bf16 %v115
  %v6677 = vunpack.c.l.bf16 %v116
  %v6678 = vunpack.c.h.bf16 %v116
  %v6679 = vunpack.c.l.bf16 %v117
  %v6680 = vunpack.c.h.bf16 %v117
  %v6681 = vunpack.c.l.bf16 %v118
  %v6682 = vunpack.c.l.bf16 %v119
  %v6683 = vunpack.c.h.bf16 %v119
  %v6684 = vunpack.c.l.bf16 %v120
  %v6685 = vunpack.c.h.bf16 %v120
  %v6686 = vunpack.c.l.bf16 %v121
  %v6687 = vunpack.c.h.bf16 %v121
  %v6688 = vunpack.c.l.bf16 %v122
  %v6689 = vunpack.c.l.bf16 %v123
  %v6690 = vunpack.c.h.bf16 %v123
  %v6691 = vunpack.c.l.bf16 %v124
  %v6692 = vunpack.c.h.bf16 %v124
  %v6693 = vunpack.c.l.bf16 %v125
  %v6694 = vunpack.c.h.bf16 %v125
  %v6695 = vunpack.c.l.bf16 %v126
  %v6696 = vunpack.c.l.bf16 %v127
  %v6697 = vunpack.c.h.bf16 %v127
  %v6698 = vunpack.c.l.bf16 %v128
  %v6699 = vunpack.c.h.bf16 %v128
  %v6700 = vunpack.c.l.bf16 %v129
  %v6701 = vunpack.c.h.bf16 %v129
  %v6702 = vunpack.c.l.bf16 %v130
  %v6703 = vunpack.c.l.bf16 %v131
  %v6704 = vunpack.c.h.bf16 %v131
  %v6705 = vunpack.c.l.bf16 %v132
  %v6706 = vunpack.c.h.bf16 %v132
  %v6707 = vunpack.c.l.bf16 %v133
  %v6708 = vunpack.c.h.bf16 %v133
  %v6709 = vunpack.c.l.bf16 %v134
  %v6710 = vunpack.c.l.bf16 %v135
  %v6711 = vunpack.c.h.bf16 %v135
  %v6712 = vunpack.c.l.bf16 %v136
  %v6713 = vunpack.c.h.bf16 %v136
  %v6714 = vunpack.c.l.bf16 %v137
  %v6715 = vunpack.c.h.bf16 %v137
  %v6716 = vunpack.c.l.bf16 %v138
  %v6717 = vunpack.c.l.bf16 %v139
  %v6718 = vunpack.c.h.bf16 %v139
  %v6719 = vunpack.c.l.bf16 %v140
  %v6720 = vunpack.c.h.bf16 %v140
  %v6721 = vunpack.c.l.bf16 %v141
  %v6722 = vunpack.c.h.bf16 %v141
  %v6723 = vunpack.c.l.bf16 %v142
  %v6724 = vunpack.c.l.bf16 %v143
  %v6725 = vunpack.c.h.bf16 %v143
  %v6726 = vunpack.c.l.bf16 %v144
  %v6727 = vunpack.c.h.bf16 %v144
  %v6728 = vunpack.c.l.bf16 %v145
  %v6729 = vunpack.c.h.bf16 %v145
  %v6730 = vunpack.c.l.bf16 %v146
  %v6731 = vunpack.c.l.bf16 %v147
  %v6732 = vunpack.c.h.bf16 %v147
  %v6733 = vunpack.c.l.bf16 %v148
  %v6734 = vunpack.c.h.bf16 %v148
  %v6735 = vunpack.c.l.bf16 %v149
  %v6736 = vunpack.c.h.bf16 %v149
  %v6737 = vunpack.c.l.bf16 %v150
  %v6738 = vunpack.c.l.bf16 %v151
  %v6739 = vunpack.c.h.bf16 %v151
  %v6740 = vunpack.c.l.bf16 %v152
  %v6741 = vunpack.c.h.bf16 %v152
  %v6742 = vunpack.c.l.bf16 %v153
  %v6743 = vunpack.c.h.bf16 %v153
  %v6744 = vunpack.c.l.bf16 %v154
  %v6745 = vunpack.c.l.bf16 %v155
  %v6746 = vunpack.c.h.bf16 %v155
  %v6747 = vunpack.c.l.bf16 %v156
  %v6748 = vunpack.c.h.bf16 %v156
  %v6749 = vunpack.c.l.bf16 %v157
  %v6750 = vunpack.c.h.bf16 %v157
  %v6751 = vunpack.c.l.bf16 %v158
  %v6752 = vunpack.c.l.bf16 %v159
  %v6753 = vunpack.c.h.bf16 %v159
  %v6754 = vunpack.c.l.bf16 %v160
  %v6755 = vunpack.c.h.bf16 %v160
  %v6756 = vunpack.c.l.bf16 %v161
  %v6757 = vunpack.c.h.bf16 %v161
  %v6758 = vunpack.c.l.bf16 %v162
  %v6759 = vunpack.c.l.bf16 %v163
  %v6760 = vunpack.c.h.bf16 %v163
  %v6761 = vunpack.c.l.bf16 %v164
  %v6762 = vunpack.c.h.bf16 %v164
  %v6763 = vunpack.c.l.bf16 %v165
  %v6764 = vunpack.c.h.bf16 %v165
  %v6765 = vunpack.c.l.bf16 %v166
  %v6766 = vunpack.c.l.bf16 %v167
  %v6767 = vunpack.c.h.bf16 %v167
  %v6768 = vunpack.c.l.bf16 %v168
  %v6769 = vunpack.c.h.bf16 %v168
  %v6770 = vunpack.c.l.bf16 %v169
  %v6771 = vunpack.c.h.bf16 %v169
  %v6772 = vunpack.c.l.bf16 %v170
  %v6773 = vunpack.c.l.bf16 %v171
  %v6774 = vunpack.c.h.bf16 %v171
  %v6775 = vunpack.c.l.bf16 %v172
  %v6776 = vunpack.c.h.bf16 %v172
  %v6777 = vunpack.c.l.bf16 %v173
  %v6778 = vunpack.c.h.bf16 %v173
  %v6779 = vunpack.c.l.bf16 %v174
  %v6780 = vunpack.c.l.bf16 %v175
  %v6781 = vunpack.c.h.bf16 %v175
  %v6782 = vunpack.c.l.bf16 %v176
  %v6783 = vunpack.c.h.bf16 %v176
  %v6784 = vunpack.c.l.bf16 %v177
  %v6785 = vunpack.c.h.bf16 %v177
  %v6786 = vunpack.c.l.bf16 %v178
  %v6787 = vunpack.c.l.bf16 %v179
  %v6788 = vunpack.c.h.bf16 %v179
  %v6789 = vunpack.c.l.bf16 %v180
  %v6790 = vunpack.c.h.bf16 %v180
  %v6791 = vunpack.c.l.bf16 %v181
  %v6792 = vunpack.c.h.bf16 %v181
  %v6793 = vunpack.c.l.bf16 %v182
  %v6794 = vunpack.c.l.bf16 %v183
  %v6795 = vunpack.c.h.bf16 %v183
  %v6796 = vunpack.c.l.bf16 %v184
  %v6797 = vunpack.c.h.bf16 %v184
  %v6798 = vunpack.c.l.bf16 %v185
  %v6799 = vunpack.c.h.bf16 %v185
  %v6800 = vunpack.c.l.bf16 %v186
  %v6801 = vunpack.c.l.bf16 %v187
  %v6802 = vunpack.c.h.bf16 %v187
  %v6803 = vunpack.c.l.bf16 %v188
  %v6804 = vunpack.c.h.bf16 %v188
  %v6805 = vunpack.c.l.bf16 %v189
  %v6806 = vunpack.c.h.bf16 %v189
  %v6807 = vunpack.c.l.bf16 %v190
  %v6808 = vunpack.c.l.bf16 %v191
  %v6809 = vunpack.c.h.bf16 %v191
  %v6810 = vunpack.c.l.bf16 %v192
  %v6811 = vunpack.c.h.bf16 %v192
  %v6812 = vunpack.c.l.bf16 %v193
  %v6813 = vunpack.c.h.bf16 %v193
  %v6814 = vunpack.c.l.bf16 %v194
  %v6815 = vunpack.c.l.bf16 %v195
  %v6816 = vunpack.c.h.bf16 %v195
  %v6817 = vunpack.c.l.bf16 %v196
  %v6818 = vunpack.c.h.bf16 %v196
  %v6819 = vunpack.c.l.bf16 %v197
  %v6820 = vunpack.c.h.bf16 %v197
  %v6821 = vunpack.c.l.bf16 %v198
  %v6822 = vunpack.c.l.bf16 %v199
  %v6823 = vunpack.c.h.bf16 %v199
  %v6824 = vunpack.c.l.bf16 %v200
  %v6825 = vunpack.c.h.bf16 %v200
  %v6826 = vunpack.c.l.bf16 %v201
  %v6827 = vunpack.c.h.bf16 %v201
  %v6828 = vunpack.c.l.bf16 %v202
  %v6829 = vunpack.c.l.bf16 %v203
  %v6830 = vunpack.c.h.bf16 %v203
  %v6831 = vunpack.c.l.bf16 %v204
  %v6832 = vunpack.c.h.bf16 %v204
  %v6833 = vunpack.c.l.bf16 %v205
  %v6834 = vunpack.c.h.bf16 %v205
  %v6835 = vunpack.c.l.bf16 %v206
  %v6836 = vunpack.c.l.bf16 %v207
  %v6837 = vunpack.c.h.bf16 %v207
  %v6838 = vunpack.c.l.bf16 %v208
  %v6839 = vunpack.c.h.bf16 %v208
  %v6840 = vunpack.c.l.bf16 %v209
  %v6841 = vunpack.c.h.bf16 %v209
  %v6842 = vunpack.c.l.bf16 %v210
  %v6843 = vunpack.c.l.bf16 %v211
  %v6844 = vunpack.c.h.bf16 %v211
  %v6845 = vunpack.c.l.bf16 %v212
  %v6846 = vunpack.c.h.bf16 %v212
  %v6847 = vunpack.c.l.bf16 %v213
  %v6848 = vunpack.c.h.bf16 %v213
  %v6849 = vunpack.c.l.bf16 %v214
  %v6850 = vunpack.c.l.bf16 %v215
  %v6851 = vunpack.c.h.bf16 %v215
  %v6852 = vunpack.c.l.bf16 %v216
  %v6853 = vunpack.c.h.bf16 %v216
  %v6854 = vunpack.c.l.bf16 %v217
  %v6855 = vunpack.c.h.bf16 %v217
  %v6856 = vunpack.c.l.bf16 %v218
  %v6857 = vunpack.c.l.bf16 %v219
  %v6858 = vunpack.c.h.bf16 %v219
  %v6859 = vunpack.c.l.bf16 %v220
  %v6860 = vunpack.c.h.bf16 %v220
  %v6861 = vunpack.c.l.bf16 %v221
  %v6862 = vunpack.c.h.bf16 %v221
  %v6863 = vunpack.c.l.bf16 %v222
  %v6864 = vunpack.c.l.bf16 %v223
  %v6865 = vunpack.c.h.bf16 %v223
  %v6866 = vunpack.c.l.bf16 %v224
  %v6867 = vunpack.c.h.bf16 %v224
  %v6868 = vunpack.c.l.bf16 %v225
  %v6869 = vunpack.c.h.bf16 %v225
  %v6870 = vunpack.c.l.bf16 %v226
  %v6871 = vunpack.c.l.bf16 %v227
  %v6872 = vunpack.c.h.bf16 %v227
  %v6873 = vunpack.c.l.bf16 %v228
  %v6874 = vunpack.c.h.bf16 %v228
  %v6875 = vunpack.c.l.bf16 %v229
  %v6876 = vunpack.c.h.bf16 %v229
  %v6877 = vunpack.c.l.bf16 %v230
  %v6878 = vunpack.c.l.bf16 %v231
  %v6879 = vunpack.c.h.bf16 %v231
  %v6880 = vunpack.c.l.bf16 %v232
  %v6881 = vunpack.c.h.bf16 %v232
  %v6882 = vunpack.c.l.bf16 %v233
  %v6883 = vunpack.c.h.bf16 %v233
  %v6884 = vunpack.c.l.bf16 %v234
  %v6885 = vunpack.c.l.bf16 %v235
  %v6886 = vunpack.c.h.bf16 %v235
  %v6887 = vunpack.c.l.bf16 %v236
  %v6888 = vunpack.c.h.bf16 %v236
  %v6889 = vunpack.c.l.bf16 %v237
  %v6890 = vunpack.c.h.bf16 %v237
  %v6891 = vunpack.c.l.bf16 %v238
  %v6892 = vunpack.c.l.bf16 %v239
  %v6893 = vunpack.c.h.bf16 %v239
  %v6894 = vunpack.c.l.bf16 %v240
  %v6895 = vunpack.c.h.bf16 %v240
  %v6896 = vunpack.c.l.bf16 %v241
  %v6897 = vunpack.c.h.bf16 %v241
  %v6898 = vunpack.c.l.bf16 %v242
  %v6899 = vunpack.c.l.bf16 %v243
  %v6900 = vunpack.c.h.bf16 %v243
  %v6901 = vunpack.c.l.bf16 %v244
  %v6902 = vunpack.c.h.bf16 %v244
  %v6903 = vunpack.c.l.bf16 %v245
  %v6904 = vunpack.c.h.bf16 %v245
  %v6905 = vunpack.c.l.bf16 %v246
  %v6906 = vunpack.c.l.bf16 %v247
  %v6907 = vunpack.c.h.bf16 %v247
  %v6908 = vunpack.c.l.bf16 %v248
  %v6909 = vunpack.c.h.bf16 %v248
  %v6910 = vunpack.c.l.bf16 %v249
  %v6911 = vunpack.c.h.bf16 %v249
  %v6912 = vunpack.c.l.bf16 %v250
  %v6913 = vunpack.c.l.bf16 %v251
  %v6914 = vunpack.c.h.bf16 %v251
  %v6915 = vunpack.c.l.bf16 %v252
  %v6916 = vunpack.c.h.bf16 %v252
  %v6917 = vunpack.c.l.bf16 %v253
  %v6918 = vunpack.c.h.bf16 %v253
  %v6919 = vunpack.c.l.bf16 %v254
  %v6920 = vunpack.c.l.bf16 %v255
  %v6921 = vunpack.c.h.bf16 %v255
  %v6922 = vunpack.c.l.bf16 %v256
  %v6923 = vunpack.c.h.bf16 %v256
  %v6924 = vunpack.c.l.bf16 %v257
  %v6925 = vunpack.c.h.bf16 %v257
  %v6926 = vunpack.c.l.bf16 %v258
  %v6927 = vunpack.c.l.bf16 %v259
  %v6928 = vunpack.c.h.bf16 %v259
  %v6929 = vunpack.c.l.bf16 %v260
  %v6930 = vunpack.c.h.bf16 %v260
  %v6931 = vunpack.c.l.bf16 %v261
  %v6932 = vunpack.c.h.bf16 %v261
  %v6933 = vunpack.c.l.bf16 %v262
  %v6934 = vunpack.c.l.bf16 %v263
  %v6935 = vunpack.c.h.bf16 %v263
  %v6936 = vunpack.c.l.bf16 %v264
  %v6937 = vunpack.c.h.bf16 %v264
  %v6938 = vunpack.c.l.bf16 %v265
  %v6939 = vunpack.c.h.bf16 %v265
  %v6940 = vunpack.c.l.bf16 %v266
  %v6941 = vunpack.c.l.bf16 %v267
  %v6942 = vunpack.c.h.bf16 %v267
  %v6943 = vunpack.c.l.bf16 %v268
  %v6944 = vunpack.c.h.bf16 %v268
  %v6945 = vunpack.c.l.bf16 %v269
  %v6946 = vunpack.c.h.bf16 %v269
  %v6947 = vunpack.c.l.bf16 %v270
  %v6948 = vunpack.c.l.bf16 %v271
  %v6949 = vunpack.c.h.bf16 %v271
  %v6950 = vunpack.c.l.bf16 %v272
  %v6951 = vunpack.c.h.bf16 %v272
  %v6952 = vunpack.c.l.bf16 %v273
  %v6953 = vunpack.c.h.bf16 %v273
  %v6954 = vunpack.c.l.bf16 %v274
  %v6955 = vunpack.c.l.bf16 %v275
  %v6956 = vunpack.c.h.bf16 %v275
  %v6957 = vunpack.c.l.bf16 %v276
  %v6958 = vunpack.c.h.bf16 %v276
  %v6959 = vunpack.c.l.bf16 %v277
  %v6960 = vunpack.c.h.bf16 %v277
  %v6961 = vunpack.c.l.bf16 %v278
  %v6962 = vunpack.c.l.bf16 %v279
  %v6963 = vunpack.c.h.bf16 %v279
  %v6964 = vunpack.c.l.bf16 %v280
  %v6965 = vunpack.c.h.bf16 %v280
  %v6966 = vunpack.c.l.bf16 %v281
  %v6967 = vunpack.c.h.bf16 %v281
  %v6968 = vunpack.c.l.bf16 %v282
  %v6969 = vsub.f32 %v6528, %v5767
  %v6970 = vsub.f32 %v6529, %v5768
  %v6971 = vsub.f32 %v6530, %v5769
  %v6972 = vsub.f32 %v6531, %v5770
  %v6973 = vsub.f32 %v6532, %v5771
  %v6974 = vsub.f32 %v6533, %v5772
  %v6975 = vsub.f32 %v6534, %v5773
  %v6976 = vsub.f32 %v6535, %v5774
  %v6977 = vsub.f32 %v6536, %v5775
  %v6978 = vsub.f32 %v6537, %v5776
  %v6979 = vsub.f32 %v6538, %v5777
  %v6980 = vsub.f32 %v6539, %v5778
  %v6981 = vsub.f32 %v6540, %v5779
  %v6982 = vsub.f32 %v6541, %v5780
  %v6983 = vsub.f32 %v6542, %v5781
  %v6984 = vsub.f32 %v6543, %v5782
  %v6985 = vsub.f32 %v6544, %v5783
  %v6986 = vsub.f32 %v6545, %v5784
  %v6987 = vsub.f32 %v6546, %v5785
  %v6988 = vsub.f32 %v6547, %v5786
  %v6989 = vsub.f32 %v6548, %v5787
  %v6990 = vsub.f32 %v6549, %v5788
  %v6991 = vsub.f32 %v6550, %v5789
  %v6992 = vsub.f32 %v6551, %v5790
  %v6993 = vsub.f32 %v6552, %v5791
  %v6994 = vsub.f32 %v6553, %v5792
  %v6995 = vsub.f32 %v6554, %v5793
  %v6996 = vsub.f32 %v6555, %v5794
  %v6997 = vsub.f32 %v6556, %v5795
  %v6998 = vsub.f32 %v6557, %v5796
  %v6999 = vsub.f32 %v6558, %v5797
  %v7000 = vsub.f32 %v6559, %v5798
  %v7001 = vsub.f32 %v6560, %v5799
  %v7002 = vsub.f32 %v6561, %v5800
  %v7003 = vsub.f32 %v6562, %v5801
  %v7004 = vsub.f32 %v6563, %v5802
  %v7005 = vsub.f32 %v6564, %v5803
  %v7006 = vsub.f32 %v6565, %v5804
  %v7007 = vsub.f32 %v6566, %v5805
  %v7008 = vsub.f32 %v6567, %v5806
  %v7009 = vsub.f32 %v6568, %v5807
  %v7010 = vsub.f32 %v6569, %v5808
  %v7011 = vsub.f32 %v6570, %v5809
  %v7012 = vsub.f32 %v6571, %v5810
  %v7013 = vsub.f32 %v6572, %v5811
  %v7014 = vsub.f32 %v6573, %v5812
  %v7015 = vsub.f32 %v6574, %v5813
  %v7016 = vsub.f32 %v6575, %v5814
  %v7017 = vsub.f32 %v6576, %v5815
  %v7018 = vsub.f32 %v6577, %v5816
  %v7019 = vsub.f32 %v6578, %v5817
  %v7020 = vsub.f32 %v6579, %v5818
  %v7021 = vsub.f32 %v6580, %v5819
  %v7022 = vsub.f32 %v6581, %v5820
  %v7023 = vsub.f32 %v6582, %v5821
  %v7024 = vsub.f32 %v6583, %v5822
  %v7025 = vsub.f32 %v6584, %v5823
  %v7026 = vsub.f32 %v6585, %v5824
  %v7027 = vsub.f32 %v6586, %v5825
  %v7028 = vsub.f32 %v6587, %v5826
  %v7029 = vsub.f32 %v6588, %v5827
  %v7030 = vsub.f32 %v6589, %v5828
  %v7031 = vsub.f32 %v6590, %v5829
  %v7032 = vsub.f32 %v6591, %v5830
  %v7033 = vsub.f32 %v6592, %v5831
  %v7034 = vsub.f32 %v6593, %v5832
  %v7035 = vsub.f32 %v6594, %v5833
  %v7036 = vsub.f32 %v6595, %v5834
  %v7037 = vsub.f32 %v6596, %v5835
  %v7038 = vsub.f32 %v6597, %v5836
  %v7039 = vsub.f32 %v6598, %v5837
  %v7040 = vsub.f32 %v6599, %v5838
  %v7041 = vsub.f32 %v6600, %v5839
  %v7042 = vsub.f32 %v6601, %v5840
  %v7043 = vsub.f32 %v6602, %v5841
  %v7044 = vsub.f32 %v6603, %v5842
  %v7045 = vsub.f32 %v6604, %v5843
  %v7046 = vsub.f32 %v6605, %v5844
  %v7047 = vsub.f32 %v6606, %v5845
  %v7048 = vsub.f32 %v6607, %v5846
  %v7049 = vsub.f32 %v6608, %v5847
  %v7050 = vsub.f32 %v6609, %v5848
  %v7051 = vsub.f32 %v6610, %v5849
  %v7052 = vsub.f32 %v6611, %v5850
  %v7053 = vsub.f32 %v6612, %v5851
  %v7054 = vsub.f32 %v6613, %v5852
  %v7055 = vsub.f32 %v6614, %v5853
  %v7056 = vsub.f32 %v6615, %v5854
  %v7057 = vsub.f32 %v6616, %v5855
  %v7058 = vsub.f32 %v6617, %v5856
  %v7059 = vsub.f32 %v6618, %v5857
  %v7060 = vsub.f32 %v6619, %v5858
  %v7061 = vsub.f32 %v6620, %v5859
  %v7062 = vsub.f32 %v6621, %v5860
  %v7063 = vsub.f32 %v6622, %v5861
  %v7064 = vsub.f32 %v6623, %v5862
  %v7065 = vsub.f32 %v6624, %v5863
  %v7066 = vsub.f32 %v6625, %v5864
  %v7067 = vsub.f32 %v6626, %v5865
  %v7068 = vsub.f32 %v6627, %v5866
  %v7069 = vsub.f32 %v6628, %v5867
  %v7070 = vsub.f32 %v6629, %v5868
  %v7071 = vsub.f32 %v6630, %v5869
  %v7072 = vsub.f32 %v6631, %v5870
  %v7073 = vsub.f32 %v6632, %v5871
  %v7074 = vsub.f32 %v6633, %v5872
  %v7075 = vsub.f32 %v6634, %v5873
  %v7076 = vsub.f32 %v6635, %v5874
  %v7077 = vsub.f32 %v6636, %v5875
  %v7078 = vsub.f32 %v6637, %v5876
  %v7079 = vsub.f32 %v6638, %v5877
  %v7080 = vsub.f32 %v6639, %v5878
  %v7081 = vsub.f32 %v6640, %v5879
  %v7082 = vsub.f32 %v6641, %v5880
  %v7083 = vsub.f32 %v6642, %v5881
  %v7084 = vsub.f32 %v6643, %v5882
  %v7085 = vsub.f32 %v6644, %v5883
  %v7086 = vsub.f32 %v6645, %v5884
  %v7087 = vsub.f32 %v6646, %v5885
  %v7088 = vsub.f32 %v6647, %v5886
  %v7089 = vsub.f32 %v6648, %v5887
  %v7090 = vsub.f32 %v6649, %v5888
  %v7091 = vsub.f32 %v6650, %v5889
  %v7092 = vsub.f32 %v6651, %v5890
  %v7093 = vsub.f32 %v6652, %v5891
  %v7094 = vsub.f32 %v6653, %v5892
  %v7095 = vsub.f32 %v6654, %v5893
  %v7096 = vsub.f32 %v6655, %v5894
  %v7097 = vsub.f32 %v6656, %v5895
  %v7098 = vsub.f32 %v6657, %v5896
  %v7099 = vsub.f32 %v6658, %v5897
  %v7100 = vsub.f32 %v6659, %v5898
  %v7101 = vsub.f32 %v6660, %v5899
  %v7102 = vsub.f32 %v6661, %v5900
  %v7103 = vsub.f32 %v6662, %v5901
  %v7104 = vsub.f32 %v6663, %v5902
  %v7105 = vsub.f32 %v6664, %v5903
  %v7106 = vsub.f32 %v6665, %v5904
  %v7107 = vsub.f32 %v6666, %v5905
  %v7108 = vsub.f32 %v6667, %v5906
  %v7109 = vsub.f32 %v6668, %v5907
  %v7110 = vsub.f32 %v6669, %v5908
  %v7111 = vsub.f32 %v6670, %v5909
  %v7112 = vsub.f32 %v6671, %v5910
  %v7113 = vsub.f32 %v6672, %v5911
  %v7114 = vsub.f32 %v6673, %v5912
  %v7115 = vsub.f32 %v6674, %v5913
  %v7116 = vsub.f32 %v6675, %v5914
  %v7117 = vsub.f32 %v6676, %v5915
  %v7118 = vsub.f32 %v6677, %v5916
  %v7119 = vsub.f32 %v6678, %v5917
  %v7120 = vsub.f32 %v6679, %v5918
  %v7121 = vsub.f32 %v6680, %v5919
  %v7122 = vsub.f32 %v6681, %v5920
  %v7123 = vsub.f32 %v6682, %v5921
  %v7124 = vsub.f32 %v6683, %v5922
  %v7125 = vsub.f32 %v6684, %v5923
  %v7126 = vsub.f32 %v6685, %v5924
  %v7127 = vsub.f32 %v6686, %v5925
  %v7128 = vsub.f32 %v6687, %v5926
  %v7129 = vsub.f32 %v6688, %v5927
  %v7130 = vsub.f32 %v6689, %v5928
  %v7131 = vsub.f32 %v6690, %v5929
  %v7132 = vsub.f32 %v6691, %v5930
  %v7133 = vsub.f32 %v6692, %v5931
  %v7134 = vsub.f32 %v6693, %v5932
  %v7135 = vsub.f32 %v6694, %v5933
  %v7136 = vsub.f32 %v6695, %v5934
  %v7137 = vsub.f32 %v6696, %v5935
  %v7138 = vsub.f32 %v6697, %v5936
  %v7139 = vsub.f32 %v6698, %v5937
  %v7140 = vsub.f32 %v6699, %v5938
  %v7141 = vsub.f32 %v6700, %v5939
  %v7142 = vsub.f32 %v6701, %v5940
  %v7143 = vsub.f32 %v6702, %v5941
  %v7144 = vsub.f32 %v6703, %v5942
  %v7145 = vsub.f32 %v6704, %v5943
  %v7146 = vsub.f32 %v6705, %v5944
  %v7147 = vsub.f32 %v6706, %v5945
  %v7148 = vsub.f32 %v6707, %v5946
  %v7149 = vsub.f32 %v6708, %v5947
  %v7150 = vsub.f32 %v6709, %v5948
  %v7151 = vsub.f32 %v6710, %v5949
  %v7152 = vsub.f32 %v6711, %v5950
  %v7153 = vsub.f32 %v6712, %v5951
  %v7154 = vsub.f32 %v6713, %v5952
  %v7155 = vsub.f32 %v6714, %v5953
  %v7156 = vsub.f32 %v6715, %v5954
  %v7157 = vsub.f32 %v6716, %v5955
  %v7158 = vsub.f32 %v6717, %v5956
  %v7159 = vsub.f32 %v6718, %v5957
  %v7160 = vsub.f32 %v6719, %v5958
  %v7161 = vsub.f32 %v6720, %v5959
  %v7162 = vsub.f32 %v6721, %v5960
  %v7163 = vsub.f32 %v6722, %v5961
  %v7164 = vsub.f32 %v6723, %v5962
  %v7165 = vsub.f32 %v6724, %v5963
  %v7166 = vsub.f32 %v6725, %v5964
  %v7167 = vsub.f32 %v6726, %v5965
  %v7168 = vsub.f32 %v6727, %v5966
  %v7169 = vsub.f32 %v6728, %v5967
  %v7170 = vsub.f32 %v6729, %v5968
  %v7171 = vsub.f32 %v6730, %v5969
  %v7172 = vsub.f32 %v6731, %v5970
  %v7173 = vsub.f32 %v6732, %v5971
  %v7174 = vsub.f32 %v6733, %v5972
  %v7175 = vsub.f32 %v6734, %v5973
  %v7176 = vsub.f32 %v6735, %v5974
  %v7177 = vsub.f32 %v6736, %v5975
  %v7178 = vsub.f32 %v6737, %v5976
  %v7179 = vsub.f32 %v6738, %v5977
  %v7180 = vsub.f32 %v6739, %v5978
  %v7181 = vsub.f32 %v6740, %v5979
  %v7182 = vsub.f32 %v6741, %v5980
  %v7183 = vsub.f32 %v6742, %v5981
  %v7184 = vsub.f32 %v6743, %v5982
  %v7185 = vsub.f32 %v6744, %v5983
  %v7186 = vsub.f32 %v6745, %v5984
  %v7187 = vsub.f32 %v6746, %v5985
  %v7188 = vsub.f32 %v6747, %v5986
  %v7189 = vsub.f32 %v6748, %v5987
  %v7190 = vsub.f32 %v6749, %v5988
  %v7191 = vsub.f32 %v6750, %v5989
  %v7192 = vsub.f32 %v6751, %v5990
  %v7193 = vsub.f32 %v6752, %v5991
  %v7194 = vsub.f32 %v6753, %v5992
  %v7195 = vsub.f32 %v6754, %v5993
  %v7196 = vsub.f32 %v6755, %v5994
  %v7197 = vsub.f32 %v6756, %v5995
  %v7198 = vsub.f32 %v6757, %v5996
  %v7199 = vsub.f32 %v6758, %v5997
  %v7200 = vsub.f32 %v6759, %v5998
  %v7201 = vsub.f32 %v6760, %v5999
  %v7202 = vsub.f32 %v6761, %v6000
  %v7203 = vsub.f32 %v6762, %v6001
  %v7204 = vsub.f32 %v6763, %v6002
  %v7205 = vsub.f32 %v6764, %v6003
  %v7206 = vsub.f32 %v6765, %v6004
  %v7207 = vsub.f32 %v6766, %v6005
  %v7208 = vsub.f32 %v6767, %v6006
  %v7209 = vsub.f32 %v6768, %v6007
  %v7210 = vsub.f32 %v6769, %v6008
  %v7211 = vsub.f32 %v6770, %v6009
  %v7212 = vsub.f32 %v6771, %v6010
  %v7213 = vsub.f32 %v6772, %v6011
  %v7214 = vsub.f32 %v6773, %v6012
  %v7215 = vsub.f32 %v6774, %v6013
  %v7216 = vsub.f32 %v6775, %v6014
  %v7217 = vsub.f32 %v6776, %v6015
  %v7218 = vsub.f32 %v6777, %v6016
  %v7219 = vsub.f32 %v6778, %v6017
  %v7220 = vsub.f32 %v6779, %v6018
  %v7221 = vsub.f32 %v6780, %v6019
  %v7222 = vsub.f32 %v6781, %v6020
  %v7223 = vsub.f32 %v6782, %v6021
  %v7224 = vsub.f32 %v6783, %v6022
  %v7225 = vsub.f32 %v6784, %v6023
  %v7226 = vsub.f32 %v6785, %v6024
  %v7227 = vsub.f32 %v6786, %v6025
  %v7228 = vsub.f32 %v6787, %v6026
  %v7229 = vsub.f32 %v6788, %v6027
  %v7230 = vsub.f32 %v6789, %v6028
  %v7231 = vsub.f32 %v6790, %v6029
  %v7232 = vsub.f32 %v6791, %v6030
  %v7233 = vsub.f32 %v6792, %v6031
  %v7234 = vsub.f32 %v6793, %v6032
  %v7235 = vsub.f32 %v6794, %v6033
  %v7236 = vsub.f32 %v6795, %v6034
  %v7237 = vsub.f32 %v6796, %v6035
  %v7238 = vsub.f32 %v6797, %v6036
  %v7239 = vsub.f32 %v6798, %v6037
  %v7240 = vsub.f32 %v6799, %v6038
  %v7241 = vsub.f32 %v6800, %v6039
  %v7242 = vsub.f32 %v6801, %v6040
  %v7243 = vsub.f32 %v6802, %v6041
  %v7244 = vsub.f32 %v6803, %v6042
  %v7245 = vsub.f32 %v6804, %v6043
  %v7246 = vsub.f32 %v6805, %v6044
  %v7247 = vsub.f32 %v6806, %v6045
  %v7248 = vsub.f32 %v6807, %v6046
  %v7249 = vsub.f32 %v6808, %v6047
  %v7250 = vsub.f32 %v6809, %v6048
  %v7251 = vsub.f32 %v6810, %v6049
  %v7252 = vsub.f32 %v6811, %v6050
  %v7253 = vsub.f32 %v6812, %v6051
  %v7254 = vsub.f32 %v6813, %v6052
  %v7255 = vsub.f32 %v6814, %v6053
  %v7256 = vsub.f32 %v6815, %v6054
  %v7257 = vsub.f32 %v6816, %v6055
  %v7258 = vsub.f32 %v6817, %v6056
  %v7259 = vsub.f32 %v6818, %v6057
  %v7260 = vsub.f32 %v6819, %v6058
  %v7261 = vsub.f32 %v6820, %v6059
  %v7262 = vsub.f32 %v6821, %v6060
  %v7263 = vsub.f32 %v6822, %v6061
  %v7264 = vsub.f32 %v6823, %v6062
  %v7265 = vsub.f32 %v6824, %v6063
  %v7266 = vsub.f32 %v6825, %v6064
  %v7267 = vsub.f32 %v6826, %v6065
  %v7268 = vsub.f32 %v6827, %v6066
  %v7269 = vsub.f32 %v6828, %v6067
  %v7270 = vsub.f32 %v6829, %v6068
  %v7271 = vsub.f32 %v6830, %v6069
  %v7272 = vsub.f32 %v6831, %v6070
  %v7273 = vsub.f32 %v6832, %v6071
  %v7274 = vsub.f32 %v6833, %v6072
  %v7275 = vsub.f32 %v6834, %v6073
  %v7276 = vsub.f32 %v6835, %v6074
  %v7277 = vsub.f32 %v6836, %v6075
  %v7278 = vsub.f32 %v6837, %v6076
  %v7279 = vsub.f32 %v6838, %v6077
  %v7280 = vsub.f32 %v6839, %v6078
  %v7281 = vsub.f32 %v6840, %v6079
  %v7282 = vsub.f32 %v6841, %v6080
  %v7283 = vsub.f32 %v6842, %v6081
  %v7284 = vsub.f32 %v6843, %v6082
  %v7285 = vsub.f32 %v6844, %v6083
  %v7286 = vsub.f32 %v6845, %v6084
  %v7287 = vsub.f32 %v6846, %v6085
  %v7288 = vsub.f32 %v6847, %v6086
  %v7289 = vsub.f32 %v6848, %v6087
  %v7290 = vsub.f32 %v6849, %v6088
  %v7291 = vsub.f32 %v6850, %v6089
  %v7292 = vsub.f32 %v6851, %v6090
  %v7293 = vsub.f32 %v6852, %v6091
  %v7294 = vsub.f32 %v6853, %v6092
  %v7295 = vsub.f32 %v6854, %v6093
  %v7296 = vsub.f32 %v6855, %v6094
  %v7297 = vsub.f32 %v6856, %v6095
  %v7298 = vsub.f32 %v6857, %v6096
  %v7299 = vsub.f32 %v6858, %v6097
  %v7300 = vsub.f32 %v6859, %v6098
  %v7301 = vsub.f32 %v6860, %v6099
  %v7302 = vsub.f32 %v6861, %v6100
  %v7303 = vsub.f32 %v6862, %v6101
  %v7304 = vsub.f32 %v6863, %v6102
  %v7305 = vsub.f32 %v6864, %v6103
  %v7306 = vsub.f32 %v6865, %v6104
  %v7307 = vsub.f32 %v6866, %v6105
  %v7308 = vsub.f32 %v6867, %v6106
  %v7309 = vsub.f32 %v6868, %v6107
  %v7310 = vsub.f32 %v6869, %v6108
  %v7311 = vsub.f32 %v6870, %v6109
  %v7312 = vsub.f32 %v6871, %v6110
  %v7313 = vsub.f32 %v6872, %v6111
  %v7314 = vsub.f32 %v6873, %v6112
  %v7315 = vsub.f32 %v6874, %v6113
  %v7316 = vsub.f32 %v6875, %v6114
  %v7317 = vsub.f32 %v6876, %v6115
  %v7318 = vsub.f32 %v6877, %v6116
  %v7319 = vsub.f32 %v6878, %v6117
  %v7320 = vsub.f32 %v6879, %v6118
  %v7321 = vsub.f32 %v6880, %v6119
  %v7322 = vsub.f32 %v6881, %v6120
  %v7323 = vsub.f32 %v6882, %v6121
  %v7324 = vsub.f32 %v6883, %v6122
  %v7325 = vsub.f32 %v6884, %v6123
  %v7326 = vsub.f32 %v6885, %v6124
  %v7327 = vsub.f32 %v6886, %v6125
  %v7328 = vsub.f32 %v6887, %v6126
  %v7329 = vsub.f32 %v6888, %v6127
  %v7330 = vsub.f32 %v6889, %v6128
  %v7331 = vsub.f32 %v6890, %v6129
  %v7332 = vsub.f32 %v6891, %v6130
  %v7333 = vsub.f32 %v6892, %v6131
  %v7334 = vsub.f32 %v6893, %v6132
  %v7335 = vsub.f32 %v6894, %v6133
  %v7336 = vsub.f32 %v6895, %v6134
  %v7337 = vsub.f32 %v6896, %v6135
  %v7338 = vsub.f32 %v6897, %v6136
  %v7339 = vsub.f32 %v6898, %v6137
  %v7340 = vsub.f32 %v6899, %v6138
  %v7341 = vsub.f32 %v6900, %v6139
  %v7342 = vsub.f32 %v6901, %v6140
  %v7343 = vsub.f32 %v6902, %v6141
  %v7344 = vsub.f32 %v6903, %v6142
  %v7345 = vsub.f32 %v6904, %v6143
  %v7346 = vsub.f32 %v6905, %v6144
  %v7347 = vsub.f32 %v6906, %v6145
  %v7348 = vsub.f32 %v6907, %v6146
  %v7349 = vsub.f32 %v6908, %v6147
  %v7350 = vsub.f32 %v6909, %v6148
  %v7351 = vsub.f32 %v6910, %v6149
  %v7352 = vsub.f32 %v6911, %v6150
  %v7353 = vsub.f32 %v6912, %v6151
  %v7354 = vsub.f32 %v6913, %v6152
  %v7355 = vsub.f32 %v6914, %v6153
  %v7356 = vsub.f32 %v6915, %v6154
  %v7357 = vsub.f32 %v6916, %v6155
  %v7358 = vsub.f32 %v6917, %v6156
  %v7359 = vsub.f32 %v6918, %v6157
  %v7360 = vsub.f32 %v6919, %v6158
  %v7361 = vsub.f32 %v6920, %v6159
  %v7362 = vsub.f32 %v6921, %v6160
  %v7363 = vsub.f32 %v6922, %v6161
  %v7364 = vsub.f32 %v6923, %v6162
  %v7365 = vsub.f32 %v6924, %v6163
  %v7366 = vsub.f32 %v6925, %v6164
  %v7367 = vsub.f32 %v6926, %v6165
  %v7368 = vsub.f32 %v6927, %v6166
  %v7369 = vsub.f32 %v6928, %v6167
  %v7370 = vsub.f32 %v6929, %v6168
  %v7371 = vsub.f32 %v6930, %v6169
  %v7372 = vsub.f32 %v6931, %v6170
  %v7373 = vsub.f32 %v6932, %v6171
  %v7374 = vsub.f32 %v6933, %v6172
  %v7375 = vsub.f32 %v6934, %v6173
  %v7376 = vsub.f32 %v6935, %v6174
  %v7377 = vsub.f32 %v6936, %v6175
  %v7378 = vsub.f32 %v6937, %v6176
  %v7379 = vsub.f32 %v6938, %v6177
  %v7380 = vsub.f32 %v6939, %v6178
  %v7381 = vsub.f32 %v6940, %v6179
  %v7382 = vsub.f32 %v6941, %v6180
  %v7383 = vsub.f32 %v6942, %v6181
  %v7384 = vsub.f32 %v6943, %v6182
  %v7385 = vsub.f32 %v6944, %v6183
  %v7386 = vsub.f32 %v6945, %v6184
  %v7387 = vsub.f32 %v6946, %v6185
  %v7388 = vsub.f32 %v6947, %v6186
  %v7389 = vsub.f32 %v6948, %v6187
  %v7390 = vsub.f32 %v6949, %v6188
  %v7391 = vsub.f32 %v6950, %v6189
  %v7392 = vsub.f32 %v6951, %v6190
  %v7393 = vsub.f32 %v6952, %v6191
  %v7394 = vsub.f32 %v6953, %v6192
  %v7395 = vsub.f32 %v6954, %v6193
  %v7396 = vsub.f32 %v6955, %v6194
  %v7397 = vsub.f32 %v6956, %v6195
  %v7398 = vsub.f32 %v6957, %v6196
  %v7399 = vsub.f32 %v6958, %v6197
  %v7400 = vsub.f32 %v6959, %v6198
  %v7401 = vsub.f32 %v6960, %v6199
  %v7402 = vsub.f32 %v6961, %v6200
  %v7403 = vsub.f32 %v6962, %v6201
  %v7404 = vsub.f32 %v6963, %v6202
  %v7405 = vsub.f32 %v6964, %v6203
  %v7406 = vsub.f32 %v6965, %v6204
  %v7407 = vsub.f32 %v6966, %v6205
  %v7408 = vsub.f32 %v6967, %v6206
  %v7409 = vsub.f32 %v6968, %v6207
  %v7410 = vmul.f32 %v6969, %v6465
  %v7411 = vmul.f32 %v6970, %v6465
  %v7412 = vmul.f32 %v6971, %v6465
  %v7413 = vmul.f32 %v6972, %v6465
  %v7414 = vmul.f32 %v6973, %v6465
  %v7415 = vmul.f32 %v6974, %v6465
  %v7416 = vmul.f32 %v6975, %v6465
  %v7417 = vmul.f32 %v6976, %v6466
  %v7418 = vmul.f32 %v6977, %v6466
  %v7419 = vmul.f32 %v6978, %v6466
  %v7420 = vmul.f32 %v6979, %v6466
  %v7421 = vmul.f32 %v6980, %v6466
  %v7422 = vmul.f32 %v6981, %v6466
  %v7423 = vmul.f32 %v6982, %v6466
  %v7424 = vmul.f32 %v6983, %v6467
  %v7425 = vmul.f32 %v6984, %v6467
  %v7426 = vmul.f32 %v6985, %v6467
  %v7427 = vmul.f32 %v6986, %v6467
  %v7428 = vmul.f32 %v6987, %v6467
  %v7429 = vmul.f32 %v6988, %v6467
  %v7430 = vmul.f32 %v6989, %v6467
  %v7431 = vmul.f32 %v6990, %v6468
  %v7432 = vmul.f32 %v6991, %v6468
  %v7433 = vmul.f32 %v6992, %v6468
  %v7434 = vmul.f32 %v6993, %v6468
  %v7435 = vmul.f32 %v6994, %v6468
  %v7436 = vmul.f32 %v6995, %v6468
  %v7437 = vmul.f32 %v6996, %v6468
  %v7438 = vmul.f32 %v6997, %v6469
  %v7439 = vmul.f32 %v6998, %v6469
  %v7440 = vmul.f32 %v6999, %v6469
  %v7441 = vmul.f32 %v7000, %v6469
  %v7442 = vmul.f32 %v7001, %v6469
  %v7443 = vmul.f32 %v7002, %v6469
  %v7444 = vmul.f32 %v7003, %v6469
  %v7445 = vmul.f32 %v7004, %v6470
  %v7446 = vmul.f32 %v7005, %v6470
  %v7447 = vmul.f32 %v7006, %v6470
  %v7448 = vmul.f32 %v7007, %v6470
  %v7449 = vmul.f32 %v7008, %v6470
  %v7450 = vmul.f32 %v7009, %v6470
  %v7451 = vmul.f32 %v7010, %v6470
  %v7452 = vmul.f32 %v7011, %v6471
  %v7453 = vmul.f32 %v7012, %v6471
  %v7454 = vmul.f32 %v7013, %v6471
  %v7455 = vmul.f32 %v7014, %v6471
  %v7456 = vmul.f32 %v7015, %v6471
  %v7457 = vmul.f32 %v7016, %v6471
  %v7458 = vmul.f32 %v7017, %v6471
  %v7459 = vmul.f32 %v7018, %v6472
  %v7460 = vmul.f32 %v7019, %v6472
  %v7461 = vmul.f32 %v7020, %v6472
  %v7462 = vmul.f32 %v7021, %v6472
  %v7463 = vmul.f32 %v7022, %v6472
  %v7464 = vmul.f32 %v7023, %v6472
  %v7465 = vmul.f32 %v7024, %v6472
  %v7466 = vmul.f32 %v7025, %v6473
  %v7467 = vmul.f32 %v7026, %v6473
  %v7468 = vmul.f32 %v7027, %v6473
  %v7469 = vmul.f32 %v7028, %v6473
  %v7470 = vmul.f32 %v7029, %v6473
  %v7471 = vmul.f32 %v7030, %v6473
  %v7472 = vmul.f32 %v7031, %v6473
  %v7473 = vmul.f32 %v7032, %v6474
  %v7474 = vmul.f32 %v7033, %v6474
  %v7475 = vmul.f32 %v7034, %v6474
  %v7476 = vmul.f32 %v7035, %v6474
  %v7477 = vmul.f32 %v7036, %v6474
  %v7478 = vmul.f32 %v7037, %v6474
  %v7479 = vmul.f32 %v7038, %v6474
  %v7480 = vmul.f32 %v7039, %v6475
  %v7481 = vmul.f32 %v7040, %v6475
  %v7482 = vmul.f32 %v7041, %v6475
  %v7483 = vmul.f32 %v7042, %v6475
  %v7484 = vmul.f32 %v7043, %v6475
  %v7485 = vmul.f32 %v7044, %v6475
  %v7486 = vmul.f32 %v7045, %v6475
  %v7487 = vmul.f32 %v7046, %v6476
  %v7488 = vmul.f32 %v7047, %v6476
  %v7489 = vmul.f32 %v7048, %v6476
  %v7490 = vmul.f32 %v7049, %v6476
  %v7491 = vmul.f32 %v7050, %v6476
  %v7492 = vmul.f32 %v7051, %v6476
  %v7493 = vmul.f32 %v7052, %v6476
  %v7494 = vmul.f32 %v7053, %v6477
  %v7495 = vmul.f32 %v7054, %v6477
  %v7496 = vmul.f32 %v7055, %v6477
  %v7497 = vmul.f32 %v7056, %v6477
  %v7498 = vmul.f32 %v7057, %v6477
  %v7499 = vmul.f32 %v7058, %v6477
  %v7500 = vmul.f32 %v7059, %v6477
  %v7501 = vmul.f32 %v7060, %v6478
  %v7502 = vmul.f32 %v7061, %v6478
  %v7503 = vmul.f32 %v7062, %v6478
  %v7504 = vmul.f32 %v7063, %v6478
  %v7505 = vmul.f32 %v7064, %v6478
  %v7506 = vmul.f32 %v7065, %v6478
  %v7507 = vmul.f32 %v7066, %v6478
  %v7508 = vmul.f32 %v7067, %v6479
  %v7509 = vmul.f32 %v7068, %v6479
  %v7510 = vmul.f32 %v7069, %v6479
  %v7511 = vmul.f32 %v7070, %v6479
  %v7512 = vmul.f32 %v7071, %v6479
  %v7513 = vmul.f32 %v7072, %v6479
  %v7514 = vmul.f32 %v7073, %v6479
  %v7515 = vmul.f32 %v7074, %v6480
  %v7516 = vmul.f32 %v7075, %v6480
  %v7517 = vmul.f32 %v7076, %v6480
  %v7518 = vmul.f32 %v7077, %v6480
  %v7519 = vmul.f32 %v7078, %v6480
  %v7520 = vmul.f32 %v7079, %v6480
  %v7521 = vmul.f32 %v7080, %v6480
  %v7522 = vmul.f32 %v7081, %v6481
  %v7523 = vmul.f32 %v7082, %v6481
  %v7524 = vmul.f32 %v7083, %v6481
  %v7525 = vmul.f32 %v7084, %v6481
  %v7526 = vmul.f32 %v7085, %v6481
  %v7527 = vmul.f32 %v7086, %v6481
  %v7528 = vmul.f32 %v7087, %v6481
  %v7529 = vmul.f32 %v7088, %v6482
  %v7530 = vmul.f32 %v7089, %v6482
  %v7531 = vmul.f32 %v7090, %v6482
  %v7532 = vmul.f32 %v7091, %v6482
  %v7533 = vmul.f32 %v7092, %v6482
  %v7534 = vmul.f32 %v7093, %v6482
  %v7535 = vmul.f32 %v7094, %v6482
  %v7536 = vmul.f32 %v7095, %v6483
  %v7537 = vmul.f32 %v7096, %v6483
  %v7538 = vmul.f32 %v7097, %v6483
  %v7539 = vmul.f32 %v7098, %v6483
  %v7540 = vmul.f32 %v7099, %v6483
  %v7541 = vmul.f32 %v7100, %v6483
  %v7542 = vmul.f32 %v7101, %v6483
  %v7543 = vmul.f32 %v7102, %v6484
  %v7544 = vmul.f32 %v7103, %v6484
  %v7545 = vmul.f32 %v7104, %v6484
  %v7546 = vmul.f32 %v7105, %v6484
  %v7547 = vmul.f32 %v7106, %v6484
  %v7548 = vmul.f32 %v7107, %v6484
  %v7549 = vmul.f32 %v7108, %v6484
  %v7550 = vmul.f32 %v7109, %v6485
  %v7551 = vmul.f32 %v7110, %v6485
  %v7552 = vmul.f32 %v7111, %v6485
  %v7553 = vmul.f32 %v7112, %v6485
  %v7554 = vmul.f32 %v7113, %v6485
  %v7555 = vmul.f32 %v7114, %v6485
  %v7556 = vmul.f32 %v7115, %v6485
  %v7557 = vmul.f32 %v7116, %v6486
  %v7558 = vmul.f32 %v7117, %v6486
  %v7559 = vmul.f32 %v7118, %v6486
  %v7560 = vmul.f32 %v7119, %v6486
  %v7561 = vmul.f32 %v7120, %v6486
  %v7562 = vmul.f32 %v7121, %v6486
  %v7563 = vmul.f32 %v7122, %v6486
  %v7564 = vmul.f32 %v7123, %v6487
  %v7565 = vmul.f32 %v7124, %v6487
  %v7566 = vmul.f32 %v7125, %v6487
  %v7567 = vmul.f32 %v7126, %v6487
  %v7568 = vmul.f32 %v7127, %v6487
  %v7569 = vmul.f32 %v7128, %v6487
  %v7570 = vmul.f32 %v7129, %v6487
  %v7571 = vmul.f32 %v7130, %v6488
  %v7572 = vmul.f32 %v7131, %v6488
  %v7573 = vmul.f32 %v7132, %v6488
  %v7574 = vmul.f32 %v7133, %v6488
  %v7575 = vmul.f32 %v7134, %v6488
  %v7576 = vmul.f32 %v7135, %v6488
  %v7577 = vmul.f32 %v7136, %v6488
  %v7578 = vmul.f32 %v7137, %v6489
  %v7579 = vmul.f32 %v7138, %v6489
  %v7580 = vmul.f32 %v7139, %v6489
  %v7581 = vmul.f32 %v7140, %v6489
  %v7582 = vmul.f32 %v7141, %v6489
  %v7583 = vmul.f32 %v7142, %v6489
  %v7584 = vmul.f32 %v7143, %v6489
  %v7585 = vmul.f32 %v7144, %v6490
  %v7586 = vmul.f32 %v7145, %v6490
  %v7587 = vmul.f32 %v7146, %v6490
  %v7588 = vmul.f32 %v7147, %v6490
  %v7589 = vmul.f32 %v7148, %v6490
  %v7590 = vmul.f32 %v7149, %v6490
  %v7591 = vmul.f32 %v7150, %v6490
  %v7592 = vmul.f32 %v7151, %v6491
  %v7593 = vmul.f32 %v7152, %v6491
  %v7594 = vmul.f32 %v7153, %v6491
  %v7595 = vmul.f32 %v7154, %v6491
  %v7596 = vmul.f32 %v7155, %v6491
  %v7597 = vmul.f32 %v7156, %v6491
  %v7598 = vmul.f32 %v7157, %v6491
  %v7599 = vmul.f32 %v7158, %v6492
  %v7600 = vmul.f32 %v7159, %v6492
  %v7601 = vmul.f32 %v7160, %v6492
  %v7602 = vmul.f32 %v7161, %v6492
  %v7603 = vmul.f32 %v7162, %v6492
  %v7604 = vmul.f32 %v7163, %v6492
  %v7605 = vmul.f32 %v7164, %v6492
  %v7606 = vmul.f32 %v7165, %v6493
  %v7607 = vmul.f32 %v7166, %v6493
  %v7608 = vmul.f32 %v7167, %v6493
  %v7609 = vmul.f32 %v7168, %v6493
  %v7610 = vmul.f32 %v7169, %v6493
  %v7611 = vmul.f32 %v7170, %v6493
  %v7612 = vmul.f32 %v7171, %v6493
  %v7613 = vmul.f32 %v7172, %v6494
  %v7614 = vmul.f32 %v7173, %v6494
  %v7615 = vmul.f32 %v7174, %v6494
  %v7616 = vmul.f32 %v7175, %v6494
  %v7617 = vmul.f32 %v7176, %v6494
  %v7618 = vmul.f32 %v7177, %v6494
  %v7619 = vmul.f32 %v7178, %v6494
  %v7620 = vmul.f32 %v7179, %v6495
  %v7621 = vmul.f32 %v7180, %v6495
  %v7622 = vmul.f32 %v7181, %v6495
  %v7623 = vmul.f32 %v7182, %v6495
  %v7624 = vmul.f32 %v7183, %v6495
  %v7625 = vmul.f32 %v7184, %v6495
  %v7626 = vmul.f32 %v7185, %v6495
  %v7627 = vmul.f32 %v7186, %v6496
  %v7628 = vmul.f32 %v7187, %v6496
  %v7629 = vmul.f32 %v7188, %v6496
  %v7630 = vmul.f32 %v7189, %v6496
  %v7631 = vmul.f32 %v7190, %v6496
  %v7632 = vmul.f32 %v7191, %v6496
  %v7633 = vmul.f32 %v7192, %v6496
  %v7634 = vmul.f32 %v7193, %v6497
  %v7635 = vmul.f32 %v7194, %v6497
  %v7636 = vmul.f32 %v7195, %v6497
  %v7637 = vmul.f32 %v7196, %v6497
  %v7638 = vmul.f32 %v7197, %v6497
  %v7639 = vmul.f32 %v7198, %v6497
  %v7640 = vmul.f32 %v7199, %v6497
  %v7641 = vmul.f32 %v7200, %v6498
  %v7642 = vmul.f32 %v7201, %v6498
  %v7643 = vmul.f32 %v7202, %v6498
  %v7644 = vmul.f32 %v7203, %v6498
  %v7645 = vmul.f32 %v7204, %v6498
  %v7646 = vmul.f32 %v7205, %v6498
  %v7647 = vmul.f32 %v7206, %v6498
  %v7648 = vmul.f32 %v7207, %v6499
  %v7649 = vmul.f32 %v7208, %v6499
  %v7650 = vmul.f32 %v7209, %v6499
  %v7651 = vmul.f32 %v7210, %v6499
  %v7652 = vmul.f32 %v7211, %v6499
  %v7653 = vmul.f32 %v7212, %v6499
  %v7654 = vmul.f32 %v7213, %v6499
  %v7655 = vmul.f32 %v7214, %v6500
  %v7656 = vmul.f32 %v7215, %v6500
  %v7657 = vmul.f32 %v7216, %v6500
  %v7658 = vmul.f32 %v7217, %v6500
  %v7659 = vmul.f32 %v7218, %v6500
  %v7660 = vmul.f32 %v7219, %v6500
  %v7661 = vmul.f32 %v7220, %v6500
  %v7662 = vmul.f32 %v7221, %v6501
  %v7663 = vmul.f32 %v7222, %v6501
  %v7664 = vmul.f32 %v7223, %v6501
  %v7665 = vmul.f32 %v7224, %v6501
  %v7666 = vmul.f32 %v7225, %v6501
  %v7667 = vmul.f32 %v7226, %v6501
  %v7668 = vmul.f32 %v7227, %v6501
  %v7669 = vmul.f32 %v7228, %v6502
  %v7670 = vmul.f32 %v7229, %v6502
  %v7671 = vmul.f32 %v7230, %v6502
  %v7672 = vmul.f32 %v7231, %v6502
  %v7673 = vmul.f32 %v7232, %v6502
  %v7674 = vmul.f32 %v7233, %v6502
  %v7675 = vmul.f32 %v7234, %v6502
  %v7676 = vmul.f32 %v7235, %v6503
  %v7677 = vmul.f32 %v7236, %v6503
  %v7678 = vmul.f32 %v7237, %v6503
  %v7679 = vmul.f32 %v7238, %v6503
  %v7680 = vmul.f32 %v7239, %v6503
  %v7681 = vmul.f32 %v7240, %v6503
  %v7682 = vmul.f32 %v7241, %v6503
  %v7683 = vmul.f32 %v7242, %v6504
  %v7684 = vmul.f32 %v7243, %v6504
  %v7685 = vmul.f32 %v7244, %v6504
  %v7686 = vmul.f32 %v7245, %v6504
  %v7687 = vmul.f32 %v7246, %v6504
  %v7688 = vmul.f32 %v7247, %v6504
  %v7689 = vmul.f32 %v7248, %v6504
  %v7690 = vmul.f32 %v7249, %v6505
  %v7691 = vmul.f32 %v7250, %v6505
  %v7692 = vmul.f32 %v7251, %v6505
  %v7693 = vmul.f32 %v7252, %v6505
  %v7694 = vmul.f32 %v7253, %v6505
  %v7695 = vmul.f32 %v7254, %v6505
  %v7696 = vmul.f32 %v7255, %v6505
  %v7697 = vmul.f32 %v7256, %v6506
  %v7698 = vmul.f32 %v7257, %v6506
  %v7699 = vmul.f32 %v7258, %v6506
  %v7700 = vmul.f32 %v7259, %v6506
  %v7701 = vmul.f32 %v7260, %v6506
  %v7702 = vmul.f32 %v7261, %v6506
  %v7703 = vmul.f32 %v7262, %v6506
  %v7704 = vmul.f32 %v7263, %v6507
  %v7705 = vmul.f32 %v7264, %v6507
  %v7706 = vmul.f32 %v7265, %v6507
  %v7707 = vmul.f32 %v7266, %v6507
  %v7708 = vmul.f32 %v7267, %v6507
  %v7709 = vmul.f32 %v7268, %v6507
  %v7710 = vmul.f32 %v7269, %v6507
  %v7711 = vmul.f32 %v7270, %v6508
  %v7712 = vmul.f32 %v7271, %v6508
  %v7713 = vmul.f32 %v7272, %v6508
  %v7714 = vmul.f32 %v7273, %v6508
  %v7715 = vmul.f32 %v7274, %v6508
  %v7716 = vmul.f32 %v7275, %v6508
  %v7717 = vmul.f32 %v7276, %v6508
  %v7718 = vmul.f32 %v7277, %v6509
  %v7719 = vmul.f32 %v7278, %v6509
  %v7720 = vmul.f32 %v7279, %v6509
  %v7721 = vmul.f32 %v7280, %v6509
  %v7722 = vmul.f32 %v7281, %v6509
  %v7723 = vmul.f32 %v7282, %v6509
  %v7724 = vmul.f32 %v7283, %v6509
  %v7725 = vmul.f32 %v7284, %v6510
  %v7726 = vmul.f32 %v7285, %v6510
  %v7727 = vmul.f32 %v7286, %v6510
  %v7728 = vmul.f32 %v7287, %v6510
  %v7729 = vmul.f32 %v7288, %v6510
  %v7730 = vmul.f32 %v7289, %v6510
  %v7731 = vmul.f32 %v7290, %v6510
  %v7732 = vmul.f32 %v7291, %v6511
  %v7733 = vmul.f32 %v7292, %v6511
  %v7734 = vmul.f32 %v7293, %v6511
  %v7735 = vmul.f32 %v7294, %v6511
  %v7736 = vmul.f32 %v7295, %v6511
  %v7737 = vmul.f32 %v7296, %v6511
  %v7738 = vmul.f32 %v7297, %v6511
  %v7739 = vmul.f32 %v7298, %v6512
  %v7740 = vmul.f32 %v7299, %v6512
  %v7741 = vmul.f32 %v7300, %v6512
  %v7742 = vmul.f32 %v7301, %v6512
  %v7743 = vmul.f32 %v7302, %v6512
  %v7744 = vmul.f32 %v7303, %v6512
  %v7745 = vmul.f32 %v7304, %v6512
  %v7746 = vmul.f32 %v7305, %v6513
  %v7747 = vmul.f32 %v7306, %v6513
  %v7748 = vmul.f32 %v7307, %v6513
  %v7749 = vmul.f32 %v7308, %v6513
  %v7750 = vmul.f32 %v7309, %v6513
  %v7751 = vmul.f32 %v7310, %v6513
  %v7752 = vmul.f32 %v7311, %v6513
  %v7753 = vmul.f32 %v7312, %v6514
  %v7754 = vmul.f32 %v7313, %v6514
  %v7755 = vmul.f32 %v7314, %v6514
  %v7756 = vmul.f32 %v7315, %v6514
  %v7757 = vmul.f32 %v7316, %v6514
  %v7758 = vmul.f32 %v7317, %v6514
  %v7759 = vmul.f32 %v7318, %v6514
  %v7760 = vmul.f32 %v7319, %v6515
  %v7761 = vmul.f32 %v7320, %v6515
  %v7762 = vmul.f32 %v7321, %v6515
  %v7763 = vmul.f32 %v7322, %v6515
  %v7764 = vmul.f32 %v7323, %v6515
  %v7765 = vmul.f32 %v7324, %v6515
  %v7766 = vmul.f32 %v7325, %v6515
  %v7767 = vmul.f32 %v7326, %v6516
  %v7768 = vmul.f32 %v7327, %v6516
  %v7769 = vmul.f32 %v7328, %v6516
  %v7770 = vmul.f32 %v7329, %v6516
  %v7771 = vmul.f32 %v7330, %v6516
  %v7772 = vmul.f32 %v7331, %v6516
  %v7773 = vmul.f32 %v7332, %v6516
  %v7774 = vmul.f32 %v7333, %v6517
  %v7775 = vmul.f32 %v7334, %v6517
  %v7776 = vmul.f32 %v7335, %v6517
  %v7777 = vmul.f32 %v7336, %v6517
  %v7778 = vmul.f32 %v7337, %v6517
  %v7779 = vmul.f32 %v7338, %v6517
  %v7780 = vmul.f32 %v7339, %v6517
  %v7781 = vmul.f32 %v7340, %v6518
  %v7782 = vmul.f32 %v7341, %v6518
  %v7783 = vmul.f32 %v7342, %v6518
  %v7784 = vmul.f32 %v7343, %v6518
  %v7785 = vmul.f32 %v7344, %v6518
  %v7786 = vmul.f32 %v7345, %v6518
  %v7787 = vmul.f32 %v7346, %v6518
  %v7788 = vmul.f32 %v7347, %v6519
  %v7789 = vmul.f32 %v7348, %v6519
  %v7790 = vmul.f32 %v7349, %v6519
  %v7791 = vmul.f32 %v7350, %v6519
  %v7792 = vmul.f32 %v7351, %v6519
  %v7793 = vmul.f32 %v7352, %v6519
  %v7794 = vmul.f32 %v7353, %v6519
  %v7795 = vmul.f32 %v7354, %v6520
  %v7796 = vmul.f32 %v7355, %v6520
  %v7797 = vmul.f32 %v7356, %v6520
  %v7798 = vmul.f32 %v7357, %v6520
  %v7799 = vmul.f32 %v7358, %v6520
  %v7800 = vmul.f32 %v7359, %v6520
  %v7801 = vmul.f32 %v7360, %v6520
  %v7802 = vmul.f32 %v7361, %v6521
  %v7803 = vmul.f32 %v7362, %v6521
  %v7804 = vmul.f32 %v7363, %v6521
  %v7805 = vmul.f32 %v7364, %v6521
  %v7806 = vmul.f32 %v7365, %v6521
  %v7807 = vmul.f32 %v7366, %v6521
  %v7808 = vmul.f32 %v7367, %v6521
  %v7809 = vmul.f32 %v7368, %v6522
  %v7810 = vmul.f32 %v7369, %v6522
  %v7811 = vmul.f32 %v7370, %v6522
  %v7812 = vmul.f32 %v7371, %v6522
  %v7813 = vmul.f32 %v7372, %v6522
  %v7814 = vmul.f32 %v7373, %v6522
  %v7815 = vmul.f32 %v7374, %v6522
  %v7816 = vmul.f32 %v7375, %v6523
  %v7817 = vmul.f32 %v7376, %v6523
  %v7818 = vmul.f32 %v7377, %v6523
  %v7819 = vmul.f32 %v7378, %v6523
  %v7820 = vmul.f32 %v7379, %v6523
  %v7821 = vmul.f32 %v7380, %v6523
  %v7822 = vmul.f32 %v7381, %v6523
  %v7823 = vmul.f32 %v7382, %v6524
  %v7824 = vmul.f32 %v7383, %v6524
  %v7825 = vmul.f32 %v7384, %v6524
  %v7826 = vmul.f32 %v7385, %v6524
  %v7827 = vmul.f32 %v7386, %v6524
  %v7828 = vmul.f32 %v7387, %v6524
  %v7829 = vmul.f32 %v7388, %v6524
  %v7830 = vmul.f32 %v7389, %v6525
  %v7831 = vmul.f32 %v7390, %v6525
  %v7832 = vmul.f32 %v7391, %v6525
  %v7833 = vmul.f32 %v7392, %v6525
  %v7834 = vmul.f32 %v7393, %v6525
  %v7835 = vmul.f32 %v7394, %v6525
  %v7836 = vmul.f32 %v7395, %v6525
  %v7837 = vmul.f32 %v7396, %v6526
  %v7838 = vmul.f32 %v7397, %v6526
  %v7839 = vmul.f32 %v7398, %v6526
  %v7840 = vmul.f32 %v7399, %v6526
  %v7841 = vmul.f32 %v7400, %v6526
  %v7842 = vmul.f32 %v7401, %v6526
  %v7843 = vmul.f32 %v7402, %v6526
  %v7844 = vmul.f32 %v7403, %v6527
  %v7845 = vmul.f32 %v7404, %v6527
  %v7846 = vmul.f32 %v7405, %v6527
  %v7847 = vmul.f32 %v7406, %v6527
  %v7848 = vmul.f32 %v7407, %v6527
  %v7849 = vmul.f32 %v7408, %v6527
  %v7850 = vmul.f32 %v7409, %v6527
  %v7851 = vmul.f32 %v7410, %v7410
  %v7852 = vmul.f32 %v7411, %v7411
  %v7853 = vmul.f32 %v7412, %v7412
  %v7854 = vmul.f32 %v7413, %v7413
  %v7855 = vmul.f32 %v7414, %v7414
  %v7856 = vmul.f32 %v7415, %v7415
  %v7857 = vmul.f32 %v7416, %v7416
  %v7858 = vmul.f32 %v7417, %v7417
  %v7859 = vmul.f32 %v7418, %v7418
  %v7860 = vmul.f32 %v7419, %v7419
  %v7861 = vmul.f32 %v7420, %v7420
  %v7862 = vmul.f32 %v7421, %v7421
  %v7863 = vmul.f32 %v7422, %v7422
  %v7864 = vmul.f32 %v7423, %v7423
  %v7865 = vmul.f32 %v7424, %v7424
  %v7866 = vmul.f32 %v7425, %v7425
  %v7867 = vmul.f32 %v7426, %v7426
  %v7868 = vmul.f32 %v7427, %v7427
  %v7869 = vmul.f32 %v7428, %v7428
  %v7870 = vmul.f32 %v7429, %v7429
  %v7871 = vmul.f32 %v7430, %v7430
  %v7872 = vmul.f32 %v7431, %v7431
  %v7873 = vmul.f32 %v7432, %v7432
  %v7874 = vmul.f32 %v7433, %v7433
  %v7875 = vmul.f32 %v7434, %v7434
  %v7876 = vmul.f32 %v7435, %v7435
  %v7877 = vmul.f32 %v7436, %v7436
  %v7878 = vmul.f32 %v7437, %v7437
  %v7879 = vmul.f32 %v7438, %v7438
  %v7880 = vmul.f32 %v7439, %v7439
  %v7881 = vmul.f32 %v7440, %v7440
  %v7882 = vmul.f32 %v7441, %v7441
  %v7883 = vmul.f32 %v7442, %v7442
  %v7884 = vmul.f32 %v7443, %v7443
  %v7885 = vmul.f32 %v7444, %v7444
  %v7886 = vmul.f32 %v7445, %v7445
  %v7887 = vmul.f32 %v7446, %v7446
  %v7888 = vmul.f32 %v7447, %v7447
  %v7889 = vmul.f32 %v7448, %v7448
  %v7890 = vmul.f32 %v7449, %v7449
  %v7891 = vmul.f32 %v7450, %v7450
  %v7892 = vmul.f32 %v7451, %v7451
  %v7893 = vmul.f32 %v7452, %v7452
  %v7894 = vmul.f32 %v7453, %v7453
  %v7895 = vmul.f32 %v7454, %v7454
  %v7896 = vmul.f32 %v7455, %v7455
  %v7897 = vmul.f32 %v7456, %v7456
  %v7898 = vmul.f32 %v7457, %v7457
  %v7899 = vmul.f32 %v7458, %v7458
  %v7900 = vmul.f32 %v7459, %v7459
  %v7901 = vmul.f32 %v7460, %v7460
  %v7902 = vmul.f32 %v7461, %v7461
  %v7903 = vmul.f32 %v7462, %v7462
  %v7904 = vmul.f32 %v7463, %v7463
  %v7905 = vmul.f32 %v7464, %v7464
  %v7906 = vmul.f32 %v7465, %v7465
  %v7907 = vmul.f32 %v7466, %v7466
  %v7908 = vmul.f32 %v7467, %v7467
  %v7909 = vmul.f32 %v7468, %v7468
  %v7910 = vmul.f32 %v7469, %v7469
  %v7911 = vmul.f32 %v7470, %v7470
  %v7912 = vmul.f32 %v7471, %v7471
  %v7913 = vmul.f32 %v7472, %v7472
  %v7914 = vmul.f32 %v7473, %v7473
  %v7915 = vmul.f32 %v7474, %v7474
  %v7916 = vmul.f32 %v7475, %v7475
  %v7917 = vmul.f32 %v7476, %v7476
  %v7918 = vmul.f32 %v7477, %v7477
  %v7919 = vmul.f32 %v7478, %v7478
  %v7920 = vmul.f32 %v7479, %v7479
  %v7921 = vmul.f32 %v7480, %v7480
  %v7922 = vmul.f32 %v7481, %v7481
  %v7923 = vmul.f32 %v7482, %v7482
  %v7924 = vmul.f32 %v7483, %v7483
  %v7925 = vmul.f32 %v7484, %v7484
  %v7926 = vmul.f32 %v7485, %v7485
  %v7927 = vmul.f32 %v7486, %v7486
  %v7928 = vmul.f32 %v7487, %v7487
  %v7929 = vmul.f32 %v7488, %v7488
  %v7930 = vmul.f32 %v7489, %v7489
  %v7931 = vmul.f32 %v7490, %v7490
  %v7932 = vmul.f32 %v7491, %v7491
  %v7933 = vmul.f32 %v7492, %v7492
  %v7934 = vmul.f32 %v7493, %v7493
  %v7935 = vmul.f32 %v7494, %v7494
  %v7936 = vmul.f32 %v7495, %v7495
  %v7937 = vmul.f32 %v7496, %v7496
  %v7938 = vmul.f32 %v7497, %v7497
  %v7939 = vmul.f32 %v7498, %v7498
  %v7940 = vmul.f32 %v7499, %v7499
  %v7941 = vmul.f32 %v7500, %v7500
  %v7942 = vmul.f32 %v7501, %v7501
  %v7943 = vmul.f32 %v7502, %v7502
  %v7944 = vmul.f32 %v7503, %v7503
  %v7945 = vmul.f32 %v7504, %v7504
  %v7946 = vmul.f32 %v7505, %v7505
  %v7947 = vmul.f32 %v7506, %v7506
  %v7948 = vmul.f32 %v7507, %v7507
  %v7949 = vmul.f32 %v7508, %v7508
  %v7950 = vmul.f32 %v7509, %v7509
  %v7951 = vmul.f32 %v7510, %v7510
  %v7952 = vmul.f32 %v7511, %v7511
  %v7953 = vmul.f32 %v7512, %v7512
  %v7954 = vmul.f32 %v7513, %v7513
  %v7955 = vmul.f32 %v7514, %v7514
  %v7956 = vmul.f32 %v7515, %v7515
  %v7957 = vmul.f32 %v7516, %v7516
  %v7958 = vmul.f32 %v7517, %v7517
  %v7959 = vmul.f32 %v7518, %v7518
  %v7960 = vmul.f32 %v7519, %v7519
  %v7961 = vmul.f32 %v7520, %v7520
  %v7962 = vmul.f32 %v7521, %v7521
  %v7963 = vmul.f32 %v7522, %v7522
  %v7964 = vmul.f32 %v7523, %v7523
  %v7965 = vmul.f32 %v7524, %v7524
  %v7966 = vmul.f32 %v7525, %v7525
  %v7967 = vmul.f32 %v7526, %v7526
  %v7968 = vmul.f32 %v7527, %v7527
  %v7969 = vmul.f32 %v7528, %v7528
  %v7970 = vmul.f32 %v7529, %v7529
  %v7971 = vmul.f32 %v7530, %v7530
  %v7972 = vmul.f32 %v7531, %v7531
  %v7973 = vmul.f32 %v7532, %v7532
  %v7974 = vmul.f32 %v7533, %v7533
  %v7975 = vmul.f32 %v7534, %v7534
  %v7976 = vmul.f32 %v7535, %v7535
  %v7977 = vmul.f32 %v7536, %v7536
  %v7978 = vmul.f32 %v7537, %v7537
  %v7979 = vmul.f32 %v7538, %v7538
  %v7980 = vmul.f32 %v7539, %v7539
  %v7981 = vmul.f32 %v7540, %v7540
  %v7982 = vmul.f32 %v7541, %v7541
  %v7983 = vmul.f32 %v7542, %v7542
  %v7984 = vmul.f32 %v7543, %v7543
  %v7985 = vmul.f32 %v7544, %v7544
  %v7986 = vmul.f32 %v7545, %v7545
  %v7987 = vmul.f32 %v7546, %v7546
  %v7988 = vmul.f32 %v7547, %v7547
  %v7989 = vmul.f32 %v7548, %v7548
  %v7990 = vmul.f32 %v7549, %v7549
  %v7991 = vmul.f32 %v7550, %v7550
  %v7992 = vmul.f32 %v7551, %v7551
  %v7993 = vmul.f32 %v7552, %v7552
  %v7994 = vmul.f32 %v7553, %v7553
  %v7995 = vmul.f32 %v7554, %v7554
  %v7996 = vmul.f32 %v7555, %v7555
  %v7997 = vmul.f32 %v7556, %v7556
  %v7998 = vmul.f32 %v7557, %v7557
  %v7999 = vmul.f32 %v7558, %v7558
  %v8000 = vmul.f32 %v7559, %v7559
  %v8001 = vmul.f32 %v7560, %v7560
  %v8002 = vmul.f32 %v7561, %v7561
  %v8003 = vmul.f32 %v7562, %v7562
  %v8004 = vmul.f32 %v7563, %v7563
  %v8005 = vmul.f32 %v7564, %v7564
  %v8006 = vmul.f32 %v7565, %v7565
  %v8007 = vmul.f32 %v7566, %v7566
  %v8008 = vmul.f32 %v7567, %v7567
  %v8009 = vmul.f32 %v7568, %v7568
  %v8010 = vmul.f32 %v7569, %v7569
  %v8011 = vmul.f32 %v7570, %v7570
  %v8012 = vmul.f32 %v7571, %v7571
  %v8013 = vmul.f32 %v7572, %v7572
  %v8014 = vmul.f32 %v7573, %v7573
  %v8015 = vmul.f32 %v7574, %v7574
  %v8016 = vmul.f32 %v7575, %v7575
  %v8017 = vmul.f32 %v7576, %v7576
  %v8018 = vmul.f32 %v7577, %v7577
  %v8019 = vmul.f32 %v7578, %v7578
  %v8020 = vmul.f32 %v7579, %v7579
  %v8021 = vmul.f32 %v7580, %v7580
  %v8022 = vmul.f32 %v7581, %v7581
  %v8023 = vmul.f32 %v7582, %v7582
  %v8024 = vmul.f32 %v7583, %v7583
  %v8025 = vmul.f32 %v7584, %v7584
  %v8026 = vmul.f32 %v7585, %v7585
  %v8027 = vmul.f32 %v7586, %v7586
  %v8028 = vmul.f32 %v7587, %v7587
  %v8029 = vmul.f32 %v7588, %v7588
  %v8030 = vmul.f32 %v7589, %v7589
  %v8031 = vmul.f32 %v7590, %v7590
  %v8032 = vmul.f32 %v7591, %v7591
  %v8033 = vmul.f32 %v7592, %v7592
  %v8034 = vmul.f32 %v7593, %v7593
  %v8035 = vmul.f32 %v7594, %v7594
  %v8036 = vmul.f32 %v7595, %v7595
  %v8037 = vmul.f32 %v7596, %v7596
  %v8038 = vmul.f32 %v7597, %v7597
  %v8039 = vmul.f32 %v7598, %v7598
  %v8040 = vmul.f32 %v7599, %v7599
  %v8041 = vmul.f32 %v7600, %v7600
  %v8042 = vmul.f32 %v7601, %v7601
  %v8043 = vmul.f32 %v7602, %v7602
  %v8044 = vmul.f32 %v7603, %v7603
  %v8045 = vmul.f32 %v7604, %v7604
  %v8046 = vmul.f32 %v7605, %v7605
  %v8047 = vmul.f32 %v7606, %v7606
  %v8048 = vmul.f32 %v7607, %v7607
  %v8049 = vmul.f32 %v7608, %v7608
  %v8050 = vmul.f32 %v7609, %v7609
  %v8051 = vmul.f32 %v7610, %v7610
  %v8052 = vmul.f32 %v7611, %v7611
  %v8053 = vmul.f32 %v7612, %v7612
  %v8054 = vmul.f32 %v7613, %v7613
  %v8055 = vmul.f32 %v7614, %v7614
  %v8056 = vmul.f32 %v7615, %v7615
  %v8057 = vmul.f32 %v7616, %v7616
  %v8058 = vmul.f32 %v7617, %v7617
  %v8059 = vmul.f32 %v7618, %v7618
  %v8060 = vmul.f32 %v7619, %v7619
  %v8061 = vmul.f32 %v7620, %v7620
  %v8062 = vmul.f32 %v7621, %v7621
  %v8063 = vmul.f32 %v7622, %v7622
  %v8064 = vmul.f32 %v7623, %v7623
  %v8065 = vmul.f32 %v7624, %v7624
  %v8066 = vmul.f32 %v7625, %v7625
  %v8067 = vmul.f32 %v7626, %v7626
  %v8068 = vmul.f32 %v7627, %v7627
  %v8069 = vmul.f32 %v7628, %v7628
  %v8070 = vmul.f32 %v7629, %v7629
  %v8071 = vmul.f32 %v7630, %v7630
  %v8072 = vmul.f32 %v7631, %v7631
  %v8073 = vmul.f32 %v7632, %v7632
  %v8074 = vmul.f32 %v7633, %v7633
  %v8075 = vmul.f32 %v7634, %v7634
  %v8076 = vmul.f32 %v7635, %v7635
  %v8077 = vmul.f32 %v7636, %v7636
  %v8078 = vmul.f32 %v7637, %v7637
  %v8079 = vmul.f32 %v7638, %v7638
  %v8080 = vmul.f32 %v7639, %v7639
  %v8081 = vmul.f32 %v7640, %v7640
  %v8082 = vmul.f32 %v7641, %v7641
  %v8083 = vmul.f32 %v7642, %v7642
  %v8084 = vmul.f32 %v7643, %v7643
  %v8085 = vmul.f32 %v7644, %v7644
  %v8086 = vmul.f32 %v7645, %v7645
  %v8087 = vmul.f32 %v7646, %v7646
  %v8088 = vmul.f32 %v7647, %v7647
  %v8089 = vmul.f32 %v7648, %v7648
  %v8090 = vmul.f32 %v7649, %v7649
  %v8091 = vmul.f32 %v7650, %v7650
  %v8092 = vmul.f32 %v7651, %v7651
  %v8093 = vmul.f32 %v7652, %v7652
  %v8094 = vmul.f32 %v7653, %v7653
  %v8095 = vmul.f32 %v7654, %v7654
  %v8096 = vmul.f32 %v7655, %v7655
  %v8097 = vmul.f32 %v7656, %v7656
  %v8098 = vmul.f32 %v7657, %v7657
  %v8099 = vmul.f32 %v7658, %v7658
  %v8100 = vmul.f32 %v7659, %v7659
  %v8101 = vmul.f32 %v7660, %v7660
  %v8102 = vmul.f32 %v7661, %v7661
  %v8103 = vmul.f32 %v7662, %v7662
  %v8104 = vmul.f32 %v7663, %v7663
  %v8105 = vmul.f32 %v7664, %v7664
  %v8106 = vmul.f32 %v7665, %v7665
  %v8107 = vmul.f32 %v7666, %v7666
  %v8108 = vmul.f32 %v7667, %v7667
  %v8109 = vmul.f32 %v7668, %v7668
  %v8110 = vmul.f32 %v7669, %v7669
  %v8111 = vmul.f32 %v7670, %v7670
  %v8112 = vmul.f32 %v7671, %v7671
  %v8113 = vmul.f32 %v7672, %v7672
  %v8114 = vmul.f32 %v7673, %v7673
  %v8115 = vmul.f32 %v7674, %v7674
  %v8116 = vmul.f32 %v7675, %v7675
  %v8117 = vmul.f32 %v7676, %v7676
  %v8118 = vmul.f32 %v7677, %v7677
  %v8119 = vmul.f32 %v7678, %v7678
  %v8120 = vmul.f32 %v7679, %v7679
  %v8121 = vmul.f32 %v7680, %v7680
  %v8122 = vmul.f32 %v7681, %v7681
  %v8123 = vmul.f32 %v7682, %v7682
  %v8124 = vmul.f32 %v7683, %v7683
  %v8125 = vmul.f32 %v7684, %v7684
  %v8126 = vmul.f32 %v7685, %v7685
  %v8127 = vmul.f32 %v7686, %v7686
  %v8128 = vmul.f32 %v7687, %v7687
  %v8129 = vmul.f32 %v7688, %v7688
  %v8130 = vmul.f32 %v7689, %v7689
  %v8131 = vmul.f32 %v7690, %v7690
  %v8132 = vmul.f32 %v7691, %v7691
  %v8133 = vmul.f32 %v7692, %v7692
  %v8134 = vmul.f32 %v7693, %v7693
  %v8135 = vmul.f32 %v7694, %v7694
  %v8136 = vmul.f32 %v7695, %v7695
  %v8137 = vmul.f32 %v7696, %v7696
  %v8138 = vmul.f32 %v7697, %v7697
  %v8139 = vmul.f32 %v7698, %v7698
  %v8140 = vmul.f32 %v7699, %v7699
  %v8141 = vmul.f32 %v7700, %v7700
  %v8142 = vmul.f32 %v7701, %v7701
  %v8143 = vmul.f32 %v7702, %v7702
  %v8144 = vmul.f32 %v7703, %v7703
  %v8145 = vmul.f32 %v7704, %v7704
  %v8146 = vmul.f32 %v7705, %v7705
  %v8147 = vmul.f32 %v7706, %v7706
  %v8148 = vmul.f32 %v7707, %v7707
  %v8149 = vmul.f32 %v7708, %v7708
  %v8150 = vmul.f32 %v7709, %v7709
  %v8151 = vmul.f32 %v7710, %v7710
  %v8152 = vmul.f32 %v7711, %v7711
  %v8153 = vmul.f32 %v7712, %v7712
  %v8154 = vmul.f32 %v7713, %v7713
  %v8155 = vmul.f32 %v7714, %v7714
  %v8156 = vmul.f32 %v7715, %v7715
  %v8157 = vmul.f32 %v7716, %v7716
  %v8158 = vmul.f32 %v7717, %v7717
  %v8159 = vmul.f32 %v7718, %v7718
  %v8160 = vmul.f32 %v7719, %v7719
  %v8161 = vmul.f32 %v7720, %v7720
  %v8162 = vmul.f32 %v7721, %v7721
  %v8163 = vmul.f32 %v7722, %v7722
  %v8164 = vmul.f32 %v7723, %v7723
  %v8165 = vmul.f32 %v7724, %v7724
  %v8166 = vmul.f32 %v7725, %v7725
  %v8167 = vmul.f32 %v7726, %v7726
  %v8168 = vmul.f32 %v7727, %v7727
  %v8169 = vmul.f32 %v7728, %v7728
  %v8170 = vmul.f32 %v7729, %v7729
  %v8171 = vmul.f32 %v7730, %v7730
  %v8172 = vmul.f32 %v7731, %v7731
  %v8173 = vmul.f32 %v7732, %v7732
  %v8174 = vmul.f32 %v7733, %v7733
  %v8175 = vmul.f32 %v7734, %v7734
  %v8176 = vmul.f32 %v7735, %v7735
  %v8177 = vmul.f32 %v7736, %v7736
  %v8178 = vmul.f32 %v7737, %v7737
  %v8179 = vmul.f32 %v7738, %v7738
  %v8180 = vmul.f32 %v7739, %v7739
  %v8181 = vmul.f32 %v7740, %v7740
  %v8182 = vmul.f32 %v7741, %v7741
  %v8183 = vmul.f32 %v7742, %v7742
  %v8184 = vmul.f32 %v7743, %v7743
  %v8185 = vmul.f32 %v7744, %v7744
  %v8186 = vmul.f32 %v7745, %v7745
  %v8187 = vmul.f32 %v7746, %v7746
  %v8188 = vmul.f32 %v7747, %v7747
  %v8189 = vmul.f32 %v7748, %v7748
  %v8190 = vmul.f32 %v7749, %v7749
  %v8191 = vmul.f32 %v7750, %v7750
  %v8192 = vmul.f32 %v7751, %v7751
  %v8193 = vmul.f32 %v7752, %v7752
  %v8194 = vmul.f32 %v7753, %v7753
  %v8195 = vmul.f32 %v7754, %v7754
  %v8196 = vmul.f32 %v7755, %v7755
  %v8197 = vmul.f32 %v7756, %v7756
  %v8198 = vmul.f32 %v7757, %v7757
  %v8199 = vmul.f32 %v7758, %v7758
  %v8200 = vmul.f32 %v7759, %v7759
  %v8201 = vmul.f32 %v7760, %v7760
  %v8202 = vmul.f32 %v7761, %v7761
  %v8203 = vmul.f32 %v7762, %v7762
  %v8204 = vmul.f32 %v7763, %v7763
  %v8205 = vmul.f32 %v7764, %v7764
  %v8206 = vmul.f32 %v7765, %v7765
  %v8207 = vmul.f32 %v7766, %v7766
  %v8208 = vmul.f32 %v7767, %v7767
  %v8209 = vmul.f32 %v7768, %v7768
  %v8210 = vmul.f32 %v7769, %v7769
  %v8211 = vmul.f32 %v7770, %v7770
  %v8212 = vmul.f32 %v7771, %v7771
  %v8213 = vmul.f32 %v7772, %v7772
  %v8214 = vmul.f32 %v7773, %v7773
  %v8215 = vmul.f32 %v7774, %v7774
  %v8216 = vmul.f32 %v7775, %v7775
  %v8217 = vmul.f32 %v7776, %v7776
  %v8218 = vmul.f32 %v7777, %v7777
  %v8219 = vmul.f32 %v7778, %v7778
  %v8220 = vmul.f32 %v7779, %v7779
  %v8221 = vmul.f32 %v7780, %v7780
  %v8222 = vmul.f32 %v7781, %v7781
  %v8223 = vmul.f32 %v7782, %v7782
  %v8224 = vmul.f32 %v7783, %v7783
  %v8225 = vmul.f32 %v7784, %v7784
  %v8226 = vmul.f32 %v7785, %v7785
  %v8227 = vmul.f32 %v7786, %v7786
  %v8228 = vmul.f32 %v7787, %v7787
  %v8229 = vmul.f32 %v7788, %v7788
  %v8230 = vmul.f32 %v7789, %v7789
  %v8231 = vmul.f32 %v7790, %v7790
  %v8232 = vmul.f32 %v7791, %v7791
  %v8233 = vmul.f32 %v7792, %v7792
  %v8234 = vmul.f32 %v7793, %v7793
  %v8235 = vmul.f32 %v7794, %v7794
  %v8236 = vmul.f32 %v7795, %v7795
  %v8237 = vmul.f32 %v7796, %v7796
  %v8238 = vmul.f32 %v7797, %v7797
  %v8239 = vmul.f32 %v7798, %v7798
  %v8240 = vmul.f32 %v7799, %v7799
  %v8241 = vmul.f32 %v7800, %v7800
  %v8242 = vmul.f32 %v7801, %v7801
  %v8243 = vmul.f32 %v7802, %v7802
  %v8244 = vmul.f32 %v7803, %v7803
  %v8245 = vmul.f32 %v7804, %v7804
  %v8246 = vmul.f32 %v7805, %v7805
  %v8247 = vmul.f32 %v7806, %v7806
  %v8248 = vmul.f32 %v7807, %v7807
  %v8249 = vmul.f32 %v7808, %v7808
  %v8250 = vmul.f32 %v7809, %v7809
  %v8251 = vmul.f32 %v7810, %v7810
  %v8252 = vmul.f32 %v7811, %v7811
  %v8253 = vmul.f32 %v7812, %v7812
  %v8254 = vmul.f32 %v7813, %v7813
  %v8255 = vmul.f32 %v7814, %v7814
  %v8256 = vmul.f32 %v7815, %v7815
  %v8257 = vmul.f32 %v7816, %v7816
  %v8258 = vmul.f32 %v7817, %v7817
  %v8259 = vmul.f32 %v7818, %v7818
  %v8260 = vmul.f32 %v7819, %v7819
  %v8261 = vmul.f32 %v7820, %v7820
  %v8262 = vmul.f32 %v7821, %v7821
  %v8263 = vmul.f32 %v7822, %v7822
  %v8264 = vmul.f32 %v7823, %v7823
  %v8265 = vmul.f32 %v7824, %v7824
  %v8266 = vmul.f32 %v7825, %v7825
  %v8267 = vmul.f32 %v7826, %v7826
  %v8268 = vmul.f32 %v7827, %v7827
  %v8269 = vmul.f32 %v7828, %v7828
  %v8270 = vmul.f32 %v7829, %v7829
  %v8271 = vmul.f32 %v7830, %v7830
  %v8272 = vmul.f32 %v7831, %v7831
  %v8273 = vmul.f32 %v7832, %v7832
  %v8274 = vmul.f32 %v7833, %v7833
  %v8275 = vmul.f32 %v7834, %v7834
  %v8276 = vmul.f32 %v7835, %v7835
  %v8277 = vmul.f32 %v7836, %v7836
  %v8278 = vmul.f32 %v7837, %v7837
  %v8279 = vmul.f32 %v7838, %v7838
  %v8280 = vmul.f32 %v7839, %v7839
  %v8281 = vmul.f32 %v7840, %v7840
  %v8282 = vmul.f32 %v7841, %v7841
  %v8283 = vmul.f32 %v7842, %v7842
  %v8284 = vmul.f32 %v7843, %v7843
  %v8285 = vmul.f32 %v7844, %v7844
  %v8286 = vmul.f32 %v7845, %v7845
  %v8287 = vmul.f32 %v7846, %v7846
  %v8288 = vmul.f32 %v7847, %v7847
  %v8289 = vmul.f32 %v7848, %v7848
  %v8290 = vmul.f32 %v7849, %v7849
  %v8291 = vmul.f32 %v7850, %v7850
  %v8292 = vadd.f32 %v7851, %v7858
  %v8293 = vadd.f32 %v7852, %v7859
  %v8294 = vadd.f32 %v7853, %v7860
  %v8295 = vadd.f32 %v7854, %v7861
  %v8296 = vadd.f32 %v7855, %v7862
  %v8297 = vadd.f32 %v7856, %v7863
  %v8298 = vadd.f32 %v7857, %v7864
  %v8299 = vadd.f32 %v8292, %v7865
  %v8300 = vadd.f32 %v8293, %v7866
  %v8301 = vadd.f32 %v8294, %v7867
  %v8302 = vadd.f32 %v8295, %v7868
  %v8303 = vadd.f32 %v8296, %v7869
  %v8304 = vadd.f32 %v8297, %v7870
  %v8305 = vadd.f32 %v8298, %v7871
  %v8306 = vadd.f32 %v8299, %v7872
  %v8307 = vadd.f32 %v8300, %v7873
  %v8308 = vadd.f32 %v8301, %v7874
  %v8309 = vadd.f32 %v8302, %v7875
  %v8310 = vadd.f32 %v8303, %v7876
  %v8311 = vadd.f32 %v8304, %v7877
  %v8312 = vadd.f32 %v8305, %v7878
  %v8313 = vadd.f32 %v8306, %v7879
  %v8314 = vadd.f32 %v8307, %v7880
  %v8315 = vadd.f32 %v8308, %v7881
  %v8316 = vadd.f32 %v8309, %v7882
  %v8317 = vadd.f32 %v8310, %v7883
  %v8318 = vadd.f32 %v8311, %v7884
  %v8319 = vadd.f32 %v8312, %v7885
  %v8320 = vadd.f32 %v8313, %v7886
  %v8321 = vadd.f32 %v8314, %v7887
  %v8322 = vadd.f32 %v8315, %v7888
  %v8323 = vadd.f32 %v8316, %v7889
  %v8324 = vadd.f32 %v8317, %v7890
  %v8325 = vadd.f32 %v8318, %v7891
  %v8326 = vadd.f32 %v8319, %v7892
  %v8327 = vadd.f32 %v8320, %v7893
  %v8328 = vadd.f32 %v8321, %v7894
  %v8329 = vadd.f32 %v8322, %v7895
  %v8330 = vadd.f32 %v8323, %v7896
  %v8331 = vadd.f32 %v8324, %v7897
  %v8332 = vadd.f32 %v8325, %v7898
  %v8333 = vadd.f32 %v8326, %v7899
  %v8334 = vadd.f32 %v8327, %v7900
  %v8335 = vadd.f32 %v8328, %v7901
  %v8336 = vadd.f32 %v8329, %v7902
  %v8337 = vadd.f32 %v8330, %v7903
  %v8338 = vadd.f32 %v8331, %v7904
  %v8339 = vadd.f32 %v8332, %v7905
  %v8340 = vadd.f32 %v8333, %v7906
  %v8341 = vadd.f32 %v8334, %v7907
  %v8342 = vadd.f32 %v8335, %v7908
  %v8343 = vadd.f32 %v8336, %v7909
  %v8344 = vadd.f32 %v8337, %v7910
  %v8345 = vadd.f32 %v8338, %v7911
  %v8346 = vadd.f32 %v8339, %v7912
  %v8347 = vadd.f32 %v8340, %v7913
  %v8348 = vadd.f32 %v8341, %v7914
  %v8349 = vadd.f32 %v8342, %v7915
  %v8350 = vadd.f32 %v8343, %v7916
  %v8351 = vadd.f32 %v8344, %v7917
  %v8352 = vadd.f32 %v8345, %v7918
  %v8353 = vadd.f32 %v8346, %v7919
  %v8354 = vadd.f32 %v8347, %v7920
  %v8355 = vadd.f32 %v8348, %v7921
  %v8356 = vadd.f32 %v8349, %v7922
  %v8357 = vadd.f32 %v8350, %v7923
  %v8358 = vadd.f32 %v8351, %v7924
  %v8359 = vadd.f32 %v8352, %v7925
  %v8360 = vadd.f32 %v8353, %v7926
  %v8361 = vadd.f32 %v8354, %v7927
  %v8362 = vadd.f32 %v8355, %v7928
  %v8363 = vadd.f32 %v8356, %v7929
  %v8364 = vadd.f32 %v8357, %v7930
  %v8365 = vadd.f32 %v8358, %v7931
  %v8366 = vadd.f32 %v8359, %v7932
  %v8367 = vadd.f32 %v8360, %v7933
  %v8368 = vadd.f32 %v8361, %v7934
  %v8369 = vadd.f32 %v8362, %v7935
  %v8370 = vadd.f32 %v8363, %v7936
  %v8371 = vadd.f32 %v8364, %v7937
  %v8372 = vadd.f32 %v8365, %v7938
  %v8373 = vadd.f32 %v8366, %v7939
  %v8374 = vadd.f32 %v8367, %v7940
  %v8375 = vadd.f32 %v8368, %v7941
  %v8376 = vadd.f32 %v8369, %v7942
  %v8377 = vadd.f32 %v8370, %v7943
  %v8378 = vadd.f32 %v8371, %v7944
  %v8379 = vadd.f32 %v8372, %v7945
  %v8380 = vadd.f32 %v8373, %v7946
  %v8381 = vadd.f32 %v8374, %v7947
  %v8382 = vadd.f32 %v8375, %v7948
  %v8383 = vadd.f32 %v8376, %v7949
  %v8384 = vadd.f32 %v8377, %v7950
  %v8385 = vadd.f32 %v8378, %v7951
  %v8386 = vadd.f32 %v8379, %v7952
  %v8387 = vadd.f32 %v8380, %v7953
  %v8388 = vadd.f32 %v8381, %v7954
  %v8389 = vadd.f32 %v8382, %v7955
  %v8390 = vadd.f32 %v8383, %v7956
  %v8391 = vadd.f32 %v8384, %v7957
  %v8392 = vadd.f32 %v8385, %v7958
  %v8393 = vadd.f32 %v8386, %v7959
  %v8394 = vadd.f32 %v8387, %v7960
  %v8395 = vadd.f32 %v8388, %v7961
  %v8396 = vadd.f32 %v8389, %v7962
  %v8397 = vadd.f32 %v8390, %v7963
  %v8398 = vadd.f32 %v8391, %v7964
  %v8399 = vadd.f32 %v8392, %v7965
  %v8400 = vadd.f32 %v8393, %v7966
  %v8401 = vadd.f32 %v8394, %v7967
  %v8402 = vadd.f32 %v8395, %v7968
  %v8403 = vadd.f32 %v8396, %v7969
  %v8404 = vadd.f32 %v8397, %v7970
  %v8405 = vadd.f32 %v8398, %v7971
  %v8406 = vadd.f32 %v8399, %v7972
  %v8407 = vadd.f32 %v8400, %v7973
  %v8408 = vadd.f32 %v8401, %v7974
  %v8409 = vadd.f32 %v8402, %v7975
  %v8410 = vadd.f32 %v8403, %v7976
  %v8411 = vadd.f32 %v8404, %v7977
  %v8412 = vadd.f32 %v8405, %v7978
  %v8413 = vadd.f32 %v8406, %v7979
  %v8414 = vadd.f32 %v8407, %v7980
  %v8415 = vadd.f32 %v8408, %v7981
  %v8416 = vadd.f32 %v8409, %v7982
  %v8417 = vadd.f32 %v8410, %v7983
  %v8418 = vadd.f32 %v8411, %v7984
  %v8419 = vadd.f32 %v8412, %v7985
  %v8420 = vadd.f32 %v8413, %v7986
  %v8421 = vadd.f32 %v8414, %v7987
  %v8422 = vadd.f32 %v8415, %v7988
  %v8423 = vadd.f32 %v8416, %v7989
  %v8424 = vadd.f32 %v8417, %v7990
  %v8425 = vadd.f32 %v8418, %v7991
  %v8426 = vadd.f32 %v8419, %v7992
  %v8427 = vadd.f32 %v8420, %v7993
  %v8428 = vadd.f32 %v8421, %v7994
  %v8429 = vadd.f32 %v8422, %v7995
  %v8430 = vadd.f32 %v8423, %v7996
  %v8431 = vadd.f32 %v8424, %v7997
  %v8432 = vadd.f32 %v8425, %v7998
  %v8433 = vadd.f32 %v8426, %v7999
  %v8434 = vadd.f32 %v8427, %v8000
  %v8435 = vadd.f32 %v8428, %v8001
  %v8436 = vadd.f32 %v8429, %v8002
  %v8437 = vadd.f32 %v8430, %v8003
  %v8438 = vadd.f32 %v8431, %v8004
  %v8439 = vadd.f32 %v8432, %v8005
  %v8440 = vadd.f32 %v8433, %v8006
  %v8441 = vadd.f32 %v8434, %v8007
  %v8442 = vadd.f32 %v8435, %v8008
  %v8443 = vadd.f32 %v8436, %v8009
  %v8444 = vadd.f32 %v8437, %v8010
  %v8445 = vadd.f32 %v8438, %v8011
  %v8446 = vadd.f32 %v8439, %v8012
  %v8447 = vadd.f32 %v8440, %v8013
  %v8448 = vadd.f32 %v8441, %v8014
  %v8449 = vadd.f32 %v8442, %v8015
  %v8450 = vadd.f32 %v8443, %v8016
  %v8451 = vadd.f32 %v8444, %v8017
  %v8452 = vadd.f32 %v8445, %v8018
  %v8453 = vadd.f32 %v8446, %v8019
  %v8454 = vadd.f32 %v8447, %v8020
  %v8455 = vadd.f32 %v8448, %v8021
  %v8456 = vadd.f32 %v8449, %v8022
  %v8457 = vadd.f32 %v8450, %v8023
  %v8458 = vadd.f32 %v8451, %v8024
  %v8459 = vadd.f32 %v8452, %v8025
  %v8460 = vadd.f32 %v8453, %v8026
  %v8461 = vadd.f32 %v8454, %v8027
  %v8462 = vadd.f32 %v8455, %v8028
  %v8463 = vadd.f32 %v8456, %v8029
  %v8464 = vadd.f32 %v8457, %v8030
  %v8465 = vadd.f32 %v8458, %v8031
  %v8466 = vadd.f32 %v8459, %v8032
  %v8467 = vadd.f32 %v8460, %v8033
  %v8468 = vadd.f32 %v8461, %v8034
  %v8469 = vadd.f32 %v8462, %v8035
  %v8470 = vadd.f32 %v8463, %v8036
  %v8471 = vadd.f32 %v8464, %v8037
  %v8472 = vadd.f32 %v8465, %v8038
  %v8473 = vadd.f32 %v8466, %v8039
  %v8474 = vadd.f32 %v8467, %v8040
  %v8475 = vadd.f32 %v8468, %v8041
  %v8476 = vadd.f32 %v8469, %v8042
  %v8477 = vadd.f32 %v8470, %v8043
  %v8478 = vadd.f32 %v8471, %v8044
  %v8479 = vadd.f32 %v8472, %v8045
  %v8480 = vadd.f32 %v8473, %v8046
  %v8481 = vadd.f32 %v8474, %v8047
  %v8482 = vadd.f32 %v8475, %v8048
  %v8483 = vadd.f32 %v8476, %v8049
  %v8484 = vadd.f32 %v8477, %v8050
  %v8485 = vadd.f32 %v8478, %v8051
  %v8486 = vadd.f32 %v8479, %v8052
  %v8487 = vadd.f32 %v8480, %v8053
  %v8488 = vadd.f32 %v8481, %v8054
  %v8489 = vadd.f32 %v8482, %v8055
  %v8490 = vadd.f32 %v8483, %v8056
  %v8491 = vadd.f32 %v8484, %v8057
  %v8492 = vadd.f32 %v8485, %v8058
  %v8493 = vadd.f32 %v8486, %v8059
  %v8494 = vadd.f32 %v8487, %v8060
  %v8495 = vadd.f32 %v8488, %v8061
  %v8496 = vadd.f32 %v8489, %v8062
  %v8497 = vadd.f32 %v8490, %v8063
  %v8498 = vadd.f32 %v8491, %v8064
  %v8499 = vadd.f32 %v8492, %v8065
  %v8500 = vadd.f32 %v8493, %v8066
  %v8501 = vadd.f32 %v8494, %v8067
  %v8502 = vadd.f32 %v8495, %v8068
  %v8503 = vadd.f32 %v8496, %v8069
  %v8504 = vadd.f32 %v8497, %v8070
  %v8505 = vadd.f32 %v8498, %v8071
  %v8506 = vadd.f32 %v8499, %v8072
  %v8507 = vadd.f32 %v8500, %v8073
  %v8508 = vadd.f32 %v8501, %v8074
  %v8509 = vadd.f32 %v8502, %v8075
  %v8510 = vadd.f32 %v8503, %v8076
  %v8511 = vadd.f32 %v8504, %v8077
  %v8512 = vadd.f32 %v8505, %v8078
  %v8513 = vadd.f32 %v8506, %v8079
  %v8514 = vadd.f32 %v8507, %v8080
  %v8515 = vadd.f32 %v8508, %v8081
  %v8516 = vadd.f32 %v8509, %v8082
  %v8517 = vadd.f32 %v8510, %v8083
  %v8518 = vadd.f32 %v8511, %v8084
  %v8519 = vadd.f32 %v8512, %v8085
  %v8520 = vadd.f32 %v8513, %v8086
  %v8521 = vadd.f32 %v8514, %v8087
  %v8522 = vadd.f32 %v8515, %v8088
  %v8523 = vadd.f32 %v8516, %v8089
  %v8524 = vadd.f32 %v8517, %v8090
  %v8525 = vadd.f32 %v8518, %v8091
  %v8526 = vadd.f32 %v8519, %v8092
  %v8527 = vadd.f32 %v8520, %v8093
  %v8528 = vadd.f32 %v8521, %v8094
  %v8529 = vadd.f32 %v8522, %v8095
  %v8530 = vadd.f32 %v8523, %v8096
  %v8531 = vadd.f32 %v8524, %v8097
  %v8532 = vadd.f32 %v8525, %v8098
  %v8533 = vadd.f32 %v8526, %v8099
  %v8534 = vadd.f32 %v8527, %v8100
  %v8535 = vadd.f32 %v8528, %v8101
  %v8536 = vadd.f32 %v8529, %v8102
  %v8537 = vadd.f32 %v8530, %v8103
  %v8538 = vadd.f32 %v8531, %v8104
  %v8539 = vadd.f32 %v8532, %v8105
  %v8540 = vadd.f32 %v8533, %v8106
  %v8541 = vadd.f32 %v8534, %v8107
  %v8542 = vadd.f32 %v8535, %v8108
  %v8543 = vadd.f32 %v8536, %v8109
  %v8544 = vadd.f32 %v8537, %v8110
  %v8545 = vadd.f32 %v8538, %v8111
  %v8546 = vadd.f32 %v8539, %v8112
  %v8547 = vadd.f32 %v8540, %v8113
  %v8548 = vadd.f32 %v8541, %v8114
  %v8549 = vadd.f32 %v8542, %v8115
  %v8550 = vadd.f32 %v8543, %v8116
  %v8551 = vadd.f32 %v8544, %v8117
  %v8552 = vadd.f32 %v8545, %v8118
  %v8553 = vadd.f32 %v8546, %v8119
  %v8554 = vadd.f32 %v8547, %v8120
  %v8555 = vadd.f32 %v8548, %v8121
  %v8556 = vadd.f32 %v8549, %v8122
  %v8557 = vadd.f32 %v8550, %v8123
  %v8558 = vadd.f32 %v8551, %v8124
  %v8559 = vadd.f32 %v8552, %v8125
  %v8560 = vadd.f32 %v8553, %v8126
  %v8561 = vadd.f32 %v8554, %v8127
  %v8562 = vadd.f32 %v8555, %v8128
  %v8563 = vadd.f32 %v8556, %v8129
  %v8564 = vadd.f32 %v8557, %v8130
  %v8565 = vadd.f32 %v8558, %v8131
  %v8566 = vadd.f32 %v8559, %v8132
  %v8567 = vadd.f32 %v8560, %v8133
  %v8568 = vadd.f32 %v8561, %v8134
  %v8569 = vadd.f32 %v8562, %v8135
  %v8570 = vadd.f32 %v8563, %v8136
  %v8571 = vadd.f32 %v8564, %v8137
  %v8572 = vadd.f32 %v8565, %v8138
  %v8573 = vadd.f32 %v8566, %v8139
  %v8574 = vadd.f32 %v8567, %v8140
  %v8575 = vadd.f32 %v8568, %v8141
  %v8576 = vadd.f32 %v8569, %v8142
  %v8577 = vadd.f32 %v8570, %v8143
  %v8578 = vadd.f32 %v8571, %v8144
  %v8579 = vadd.f32 %v8572, %v8145
  %v8580 = vadd.f32 %v8573, %v8146
  %v8581 = vadd.f32 %v8574, %v8147
  %v8582 = vadd.f32 %v8575, %v8148
  %v8583 = vadd.f32 %v8576, %v8149
  %v8584 = vadd.f32 %v8577, %v8150
  %v8585 = vadd.f32 %v8578, %v8151
  %v8586 = vadd.f32 %v8579, %v8152
  %v8587 = vadd.f32 %v8580, %v8153
  %v8588 = vadd.f32 %v8581, %v8154
  %v8589 = vadd.f32 %v8582, %v8155
  %v8590 = vadd.f32 %v8583, %v8156
  %v8591 = vadd.f32 %v8584, %v8157
  %v8592 = vadd.f32 %v8585, %v8158
  %v8593 = vadd.f32 %v8586, %v8159
  %v8594 = vadd.f32 %v8587, %v8160
  %v8595 = vadd.f32 %v8588, %v8161
  %v8596 = vadd.f32 %v8589, %v8162
  %v8597 = vadd.f32 %v8590, %v8163
  %v8598 = vadd.f32 %v8591, %v8164
  %v8599 = vadd.f32 %v8592, %v8165
  %v8600 = vadd.f32 %v8593, %v8166
  %v8601 = vadd.f32 %v8594, %v8167
  %v8602 = vadd.f32 %v8595, %v8168
  %v8603 = vadd.f32 %v8596, %v8169
  %v8604 = vadd.f32 %v8597, %v8170
  %v8605 = vadd.f32 %v8598, %v8171
  %v8606 = vadd.f32 %v8599, %v8172
  %v8607 = vadd.f32 %v8600, %v8173
  %v8608 = vadd.f32 %v8601, %v8174
  %v8609 = vadd.f32 %v8602, %v8175
  %v8610 = vadd.f32 %v8603, %v8176
  %v8611 = vadd.f32 %v8604, %v8177
  %v8612 = vadd.f32 %v8605, %v8178
  %v8613 = vadd.f32 %v8606, %v8179
  %v8614 = vadd.f32 %v8607, %v8180
  %v8615 = vadd.f32 %v8608, %v8181
  %v8616 = vadd.f32 %v8609, %v8182
  %v8617 = vadd.f32 %v8610, %v8183
  %v8618 = vadd.f32 %v8611, %v8184
  %v8619 = vadd.f32 %v8612, %v8185
  %v8620 = vadd.f32 %v8613, %v8186
  %v8621 = vadd.f32 %v8614, %v8187
  %v8622 = vadd.f32 %v8615, %v8188
  %v8623 = vadd.f32 %v8616, %v8189
  %v8624 = vadd.f32 %v8617, %v8190
  %v8625 = vadd.f32 %v8618, %v8191
  %v8626 = vadd.f32 %v8619, %v8192
  %v8627 = vadd.f32 %v8620, %v8193
  %v8628 = vadd.f32 %v8621, %v8194
  %v8629 = vadd.f32 %v8622, %v8195
  %v8630 = vadd.f32 %v8623, %v8196
  %v8631 = vadd.f32 %v8624, %v8197
  %v8632 = vadd.f32 %v8625, %v8198
  %v8633 = vadd.f32 %v8626, %v8199
  %v8634 = vadd.f32 %v8627, %v8200
  %v8635 = vadd.f32 %v8628, %v8201
  %v8636 = vadd.f32 %v8629, %v8202
  %v8637 = vadd.f32 %v8630, %v8203
  %v8638 = vadd.f32 %v8631, %v8204
  %v8639 = vadd.f32 %v8632, %v8205
  %v8640 = vadd.f32 %v8633, %v8206
  %v8641 = vadd.f32 %v8634, %v8207
  %v8642 = vadd.f32 %v8635, %v8208
  %v8643 = vadd.f32 %v8636, %v8209
  %v8644 = vadd.f32 %v8637, %v8210
  %v8645 = vadd.f32 %v8638, %v8211
  %v8646 = vadd.f32 %v8639, %v8212
  %v8647 = vadd.f32 %v8640, %v8213
  %v8648 = vadd.f32 %v8641, %v8214
  %v8649 = vadd.f32 %v8642, %v8215
  %v8650 = vadd.f32 %v8643, %v8216
  %v8651 = vadd.f32 %v8644, %v8217
  %v8652 = vadd.f32 %v8645, %v8218
  %v8653 = vadd.f32 %v8646, %v8219
  %v8654 = vadd.f32 %v8647, %v8220
  %v8655 = vadd.f32 %v8648, %v8221
  %v8656 = vadd.f32 %v8649, %v8222
  %v8657 = vadd.f32 %v8650, %v8223
  %v8658 = vadd.f32 %v8651, %v8224
  %v8659 = vadd.f32 %v8652, %v8225
  %v8660 = vadd.f32 %v8653, %v8226
  %v8661 = vadd.f32 %v8654, %v8227
  %v8662 = vadd.f32 %v8655, %v8228
  %v8663 = vadd.f32 %v8656, %v8229
  %v8664 = vadd.f32 %v8657, %v8230
  %v8665 = vadd.f32 %v8658, %v8231
  %v8666 = vadd.f32 %v8659, %v8232
  %v8667 = vadd.f32 %v8660, %v8233
  %v8668 = vadd.f32 %v8661, %v8234
  %v8669 = vadd.f32 %v8662, %v8235
  %v8670 = vadd.f32 %v8663, %v8236
  %v8671 = vadd.f32 %v8664, %v8237
  %v8672 = vadd.f32 %v8665, %v8238
  %v8673 = vadd.f32 %v8666, %v8239
  %v8674 = vadd.f32 %v8667, %v8240
  %v8675 = vadd.f32 %v8668, %v8241
  %v8676 = vadd.f32 %v8669, %v8242
  %v8677 = vadd.f32 %v8670, %v8243
  %v8678 = vadd.f32 %v8671, %v8244
  %v8679 = vadd.f32 %v8672, %v8245
  %v8680 = vadd.f32 %v8673, %v8246
  %v8681 = vadd.f32 %v8674, %v8247
  %v8682 = vadd.f32 %v8675, %v8248
  %v8683 = vadd.f32 %v8676, %v8249
  %v8684 = vadd.f32 %v8677, %v8250
  %v8685 = vadd.f32 %v8678, %v8251
  %v8686 = vadd.f32 %v8679, %v8252
  %v8687 = vadd.f32 %v8680, %v8253
  %v8688 = vadd.f32 %v8681, %v8254
  %v8689 = vadd.f32 %v8682, %v8255
  %v8690 = vadd.f32 %v8683, %v8256
  %v8691 = vadd.f32 %v8684, %v8257
  %v8692 = vadd.f32 %v8685, %v8258
  %v8693 = vadd.f32 %v8686, %v8259
  %v8694 = vadd.f32 %v8687, %v8260
  %v8695 = vadd.f32 %v8688, %v8261
  %v8696 = vadd.f32 %v8689, %v8262
  %v8697 = vadd.f32 %v8690, %v8263
  %v8698 = vadd.f32 %v8691, %v8264
  %v8699 = vadd.f32 %v8692, %v8265
  %v8700 = vadd.f32 %v8693, %v8266
  %v8701 = vadd.f32 %v8694, %v8267
  %v8702 = vadd.f32 %v8695, %v8268
  %v8703 = vadd.f32 %v8696, %v8269
  %v8704 = vadd.f32 %v8697, %v8270
  %v8705 = vadd.f32 %v8698, %v8271
  %v8706 = vadd.f32 %v8699, %v8272
  %v8707 = vadd.f32 %v8700, %v8273
  %v8708 = vadd.f32 %v8701, %v8274
  %v8709 = vadd.f32 %v8702, %v8275
  %v8710 = vadd.f32 %v8703, %v8276
  %v8711 = vadd.f32 %v8704, %v8277
  %v8712 = vadd.f32 %v8705, %v8278
  %v8713 = vadd.f32 %v8706, %v8279
  %v8714 = vadd.f32 %v8707, %v8280
  %v8715 = vadd.f32 %v8708, %v8281
  %v8716 = vadd.f32 %v8709, %v8282
  %v8717 = vadd.f32 %v8710, %v8283
  %v8718 = vadd.f32 %v8711, %v8284
  %v8719 = vadd.f32 %v8712, %v8285
  %v8720 = vadd.f32 %v8713, %v8286
  %v8721 = vadd.f32 %v8714, %v8287
  %v8722 = vadd.f32 %v8715, %v8288
  %v8723 = vadd.f32 %v8716, %v8289
  %v8724 = vadd.f32 %v8717, %v8290
  %v8725 = vadd.f32 %v8718, %v8291
  %8726 = vst [vmem:[%s8] sm:$0xff] %v8719
  %8727 = vst [vmem:[%s8 + $0x8] sm:$0xff] %v8720
  %8728 = vst [vmem:[%s8 + $0x10] sm:$0xff] %v8721
  %8729 = vst [vmem:[%s8 + $0x18] sm:$0xff] %v8722
  %8730 = vst [vmem:[%s8 + $0x20] sm:$0xff] %v8723
  %8731 = vst [vmem:[%s8 + $0x28] sm:$0xff] %v8724
  %8732 = vst.msk [vmem:[%s8 + $0x30] sm:$0xff] %vm1789, %v8725
  // Predicated region
  $region34: #{ae_forward.1} parent=0 // pred_check
    _
  $region35: #{ae_forward.1} parent=0 // pred_check_branch
    %8734 = sbr.rel (0) target = $region37
  $region36: #{ae_forward.1} parent=0 // pred_region
    _
  $region37: #{ae_forward.1} parent=0 // pred_fallthru
    _
  // Predicated region
  $region38: #{ae_forward.1} parent=0 // pred_check
    _
  $region39: #{ae_forward.1} parent=0 // pred_check_branch
    %8736 = sbr.rel (0) target = $region41
  $region40: #{ae_forward.1} parent=0 // pred_region
    _
  $region41: #{ae_forward.1} parent=0 // pred_fallthru
    _

</llo_original>
